<compile_context>
chip_gen: v7x
topology: tpu7x:2x2x1
jax: 0.10.0
libtpu: 0.0.40
codegen_flags: <defaults>
</compile_context>

<pallas_src>
import jax
import jax.numpy as jnp
from jax.experimental import pallas as pl
from jax.experimental.pallas import tpu as pltpu


def _round_up(x, m):
    return ((x + m - 1) // m) * m


# --------------------------------------------------------------------------
# Fused kernel builder (static shapes / dtypes captured by closure)
# --------------------------------------------------------------------------
def _build_kernel(*, T, Bt, H, Vp, E, K, CO, Lp, mxu_dtype, unroll):
    T_out = T - K + 1
    TB = T * Bt
    f32 = jnp.float32
    cdt = mxu_dtype          # MXU operand dtype (f32 or bf16)

    def recurrence(gxf, gxb, whf, whb, out, apply_relu):
        # whf / whb are already-loaded (H, 4H) recurrent weights (cdt).
        def step(t, carry):
            h_f, c_f, h_b, c_b = carry

            # ---- forward direction, timestep t ----
            rowf = pl.multiple_of(t * Bt, Bt)
            gf = gxf[pl.ds(rowf, Bt), :] + jnp.dot(
                h_f.astype(cdt), whf, preferred_element_type=f32)   # (Bt, 4H)
            pf = jax.nn.sigmoid(gf)   # full 128-lane sigmoid; g-cols prescaled by 2
            c_f = pf[:, H:2 * H] * c_f + pf[:, 0:H] * (2.0 * pf[:, 2 * H:3 * H] - 1.0)
            h_f = pf[:, 3 * H:4 * H] * jnp.tanh(c_f)

            # ---- backward direction, timestep T-1-t ----
            tb = T - 1 - t
            rowb = pl.multiple_of(tb * Bt, Bt)
            gb = gxb[pl.ds(rowb, Bt), :] + jnp.dot(
                h_b.astype(cdt), whb, preferred_element_type=f32)
            pb = jax.nn.sigmoid(gb)
            c_b = pb[:, H:2 * H] * c_b + pb[:, 0:H] * (2.0 * pb[:, 2 * H:3 * H] - 1.0)
            h_b = pb[:, 3 * H:4 * H] * jnp.tanh(c_b)

            hf_s = jnp.maximum(h_f, 0.0) if apply_relu else h_f
            hb_s = jnp.maximum(h_b, 0.0) if apply_relu else h_b
            # merged hidden buffer: fwd lanes [0:H], bwd lanes [H:2H]
            out[pl.ds(rowf, Bt), 0:H] = hf_s
            out[pl.ds(rowb, Bt), H:2 * H] = hb_s
            return h_f, c_f, h_b, c_b

        z = jnp.zeros((Bt, H), f32)
        jax.lax.fori_loop(0, T, step, (z, z, z, z), unroll=unroll)

    def kernel(idx_ref, tbl_ref, wih0_ref, wih1_ref, whh_ref, bl_ref,
               cw_ref, cb_ref, fw_ref, fb_ref, out_ref,
               gxf, gxb, h0, h1):
        # ---- embedding: one-hot (TB, Vp) @ table (Vp, E) on the MXU ----
        ids = idx_ref[...]                                           # (TB, 1) i32
        iota = jax.lax.broadcasted_iota(jnp.int32, (TB, Vp), 1)
        onehot = (iota == ids).astype(cdt)
        emb = jnp.dot(onehot, tbl_ref[...],
                      preferred_element_type=f32).astype(cdt)        # (TB, E)

        # ---- layer 0: hoisted input projection, then recurrence ----
        gxf[...] = jnp.dot(emb, wih0_ref[0], preferred_element_type=f32) + bl_ref[0]
        gxb[...] = jnp.dot(emb, wih0_ref[1], preferred_element_type=f32) + bl_ref[1]
        recurrence(gxf, gxb, whh_ref[0], whh_ref[1], h0, apply_relu=False)

        # ---- layer 1: single (TB,2H)@(2H,4H) projection per direction ----
        x0 = h0[...].astype(cdt)                                     # (TB, 2H)
        gxf[...] = jnp.dot(x0, wih1_ref[0], preferred_element_type=f32) + bl_ref[2]
        gxb[...] = jnp.dot(x0, wih1_ref[1], preferred_element_type=f32) + bl_ref[3]
        recurrence(gxf, gxb, whh_ref[2], whh_ref[3], h1, apply_relu=True)

        # ---- head: conv1d(k=3) as K shifted (T_out*Bt,2H)@(2H,CO) matmuls ----
        conv = None
        for k in range(K):                               # static, K = 3
            rk = h1[k * Bt:k * Bt + T_out * Bt, :].astype(cdt)       # relu'd
            term = jnp.dot(rk, cw_ref[k], preferred_element_type=f32)
            conv = term if conv is None else conv + term
        conv = conv + cb_ref[...]                        # (T_out*Bt, CO) f32

        # avg / max pool over the T_out positions
        avg = conv[0:Bt]
        mx = conv[0:Bt]
        for t in range(1, T_out):                        # static, small
            ct = conv[t * Bt:(t + 1) * Bt]
            avg = avg + ct
            mx = jnp.maximum(mx, ct)
        avg = avg * (1.0 / T_out)

        # fused FC: (Bt, 2*CO=128) @ (128, Lp) single matmul + log_softmax
        feat = jnp.concatenate([avg, mx], axis=1).astype(cdt)        # (Bt, 2CO)
        logits = jnp.dot(feat, fw_ref[...], preferred_element_type=f32) + fb_ref[...]
        m = jnp.max(logits, axis=1, keepdims=True)
        lse = m + jnp.log(jnp.sum(jnp.exp(logits - m), axis=1, keepdims=True))
        out_ref[...] = logits - lse

    return kernel


# --------------------------------------------------------------------------
# One-time parameter preparation (transposes, bias sums, g-gate prescale,
# vocab padding, weight stacking, FC fusion/padding, optional bf16 cast).
# --------------------------------------------------------------------------
def prepare_params(params, batch_tile=128, mxu_dtype=jnp.float32):
    f32 = jnp.float32
    w0 = params["lstm"]["l0_fwd"][0]
    H = w0.shape[0] // 4
    E = w0.shape[1]
    V = params["embed"].shape[0]
    Vp = _round_up(V, 128)
    tbl = jnp.zeros((Vp, E), f32).at[:V].set(
        params["embed"].astype(f32)).astype(mxu_dtype)

    # g-gate columns pre-scaled by 2 so tanh(x) = 2*sigmoid(2x)-1 can be
    # recovered from one full-width sigmoid inside the kernel (exact).
    scale = jnp.concatenate(
        [jnp.ones(2 * H), 2.0 * jnp.ones(H), jnp.ones(H)]).astype(f32)

    def prep_dir(p):
        w_ih, w_hh, b_ih, b_hh = p
        wih_t = (jnp.transpose(w_ih).astype(f32) * scale[None, :]).astype(mxu_dtype)
        whh_t = (jnp.transpose(w_hh).astype(f32) * scale[None, :]).astype(mxu_dtype)
        bias = ((b_ih + b_hh).astype(f32) * scale)[None, :]          # f32
        return wih_t, whh_t, bias

    l0f = prep_dir(params["lstm"]["l0_fwd"])
    l0b = prep_dir(params["lstm"]["l0_bwd"])
    l1f = prep_dir(params["lstm"]["l1_fwd"])
    l1b = prep_dir(params["lstm"]["l1_bwd"])

    wih0 = jnp.stack([l0f[0], l0b[0]])                   # (2, E, 4H)
    wih1 = jnp.stack([l1f[0], l1b[0]])                   # (2, 2H, 4H)
    whh = jnp.stack([l0f[1], l0b[1], l1f[1], l1b[1]])    # (4, H, 4H)
    bl = jnp.stack([l0f[2], l0b[2], l1f[2], l1b[2]])     # (4, 1, 4H) f32

    conv_w = params["conv_w"]                            # (CO, 2H, K)
    CO, _, K = conv_w.shape
    cw = jnp.transpose(conv_w, (2, 1, 0)).astype(mxu_dtype)   # (K, 2H, CO)
    cb = params["conv_b"].astype(f32)[None, :]                # (1, CO)

    fc_w = params["fc_w"]                                # (L, 2*CO)
    L = fc_w.shape[0]
    Lp = _round_up(L, 128)
    fw = jnp.zeros((2 * CO, Lp), f32).at[:, :L].set(
        jnp.transpose(fc_w).astype(f32)).astype(mxu_dtype)
    # pad bias lanes with -1e30 so padded logits never affect max/logsumexp
    fb = jnp.full((1, Lp), -1e30, f32).at[0, :L].set(params["fc_b"].astype(f32))

    return {
        "batch_tile": int(batch_tile), "mxu_dtype": mxu_dtype,
        "H": H, "E": E, "Vp": Vp, "K": K, "CO": CO, "L": L, "Lp": Lp,
        "tbl": tbl, "wih0": wih0, "wih1": wih1, "whh": whh, "bl": bl,
        "cw": cw, "cb": cb, "fw": fw, "fb": fb,
    }


# --------------------------------------------------------------------------
# Full model forward (single fused pallas_call, batch-tiled grid)
# --------------------------------------------------------------------------
def lstm_cnn_forward(prep, info):
    B, T = info.shape
    H, E, Vp = prep["H"], prep["E"], prep["Vp"]
    K, CO, L, Lp = prep["K"], prep["CO"], prep["L"], prep["Lp"]
    mxu_dtype = prep["mxu_dtype"]
    assert T >= K, "sequence length must be >= conv kernel size"

    # Batch tile: multiple of 8 sublanes, up to batch_tile rows per grid step.
    Bt = _round_up(min(prep["batch_tile"], _round_up(B, 8)), 8)
    nt = (B + Bt - 1) // Bt
    Bp_total = nt * Bt
    TBt = T * Bt

    # Pad the batch, then lay out per-tile time-major: within tile i,
    # row r = t*Bt + b_local (global batch index = i*Bt + b_local).
    info_p = jnp.zeros((Bp_total, T), jnp.int32).at[:B, :].set(info.astype(jnp.int32))
    idx_tm = info_p.reshape(nt, Bt, T).transpose(0, 2, 1).reshape(nt * TBt, 1)

    unroll = True if T <= 16 else 8
    kernel = _build_kernel(T=T, Bt=Bt, H=H, Vp=Vp, E=E, K=K, CO=CO, Lp=Lp,
                           mxu_dtype=mxu_dtype, unroll=unroll)

    weights = (prep["tbl"], prep["wih0"], prep["wih1"], prep["whh"], prep["bl"],
               prep["cw"], prep["cb"], prep["fw"], prep["fb"])

    def _full_spec(shape):
        n = len(shape)
        return pl.BlockSpec(shape, lambda i, _n=n: (0,) * _n)

    in_specs = [pl.BlockSpec((TBt, 1), lambda i: (i, 0))] + [
        _full_spec(w.shape) for w in weights]

    # Explicit VMEM budget: per-tile scratch + resident weights + (double-
    # buffered) tiled inputs/outputs, with 2x headroom; clamped so it is valid
    # on v5e/v6e (128 MiB) and v7x (64 MiB physical).
    scratch_bytes = 2 * TBt * 4 * H * 4 + 2 * TBt * 2 * H * 4
    weight_bytes = sum(int(w.size) * w.dtype.itemsize for w in weights)
    io_bytes = 2 * (TBt * 4 + Bt * Lp * 4)
    vmem_limit = int(min(max(2 * (scratch_bytes + weight_bytes + io_bytes),
                             32 << 20), 64 << 20))

    out = pl.pallas_call(
        kernel,
        out_shape=jax.ShapeDtypeStruct((Bp_total, Lp), jnp.float32),
        grid=(nt,),
        in_specs=in_specs,
        out_specs=pl.BlockSpec((Bt, Lp), lambda i: (i, 0)),
        scratch_shapes=[
            pltpu.VMEM((TBt, 4 * H), jnp.float32),   # gates-x fwd (reused per layer)
            pltpu.VMEM((TBt, 4 * H), jnp.float32),   # gates-x bwd (reused per layer)
            pltpu.VMEM((TBt, 2 * H), jnp.float32),   # layer-0 hidden (fwd|bwd lanes)
            pltpu.VMEM((TBt, 2 * H), jnp.float32),   # relu(layer-1 hidden) (fwd|bwd)
        ],
        compiler_params=pltpu.CompilerParams(
            dimension_semantics=("parallel",),       # batch tiles shard across cores
            vmem_limit_bytes=vmem_limit),
    )(idx_tm, *weights)
    return out[:B, :L]


# --------------------------------------------------------------------------
# Pure-JAX reference (for in-script correctness check)
# --------------------------------------------------------------------------
def _lstm_scan(x_tbi, w_ih, w_hh, b_ih, b_hh):
    B = x_tbi.shape[1]
    H = w_hh.shape[1]

    def step(carry, x_t):
        h, c = carry
        gates = x_t @ w_ih.T + h @ w_hh.T + b_ih + b_hh
        i_g, f_g, g_g, o_g = jnp.split(gates, 4, axis=1)
        i_g = jax.nn.sigmoid(i_g)
        f_g = jax.nn.sigmoid(f_g)
        g_g = jnp.tanh(g_g)
        o_g = jax.nn.sigmoid(o_g)
        c_new = f_g * c + i_g * g_g
        h_new = o_g * jnp.tanh(c_new)
        return (h_new, c_new), h_new

    init = (jnp.zeros((B, H), jnp.float32), jnp.zeros((B, H), jnp.float32))
    _, hs = jax.lax.scan(step, init, x_tbi)
    return hs


def reference_forward(params, info):
    B, T = info.shape
    emb = params["embed"][info]                          # (B, T, E)
    x = emb.transpose(1, 0, 2)                           # (T, B, E)

    def bil(xx, pf, pb):
        hf = _lstm_scan(xx, *pf)
        hb = _lstm_scan(xx[::-1], *pb)[::-1]
        return jnp.concatenate([hf, hb], axis=-1)

    l0 = bil(x, params["lstm"]["l0_fwd"], params["lstm"]["l0_bwd"])
    l1 = bil(l0, params["lstm"]["l1_fwd"], params["lstm"]["l1_bwd"])
    rep = jnp.maximum(l1, 0.0)                           # (T, B, 2H)

    K = params["conv_w"].shape[2]
    T_out = T - K + 1
    cw = jnp.transpose(params["conv_w"], (2, 1, 0))      # (K, 2H, 64)
    conv = jnp.stack(
        [sum(rep[t + k] @ cw[k] for k in range(K)) + params["conv_b"]
         for t in range(T_out)], axis=0)                 # (T_out, B, 64)
    avg = conv.mean(axis=0)
    mx = conv.max(axis=0)
    feat = jnp.concatenate([avg, mx], axis=1)
    logits = feat @ params["fc_w"].T + params["fc_b"]
    return jax.nn.log_softmax(logits, axis=1)


# --------------------------------------------------------------------------
# Deterministic parameter init (shapes match the PyTorch module)
# --------------------------------------------------------------------------
def init_params(key, vocab, embed, hidden, labels):
    keys = iter(jax.random.split(key, 32))

    def u(shape, scale=0.1):
        return jax.random.uniform(next(keys), shape, jnp.float32, -1.0, 1.0) * scale

    def lstm_dir(input_size):
        return (u((4 * hidden, input_size)), u((4 * hidden, hidden)),
                u((4 * hidden,)), u((4 * hidden,)))

    return {
        "embed": u((vocab, embed), 1.0),                 # weights_matrix
        "lstm": {
            "l0_fwd": lstm_dir(embed),
            "l0_bwd": lstm_dir(embed),
            "l1_fwd": lstm_dir(2 * hidden),
            "l1_bwd": lstm_dir(2 * hidden),
        },
        "conv_w": u((64, 2 * hidden, 3)),
        "conv_b": u((64,)),
        "fc_w": u((labels, 128)),
        "fc_b": u((labels,)),
    }


if __name__ == "__main__":
    B, T, E, H, V, L = 2, 8, 16, 32, 50, 5
    key = jax.random.PRNGKey(0)
    kp, kx = jax.random.split(key)
    params = init_params(kp, V, E, H, L)
    info = jax.random.randint(kx, (B, T), 0, V, dtype=jnp.int32)

    ref = jax.block_until_ready(reference_forward(params, info))

    # --- f32 MXU operands (generation-agnostic), strict check ---
    prep32 = prepare_params(params, batch_tile=128, mxu_dtype=jnp.float32)
    out32 = jax.block_until_ready(lstm_cnn_forward(prep32, info))
    assert out32.shape == (B, L), out32.shape
    assert jnp.allclose(jnp.sum(jnp.exp(out32), axis=1), 1.0, atol=1e-3)
    assert jnp.allclose(out32, ref, atol=1e-2, rtol=1e-2), (
        f"max abs diff {float(jnp.max(jnp.abs(out32 - ref)))}")

    # --- bf16 MXU operands (fast path on v6e/v7x), looser check ---
    prep16 = prepare_params(params, batch_tile=128, mxu_dtype=jnp.bfloat16)
    out16 = jax.block_until_ready(lstm_cnn_forward(prep16, info))
    assert out16.shape == (B, L), out16.shape
    assert jnp.allclose(jnp.sum(jnp.exp(out16), axis=1), 1.0, atol=1e-2)
    assert jnp.allclose(out16, ref, atol=1e-1, rtol=1e-1), (
        f"max abs diff {float(jnp.max(jnp.abs(out16 - ref)))}")

    print("KERNEL_OK")
</pallas_src>

<mosaic_0001>
module attributes {stable_mosaic.version = 11 : i64} {
  func.func @kernel(%arg0: i32, %arg1: memref<64x1xi32, #tpu.memory_space<vmem>>, %arg2: memref<128x16xf32, #tpu.memory_space<vmem>>, %arg3: memref<2x16x128xf32, #tpu.memory_space<vmem>>, %arg4: memref<2x64x128xf32, #tpu.memory_space<vmem>>, %arg5: memref<4x32x128xf32, #tpu.memory_space<vmem>>, %arg6: memref<4x1x128xf32, #tpu.memory_space<vmem>>, %arg7: memref<3x64x64xf32, #tpu.memory_space<vmem>>, %arg8: memref<1x64xf32, #tpu.memory_space<vmem>>, %arg9: memref<128x128xf32, #tpu.memory_space<vmem>>, %arg10: memref<1x128xf32, #tpu.memory_space<vmem>>, %arg11: memref<8x128xf32, #tpu.memory_space<vmem>>, %arg12: memref<64x128xf32, #tpu.memory_space<vmem>>, %arg13: memref<64x128xf32, #tpu.memory_space<vmem>>, %arg14: memref<64x64xf32, #tpu.memory_space<vmem>>, %arg15: memref<64x64xf32, #tpu.memory_space<vmem>>) attributes {dimension_semantics = [#tpu.dimension_semantics<parallel>], iteration_bounds = array<i64: 1>, scalar_prefetch = 0 : i64, scratch_operands = 4 : i64, tpu.core_type = #tpu.core_type<tc>, window_params = [{transform_indices = @transform_0, window_bounds = array<i64: 64, 1>}, {pipeline_mode = #tpu.pipeline_mode<synchronous>, transform_indices = @transform_1, window_bounds = array<i64: 128, 16>}, {pipeline_mode = #tpu.pipeline_mode<synchronous>, transform_indices = @transform_2, window_bounds = array<i64: 2, 16, 128>}, {pipeline_mode = #tpu.pipeline_mode<synchronous>, transform_indices = @transform_3, window_bounds = array<i64: 2, 64, 128>}, {pipeline_mode = #tpu.pipeline_mode<synchronous>, transform_indices = @transform_4, window_bounds = array<i64: 4, 32, 128>}, {pipeline_mode = #tpu.pipeline_mode<synchronous>, transform_indices = @transform_5, window_bounds = array<i64: 4, 1, 128>}, {pipeline_mode = #tpu.pipeline_mode<synchronous>, transform_indices = @transform_6, window_bounds = array<i64: 3, 64, 64>}, {pipeline_mode = #tpu.pipeline_mode<synchronous>, transform_indices = @transform_7, window_bounds = array<i64: 1, 64>}, {pipeline_mode = #tpu.pipeline_mode<synchronous>, transform_indices = @transform_8, window_bounds = array<i64: 128, 128>}, {pipeline_mode = #tpu.pipeline_mode<synchronous>, transform_indices = @transform_9, window_bounds = array<i64: 1, 128>}, {transform_indices = @transform_10, window_bounds = array<i64: 8, 128>}]} {
    %c0 = arith.constant 0 : index
    %c0_0 = arith.constant 0 : index
    %0 = vector.load %arg1[%c0, %c0_0] : memref<64x1xi32, #tpu.memory_space<vmem>>, vector<64x1xi32>
    %1 = tpu.iota {dimensions = array<i32: 1>} : vector<64x128xi32>
    %2 = vector.broadcast %0 : vector<64x1xi32> to vector<64x128xi32>
    %3 = arith.cmpi eq, %1, %2 : vector<64x128xi32>
    %4 = arith.extui %3 : vector<64x128xi1> to vector<64x128xi32>
    %5 = arith.sitofp %4 : vector<64x128xi32> to vector<64x128xf32>
    %c0_1 = arith.constant 0 : index
    %c0_2 = arith.constant 0 : index
    %6 = vector.load %arg2[%c0_1, %c0_2] : memref<128x16xf32, #tpu.memory_space<vmem>>, vector<128x16xf32>
    %cst = arith.constant dense<0.000000e+00> : vector<64x16xf32>
    %7 = tpu.matmul %5, %6, %cst {dimension_numbers = #tpu.dot_dimension_numbers<[1], [0], [0], [1], [0, 0, 1, 1], [], []>} : vector<64x128xf32>, vector<128x16xf32>, vector<64x16xf32> -> vector<64x16xf32>
    %c0_3 = arith.constant 0 : index
    %c0_4 = arith.constant 0 : index
    %c0_5 = arith.constant 0 : index
    %8 = vector.load %arg3[%c0_3, %c0_4, %c0_5] : memref<2x16x128xf32, #tpu.memory_space<vmem>>, vector<1x16x128xf32>
    %9 = vector.shape_cast %8 : vector<1x16x128xf32> to vector<16x128xf32>
    %cst_6 = arith.constant dense<0.000000e+00> : vector<64x128xf32>
    %10 = tpu.matmul %7, %9, %cst_6 {dimension_numbers = #tpu.dot_dimension_numbers<[1], [0], [0], [1], [0, 0, 1, 1], [], []>} : vector<64x16xf32>, vector<16x128xf32>, vector<64x128xf32> -> vector<64x128xf32>
    %c0_7 = arith.constant 0 : index
    %c0_8 = arith.constant 0 : index
    %c0_9 = arith.constant 0 : index
    %11 = vector.load %arg6[%c0_7, %c0_8, %c0_9] : memref<4x1x128xf32, #tpu.memory_space<vmem>>, vector<1x1x128xf32>
    %12 = vector.shape_cast %11 : vector<1x1x128xf32> to vector<1x128xf32>
    %13 = vector.broadcast %12 : vector<1x128xf32> to vector<64x128xf32>
    %14 = arith.addf %10, %13 : vector<64x128xf32>
    %c0_10 = arith.constant 0 : index
    %c0_11 = arith.constant 0 : index
    %15 = vector.load %arg12[%c0_10, %c0_11] : memref<64x128xf32, #tpu.memory_space<vmem>>, vector<64x128xf32>
    tpu.vector_store %arg12[%c0_10, %c0_11], %14 {strides = array<i32>} : memref<64x128xf32, #tpu.memory_space<vmem>>, vector<64x128xf32>,
    %c1 = arith.constant 1 : index
    %c0_12 = arith.constant 0 : index
    %c0_13 = arith.constant 0 : index
    %16 = vector.load %arg3[%c1, %c0_12, %c0_13] : memref<2x16x128xf32, #tpu.memory_space<vmem>>, vector<1x16x128xf32>
    %17 = vector.shape_cast %16 : vector<1x16x128xf32> to vector<16x128xf32>
    %cst_14 = arith.constant dense<0.000000e+00> : vector<64x128xf32>
    %18 = tpu.matmul %7, %17, %cst_14 {dimension_numbers = #tpu.dot_dimension_numbers<[1], [0], [0], [1], [0, 0, 1, 1], [], []>} : vector<64x16xf32>, vector<16x128xf32>, vector<64x128xf32> -> vector<64x128xf32>
    %c1_15 = arith.constant 1 : index
    %c0_16 = arith.constant 0 : index
    %c0_17 = arith.constant 0 : index
    %19 = vector.load %arg6[%c1_15, %c0_16, %c0_17] : memref<4x1x128xf32, #tpu.memory_space<vmem>>, vector<1x1x128xf32>
    %20 = vector.shape_cast %19 : vector<1x1x128xf32> to vector<1x128xf32>
    %21 = vector.broadcast %20 : vector<1x128xf32> to vector<64x128xf32>
    %22 = arith.addf %18, %21 : vector<64x128xf32>
    %c0_18 = arith.constant 0 : index
    %c0_19 = arith.constant 0 : index
    %23 = vector.load %arg13[%c0_18, %c0_19] : memref<64x128xf32, #tpu.memory_space<vmem>>, vector<64x128xf32>
    tpu.vector_store %arg13[%c0_18, %c0_19], %22 {strides = array<i32>} : memref<64x128xf32, #tpu.memory_space<vmem>>, vector<64x128xf32>,
    %c0_20 = arith.constant 0 : index
    %c0_21 = arith.constant 0 : index
    %c0_22 = arith.constant 0 : index
    %24 = vector.load %arg5[%c0_20, %c0_21, %c0_22] : memref<4x32x128xf32, #tpu.memory_space<vmem>>, vector<1x32x128xf32>
    %25 = vector.shape_cast %24 : vector<1x32x128xf32> to vector<32x128xf32>
    %c1_23 = arith.constant 1 : index
    %c0_24 = arith.constant 0 : index
    %c0_25 = arith.constant 0 : index
    %26 = vector.load %arg5[%c1_23, %c0_24, %c0_25] : memref<4x32x128xf32, #tpu.memory_space<vmem>>, vector<1x32x128xf32>
    %27 = vector.shape_cast %26 : vector<1x32x128xf32> to vector<32x128xf32>
    %cst_26 = arith.constant 0.000000e+00 : f32
    %28 = vector.broadcast %cst_26 : f32 to vector<8x32xf32>
    %c0_i32 = arith.constant 0 : i32
    %c8_i32 = arith.constant 8 : i32
    %29 = arith.muli %c0_i32, %c8_i32 : i32
    %30 = tpu.assume_multiple %29, 8 : i32
    %31 = arith.index_cast %30 : i32 to index
    %c0_27 = arith.constant 0 : index
    %32 = vector.load %arg12[%31, %c0_27] : memref<64x128xf32, #tpu.memory_space<vmem>>, vector<8x128xf32>
    %cst_28 = arith.constant dense<0.000000e+00> : vector<8x128xf32>
    %33 = tpu.matmul %28, %25, %cst_28 {dimension_numbers = #tpu.dot_dimension_numbers<[1], [0], [0], [1], [0, 0, 1, 1], [], []>} : vector<8x32xf32>, vector<32x128xf32>, vector<8x128xf32> -> vector<8x128xf32>
    %34 = arith.addf %32, %33 : vector<8x128xf32>
    %35 = arith.negf %34 : vector<8x128xf32>
    %36 = math.exp %35 : vector<8x128xf32>
    %cst_29 = arith.constant 1.000000e+00 : f32
    %37 = vector.broadcast %cst_29 : f32 to vector<8x128xf32>
    %38 = arith.addf %37, %36 : vector<8x128xf32>
    %39 = arith.divf %37, %38 : vector<8x128xf32>
    %40 = vector.extract_strided_slice %39 {offsets = [0, 32], sizes = [8, 32], strides = [1, 1]} : vector<8x128xf32> to vector<8x32xf32>
    %41 = arith.mulf %40, %28 : vector<8x32xf32>
    %42 = vector.extract_strided_slice %39 {offsets = [0, 0], sizes = [8, 32], strides = [1, 1]} : vector<8x128xf32> to vector<8x32xf32>
    %43 = vector.extract_strided_slice %39 {offsets = [0, 64], sizes = [8, 32], strides = [1, 1]} : vector<8x128xf32> to vector<8x32xf32>
    %cst_30 = arith.constant 2.000000e+00 : f32
    %44 = vector.broadcast %cst_30 : f32 to vector<8x32xf32>
    %45 = arith.mulf %44, %43 : vector<8x32xf32>
    %cst_31 = arith.constant 1.000000e+00 : f32
    %46 = vector.broadcast %cst_31 : f32 to vector<8x32xf32>
    %47 = arith.subf %45, %46 : vector<8x32xf32>
    %48 = arith.mulf %42, %47 : vector<8x32xf32>
    %49 = arith.addf %41, %48 : vector<8x32xf32>
    %50 = vector.extract_strided_slice %39 {offsets = [0, 96], sizes = [8, 32], strides = [1, 1]} : vector<8x128xf32> to vector<8x32xf32>
    %51 = math.tanh %49 : vector<8x32xf32>
    %52 = arith.mulf %50, %51 : vector<8x32xf32>
    %c7_i32 = arith.constant 7 : i32
    %53 = arith.subi %c7_i32, %c0_i32 : i32
    %c8_i32_32 = arith.constant 8 : i32
    %54 = arith.muli %53, %c8_i32_32 : i32
    %55 = tpu.assume_multiple %54, 8 : i32
    %56 = arith.index_cast %55 : i32 to index
    %c0_33 = arith.constant 0 : index
    %57 = vector.load %arg13[%56, %c0_33] : memref<64x128xf32, #tpu.memory_space<vmem>>, vector<8x128xf32>
    %cst_34 = arith.constant dense<0.000000e+00> : vector<8x128xf32>
    %58 = tpu.matmul %28, %27, %cst_34 {dimension_numbers = #tpu.dot_dimension_numbers<[1], [0], [0], [1], [0, 0, 1, 1], [], []>} : vector<8x32xf32>, vector<32x128xf32>, vector<8x128xf32> -> vector<8x128xf32>
    %59 = arith.addf %57, %58 : vector<8x128xf32>
    %60 = arith.negf %59 : vector<8x128xf32>
    %61 = math.exp %60 : vector<8x128xf32>
    %cst_35 = arith.constant 1.000000e+00 : f32
    %62 = vector.broadcast %cst_35 : f32 to vector<8x128xf32>
    %63 = arith.addf %62, %61 : vector<8x128xf32>
    %64 = arith.divf %62, %63 : vector<8x128xf32>
    %65 = vector.extract_strided_slice %64 {offsets = [0, 32], sizes = [8, 32], strides = [1, 1]} : vector<8x128xf32> to vector<8x32xf32>
    %66 = arith.mulf %65, %28 : vector<8x32xf32>
    %67 = vector.extract_strided_slice %64 {offsets = [0, 0], sizes = [8, 32], strides = [1, 1]} : vector<8x128xf32> to vector<8x32xf32>
    %68 = vector.extract_strided_slice %64 {offsets = [0, 64], sizes = [8, 32], strides = [1, 1]} : vector<8x128xf32> to vector<8x32xf32>
    %cst_36 = arith.constant 2.000000e+00 : f32
    %69 = vector.broadcast %cst_36 : f32 to vector<8x32xf32>
    %70 = arith.mulf %69, %68 : vector<8x32xf32>
    %cst_37 = arith.constant 1.000000e+00 : f32
    %71 = vector.broadcast %cst_37 : f32 to vector<8x32xf32>
    %72 = arith.subf %70, %71 : vector<8x32xf32>
    %73 = arith.mulf %67, %72 : vector<8x32xf32>
    %74 = arith.addf %66, %73 : vector<8x32xf32>
    %75 = vector.extract_strided_slice %64 {offsets = [0, 96], sizes = [8, 32], strides = [1, 1]} : vector<8x128xf32> to vector<8x32xf32>
    %76 = math.tanh %74 : vector<8x32xf32>
    %77 = arith.mulf %75, %76 : vector<8x32xf32>
    %78 = arith.index_cast %30 : i32 to index
    %c0_38 = arith.constant 0 : index
    %79 = vector.load %arg14[%78, %c0_38] : memref<64x64xf32, #tpu.memory_space<vmem>>, vector<8x32xf32>
    tpu.vector_store %arg14[%78, %c0_38], %52 {strides = array<i32>} : memref<64x64xf32, #tpu.memory_space<vmem>>, vector<8x32xf32>,
    %80 = arith.index_cast %55 : i32 to index
    %c32 = arith.constant 32 : index
    %81 = vector.load %arg14[%80, %c32] : memref<64x64xf32, #tpu.memory_space<vmem>>, vector<8x32xf32>
    tpu.vector_store %arg14[%80, %c32], %77 {strides = array<i32>} : memref<64x64xf32, #tpu.memory_space<vmem>>, vector<8x32xf32>,
    %c1_i32 = arith.constant 1 : i32
    %c8_i32_39 = arith.constant 8 : i32
    %82 = arith.muli %c1_i32, %c8_i32_39 : i32
    %83 = tpu.assume_multiple %82, 8 : i32
    %84 = arith.index_cast %83 : i32 to index
    %c0_40 = arith.constant 0 : index
    %85 = vector.load %arg12[%84, %c0_40] : memref<64x128xf32, #tpu.memory_space<vmem>>, vector<8x128xf32>
    %cst_41 = arith.constant dense<0.000000e+00> : vector<8x128xf32>
    %86 = tpu.matmul %52, %25, %cst_41 {dimension_numbers = #tpu.dot_dimension_numbers<[1], [0], [0], [1], [0, 0, 1, 1], [], []>} : vector<8x32xf32>, vector<32x128xf32>, vector<8x128xf32> -> vector<8x128xf32>
    %87 = arith.addf %85, %86 : vector<8x128xf32>
    %88 = arith.negf %87 : vector<8x128xf32>
    %89 = math.exp %88 : vector<8x128xf32>
    %cst_42 = arith.constant 1.000000e+00 : f32
    %90 = vector.broadcast %cst_42 : f32 to vector<8x128xf32>
    %91 = arith.addf %90, %89 : vector<8x128xf32>
    %92 = arith.divf %90, %91 : vector<8x128xf32>
    %93 = vector.extract_strided_slice %92 {offsets = [0, 32], sizes = [8, 32], strides = [1, 1]} : vector<8x128xf32> to vector<8x32xf32>
    %94 = arith.mulf %93, %49 : vector<8x32xf32>
    %95 = vector.extract_strided_slice %92 {offsets = [0, 0], sizes = [8, 32], strides = [1, 1]} : vector<8x128xf32> to vector<8x32xf32>
    %96 = vector.extract_strided_slice %92 {offsets = [0, 64], sizes = [8, 32], strides = [1, 1]} : vector<8x128xf32> to vector<8x32xf32>
    %cst_43 = arith.constant 2.000000e+00 : f32
    %97 = vector.broadcast %cst_43 : f32 to vector<8x32xf32>
    %98 = arith.mulf %97, %96 : vector<8x32xf32>
    %cst_44 = arith.constant 1.000000e+00 : f32
    %99 = vector.broadcast %cst_44 : f32 to vector<8x32xf32>
    %100 = arith.subf %98, %99 : vector<8x32xf32>
    %101 = arith.mulf %95, %100 : vector<8x32xf32>
    %102 = arith.addf %94, %101 : vector<8x32xf32>
    %103 = vector.extract_strided_slice %92 {offsets = [0, 96], sizes = [8, 32], strides = [1, 1]} : vector<8x128xf32> to vector<8x32xf32>
    %104 = math.tanh %102 : vector<8x32xf32>
    %105 = arith.mulf %103, %104 : vector<8x32xf32>
    %c7_i32_45 = arith.constant 7 : i32
    %106 = arith.subi %c7_i32_45, %c1_i32 : i32
    %c8_i32_46 = arith.constant 8 : i32
    %107 = arith.muli %106, %c8_i32_46 : i32
    %108 = tpu.assume_multiple %107, 8 : i32
    %109 = arith.index_cast %108 : i32 to index
    %c0_47 = arith.constant 0 : index
    %110 = vector.load %arg13[%109, %c0_47] : memref<64x128xf32, #tpu.memory_space<vmem>>, vector<8x128xf32>
    %cst_48 = arith.constant dense<0.000000e+00> : vector<8x128xf32>
    %111 = tpu.matmul %77, %27, %cst_48 {dimension_numbers = #tpu.dot_dimension_numbers<[1], [0], [0], [1], [0, 0, 1, 1], [], []>} : vector<8x32xf32>, vector<32x128xf32>, vector<8x128xf32> -> vector<8x128xf32>
    %112 = arith.addf %110, %111 : vector<8x128xf32>
    %113 = arith.negf %112 : vector<8x128xf32>
    %114 = math.exp %113 : vector<8x128xf32>
    %cst_49 = arith.constant 1.000000e+00 : f32
    %115 = vector.broadcast %cst_49 : f32 to vector<8x128xf32>
    %116 = arith.addf %115, %114 : vector<8x128xf32>
    %117 = arith.divf %115, %116 : vector<8x128xf32>
    %118 = vector.extract_strided_slice %117 {offsets = [0, 32], sizes = [8, 32], strides = [1, 1]} : vector<8x128xf32> to vector<8x32xf32>
    %119 = arith.mulf %118, %74 : vector<8x32xf32>
    %120 = vector.extract_strided_slice %117 {offsets = [0, 0], sizes = [8, 32], strides = [1, 1]} : vector<8x128xf32> to vector<8x32xf32>
    %121 = vector.extract_strided_slice %117 {offsets = [0, 64], sizes = [8, 32], strides = [1, 1]} : vector<8x128xf32> to vector<8x32xf32>
    %cst_50 = arith.constant 2.000000e+00 : f32
    %122 = vector.broadcast %cst_50 : f32 to vector<8x32xf32>
    %123 = arith.mulf %122, %121 : vector<8x32xf32>
    %cst_51 = arith.constant 1.000000e+00 : f32
    %124 = vector.broadcast %cst_51 : f32 to vector<8x32xf32>
    %125 = arith.subf %123, %124 : vector<8x32xf32>
    %126 = arith.mulf %120, %125 : vector<8x32xf32>
    %127 = arith.addf %119, %126 : vector<8x32xf32>
    %128 = vector.extract_strided_slice %117 {offsets = [0, 96], sizes = [8, 32], strides = [1, 1]} : vector<8x128xf32> to vector<8x32xf32>
    %129 = math.tanh %127 : vector<8x32xf32>
    %130 = arith.mulf %128, %129 : vector<8x32xf32>
    %131 = arith.index_cast %83 : i32 to index
    %c0_52 = arith.constant 0 : index
    %132 = vector.load %arg14[%131, %c0_52] : memref<64x64xf32, #tpu.memory_space<vmem>>, vector<8x32xf32>
    tpu.vector_store %arg14[%131, %c0_52], %105 {strides = array<i32>} : memref<64x64xf32, #tpu.memory_space<vmem>>, vector<8x32xf32>,
    %133 = arith.index_cast %108 : i32 to index
    %c32_53 = arith.constant 32 : index
    %134 = vector.load %arg14[%133, %c32_53] : memref<64x64xf32, #tpu.memory_space<vmem>>, vector<8x32xf32>
    tpu.vector_store %arg14[%133, %c32_53], %130 {strides = array<i32>} : memref<64x64xf32, #tpu.memory_space<vmem>>, vector<8x32xf32>,
    %c2_i32 = arith.constant 2 : i32
    %c8_i32_54 = arith.constant 8 : i32
    %135 = arith.muli %c2_i32, %c8_i32_54 : i32
    %136 = tpu.assume_multiple %135, 8 : i32
    %137 = arith.index_cast %136 : i32 to index
    %c0_55 = arith.constant 0 : index
    %138 = vector.load %arg12[%137, %c0_55] : memref<64x128xf32, #tpu.memory_space<vmem>>, vector<8x128xf32>
    %cst_56 = arith.constant dense<0.000000e+00> : vector<8x128xf32>
    %139 = tpu.matmul %105, %25, %cst_56 {dimension_numbers = #tpu.dot_dimension_numbers<[1], [0], [0], [1], [0, 0, 1, 1], [], []>} : vector<8x32xf32>, vector<32x128xf32>, vector<8x128xf32> -> vector<8x128xf32>
    %140 = arith.addf %138, %139 : vector<8x128xf32>
    %141 = arith.negf %140 : vector<8x128xf32>
    %142 = math.exp %141 : vector<8x128xf32>
    %cst_57 = arith.constant 1.000000e+00 : f32
    %143 = vector.broadcast %cst_57 : f32 to vector<8x128xf32>
    %144 = arith.addf %143, %142 : vector<8x128xf32>
    %145 = arith.divf %143, %144 : vector<8x128xf32>
    %146 = vector.extract_strided_slice %145 {offsets = [0, 32], sizes = [8, 32], strides = [1, 1]} : vector<8x128xf32> to vector<8x32xf32>
    %147 = arith.mulf %146, %102 : vector<8x32xf32>
    %148 = vector.extract_strided_slice %145 {offsets = [0, 0], sizes = [8, 32], strides = [1, 1]} : vector<8x128xf32> to vector<8x32xf32>
    %149 = vector.extract_strided_slice %145 {offsets = [0, 64], sizes = [8, 32], strides = [1, 1]} : vector<8x128xf32> to vector<8x32xf32>
    %cst_58 = arith.constant 2.000000e+00 : f32
    %150 = vector.broadcast %cst_58 : f32 to vector<8x32xf32>
    %151 = arith.mulf %150, %149 : vector<8x32xf32>
    %cst_59 = arith.constant 1.000000e+00 : f32
    %152 = vector.broadcast %cst_59 : f32 to vector<8x32xf32>
    %153 = arith.subf %151, %152 : vector<8x32xf32>
    %154 = arith.mulf %148, %153 : vector<8x32xf32>
    %155 = arith.addf %147, %154 : vector<8x32xf32>
    %156 = vector.extract_strided_slice %145 {offsets = [0, 96], sizes = [8, 32], strides = [1, 1]} : vector<8x128xf32> to vector<8x32xf32>
    %157 = math.tanh %155 : vector<8x32xf32>
    %158 = arith.mulf %156, %157 : vector<8x32xf32>
    %c7_i32_60 = arith.constant 7 : i32
    %159 = arith.subi %c7_i32_60, %c2_i32 : i32
    %c8_i32_61 = arith.constant 8 : i32
    %160 = arith.muli %159, %c8_i32_61 : i32
    %161 = tpu.assume_multiple %160, 8 : i32
    %162 = arith.index_cast %161 : i32 to index
    %c0_62 = arith.constant 0 : index
    %163 = vector.load %arg13[%162, %c0_62] : memref<64x128xf32, #tpu.memory_space<vmem>>, vector<8x128xf32>
    %cst_63 = arith.constant dense<0.000000e+00> : vector<8x128xf32>
    %164 = tpu.matmul %130, %27, %cst_63 {dimension_numbers = #tpu.dot_dimension_numbers<[1], [0], [0], [1], [0, 0, 1, 1], [], []>} : vector<8x32xf32>, vector<32x128xf32>, vector<8x128xf32> -> vector<8x128xf32>
    %165 = arith.addf %163, %164 : vector<8x128xf32>
    %166 = arith.negf %165 : vector<8x128xf32>
    %167 = math.exp %166 : vector<8x128xf32>
    %cst_64 = arith.constant 1.000000e+00 : f32
    %168 = vector.broadcast %cst_64 : f32 to vector<8x128xf32>
    %169 = arith.addf %168, %167 : vector<8x128xf32>
    %170 = arith.divf %168, %169 : vector<8x128xf32>
    %171 = vector.extract_strided_slice %170 {offsets = [0, 32], sizes = [8, 32], strides = [1, 1]} : vector<8x128xf32> to vector<8x32xf32>
    %172 = arith.mulf %171, %127 : vector<8x32xf32>
    %173 = vector.extract_strided_slice %170 {offsets = [0, 0], sizes = [8, 32], strides = [1, 1]} : vector<8x128xf32> to vector<8x32xf32>
    %174 = vector.extract_strided_slice %170 {offsets = [0, 64], sizes = [8, 32], strides = [1, 1]} : vector<8x128xf32> to vector<8x32xf32>
    %cst_65 = arith.constant 2.000000e+00 : f32
    %175 = vector.broadcast %cst_65 : f32 to vector<8x32xf32>
    %176 = arith.mulf %175, %174 : vector<8x32xf32>
    %cst_66 = arith.constant 1.000000e+00 : f32
    %177 = vector.broadcast %cst_66 : f32 to vector<8x32xf32>
    %178 = arith.subf %176, %177 : vector<8x32xf32>
    %179 = arith.mulf %173, %178 : vector<8x32xf32>
    %180 = arith.addf %172, %179 : vector<8x32xf32>
    %181 = vector.extract_strided_slice %170 {offsets = [0, 96], sizes = [8, 32], strides = [1, 1]} : vector<8x128xf32> to vector<8x32xf32>
    %182 = math.tanh %180 : vector<8x32xf32>
    %183 = arith.mulf %181, %182 : vector<8x32xf32>
    %184 = arith.index_cast %136 : i32 to index
    %c0_67 = arith.constant 0 : index
    %185 = vector.load %arg14[%184, %c0_67] : memref<64x64xf32, #tpu.memory_space<vmem>>, vector<8x32xf32>
    tpu.vector_store %arg14[%184, %c0_67], %158 {strides = array<i32>} : memref<64x64xf32, #tpu.memory_space<vmem>>, vector<8x32xf32>,
    %186 = arith.index_cast %161 : i32 to index
    %c32_68 = arith.constant 32 : index
    %187 = vector.load %arg14[%186, %c32_68] : memref<64x64xf32, #tpu.memory_space<vmem>>, vector<8x32xf32>
    tpu.vector_store %arg14[%186, %c32_68], %183 {strides = array<i32>} : memref<64x64xf32, #tpu.memory_space<vmem>>, vector<8x32xf32>,
    %c3_i32 = arith.constant 3 : i32
    %c8_i32_69 = arith.constant 8 : i32
    %188 = arith.muli %c3_i32, %c8_i32_69 : i32
    %189 = tpu.assume_multiple %188, 8 : i32
    %190 = arith.index_cast %189 : i32 to index
    %c0_70 = arith.constant 0 : index
    %191 = vector.load %arg12[%190, %c0_70] : memref<64x128xf32, #tpu.memory_space<vmem>>, vector<8x128xf32>
    %cst_71 = arith.constant dense<0.000000e+00> : vector<8x128xf32>
    %192 = tpu.matmul %158, %25, %cst_71 {dimension_numbers = #tpu.dot_dimension_numbers<[1], [0], [0], [1], [0, 0, 1, 1], [], []>} : vector<8x32xf32>, vector<32x128xf32>, vector<8x128xf32> -> vector<8x128xf32>
    %193 = arith.addf %191, %192 : vector<8x128xf32>
    %194 = arith.negf %193 : vector<8x128xf32>
    %195 = math.exp %194 : vector<8x128xf32>
    %cst_72 = arith.constant 1.000000e+00 : f32
    %196 = vector.broadcast %cst_72 : f32 to vector<8x128xf32>
    %197 = arith.addf %196, %195 : vector<8x128xf32>
    %198 = arith.divf %196, %197 : vector<8x128xf32>
    %199 = vector.extract_strided_slice %198 {offsets = [0, 32], sizes = [8, 32], strides = [1, 1]} : vector<8x128xf32> to vector<8x32xf32>
    %200 = arith.mulf %199, %155 : vector<8x32xf32>
    %201 = vector.extract_strided_slice %198 {offsets = [0, 0], sizes = [8, 32], strides = [1, 1]} : vector<8x128xf32> to vector<8x32xf32>
    %202 = vector.extract_strided_slice %198 {offsets = [0, 64], sizes = [8, 32], strides = [1, 1]} : vector<8x128xf32> to vector<8x32xf32>
    %cst_73 = arith.constant 2.000000e+00 : f32
    %203 = vector.broadcast %cst_73 : f32 to vector<8x32xf32>
    %204 = arith.mulf %203, %202 : vector<8x32xf32>
    %cst_74 = arith.constant 1.000000e+00 : f32
    %205 = vector.broadcast %cst_74 : f32 to vector<8x32xf32>
    %206 = arith.subf %204, %205 : vector<8x32xf32>
    %207 = arith.mulf %201, %206 : vector<8x32xf32>
    %208 = arith.addf %200, %207 : vector<8x32xf32>
    %209 = vector.extract_strided_slice %198 {offsets = [0, 96], sizes = [8, 32], strides = [1, 1]} : vector<8x128xf32> to vector<8x32xf32>
    %210 = math.tanh %208 : vector<8x32xf32>
    %211 = arith.mulf %209, %210 : vector<8x32xf32>
    %c7_i32_75 = arith.constant 7 : i32
    %212 = arith.subi %c7_i32_75, %c3_i32 : i32
    %c8_i32_76 = arith.constant 8 : i32
    %213 = arith.muli %212, %c8_i32_76 : i32
    %214 = tpu.assume_multiple %213, 8 : i32
    %215 = arith.index_cast %214 : i32 to index
    %c0_77 = arith.constant 0 : index
    %216 = vector.load %arg13[%215, %c0_77] : memref<64x128xf32, #tpu.memory_space<vmem>>, vector<8x128xf32>
    %cst_78 = arith.constant dense<0.000000e+00> : vector<8x128xf32>
    %217 = tpu.matmul %183, %27, %cst_78 {dimension_numbers = #tpu.dot_dimension_numbers<[1], [0], [0], [1], [0, 0, 1, 1], [], []>} : vector<8x32xf32>, vector<32x128xf32>, vector<8x128xf32> -> vector<8x128xf32>
    %218 = arith.addf %216, %217 : vector<8x128xf32>
    %219 = arith.negf %218 : vector<8x128xf32>
    %220 = math.exp %219 : vector<8x128xf32>
    %cst_79 = arith.constant 1.000000e+00 : f32
    %221 = vector.broadcast %cst_79 : f32 to vector<8x128xf32>
    %222 = arith.addf %221, %220 : vector<8x128xf32>
    %223 = arith.divf %221, %222 : vector<8x128xf32>
    %224 = vector.extract_strided_slice %223 {offsets = [0, 32], sizes = [8, 32], strides = [1, 1]} : vector<8x128xf32> to vector<8x32xf32>
    %225 = arith.mulf %224, %180 : vector<8x32xf32>
    %226 = vector.extract_strided_slice %223 {offsets = [0, 0], sizes = [8, 32], strides = [1, 1]} : vector<8x128xf32> to vector<8x32xf32>
    %227 = vector.extract_strided_slice %223 {offsets = [0, 64], sizes = [8, 32], strides = [1, 1]} : vector<8x128xf32> to vector<8x32xf32>
    %cst_80 = arith.constant 2.000000e+00 : f32
    %228 = vector.broadcast %cst_80 : f32 to vector<8x32xf32>
    %229 = arith.mulf %228, %227 : vector<8x32xf32>
    %cst_81 = arith.constant 1.000000e+00 : f32
    %230 = vector.broadcast %cst_81 : f32 to vector<8x32xf32>
    %231 = arith.subf %229, %230 : vector<8x32xf32>
    %232 = arith.mulf %226, %231 : vector<8x32xf32>
    %233 = arith.addf %225, %232 : vector<8x32xf32>
    %234 = vector.extract_strided_slice %223 {offsets = [0, 96], sizes = [8, 32], strides = [1, 1]} : vector<8x128xf32> to vector<8x32xf32>
    %235 = math.tanh %233 : vector<8x32xf32>
    %236 = arith.mulf %234, %235 : vector<8x32xf32>
    %237 = arith.index_cast %189 : i32 to index
    %c0_82 = arith.constant 0 : index
    %238 = vector.load %arg14[%237, %c0_82] : memref<64x64xf32, #tpu.memory_space<vmem>>, vector<8x32xf32>
    tpu.vector_store %arg14[%237, %c0_82], %211 {strides = array<i32>} : memref<64x64xf32, #tpu.memory_space<vmem>>, vector<8x32xf32>,
    %239 = arith.index_cast %214 : i32 to index
    %c32_83 = arith.constant 32 : index
    %240 = vector.load %arg14[%239, %c32_83] : memref<64x64xf32, #tpu.memory_space<vmem>>, vector<8x32xf32>
    tpu.vector_store %arg14[%239, %c32_83], %236 {strides = array<i32>} : memref<64x64xf32, #tpu.memory_space<vmem>>, vector<8x32xf32>,
    %c4_i32 = arith.constant 4 : i32
    %c8_i32_84 = arith.constant 8 : i32
    %241 = arith.muli %c4_i32, %c8_i32_84 : i32
    %242 = tpu.assume_multiple %241, 8 : i32
    %243 = arith.index_cast %242 : i32 to index
    %c0_85 = arith.constant 0 : index
    %244 = vector.load %arg12[%243, %c0_85] : memref<64x128xf32, #tpu.memory_space<vmem>>, vector<8x128xf32>
    %cst_86 = arith.constant dense<0.000000e+00> : vector<8x128xf32>
    %245 = tpu.matmul %211, %25, %cst_86 {dimension_numbers = #tpu.dot_dimension_numbers<[1], [0], [0], [1], [0, 0, 1, 1], [], []>} : vector<8x32xf32>, vector<32x128xf32>, vector<8x128xf32> -> vector<8x128xf32>
    %246 = arith.addf %244, %245 : vector<8x128xf32>
    %247 = arith.negf %246 : vector<8x128xf32>
    %248 = math.exp %247 : vector<8x128xf32>
    %cst_87 = arith.constant 1.000000e+00 : f32
    %249 = vector.broadcast %cst_87 : f32 to vector<8x128xf32>
    %250 = arith.addf %249, %248 : vector<8x128xf32>
    %251 = arith.divf %249, %250 : vector<8x128xf32>
    %252 = vector.extract_strided_slice %251 {offsets = [0, 32], sizes = [8, 32], strides = [1, 1]} : vector<8x128xf32> to vector<8x32xf32>
    %253 = arith.mulf %252, %208 : vector<8x32xf32>
    %254 = vector.extract_strided_slice %251 {offsets = [0, 0], sizes = [8, 32], strides = [1, 1]} : vector<8x128xf32> to vector<8x32xf32>
    %255 = vector.extract_strided_slice %251 {offsets = [0, 64], sizes = [8, 32], strides = [1, 1]} : vector<8x128xf32> to vector<8x32xf32>
    %cst_88 = arith.constant 2.000000e+00 : f32
    %256 = vector.broadcast %cst_88 : f32 to vector<8x32xf32>
    %257 = arith.mulf %256, %255 : vector<8x32xf32>
    %cst_89 = arith.constant 1.000000e+00 : f32
    %258 = vector.broadcast %cst_89 : f32 to vector<8x32xf32>
    %259 = arith.subf %257, %258 : vector<8x32xf32>
    %260 = arith.mulf %254, %259 : vector<8x32xf32>
    %261 = arith.addf %253, %260 : vector<8x32xf32>
    %262 = vector.extract_strided_slice %251 {offsets = [0, 96], sizes = [8, 32], strides = [1, 1]} : vector<8x128xf32> to vector<8x32xf32>
    %263 = math.tanh %261 : vector<8x32xf32>
    %264 = arith.mulf %262, %263 : vector<8x32xf32>
    %c7_i32_90 = arith.constant 7 : i32
    %265 = arith.subi %c7_i32_90, %c4_i32 : i32
    %c8_i32_91 = arith.constant 8 : i32
    %266 = arith.muli %265, %c8_i32_91 : i32
    %267 = tpu.assume_multiple %266, 8 : i32
    %268 = arith.index_cast %267 : i32 to index
    %c0_92 = arith.constant 0 : index
    %269 = vector.load %arg13[%268, %c0_92] : memref<64x128xf32, #tpu.memory_space<vmem>>, vector<8x128xf32>
    %cst_93 = arith.constant dense<0.000000e+00> : vector<8x128xf32>
    %270 = tpu.matmul %236, %27, %cst_93 {dimension_numbers = #tpu.dot_dimension_numbers<[1], [0], [0], [1], [0, 0, 1, 1], [], []>} : vector<8x32xf32>, vector<32x128xf32>, vector<8x128xf32> -> vector<8x128xf32>
    %271 = arith.addf %269, %270 : vector<8x128xf32>
    %272 = arith.negf %271 : vector<8x128xf32>
    %273 = math.exp %272 : vector<8x128xf32>
    %cst_94 = arith.constant 1.000000e+00 : f32
    %274 = vector.broadcast %cst_94 : f32 to vector<8x128xf32>
    %275 = arith.addf %274, %273 : vector<8x128xf32>
    %276 = arith.divf %274, %275 : vector<8x128xf32>
    %277 = vector.extract_strided_slice %276 {offsets = [0, 32], sizes = [8, 32], strides = [1, 1]} : vector<8x128xf32> to vector<8x32xf32>
    %278 = arith.mulf %277, %233 : vector<8x32xf32>
    %279 = vector.extract_strided_slice %276 {offsets = [0, 0], sizes = [8, 32], strides = [1, 1]} : vector<8x128xf32> to vector<8x32xf32>
    %280 = vector.extract_strided_slice %276 {offsets = [0, 64], sizes = [8, 32], strides = [1, 1]} : vector<8x128xf32> to vector<8x32xf32>
    %cst_95 = arith.constant 2.000000e+00 : f32
    %281 = vector.broadcast %cst_95 : f32 to vector<8x32xf32>
    %282 = arith.mulf %281, %280 : vector<8x32xf32>
    %cst_96 = arith.constant 1.000000e+00 : f32
    %283 = vector.broadcast %cst_96 : f32 to vector<8x32xf32>
    %284 = arith.subf %282, %283 : vector<8x32xf32>
    %285 = arith.mulf %279, %284 : vector<8x32xf32>
    %286 = arith.addf %278, %285 : vector<8x32xf32>
    %287 = vector.extract_strided_slice %276 {offsets = [0, 96], sizes = [8, 32], strides = [1, 1]} : vector<8x128xf32> to vector<8x32xf32>
    %288 = math.tanh %286 : vector<8x32xf32>
    %289 = arith.mulf %287, %288 : vector<8x32xf32>
    %290 = arith.index_cast %242 : i32 to index
    %c0_97 = arith.constant 0 : index
    %291 = vector.load %arg14[%290, %c0_97] : memref<64x64xf32, #tpu.memory_space<vmem>>, vector<8x32xf32>
    tpu.vector_store %arg14[%290, %c0_97], %264 {strides = array<i32>} : memref<64x64xf32, #tpu.memory_space<vmem>>, vector<8x32xf32>,
    %292 = arith.index_cast %267 : i32 to index
    %c32_98 = arith.constant 32 : index
    %293 = vector.load %arg14[%292, %c32_98] : memref<64x64xf32, #tpu.memory_space<vmem>>, vector<8x32xf32>
    tpu.vector_store %arg14[%292, %c32_98], %289 {strides = array<i32>} : memref<64x64xf32, #tpu.memory_space<vmem>>, vector<8x32xf32>,
    %c5_i32 = arith.constant 5 : i32
    %c8_i32_99 = arith.constant 8 : i32
    %294 = arith.muli %c5_i32, %c8_i32_99 : i32
    %295 = tpu.assume_multiple %294, 8 : i32
    %296 = arith.index_cast %295 : i32 to index
    %c0_100 = arith.constant 0 : index
    %297 = vector.load %arg12[%296, %c0_100] : memref<64x128xf32, #tpu.memory_space<vmem>>, vector<8x128xf32>
    %cst_101 = arith.constant dense<0.000000e+00> : vector<8x128xf32>
    %298 = tpu.matmul %264, %25, %cst_101 {dimension_numbers = #tpu.dot_dimension_numbers<[1], [0], [0], [1], [0, 0, 1, 1], [], []>} : vector<8x32xf32>, vector<32x128xf32>, vector<8x128xf32> -> vector<8x128xf32>
    %299 = arith.addf %297, %298 : vector<8x128xf32>
    %300 = arith.negf %299 : vector<8x128xf32>
    %301 = math.exp %300 : vector<8x128xf32>
    %cst_102 = arith.constant 1.000000e+00 : f32
    %302 = vector.broadcast %cst_102 : f32 to vector<8x128xf32>
    %303 = arith.addf %302, %301 : vector<8x128xf32>
    %304 = arith.divf %302, %303 : vector<8x128xf32>
    %305 = vector.extract_strided_slice %304 {offsets = [0, 32], sizes = [8, 32], strides = [1, 1]} : vector<8x128xf32> to vector<8x32xf32>
    %306 = arith.mulf %305, %261 : vector<8x32xf32>
    %307 = vector.extract_strided_slice %304 {offsets = [0, 0], sizes = [8, 32], strides = [1, 1]} : vector<8x128xf32> to vector<8x32xf32>
    %308 = vector.extract_strided_slice %304 {offsets = [0, 64], sizes = [8, 32], strides = [1, 1]} : vector<8x128xf32> to vector<8x32xf32>
    %cst_103 = arith.constant 2.000000e+00 : f32
    %309 = vector.broadcast %cst_103 : f32 to vector<8x32xf32>
    %310 = arith.mulf %309, %308 : vector<8x32xf32>
    %cst_104 = arith.constant 1.000000e+00 : f32
    %311 = vector.broadcast %cst_104 : f32 to vector<8x32xf32>
    %312 = arith.subf %310, %311 : vector<8x32xf32>
    %313 = arith.mulf %307, %312 : vector<8x32xf32>
    %314 = arith.addf %306, %313 : vector<8x32xf32>
    %315 = vector.extract_strided_slice %304 {offsets = [0, 96], sizes = [8, 32], strides = [1, 1]} : vector<8x128xf32> to vector<8x32xf32>
    %316 = math.tanh %314 : vector<8x32xf32>
    %317 = arith.mulf %315, %316 : vector<8x32xf32>
    %c7_i32_105 = arith.constant 7 : i32
    %318 = arith.subi %c7_i32_105, %c5_i32 : i32
    %c8_i32_106 = arith.constant 8 : i32
    %319 = arith.muli %318, %c8_i32_106 : i32
    %320 = tpu.assume_multiple %319, 8 : i32
    %321 = arith.index_cast %320 : i32 to index
    %c0_107 = arith.constant 0 : index
    %322 = vector.load %arg13[%321, %c0_107] : memref<64x128xf32, #tpu.memory_space<vmem>>, vector<8x128xf32>
    %cst_108 = arith.constant dense<0.000000e+00> : vector<8x128xf32>
    %323 = tpu.matmul %289, %27, %cst_108 {dimension_numbers = #tpu.dot_dimension_numbers<[1], [0], [0], [1], [0, 0, 1, 1], [], []>} : vector<8x32xf32>, vector<32x128xf32>, vector<8x128xf32> -> vector<8x128xf32>
    %324 = arith.addf %322, %323 : vector<8x128xf32>
    %325 = arith.negf %324 : vector<8x128xf32>
    %326 = math.exp %325 : vector<8x128xf32>
    %cst_109 = arith.constant 1.000000e+00 : f32
    %327 = vector.broadcast %cst_109 : f32 to vector<8x128xf32>
    %328 = arith.addf %327, %326 : vector<8x128xf32>
    %329 = arith.divf %327, %328 : vector<8x128xf32>
    %330 = vector.extract_strided_slice %329 {offsets = [0, 32], sizes = [8, 32], strides = [1, 1]} : vector<8x128xf32> to vector<8x32xf32>
    %331 = arith.mulf %330, %286 : vector<8x32xf32>
    %332 = vector.extract_strided_slice %329 {offsets = [0, 0], sizes = [8, 32], strides = [1, 1]} : vector<8x128xf32> to vector<8x32xf32>
    %333 = vector.extract_strided_slice %329 {offsets = [0, 64], sizes = [8, 32], strides = [1, 1]} : vector<8x128xf32> to vector<8x32xf32>
    %cst_110 = arith.constant 2.000000e+00 : f32
    %334 = vector.broadcast %cst_110 : f32 to vector<8x32xf32>
    %335 = arith.mulf %334, %333 : vector<8x32xf32>
    %cst_111 = arith.constant 1.000000e+00 : f32
    %336 = vector.broadcast %cst_111 : f32 to vector<8x32xf32>
    %337 = arith.subf %335, %336 : vector<8x32xf32>
    %338 = arith.mulf %332, %337 : vector<8x32xf32>
    %339 = arith.addf %331, %338 : vector<8x32xf32>
    %340 = vector.extract_strided_slice %329 {offsets = [0, 96], sizes = [8, 32], strides = [1, 1]} : vector<8x128xf32> to vector<8x32xf32>
    %341 = math.tanh %339 : vector<8x32xf32>
    %342 = arith.mulf %340, %341 : vector<8x32xf32>
    %343 = arith.index_cast %295 : i32 to index
    %c0_112 = arith.constant 0 : index
    %344 = vector.load %arg14[%343, %c0_112] : memref<64x64xf32, #tpu.memory_space<vmem>>, vector<8x32xf32>
    tpu.vector_store %arg14[%343, %c0_112], %317 {strides = array<i32>} : memref<64x64xf32, #tpu.memory_space<vmem>>, vector<8x32xf32>,
    %345 = arith.index_cast %320 : i32 to index
    %c32_113 = arith.constant 32 : index
    %346 = vector.load %arg14[%345, %c32_113] : memref<64x64xf32, #tpu.memory_space<vmem>>, vector<8x32xf32>
    tpu.vector_store %arg14[%345, %c32_113], %342 {strides = array<i32>} : memref<64x64xf32, #tpu.memory_space<vmem>>, vector<8x32xf32>,
    %c6_i32 = arith.constant 6 : i32
    %c8_i32_114 = arith.constant 8 : i32
    %347 = arith.muli %c6_i32, %c8_i32_114 : i32
    %348 = tpu.assume_multiple %347, 8 : i32
    %349 = arith.index_cast %348 : i32 to index
    %c0_115 = arith.constant 0 : index
    %350 = vector.load %arg12[%349, %c0_115] : memref<64x128xf32, #tpu.memory_space<vmem>>, vector<8x128xf32>
    %cst_116 = arith.constant dense<0.000000e+00> : vector<8x128xf32>
    %351 = tpu.matmul %317, %25, %cst_116 {dimension_numbers = #tpu.dot_dimension_numbers<[1], [0], [0], [1], [0, 0, 1, 1], [], []>} : vector<8x32xf32>, vector<32x128xf32>, vector<8x128xf32> -> vector<8x128xf32>
    %352 = arith.addf %350, %351 : vector<8x128xf32>
    %353 = arith.negf %352 : vector<8x128xf32>
    %354 = math.exp %353 : vector<8x128xf32>
    %cst_117 = arith.constant 1.000000e+00 : f32
    %355 = vector.broadcast %cst_117 : f32 to vector<8x128xf32>
    %356 = arith.addf %355, %354 : vector<8x128xf32>
    %357 = arith.divf %355, %356 : vector<8x128xf32>
    %358 = vector.extract_strided_slice %357 {offsets = [0, 32], sizes = [8, 32], strides = [1, 1]} : vector<8x128xf32> to vector<8x32xf32>
    %359 = arith.mulf %358, %314 : vector<8x32xf32>
    %360 = vector.extract_strided_slice %357 {offsets = [0, 0], sizes = [8, 32], strides = [1, 1]} : vector<8x128xf32> to vector<8x32xf32>
    %361 = vector.extract_strided_slice %357 {offsets = [0, 64], sizes = [8, 32], strides = [1, 1]} : vector<8x128xf32> to vector<8x32xf32>
    %cst_118 = arith.constant 2.000000e+00 : f32
    %362 = vector.broadcast %cst_118 : f32 to vector<8x32xf32>
    %363 = arith.mulf %362, %361 : vector<8x32xf32>
    %cst_119 = arith.constant 1.000000e+00 : f32
    %364 = vector.broadcast %cst_119 : f32 to vector<8x32xf32>
    %365 = arith.subf %363, %364 : vector<8x32xf32>
    %366 = arith.mulf %360, %365 : vector<8x32xf32>
    %367 = arith.addf %359, %366 : vector<8x32xf32>
    %368 = vector.extract_strided_slice %357 {offsets = [0, 96], sizes = [8, 32], strides = [1, 1]} : vector<8x128xf32> to vector<8x32xf32>
    %369 = math.tanh %367 : vector<8x32xf32>
    %370 = arith.mulf %368, %369 : vector<8x32xf32>
    %c7_i32_120 = arith.constant 7 : i32
    %371 = arith.subi %c7_i32_120, %c6_i32 : i32
    %c8_i32_121 = arith.constant 8 : i32
    %372 = arith.muli %371, %c8_i32_121 : i32
    %373 = tpu.assume_multiple %372, 8 : i32
    %374 = arith.index_cast %373 : i32 to index
    %c0_122 = arith.constant 0 : index
    %375 = vector.load %arg13[%374, %c0_122] : memref<64x128xf32, #tpu.memory_space<vmem>>, vector<8x128xf32>
    %cst_123 = arith.constant dense<0.000000e+00> : vector<8x128xf32>
    %376 = tpu.matmul %342, %27, %cst_123 {dimension_numbers = #tpu.dot_dimension_numbers<[1], [0], [0], [1], [0, 0, 1, 1], [], []>} : vector<8x32xf32>, vector<32x128xf32>, vector<8x128xf32> -> vector<8x128xf32>
    %377 = arith.addf %375, %376 : vector<8x128xf32>
    %378 = arith.negf %377 : vector<8x128xf32>
    %379 = math.exp %378 : vector<8x128xf32>
    %cst_124 = arith.constant 1.000000e+00 : f32
    %380 = vector.broadcast %cst_124 : f32 to vector<8x128xf32>
    %381 = arith.addf %380, %379 : vector<8x128xf32>
    %382 = arith.divf %380, %381 : vector<8x128xf32>
    %383 = vector.extract_strided_slice %382 {offsets = [0, 32], sizes = [8, 32], strides = [1, 1]} : vector<8x128xf32> to vector<8x32xf32>
    %384 = arith.mulf %383, %339 : vector<8x32xf32>
    %385 = vector.extract_strided_slice %382 {offsets = [0, 0], sizes = [8, 32], strides = [1, 1]} : vector<8x128xf32> to vector<8x32xf32>
    %386 = vector.extract_strided_slice %382 {offsets = [0, 64], sizes = [8, 32], strides = [1, 1]} : vector<8x128xf32> to vector<8x32xf32>
    %cst_125 = arith.constant 2.000000e+00 : f32
    %387 = vector.broadcast %cst_125 : f32 to vector<8x32xf32>
    %388 = arith.mulf %387, %386 : vector<8x32xf32>
    %cst_126 = arith.constant 1.000000e+00 : f32
    %389 = vector.broadcast %cst_126 : f32 to vector<8x32xf32>
    %390 = arith.subf %388, %389 : vector<8x32xf32>
    %391 = arith.mulf %385, %390 : vector<8x32xf32>
    %392 = arith.addf %384, %391 : vector<8x32xf32>
    %393 = vector.extract_strided_slice %382 {offsets = [0, 96], sizes = [8, 32], strides = [1, 1]} : vector<8x128xf32> to vector<8x32xf32>
    %394 = math.tanh %392 : vector<8x32xf32>
    %395 = arith.mulf %393, %394 : vector<8x32xf32>
    %396 = arith.index_cast %348 : i32 to index
    %c0_127 = arith.constant 0 : index
    %397 = vector.load %arg14[%396, %c0_127] : memref<64x64xf32, #tpu.memory_space<vmem>>, vector<8x32xf32>
    tpu.vector_store %arg14[%396, %c0_127], %370 {strides = array<i32>} : memref<64x64xf32, #tpu.memory_space<vmem>>, vector<8x32xf32>,
    %398 = arith.index_cast %373 : i32 to index
    %c32_128 = arith.constant 32 : index
    %399 = vector.load %arg14[%398, %c32_128] : memref<64x64xf32, #tpu.memory_space<vmem>>, vector<8x32xf32>
    tpu.vector_store %arg14[%398, %c32_128], %395 {strides = array<i32>} : memref<64x64xf32, #tpu.memory_space<vmem>>, vector<8x32xf32>,
    %c7_i32_129 = arith.constant 7 : i32
    %c8_i32_130 = arith.constant 8 : i32
    %400 = arith.muli %c7_i32_129, %c8_i32_130 : i32
    %401 = tpu.assume_multiple %400, 8 : i32
    %402 = arith.index_cast %401 : i32 to index
    %c0_131 = arith.constant 0 : index
    %403 = vector.load %arg12[%402, %c0_131] : memref<64x128xf32, #tpu.memory_space<vmem>>, vector<8x128xf32>
    %cst_132 = arith.constant dense<0.000000e+00> : vector<8x128xf32>
    %404 = tpu.matmul %370, %25, %cst_132 {dimension_numbers = #tpu.dot_dimension_numbers<[1], [0], [0], [1], [0, 0, 1, 1], [], []>} : vector<8x32xf32>, vector<32x128xf32>, vector<8x128xf32> -> vector<8x128xf32>
    %405 = arith.addf %403, %404 : vector<8x128xf32>
    %406 = arith.negf %405 : vector<8x128xf32>
    %407 = math.exp %406 : vector<8x128xf32>
    %cst_133 = arith.constant 1.000000e+00 : f32
    %408 = vector.broadcast %cst_133 : f32 to vector<8x128xf32>
    %409 = arith.addf %408, %407 : vector<8x128xf32>
    %410 = arith.divf %408, %409 : vector<8x128xf32>
    %411 = vector.extract_strided_slice %410 {offsets = [0, 32], sizes = [8, 32], strides = [1, 1]} : vector<8x128xf32> to vector<8x32xf32>
    %412 = arith.mulf %411, %367 : vector<8x32xf32>
    %413 = vector.extract_strided_slice %410 {offsets = [0, 0], sizes = [8, 32], strides = [1, 1]} : vector<8x128xf32> to vector<8x32xf32>
    %414 = vector.extract_strided_slice %410 {offsets = [0, 64], sizes = [8, 32], strides = [1, 1]} : vector<8x128xf32> to vector<8x32xf32>
    %cst_134 = arith.constant 2.000000e+00 : f32
    %415 = vector.broadcast %cst_134 : f32 to vector<8x32xf32>
    %416 = arith.mulf %415, %414 : vector<8x32xf32>
    %cst_135 = arith.constant 1.000000e+00 : f32
    %417 = vector.broadcast %cst_135 : f32 to vector<8x32xf32>
    %418 = arith.subf %416, %417 : vector<8x32xf32>
    %419 = arith.mulf %413, %418 : vector<8x32xf32>
    %420 = arith.addf %412, %419 : vector<8x32xf32>
    %421 = vector.extract_strided_slice %410 {offsets = [0, 96], sizes = [8, 32], strides = [1, 1]} : vector<8x128xf32> to vector<8x32xf32>
    %422 = math.tanh %420 : vector<8x32xf32>
    %423 = arith.mulf %421, %422 : vector<8x32xf32>
    %c7_i32_136 = arith.constant 7 : i32
    %424 = arith.subi %c7_i32_136, %c7_i32_129 : i32
    %c8_i32_137 = arith.constant 8 : i32
    %425 = arith.muli %424, %c8_i32_137 : i32
    %426 = tpu.assume_multiple %425, 8 : i32
    %427 = arith.index_cast %426 : i32 to index
    %c0_138 = arith.constant 0 : index
    %428 = vector.load %arg13[%427, %c0_138] : memref<64x128xf32, #tpu.memory_space<vmem>>, vector<8x128xf32>
    %cst_139 = arith.constant dense<0.000000e+00> : vector<8x128xf32>
    %429 = tpu.matmul %395, %27, %cst_139 {dimension_numbers = #tpu.dot_dimension_numbers<[1], [0], [0], [1], [0, 0, 1, 1], [], []>} : vector<8x32xf32>, vector<32x128xf32>, vector<8x128xf32> -> vector<8x128xf32>
    %430 = arith.addf %428, %429 : vector<8x128xf32>
    %431 = arith.negf %430 : vector<8x128xf32>
    %432 = math.exp %431 : vector<8x128xf32>
    %cst_140 = arith.constant 1.000000e+00 : f32
    %433 = vector.broadcast %cst_140 : f32 to vector<8x128xf32>
    %434 = arith.addf %433, %432 : vector<8x128xf32>
    %435 = arith.divf %433, %434 : vector<8x128xf32>
    %436 = vector.extract_strided_slice %435 {offsets = [0, 32], sizes = [8, 32], strides = [1, 1]} : vector<8x128xf32> to vector<8x32xf32>
    %437 = arith.mulf %436, %392 : vector<8x32xf32>
    %438 = vector.extract_strided_slice %435 {offsets = [0, 0], sizes = [8, 32], strides = [1, 1]} : vector<8x128xf32> to vector<8x32xf32>
    %439 = vector.extract_strided_slice %435 {offsets = [0, 64], sizes = [8, 32], strides = [1, 1]} : vector<8x128xf32> to vector<8x32xf32>
    %cst_141 = arith.constant 2.000000e+00 : f32
    %440 = vector.broadcast %cst_141 : f32 to vector<8x32xf32>
    %441 = arith.mulf %440, %439 : vector<8x32xf32>
    %cst_142 = arith.constant 1.000000e+00 : f32
    %442 = vector.broadcast %cst_142 : f32 to vector<8x32xf32>
    %443 = arith.subf %441, %442 : vector<8x32xf32>
    %444 = arith.mulf %438, %443 : vector<8x32xf32>
    %445 = arith.addf %437, %444 : vector<8x32xf32>
    %446 = vector.extract_strided_slice %435 {offsets = [0, 96], sizes = [8, 32], strides = [1, 1]} : vector<8x128xf32> to vector<8x32xf32>
    %447 = math.tanh %445 : vector<8x32xf32>
    %448 = arith.mulf %446, %447 : vector<8x32xf32>
    %449 = arith.index_cast %401 : i32 to index
    %c0_143 = arith.constant 0 : index
    %450 = vector.load %arg14[%449, %c0_143] : memref<64x64xf32, #tpu.memory_space<vmem>>, vector<8x32xf32>
    tpu.vector_store %arg14[%449, %c0_143], %423 {strides = array<i32>} : memref<64x64xf32, #tpu.memory_space<vmem>>, vector<8x32xf32>,
    %451 = arith.index_cast %426 : i32 to index
    %c32_144 = arith.constant 32 : index
    %452 = vector.load %arg14[%451, %c32_144] : memref<64x64xf32, #tpu.memory_space<vmem>>, vector<8x32xf32>
    tpu.vector_store %arg14[%451, %c32_144], %448 {strides = array<i32>} : memref<64x64xf32, #tpu.memory_space<vmem>>, vector<8x32xf32>,
    %c8_i32_145 = arith.constant 8 : i32
    %c0_146 = arith.constant 0 : index
    %c0_147 = arith.constant 0 : index
    %453 = vector.load %arg14[%c0_146, %c0_147] : memref<64x64xf32, #tpu.memory_space<vmem>>, vector<64x64xf32>
    %c0_148 = arith.constant 0 : index
    %c0_149 = arith.constant 0 : index
    %c0_150 = arith.constant 0 : index
    %454 = vector.load %arg4[%c0_148, %c0_149, %c0_150] : memref<2x64x128xf32, #tpu.memory_space<vmem>>, vector<1x64x128xf32>
    %455 = vector.shape_cast %454 : vector<1x64x128xf32> to vector<64x128xf32>
    %cst_151 = arith.constant dense<0.000000e+00> : vector<64x128xf32>
    %456 = tpu.matmul %453, %455, %cst_151 {dimension_numbers = #tpu.dot_dimension_numbers<[1], [0], [0], [1], [0, 0, 1, 1], [], []>} : vector<64x64xf32>, vector<64x128xf32>, vector<64x128xf32> -> vector<64x128xf32>
    %c2 = arith.constant 2 : index
    %c0_152 = arith.constant 0 : index
    %c0_153 = arith.constant 0 : index
    %457 = vector.load %arg6[%c2, %c0_152, %c0_153] : memref<4x1x128xf32, #tpu.memory_space<vmem>>, vector<1x1x128xf32>
    %458 = vector.shape_cast %457 : vector<1x1x128xf32> to vector<1x128xf32>
    %459 = vector.broadcast %458 : vector<1x128xf32> to vector<64x128xf32>
    %460 = arith.addf %456, %459 : vector<64x128xf32>
    %c0_154 = arith.constant 0 : index
    %c0_155 = arith.constant 0 : index
    %461 = vector.load %arg12[%c0_154, %c0_155] : memref<64x128xf32, #tpu.memory_space<vmem>>, vector<64x128xf32>
    tpu.vector_store %arg12[%c0_154, %c0_155], %460 {strides = array<i32>} : memref<64x128xf32, #tpu.memory_space<vmem>>, vector<64x128xf32>,
    %c1_156 = arith.constant 1 : index
    %c0_157 = arith.constant 0 : index
    %c0_158 = arith.constant 0 : index
    %462 = vector.load %arg4[%c1_156, %c0_157, %c0_158] : memref<2x64x128xf32, #tpu.memory_space<vmem>>, vector<1x64x128xf32>
    %463 = vector.shape_cast %462 : vector<1x64x128xf32> to vector<64x128xf32>
    %cst_159 = arith.constant dense<0.000000e+00> : vector<64x128xf32>
    %464 = tpu.matmul %453, %463, %cst_159 {dimension_numbers = #tpu.dot_dimension_numbers<[1], [0], [0], [1], [0, 0, 1, 1], [], []>} : vector<64x64xf32>, vector<64x128xf32>, vector<64x128xf32> -> vector<64x128xf32>
    %c3 = arith.constant 3 : index
    %c0_160 = arith.constant 0 : index
    %c0_161 = arith.constant 0 : index
    %465 = vector.load %arg6[%c3, %c0_160, %c0_161] : memref<4x1x128xf32, #tpu.memory_space<vmem>>, vector<1x1x128xf32>
    %466 = vector.shape_cast %465 : vector<1x1x128xf32> to vector<1x128xf32>
    %467 = vector.broadcast %466 : vector<1x128xf32> to vector<64x128xf32>
    %468 = arith.addf %464, %467 : vector<64x128xf32>
    %c0_162 = arith.constant 0 : index
    %c0_163 = arith.constant 0 : index
    %469 = vector.load %arg13[%c0_162, %c0_163] : memref<64x128xf32, #tpu.memory_space<vmem>>, vector<64x128xf32>
    tpu.vector_store %arg13[%c0_162, %c0_163], %468 {strides = array<i32>} : memref<64x128xf32, #tpu.memory_space<vmem>>, vector<64x128xf32>,
    %c2_164 = arith.constant 2 : index
    %c0_165 = arith.constant 0 : index
    %c0_166 = arith.constant 0 : index
    %470 = vector.load %arg5[%c2_164, %c0_165, %c0_166] : memref<4x32x128xf32, #tpu.memory_space<vmem>>, vector<1x32x128xf32>
    %471 = vector.shape_cast %470 : vector<1x32x128xf32> to vector<32x128xf32>
    %c3_167 = arith.constant 3 : index
    %c0_168 = arith.constant 0 : index
    %c0_169 = arith.constant 0 : index
    %472 = vector.load %arg5[%c3_167, %c0_168, %c0_169] : memref<4x32x128xf32, #tpu.memory_space<vmem>>, vector<1x32x128xf32>
    %473 = vector.shape_cast %472 : vector<1x32x128xf32> to vector<32x128xf32>
    %cst_170 = arith.constant 0.000000e+00 : f32
    %474 = vector.broadcast %cst_170 : f32 to vector<8x32xf32>
    %c0_i32_171 = arith.constant 0 : i32
    %c8_i32_172 = arith.constant 8 : i32
    %475 = arith.muli %c0_i32_171, %c8_i32_172 : i32
    %476 = tpu.assume_multiple %475, 8 : i32
    %477 = arith.index_cast %476 : i32 to index
    %c0_173 = arith.constant 0 : index
    %478 = vector.load %arg12[%477, %c0_173] : memref<64x128xf32, #tpu.memory_space<vmem>>, vector<8x128xf32>
    %cst_174 = arith.constant dense<0.000000e+00> : vector<8x128xf32>
    %479 = tpu.matmul %474, %471, %cst_174 {dimension_numbers = #tpu.dot_dimension_numbers<[1], [0], [0], [1], [0, 0, 1, 1], [], []>} : vector<8x32xf32>, vector<32x128xf32>, vector<8x128xf32> -> vector<8x128xf32>
    %480 = arith.addf %478, %479 : vector<8x128xf32>
    %481 = arith.negf %480 : vector<8x128xf32>
    %482 = math.exp %481 : vector<8x128xf32>
    %cst_175 = arith.constant 1.000000e+00 : f32
    %483 = vector.broadcast %cst_175 : f32 to vector<8x128xf32>
    %484 = arith.addf %483, %482 : vector<8x128xf32>
    %485 = arith.divf %483, %484 : vector<8x128xf32>
    %486 = vector.extract_strided_slice %485 {offsets = [0, 32], sizes = [8, 32], strides = [1, 1]} : vector<8x128xf32> to vector<8x32xf32>
    %487 = arith.mulf %486, %474 : vector<8x32xf32>
    %488 = vector.extract_strided_slice %485 {offsets = [0, 0], sizes = [8, 32], strides = [1, 1]} : vector<8x128xf32> to vector<8x32xf32>
    %489 = vector.extract_strided_slice %485 {offsets = [0, 64], sizes = [8, 32], strides = [1, 1]} : vector<8x128xf32> to vector<8x32xf32>
    %cst_176 = arith.constant 2.000000e+00 : f32
    %490 = vector.broadcast %cst_176 : f32 to vector<8x32xf32>
    %491 = arith.mulf %490, %489 : vector<8x32xf32>
    %cst_177 = arith.constant 1.000000e+00 : f32
    %492 = vector.broadcast %cst_177 : f32 to vector<8x32xf32>
    %493 = arith.subf %491, %492 : vector<8x32xf32>
    %494 = arith.mulf %488, %493 : vector<8x32xf32>
    %495 = arith.addf %487, %494 : vector<8x32xf32>
    %496 = vector.extract_strided_slice %485 {offsets = [0, 96], sizes = [8, 32], strides = [1, 1]} : vector<8x128xf32> to vector<8x32xf32>
    %497 = math.tanh %495 : vector<8x32xf32>
    %498 = arith.mulf %496, %497 : vector<8x32xf32>
    %c7_i32_178 = arith.constant 7 : i32
    %499 = arith.subi %c7_i32_178, %c0_i32_171 : i32
    %c8_i32_179 = arith.constant 8 : i32
    %500 = arith.muli %499, %c8_i32_179 : i32
    %501 = tpu.assume_multiple %500, 8 : i32
    %502 = arith.index_cast %501 : i32 to index
    %c0_180 = arith.constant 0 : index
    %503 = vector.load %arg13[%502, %c0_180] : memref<64x128xf32, #tpu.memory_space<vmem>>, vector<8x128xf32>
    %cst_181 = arith.constant dense<0.000000e+00> : vector<8x128xf32>
    %504 = tpu.matmul %474, %473, %cst_181 {dimension_numbers = #tpu.dot_dimension_numbers<[1], [0], [0], [1], [0, 0, 1, 1], [], []>} : vector<8x32xf32>, vector<32x128xf32>, vector<8x128xf32> -> vector<8x128xf32>
    %505 = arith.addf %503, %504 : vector<8x128xf32>
    %506 = arith.negf %505 : vector<8x128xf32>
    %507 = math.exp %506 : vector<8x128xf32>
    %cst_182 = arith.constant 1.000000e+00 : f32
    %508 = vector.broadcast %cst_182 : f32 to vector<8x128xf32>
    %509 = arith.addf %508, %507 : vector<8x128xf32>
    %510 = arith.divf %508, %509 : vector<8x128xf32>
    %511 = vector.extract_strided_slice %510 {offsets = [0, 32], sizes = [8, 32], strides = [1, 1]} : vector<8x128xf32> to vector<8x32xf32>
    %512 = arith.mulf %511, %474 : vector<8x32xf32>
    %513 = vector.extract_strided_slice %510 {offsets = [0, 0], sizes = [8, 32], strides = [1, 1]} : vector<8x128xf32> to vector<8x32xf32>
    %514 = vector.extract_strided_slice %510 {offsets = [0, 64], sizes = [8, 32], strides = [1, 1]} : vector<8x128xf32> to vector<8x32xf32>
    %cst_183 = arith.constant 2.000000e+00 : f32
    %515 = vector.broadcast %cst_183 : f32 to vector<8x32xf32>
    %516 = arith.mulf %515, %514 : vector<8x32xf32>
    %cst_184 = arith.constant 1.000000e+00 : f32
    %517 = vector.broadcast %cst_184 : f32 to vector<8x32xf32>
    %518 = arith.subf %516, %517 : vector<8x32xf32>
    %519 = arith.mulf %513, %518 : vector<8x32xf32>
    %520 = arith.addf %512, %519 : vector<8x32xf32>
    %521 = vector.extract_strided_slice %510 {offsets = [0, 96], sizes = [8, 32], strides = [1, 1]} : vector<8x128xf32> to vector<8x32xf32>
    %522 = math.tanh %520 : vector<8x32xf32>
    %523 = arith.mulf %521, %522 : vector<8x32xf32>
    %cst_185 = arith.constant 0.000000e+00 : f32
    %524 = vector.broadcast %cst_185 : f32 to vector<8x32xf32>
    %525 = arith.maximumf %498, %524 : vector<8x32xf32>
    %cst_186 = arith.constant 0.000000e+00 : f32
    %526 = vector.broadcast %cst_186 : f32 to vector<8x32xf32>
    %527 = arith.maximumf %523, %526 : vector<8x32xf32>
    %528 = arith.index_cast %476 : i32 to index
    %c0_187 = arith.constant 0 : index
    %529 = vector.load %arg15[%528, %c0_187] : memref<64x64xf32, #tpu.memory_space<vmem>>, vector<8x32xf32>
    tpu.vector_store %arg15[%528, %c0_187], %525 {strides = array<i32>} : memref<64x64xf32, #tpu.memory_space<vmem>>, vector<8x32xf32>,
    %530 = arith.index_cast %501 : i32 to index
    %c32_188 = arith.constant 32 : index
    %531 = vector.load %arg15[%530, %c32_188] : memref<64x64xf32, #tpu.memory_space<vmem>>, vector<8x32xf32>
    tpu.vector_store %arg15[%530, %c32_188], %527 {strides = array<i32>} : memref<64x64xf32, #tpu.memory_space<vmem>>, vector<8x32xf32>,
    %c1_i32_189 = arith.constant 1 : i32
    %c8_i32_190 = arith.constant 8 : i32
    %532 = arith.muli %c1_i32_189, %c8_i32_190 : i32
    %533 = tpu.assume_multiple %532, 8 : i32
    %534 = arith.index_cast %533 : i32 to index
    %c0_191 = arith.constant 0 : index
    %535 = vector.load %arg12[%534, %c0_191] : memref<64x128xf32, #tpu.memory_space<vmem>>, vector<8x128xf32>
    %cst_192 = arith.constant dense<0.000000e+00> : vector<8x128xf32>
    %536 = tpu.matmul %498, %471, %cst_192 {dimension_numbers = #tpu.dot_dimension_numbers<[1], [0], [0], [1], [0, 0, 1, 1], [], []>} : vector<8x32xf32>, vector<32x128xf32>, vector<8x128xf32> -> vector<8x128xf32>
    %537 = arith.addf %535, %536 : vector<8x128xf32>
    %538 = arith.negf %537 : vector<8x128xf32>
    %539 = math.exp %538 : vector<8x128xf32>
    %cst_193 = arith.constant 1.000000e+00 : f32
    %540 = vector.broadcast %cst_193 : f32 to vector<8x128xf32>
    %541 = arith.addf %540, %539 : vector<8x128xf32>
    %542 = arith.divf %540, %541 : vector<8x128xf32>
    %543 = vector.extract_strided_slice %542 {offsets = [0, 32], sizes = [8, 32], strides = [1, 1]} : vector<8x128xf32> to vector<8x32xf32>
    %544 = arith.mulf %543, %495 : vector<8x32xf32>
    %545 = vector.extract_strided_slice %542 {offsets = [0, 0], sizes = [8, 32], strides = [1, 1]} : vector<8x128xf32> to vector<8x32xf32>
    %546 = vector.extract_strided_slice %542 {offsets = [0, 64], sizes = [8, 32], strides = [1, 1]} : vector<8x128xf32> to vector<8x32xf32>
    %cst_194 = arith.constant 2.000000e+00 : f32
    %547 = vector.broadcast %cst_194 : f32 to vector<8x32xf32>
    %548 = arith.mulf %547, %546 : vector<8x32xf32>
    %cst_195 = arith.constant 1.000000e+00 : f32
    %549 = vector.broadcast %cst_195 : f32 to vector<8x32xf32>
    %550 = arith.subf %548, %549 : vector<8x32xf32>
    %551 = arith.mulf %545, %550 : vector<8x32xf32>
    %552 = arith.addf %544, %551 : vector<8x32xf32>
    %553 = vector.extract_strided_slice %542 {offsets = [0, 96], sizes = [8, 32], strides = [1, 1]} : vector<8x128xf32> to vector<8x32xf32>
    %554 = math.tanh %552 : vector<8x32xf32>
    %555 = arith.mulf %553, %554 : vector<8x32xf32>
    %c7_i32_196 = arith.constant 7 : i32
    %556 = arith.subi %c7_i32_196, %c1_i32_189 : i32
    %c8_i32_197 = arith.constant 8 : i32
    %557 = arith.muli %556, %c8_i32_197 : i32
    %558 = tpu.assume_multiple %557, 8 : i32
    %559 = arith.index_cast %558 : i32 to index
    %c0_198 = arith.constant 0 : index
    %560 = vector.load %arg13[%559, %c0_198] : memref<64x128xf32, #tpu.memory_space<vmem>>, vector<8x128xf32>
    %cst_199 = arith.constant dense<0.000000e+00> : vector<8x128xf32>
    %561 = tpu.matmul %523, %473, %cst_199 {dimension_numbers = #tpu.dot_dimension_numbers<[1], [0], [0], [1], [0, 0, 1, 1], [], []>} : vector<8x32xf32>, vector<32x128xf32>, vector<8x128xf32> -> vector<8x128xf32>
    %562 = arith.addf %560, %561 : vector<8x128xf32>
    %563 = arith.negf %562 : vector<8x128xf32>
    %564 = math.exp %563 : vector<8x128xf32>
    %cst_200 = arith.constant 1.000000e+00 : f32
    %565 = vector.broadcast %cst_200 : f32 to vector<8x128xf32>
    %566 = arith.addf %565, %564 : vector<8x128xf32>
    %567 = arith.divf %565, %566 : vector<8x128xf32>
    %568 = vector.extract_strided_slice %567 {offsets = [0, 32], sizes = [8, 32], strides = [1, 1]} : vector<8x128xf32> to vector<8x32xf32>
    %569 = arith.mulf %568, %520 : vector<8x32xf32>
    %570 = vector.extract_strided_slice %567 {offsets = [0, 0], sizes = [8, 32], strides = [1, 1]} : vector<8x128xf32> to vector<8x32xf32>
    %571 = vector.extract_strided_slice %567 {offsets = [0, 64], sizes = [8, 32], strides = [1, 1]} : vector<8x128xf32> to vector<8x32xf32>
    %cst_201 = arith.constant 2.000000e+00 : f32
    %572 = vector.broadcast %cst_201 : f32 to vector<8x32xf32>
    %573 = arith.mulf %572, %571 : vector<8x32xf32>
    %cst_202 = arith.constant 1.000000e+00 : f32
    %574 = vector.broadcast %cst_202 : f32 to vector<8x32xf32>
    %575 = arith.subf %573, %574 : vector<8x32xf32>
    %576 = arith.mulf %570, %575 : vector<8x32xf32>
    %577 = arith.addf %569, %576 : vector<8x32xf32>
    %578 = vector.extract_strided_slice %567 {offsets = [0, 96], sizes = [8, 32], strides = [1, 1]} : vector<8x128xf32> to vector<8x32xf32>
    %579 = math.tanh %577 : vector<8x32xf32>
    %580 = arith.mulf %578, %579 : vector<8x32xf32>
    %cst_203 = arith.constant 0.000000e+00 : f32
    %581 = vector.broadcast %cst_203 : f32 to vector<8x32xf32>
    %582 = arith.maximumf %555, %581 : vector<8x32xf32>
    %cst_204 = arith.constant 0.000000e+00 : f32
    %583 = vector.broadcast %cst_204 : f32 to vector<8x32xf32>
    %584 = arith.maximumf %580, %583 : vector<8x32xf32>
    %585 = arith.index_cast %533 : i32 to index
    %c0_205 = arith.constant 0 : index
    %586 = vector.load %arg15[%585, %c0_205] : memref<64x64xf32, #tpu.memory_space<vmem>>, vector<8x32xf32>
    tpu.vector_store %arg15[%585, %c0_205], %582 {strides = array<i32>} : memref<64x64xf32, #tpu.memory_space<vmem>>, vector<8x32xf32>,
    %587 = arith.index_cast %558 : i32 to index
    %c32_206 = arith.constant 32 : index
    %588 = vector.load %arg15[%587, %c32_206] : memref<64x64xf32, #tpu.memory_space<vmem>>, vector<8x32xf32>
    tpu.vector_store %arg15[%587, %c32_206], %584 {strides = array<i32>} : memref<64x64xf32, #tpu.memory_space<vmem>>, vector<8x32xf32>,
    %c2_i32_207 = arith.constant 2 : i32
    %c8_i32_208 = arith.constant 8 : i32
    %589 = arith.muli %c2_i32_207, %c8_i32_208 : i32
    %590 = tpu.assume_multiple %589, 8 : i32
    %591 = arith.index_cast %590 : i32 to index
    %c0_209 = arith.constant 0 : index
    %592 = vector.load %arg12[%591, %c0_209] : memref<64x128xf32, #tpu.memory_space<vmem>>, vector<8x128xf32>
    %cst_210 = arith.constant dense<0.000000e+00> : vector<8x128xf32>
    %593 = tpu.matmul %555, %471, %cst_210 {dimension_numbers = #tpu.dot_dimension_numbers<[1], [0], [0], [1], [0, 0, 1, 1], [], []>} : vector<8x32xf32>, vector<32x128xf32>, vector<8x128xf32> -> vector<8x128xf32>
    %594 = arith.addf %592, %593 : vector<8x128xf32>
    %595 = arith.negf %594 : vector<8x128xf32>
    %596 = math.exp %595 : vector<8x128xf32>
    %cst_211 = arith.constant 1.000000e+00 : f32
    %597 = vector.broadcast %cst_211 : f32 to vector<8x128xf32>
    %598 = arith.addf %597, %596 : vector<8x128xf32>
    %599 = arith.divf %597, %598 : vector<8x128xf32>
    %600 = vector.extract_strided_slice %599 {offsets = [0, 32], sizes = [8, 32], strides = [1, 1]} : vector<8x128xf32> to vector<8x32xf32>
    %601 = arith.mulf %600, %552 : vector<8x32xf32>
    %602 = vector.extract_strided_slice %599 {offsets = [0, 0], sizes = [8, 32], strides = [1, 1]} : vector<8x128xf32> to vector<8x32xf32>
    %603 = vector.extract_strided_slice %599 {offsets = [0, 64], sizes = [8, 32], strides = [1, 1]} : vector<8x128xf32> to vector<8x32xf32>
    %cst_212 = arith.constant 2.000000e+00 : f32
    %604 = vector.broadcast %cst_212 : f32 to vector<8x32xf32>
    %605 = arith.mulf %604, %603 : vector<8x32xf32>
    %cst_213 = arith.constant 1.000000e+00 : f32
    %606 = vector.broadcast %cst_213 : f32 to vector<8x32xf32>
    %607 = arith.subf %605, %606 : vector<8x32xf32>
    %608 = arith.mulf %602, %607 : vector<8x32xf32>
    %609 = arith.addf %601, %608 : vector<8x32xf32>
    %610 = vector.extract_strided_slice %599 {offsets = [0, 96], sizes = [8, 32], strides = [1, 1]} : vector<8x128xf32> to vector<8x32xf32>
    %611 = math.tanh %609 : vector<8x32xf32>
    %612 = arith.mulf %610, %611 : vector<8x32xf32>
    %c7_i32_214 = arith.constant 7 : i32
    %613 = arith.subi %c7_i32_214, %c2_i32_207 : i32
    %c8_i32_215 = arith.constant 8 : i32
    %614 = arith.muli %613, %c8_i32_215 : i32
    %615 = tpu.assume_multiple %614, 8 : i32
    %616 = arith.index_cast %615 : i32 to index
    %c0_216 = arith.constant 0 : index
    %617 = vector.load %arg13[%616, %c0_216] : memref<64x128xf32, #tpu.memory_space<vmem>>, vector<8x128xf32>
    %cst_217 = arith.constant dense<0.000000e+00> : vector<8x128xf32>
    %618 = tpu.matmul %580, %473, %cst_217 {dimension_numbers = #tpu.dot_dimension_numbers<[1], [0], [0], [1], [0, 0, 1, 1], [], []>} : vector<8x32xf32>, vector<32x128xf32>, vector<8x128xf32> -> vector<8x128xf32>
    %619 = arith.addf %617, %618 : vector<8x128xf32>
    %620 = arith.negf %619 : vector<8x128xf32>
    %621 = math.exp %620 : vector<8x128xf32>
    %cst_218 = arith.constant 1.000000e+00 : f32
    %622 = vector.broadcast %cst_218 : f32 to vector<8x128xf32>
    %623 = arith.addf %622, %621 : vector<8x128xf32>
    %624 = arith.divf %622, %623 : vector<8x128xf32>
    %625 = vector.extract_strided_slice %624 {offsets = [0, 32], sizes = [8, 32], strides = [1, 1]} : vector<8x128xf32> to vector<8x32xf32>
    %626 = arith.mulf %625, %577 : vector<8x32xf32>
    %627 = vector.extract_strided_slice %624 {offsets = [0, 0], sizes = [8, 32], strides = [1, 1]} : vector<8x128xf32> to vector<8x32xf32>
    %628 = vector.extract_strided_slice %624 {offsets = [0, 64], sizes = [8, 32], strides = [1, 1]} : vector<8x128xf32> to vector<8x32xf32>
    %cst_219 = arith.constant 2.000000e+00 : f32
    %629 = vector.broadcast %cst_219 : f32 to vector<8x32xf32>
    %630 = arith.mulf %629, %628 : vector<8x32xf32>
    %cst_220 = arith.constant 1.000000e+00 : f32
    %631 = vector.broadcast %cst_220 : f32 to vector<8x32xf32>
    %632 = arith.subf %630, %631 : vector<8x32xf32>
    %633 = arith.mulf %627, %632 : vector<8x32xf32>
    %634 = arith.addf %626, %633 : vector<8x32xf32>
    %635 = vector.extract_strided_slice %624 {offsets = [0, 96], sizes = [8, 32], strides = [1, 1]} : vector<8x128xf32> to vector<8x32xf32>
    %636 = math.tanh %634 : vector<8x32xf32>
    %637 = arith.mulf %635, %636 : vector<8x32xf32>
    %cst_221 = arith.constant 0.000000e+00 : f32
    %638 = vector.broadcast %cst_221 : f32 to vector<8x32xf32>
    %639 = arith.maximumf %612, %638 : vector<8x32xf32>
    %cst_222 = arith.constant 0.000000e+00 : f32
    %640 = vector.broadcast %cst_222 : f32 to vector<8x32xf32>
    %641 = arith.maximumf %637, %640 : vector<8x32xf32>
    %642 = arith.index_cast %590 : i32 to index
    %c0_223 = arith.constant 0 : index
    %643 = vector.load %arg15[%642, %c0_223] : memref<64x64xf32, #tpu.memory_space<vmem>>, vector<8x32xf32>
    tpu.vector_store %arg15[%642, %c0_223], %639 {strides = array<i32>} : memref<64x64xf32, #tpu.memory_space<vmem>>, vector<8x32xf32>,
    %644 = arith.index_cast %615 : i32 to index
    %c32_224 = arith.constant 32 : index
    %645 = vector.load %arg15[%644, %c32_224] : memref<64x64xf32, #tpu.memory_space<vmem>>, vector<8x32xf32>
    tpu.vector_store %arg15[%644, %c32_224], %641 {strides = array<i32>} : memref<64x64xf32, #tpu.memory_space<vmem>>, vector<8x32xf32>,
    %c3_i32_225 = arith.constant 3 : i32
    %c8_i32_226 = arith.constant 8 : i32
    %646 = arith.muli %c3_i32_225, %c8_i32_226 : i32
    %647 = tpu.assume_multiple %646, 8 : i32
    %648 = arith.index_cast %647 : i32 to index
    %c0_227 = arith.constant 0 : index
    %649 = vector.load %arg12[%648, %c0_227] : memref<64x128xf32, #tpu.memory_space<vmem>>, vector<8x128xf32>
    %cst_228 = arith.constant dense<0.000000e+00> : vector<8x128xf32>
    %650 = tpu.matmul %612, %471, %cst_228 {dimension_numbers = #tpu.dot_dimension_numbers<[1], [0], [0], [1], [0, 0, 1, 1], [], []>} : vector<8x32xf32>, vector<32x128xf32>, vector<8x128xf32> -> vector<8x128xf32>
    %651 = arith.addf %649, %650 : vector<8x128xf32>
    %652 = arith.negf %651 : vector<8x128xf32>
    %653 = math.exp %652 : vector<8x128xf32>
    %cst_229 = arith.constant 1.000000e+00 : f32
    %654 = vector.broadcast %cst_229 : f32 to vector<8x128xf32>
    %655 = arith.addf %654, %653 : vector<8x128xf32>
    %656 = arith.divf %654, %655 : vector<8x128xf32>
    %657 = vector.extract_strided_slice %656 {offsets = [0, 32], sizes = [8, 32], strides = [1, 1]} : vector<8x128xf32> to vector<8x32xf32>
    %658 = arith.mulf %657, %609 : vector<8x32xf32>
    %659 = vector.extract_strided_slice %656 {offsets = [0, 0], sizes = [8, 32], strides = [1, 1]} : vector<8x128xf32> to vector<8x32xf32>
    %660 = vector.extract_strided_slice %656 {offsets = [0, 64], sizes = [8, 32], strides = [1, 1]} : vector<8x128xf32> to vector<8x32xf32>
    %cst_230 = arith.constant 2.000000e+00 : f32
    %661 = vector.broadcast %cst_230 : f32 to vector<8x32xf32>
    %662 = arith.mulf %661, %660 : vector<8x32xf32>
    %cst_231 = arith.constant 1.000000e+00 : f32
    %663 = vector.broadcast %cst_231 : f32 to vector<8x32xf32>
    %664 = arith.subf %662, %663 : vector<8x32xf32>
    %665 = arith.mulf %659, %664 : vector<8x32xf32>
    %666 = arith.addf %658, %665 : vector<8x32xf32>
    %667 = vector.extract_strided_slice %656 {offsets = [0, 96], sizes = [8, 32], strides = [1, 1]} : vector<8x128xf32> to vector<8x32xf32>
    %668 = math.tanh %666 : vector<8x32xf32>
    %669 = arith.mulf %667, %668 : vector<8x32xf32>
    %c7_i32_232 = arith.constant 7 : i32
    %670 = arith.subi %c7_i32_232, %c3_i32_225 : i32
    %c8_i32_233 = arith.constant 8 : i32
    %671 = arith.muli %670, %c8_i32_233 : i32
    %672 = tpu.assume_multiple %671, 8 : i32
    %673 = arith.index_cast %672 : i32 to index
    %c0_234 = arith.constant 0 : index
    %674 = vector.load %arg13[%673, %c0_234] : memref<64x128xf32, #tpu.memory_space<vmem>>, vector<8x128xf32>
    %cst_235 = arith.constant dense<0.000000e+00> : vector<8x128xf32>
    %675 = tpu.matmul %637, %473, %cst_235 {dimension_numbers = #tpu.dot_dimension_numbers<[1], [0], [0], [1], [0, 0, 1, 1], [], []>} : vector<8x32xf32>, vector<32x128xf32>, vector<8x128xf32> -> vector<8x128xf32>
    %676 = arith.addf %674, %675 : vector<8x128xf32>
    %677 = arith.negf %676 : vector<8x128xf32>
    %678 = math.exp %677 : vector<8x128xf32>
    %cst_236 = arith.constant 1.000000e+00 : f32
    %679 = vector.broadcast %cst_236 : f32 to vector<8x128xf32>
    %680 = arith.addf %679, %678 : vector<8x128xf32>
    %681 = arith.divf %679, %680 : vector<8x128xf32>
    %682 = vector.extract_strided_slice %681 {offsets = [0, 32], sizes = [8, 32], strides = [1, 1]} : vector<8x128xf32> to vector<8x32xf32>
    %683 = arith.mulf %682, %634 : vector<8x32xf32>
    %684 = vector.extract_strided_slice %681 {offsets = [0, 0], sizes = [8, 32], strides = [1, 1]} : vector<8x128xf32> to vector<8x32xf32>
    %685 = vector.extract_strided_slice %681 {offsets = [0, 64], sizes = [8, 32], strides = [1, 1]} : vector<8x128xf32> to vector<8x32xf32>
    %cst_237 = arith.constant 2.000000e+00 : f32
    %686 = vector.broadcast %cst_237 : f32 to vector<8x32xf32>
    %687 = arith.mulf %686, %685 : vector<8x32xf32>
    %cst_238 = arith.constant 1.000000e+00 : f32
    %688 = vector.broadcast %cst_238 : f32 to vector<8x32xf32>
    %689 = arith.subf %687, %688 : vector<8x32xf32>
    %690 = arith.mulf %684, %689 : vector<8x32xf32>
    %691 = arith.addf %683, %690 : vector<8x32xf32>
    %692 = vector.extract_strided_slice %681 {offsets = [0, 96], sizes = [8, 32], strides = [1, 1]} : vector<8x128xf32> to vector<8x32xf32>
    %693 = math.tanh %691 : vector<8x32xf32>
    %694 = arith.mulf %692, %693 : vector<8x32xf32>
    %cst_239 = arith.constant 0.000000e+00 : f32
    %695 = vector.broadcast %cst_239 : f32 to vector<8x32xf32>
    %696 = arith.maximumf %669, %695 : vector<8x32xf32>
    %cst_240 = arith.constant 0.000000e+00 : f32
    %697 = vector.broadcast %cst_240 : f32 to vector<8x32xf32>
    %698 = arith.maximumf %694, %697 : vector<8x32xf32>
    %699 = arith.index_cast %647 : i32 to index
    %c0_241 = arith.constant 0 : index
    %700 = vector.load %arg15[%699, %c0_241] : memref<64x64xf32, #tpu.memory_space<vmem>>, vector<8x32xf32>
    tpu.vector_store %arg15[%699, %c0_241], %696 {strides = array<i32>} : memref<64x64xf32, #tpu.memory_space<vmem>>, vector<8x32xf32>,
    %701 = arith.index_cast %672 : i32 to index
    %c32_242 = arith.constant 32 : index
    %702 = vector.load %arg15[%701, %c32_242] : memref<64x64xf32, #tpu.memory_space<vmem>>, vector<8x32xf32>
    tpu.vector_store %arg15[%701, %c32_242], %698 {strides = array<i32>} : memref<64x64xf32, #tpu.memory_space<vmem>>, vector<8x32xf32>,
    %c4_i32_243 = arith.constant 4 : i32
    %c8_i32_244 = arith.constant 8 : i32
    %703 = arith.muli %c4_i32_243, %c8_i32_244 : i32
    %704 = tpu.assume_multiple %703, 8 : i32
    %705 = arith.index_cast %704 : i32 to index
    %c0_245 = arith.constant 0 : index
    %706 = vector.load %arg12[%705, %c0_245] : memref<64x128xf32, #tpu.memory_space<vmem>>, vector<8x128xf32>
    %cst_246 = arith.constant dense<0.000000e+00> : vector<8x128xf32>
    %707 = tpu.matmul %669, %471, %cst_246 {dimension_numbers = #tpu.dot_dimension_numbers<[1], [0], [0], [1], [0, 0, 1, 1], [], []>} : vector<8x32xf32>, vector<32x128xf32>, vector<8x128xf32> -> vector<8x128xf32>
    %708 = arith.addf %706, %707 : vector<8x128xf32>
    %709 = arith.negf %708 : vector<8x128xf32>
    %710 = math.exp %709 : vector<8x128xf32>
    %cst_247 = arith.constant 1.000000e+00 : f32
    %711 = vector.broadcast %cst_247 : f32 to vector<8x128xf32>
    %712 = arith.addf %711, %710 : vector<8x128xf32>
    %713 = arith.divf %711, %712 : vector<8x128xf32>
    %714 = vector.extract_strided_slice %713 {offsets = [0, 32], sizes = [8, 32], strides = [1, 1]} : vector<8x128xf32> to vector<8x32xf32>
    %715 = arith.mulf %714, %666 : vector<8x32xf32>
    %716 = vector.extract_strided_slice %713 {offsets = [0, 0], sizes = [8, 32], strides = [1, 1]} : vector<8x128xf32> to vector<8x32xf32>
    %717 = vector.extract_strided_slice %713 {offsets = [0, 64], sizes = [8, 32], strides = [1, 1]} : vector<8x128xf32> to vector<8x32xf32>
    %cst_248 = arith.constant 2.000000e+00 : f32
    %718 = vector.broadcast %cst_248 : f32 to vector<8x32xf32>
    %719 = arith.mulf %718, %717 : vector<8x32xf32>
    %cst_249 = arith.constant 1.000000e+00 : f32
    %720 = vector.broadcast %cst_249 : f32 to vector<8x32xf32>
    %721 = arith.subf %719, %720 : vector<8x32xf32>
    %722 = arith.mulf %716, %721 : vector<8x32xf32>
    %723 = arith.addf %715, %722 : vector<8x32xf32>
    %724 = vector.extract_strided_slice %713 {offsets = [0, 96], sizes = [8, 32], strides = [1, 1]} : vector<8x128xf32> to vector<8x32xf32>
    %725 = math.tanh %723 : vector<8x32xf32>
    %726 = arith.mulf %724, %725 : vector<8x32xf32>
    %c7_i32_250 = arith.constant 7 : i32
    %727 = arith.subi %c7_i32_250, %c4_i32_243 : i32
    %c8_i32_251 = arith.constant 8 : i32
    %728 = arith.muli %727, %c8_i32_251 : i32
    %729 = tpu.assume_multiple %728, 8 : i32
    %730 = arith.index_cast %729 : i32 to index
    %c0_252 = arith.constant 0 : index
    %731 = vector.load %arg13[%730, %c0_252] : memref<64x128xf32, #tpu.memory_space<vmem>>, vector<8x128xf32>
    %cst_253 = arith.constant dense<0.000000e+00> : vector<8x128xf32>
    %732 = tpu.matmul %694, %473, %cst_253 {dimension_numbers = #tpu.dot_dimension_numbers<[1], [0], [0], [1], [0, 0, 1, 1], [], []>} : vector<8x32xf32>, vector<32x128xf32>, vector<8x128xf32> -> vector<8x128xf32>
    %733 = arith.addf %731, %732 : vector<8x128xf32>
    %734 = arith.negf %733 : vector<8x128xf32>
    %735 = math.exp %734 : vector<8x128xf32>
    %cst_254 = arith.constant 1.000000e+00 : f32
    %736 = vector.broadcast %cst_254 : f32 to vector<8x128xf32>
    %737 = arith.addf %736, %735 : vector<8x128xf32>
    %738 = arith.divf %736, %737 : vector<8x128xf32>
    %739 = vector.extract_strided_slice %738 {offsets = [0, 32], sizes = [8, 32], strides = [1, 1]} : vector<8x128xf32> to vector<8x32xf32>
    %740 = arith.mulf %739, %691 : vector<8x32xf32>
    %741 = vector.extract_strided_slice %738 {offsets = [0, 0], sizes = [8, 32], strides = [1, 1]} : vector<8x128xf32> to vector<8x32xf32>
    %742 = vector.extract_strided_slice %738 {offsets = [0, 64], sizes = [8, 32], strides = [1, 1]} : vector<8x128xf32> to vector<8x32xf32>
    %cst_255 = arith.constant 2.000000e+00 : f32
    %743 = vector.broadcast %cst_255 : f32 to vector<8x32xf32>
    %744 = arith.mulf %743, %742 : vector<8x32xf32>
    %cst_256 = arith.constant 1.000000e+00 : f32
    %745 = vector.broadcast %cst_256 : f32 to vector<8x32xf32>
    %746 = arith.subf %744, %745 : vector<8x32xf32>
    %747 = arith.mulf %741, %746 : vector<8x32xf32>
    %748 = arith.addf %740, %747 : vector<8x32xf32>
    %749 = vector.extract_strided_slice %738 {offsets = [0, 96], sizes = [8, 32], strides = [1, 1]} : vector<8x128xf32> to vector<8x32xf32>
    %750 = math.tanh %748 : vector<8x32xf32>
    %751 = arith.mulf %749, %750 : vector<8x32xf32>
    %cst_257 = arith.constant 0.000000e+00 : f32
    %752 = vector.broadcast %cst_257 : f32 to vector<8x32xf32>
    %753 = arith.maximumf %726, %752 : vector<8x32xf32>
    %cst_258 = arith.constant 0.000000e+00 : f32
    %754 = vector.broadcast %cst_258 : f32 to vector<8x32xf32>
    %755 = arith.maximumf %751, %754 : vector<8x32xf32>
    %756 = arith.index_cast %704 : i32 to index
    %c0_259 = arith.constant 0 : index
    %757 = vector.load %arg15[%756, %c0_259] : memref<64x64xf32, #tpu.memory_space<vmem>>, vector<8x32xf32>
    tpu.vector_store %arg15[%756, %c0_259], %753 {strides = array<i32>} : memref<64x64xf32, #tpu.memory_space<vmem>>, vector<8x32xf32>,
    %758 = arith.index_cast %729 : i32 to index
    %c32_260 = arith.constant 32 : index
    %759 = vector.load %arg15[%758, %c32_260] : memref<64x64xf32, #tpu.memory_space<vmem>>, vector<8x32xf32>
    tpu.vector_store %arg15[%758, %c32_260], %755 {strides = array<i32>} : memref<64x64xf32, #tpu.memory_space<vmem>>, vector<8x32xf32>,
    %c5_i32_261 = arith.constant 5 : i32
    %c8_i32_262 = arith.constant 8 : i32
    %760 = arith.muli %c5_i32_261, %c8_i32_262 : i32
    %761 = tpu.assume_multiple %760, 8 : i32
    %762 = arith.index_cast %761 : i32 to index
    %c0_263 = arith.constant 0 : index
    %763 = vector.load %arg12[%762, %c0_263] : memref<64x128xf32, #tpu.memory_space<vmem>>, vector<8x128xf32>
    %cst_264 = arith.constant dense<0.000000e+00> : vector<8x128xf32>
    %764 = tpu.matmul %726, %471, %cst_264 {dimension_numbers = #tpu.dot_dimension_numbers<[1], [0], [0], [1], [0, 0, 1, 1], [], []>} : vector<8x32xf32>, vector<32x128xf32>, vector<8x128xf32> -> vector<8x128xf32>
    %765 = arith.addf %763, %764 : vector<8x128xf32>
    %766 = arith.negf %765 : vector<8x128xf32>
    %767 = math.exp %766 : vector<8x128xf32>
    %cst_265 = arith.constant 1.000000e+00 : f32
    %768 = vector.broadcast %cst_265 : f32 to vector<8x128xf32>
    %769 = arith.addf %768, %767 : vector<8x128xf32>
    %770 = arith.divf %768, %769 : vector<8x128xf32>
    %771 = vector.extract_strided_slice %770 {offsets = [0, 32], sizes = [8, 32], strides = [1, 1]} : vector<8x128xf32> to vector<8x32xf32>
    %772 = arith.mulf %771, %723 : vector<8x32xf32>
    %773 = vector.extract_strided_slice %770 {offsets = [0, 0], sizes = [8, 32], strides = [1, 1]} : vector<8x128xf32> to vector<8x32xf32>
    %774 = vector.extract_strided_slice %770 {offsets = [0, 64], sizes = [8, 32], strides = [1, 1]} : vector<8x128xf32> to vector<8x32xf32>
    %cst_266 = arith.constant 2.000000e+00 : f32
    %775 = vector.broadcast %cst_266 : f32 to vector<8x32xf32>
    %776 = arith.mulf %775, %774 : vector<8x32xf32>
    %cst_267 = arith.constant 1.000000e+00 : f32
    %777 = vector.broadcast %cst_267 : f32 to vector<8x32xf32>
    %778 = arith.subf %776, %777 : vector<8x32xf32>
    %779 = arith.mulf %773, %778 : vector<8x32xf32>
    %780 = arith.addf %772, %779 : vector<8x32xf32>
    %781 = vector.extract_strided_slice %770 {offsets = [0, 96], sizes = [8, 32], strides = [1, 1]} : vector<8x128xf32> to vector<8x32xf32>
    %782 = math.tanh %780 : vector<8x32xf32>
    %783 = arith.mulf %781, %782 : vector<8x32xf32>
    %c7_i32_268 = arith.constant 7 : i32
    %784 = arith.subi %c7_i32_268, %c5_i32_261 : i32
    %c8_i32_269 = arith.constant 8 : i32
    %785 = arith.muli %784, %c8_i32_269 : i32
    %786 = tpu.assume_multiple %785, 8 : i32
    %787 = arith.index_cast %786 : i32 to index
    %c0_270 = arith.constant 0 : index
    %788 = vector.load %arg13[%787, %c0_270] : memref<64x128xf32, #tpu.memory_space<vmem>>, vector<8x128xf32>
    %cst_271 = arith.constant dense<0.000000e+00> : vector<8x128xf32>
    %789 = tpu.matmul %751, %473, %cst_271 {dimension_numbers = #tpu.dot_dimension_numbers<[1], [0], [0], [1], [0, 0, 1, 1], [], []>} : vector<8x32xf32>, vector<32x128xf32>, vector<8x128xf32> -> vector<8x128xf32>
    %790 = arith.addf %788, %789 : vector<8x128xf32>
    %791 = arith.negf %790 : vector<8x128xf32>
    %792 = math.exp %791 : vector<8x128xf32>
    %cst_272 = arith.constant 1.000000e+00 : f32
    %793 = vector.broadcast %cst_272 : f32 to vector<8x128xf32>
    %794 = arith.addf %793, %792 : vector<8x128xf32>
    %795 = arith.divf %793, %794 : vector<8x128xf32>
    %796 = vector.extract_strided_slice %795 {offsets = [0, 32], sizes = [8, 32], strides = [1, 1]} : vector<8x128xf32> to vector<8x32xf32>
    %797 = arith.mulf %796, %748 : vector<8x32xf32>
    %798 = vector.extract_strided_slice %795 {offsets = [0, 0], sizes = [8, 32], strides = [1, 1]} : vector<8x128xf32> to vector<8x32xf32>
    %799 = vector.extract_strided_slice %795 {offsets = [0, 64], sizes = [8, 32], strides = [1, 1]} : vector<8x128xf32> to vector<8x32xf32>
    %cst_273 = arith.constant 2.000000e+00 : f32
    %800 = vector.broadcast %cst_273 : f32 to vector<8x32xf32>
    %801 = arith.mulf %800, %799 : vector<8x32xf32>
    %cst_274 = arith.constant 1.000000e+00 : f32
    %802 = vector.broadcast %cst_274 : f32 to vector<8x32xf32>
    %803 = arith.subf %801, %802 : vector<8x32xf32>
    %804 = arith.mulf %798, %803 : vector<8x32xf32>
    %805 = arith.addf %797, %804 : vector<8x32xf32>
    %806 = vector.extract_strided_slice %795 {offsets = [0, 96], sizes = [8, 32], strides = [1, 1]} : vector<8x128xf32> to vector<8x32xf32>
    %807 = math.tanh %805 : vector<8x32xf32>
    %808 = arith.mulf %806, %807 : vector<8x32xf32>
    %cst_275 = arith.constant 0.000000e+00 : f32
    %809 = vector.broadcast %cst_275 : f32 to vector<8x32xf32>
    %810 = arith.maximumf %783, %809 : vector<8x32xf32>
    %cst_276 = arith.constant 0.000000e+00 : f32
    %811 = vector.broadcast %cst_276 : f32 to vector<8x32xf32>
    %812 = arith.maximumf %808, %811 : vector<8x32xf32>
    %813 = arith.index_cast %761 : i32 to index
    %c0_277 = arith.constant 0 : index
    %814 = vector.load %arg15[%813, %c0_277] : memref<64x64xf32, #tpu.memory_space<vmem>>, vector<8x32xf32>
    tpu.vector_store %arg15[%813, %c0_277], %810 {strides = array<i32>} : memref<64x64xf32, #tpu.memory_space<vmem>>, vector<8x32xf32>,
    %815 = arith.index_cast %786 : i32 to index
    %c32_278 = arith.constant 32 : index
    %816 = vector.load %arg15[%815, %c32_278] : memref<64x64xf32, #tpu.memory_space<vmem>>, vector<8x32xf32>
    tpu.vector_store %arg15[%815, %c32_278], %812 {strides = array<i32>} : memref<64x64xf32, #tpu.memory_space<vmem>>, vector<8x32xf32>,
    %c6_i32_279 = arith.constant 6 : i32
    %c8_i32_280 = arith.constant 8 : i32
    %817 = arith.muli %c6_i32_279, %c8_i32_280 : i32
    %818 = tpu.assume_multiple %817, 8 : i32
    %819 = arith.index_cast %818 : i32 to index
    %c0_281 = arith.constant 0 : index
    %820 = vector.load %arg12[%819, %c0_281] : memref<64x128xf32, #tpu.memory_space<vmem>>, vector<8x128xf32>
    %cst_282 = arith.constant dense<0.000000e+00> : vector<8x128xf32>
    %821 = tpu.matmul %783, %471, %cst_282 {dimension_numbers = #tpu.dot_dimension_numbers<[1], [0], [0], [1], [0, 0, 1, 1], [], []>} : vector<8x32xf32>, vector<32x128xf32>, vector<8x128xf32> -> vector<8x128xf32>
    %822 = arith.addf %820, %821 : vector<8x128xf32>
    %823 = arith.negf %822 : vector<8x128xf32>
    %824 = math.exp %823 : vector<8x128xf32>
    %cst_283 = arith.constant 1.000000e+00 : f32
    %825 = vector.broadcast %cst_283 : f32 to vector<8x128xf32>
    %826 = arith.addf %825, %824 : vector<8x128xf32>
    %827 = arith.divf %825, %826 : vector<8x128xf32>
    %828 = vector.extract_strided_slice %827 {offsets = [0, 32], sizes = [8, 32], strides = [1, 1]} : vector<8x128xf32> to vector<8x32xf32>
    %829 = arith.mulf %828, %780 : vector<8x32xf32>
    %830 = vector.extract_strided_slice %827 {offsets = [0, 0], sizes = [8, 32], strides = [1, 1]} : vector<8x128xf32> to vector<8x32xf32>
    %831 = vector.extract_strided_slice %827 {offsets = [0, 64], sizes = [8, 32], strides = [1, 1]} : vector<8x128xf32> to vector<8x32xf32>
    %cst_284 = arith.constant 2.000000e+00 : f32
    %832 = vector.broadcast %cst_284 : f32 to vector<8x32xf32>
    %833 = arith.mulf %832, %831 : vector<8x32xf32>
    %cst_285 = arith.constant 1.000000e+00 : f32
    %834 = vector.broadcast %cst_285 : f32 to vector<8x32xf32>
    %835 = arith.subf %833, %834 : vector<8x32xf32>
    %836 = arith.mulf %830, %835 : vector<8x32xf32>
    %837 = arith.addf %829, %836 : vector<8x32xf32>
    %838 = vector.extract_strided_slice %827 {offsets = [0, 96], sizes = [8, 32], strides = [1, 1]} : vector<8x128xf32> to vector<8x32xf32>
    %839 = math.tanh %837 : vector<8x32xf32>
    %840 = arith.mulf %838, %839 : vector<8x32xf32>
    %c7_i32_286 = arith.constant 7 : i32
    %841 = arith.subi %c7_i32_286, %c6_i32_279 : i32
    %c8_i32_287 = arith.constant 8 : i32
    %842 = arith.muli %841, %c8_i32_287 : i32
    %843 = tpu.assume_multiple %842, 8 : i32
    %844 = arith.index_cast %843 : i32 to index
    %c0_288 = arith.constant 0 : index
    %845 = vector.load %arg13[%844, %c0_288] : memref<64x128xf32, #tpu.memory_space<vmem>>, vector<8x128xf32>
    %cst_289 = arith.constant dense<0.000000e+00> : vector<8x128xf32>
    %846 = tpu.matmul %808, %473, %cst_289 {dimension_numbers = #tpu.dot_dimension_numbers<[1], [0], [0], [1], [0, 0, 1, 1], [], []>} : vector<8x32xf32>, vector<32x128xf32>, vector<8x128xf32> -> vector<8x128xf32>
    %847 = arith.addf %845, %846 : vector<8x128xf32>
    %848 = arith.negf %847 : vector<8x128xf32>
    %849 = math.exp %848 : vector<8x128xf32>
    %cst_290 = arith.constant 1.000000e+00 : f32
    %850 = vector.broadcast %cst_290 : f32 to vector<8x128xf32>
    %851 = arith.addf %850, %849 : vector<8x128xf32>
    %852 = arith.divf %850, %851 : vector<8x128xf32>
    %853 = vector.extract_strided_slice %852 {offsets = [0, 32], sizes = [8, 32], strides = [1, 1]} : vector<8x128xf32> to vector<8x32xf32>
    %854 = arith.mulf %853, %805 : vector<8x32xf32>
    %855 = vector.extract_strided_slice %852 {offsets = [0, 0], sizes = [8, 32], strides = [1, 1]} : vector<8x128xf32> to vector<8x32xf32>
    %856 = vector.extract_strided_slice %852 {offsets = [0, 64], sizes = [8, 32], strides = [1, 1]} : vector<8x128xf32> to vector<8x32xf32>
    %cst_291 = arith.constant 2.000000e+00 : f32
    %857 = vector.broadcast %cst_291 : f32 to vector<8x32xf32>
    %858 = arith.mulf %857, %856 : vector<8x32xf32>
    %cst_292 = arith.constant 1.000000e+00 : f32
    %859 = vector.broadcast %cst_292 : f32 to vector<8x32xf32>
    %860 = arith.subf %858, %859 : vector<8x32xf32>
    %861 = arith.mulf %855, %860 : vector<8x32xf32>
    %862 = arith.addf %854, %861 : vector<8x32xf32>
    %863 = vector.extract_strided_slice %852 {offsets = [0, 96], sizes = [8, 32], strides = [1, 1]} : vector<8x128xf32> to vector<8x32xf32>
    %864 = math.tanh %862 : vector<8x32xf32>
    %865 = arith.mulf %863, %864 : vector<8x32xf32>
    %cst_293 = arith.constant 0.000000e+00 : f32
    %866 = vector.broadcast %cst_293 : f32 to vector<8x32xf32>
    %867 = arith.maximumf %840, %866 : vector<8x32xf32>
    %cst_294 = arith.constant 0.000000e+00 : f32
    %868 = vector.broadcast %cst_294 : f32 to vector<8x32xf32>
    %869 = arith.maximumf %865, %868 : vector<8x32xf32>
    %870 = arith.index_cast %818 : i32 to index
    %c0_295 = arith.constant 0 : index
    %871 = vector.load %arg15[%870, %c0_295] : memref<64x64xf32, #tpu.memory_space<vmem>>, vector<8x32xf32>
    tpu.vector_store %arg15[%870, %c0_295], %867 {strides = array<i32>} : memref<64x64xf32, #tpu.memory_space<vmem>>, vector<8x32xf32>,
    %872 = arith.index_cast %843 : i32 to index
    %c32_296 = arith.constant 32 : index
    %873 = vector.load %arg15[%872, %c32_296] : memref<64x64xf32, #tpu.memory_space<vmem>>, vector<8x32xf32>
    tpu.vector_store %arg15[%872, %c32_296], %869 {strides = array<i32>} : memref<64x64xf32, #tpu.memory_space<vmem>>, vector<8x32xf32>,
    %c7_i32_297 = arith.constant 7 : i32
    %c8_i32_298 = arith.constant 8 : i32
    %874 = arith.muli %c7_i32_297, %c8_i32_298 : i32
    %875 = tpu.assume_multiple %874, 8 : i32
    %876 = arith.index_cast %875 : i32 to index
    %c0_299 = arith.constant 0 : index
    %877 = vector.load %arg12[%876, %c0_299] : memref<64x128xf32, #tpu.memory_space<vmem>>, vector<8x128xf32>
    %cst_300 = arith.constant dense<0.000000e+00> : vector<8x128xf32>
    %878 = tpu.matmul %840, %471, %cst_300 {dimension_numbers = #tpu.dot_dimension_numbers<[1], [0], [0], [1], [0, 0, 1, 1], [], []>} : vector<8x32xf32>, vector<32x128xf32>, vector<8x128xf32> -> vector<8x128xf32>
    %879 = arith.addf %877, %878 : vector<8x128xf32>
    %880 = arith.negf %879 : vector<8x128xf32>
    %881 = math.exp %880 : vector<8x128xf32>
    %cst_301 = arith.constant 1.000000e+00 : f32
    %882 = vector.broadcast %cst_301 : f32 to vector<8x128xf32>
    %883 = arith.addf %882, %881 : vector<8x128xf32>
    %884 = arith.divf %882, %883 : vector<8x128xf32>
    %885 = vector.extract_strided_slice %884 {offsets = [0, 32], sizes = [8, 32], strides = [1, 1]} : vector<8x128xf32> to vector<8x32xf32>
    %886 = arith.mulf %885, %837 : vector<8x32xf32>
    %887 = vector.extract_strided_slice %884 {offsets = [0, 0], sizes = [8, 32], strides = [1, 1]} : vector<8x128xf32> to vector<8x32xf32>
    %888 = vector.extract_strided_slice %884 {offsets = [0, 64], sizes = [8, 32], strides = [1, 1]} : vector<8x128xf32> to vector<8x32xf32>
    %cst_302 = arith.constant 2.000000e+00 : f32
    %889 = vector.broadcast %cst_302 : f32 to vector<8x32xf32>
    %890 = arith.mulf %889, %888 : vector<8x32xf32>
    %cst_303 = arith.constant 1.000000e+00 : f32
    %891 = vector.broadcast %cst_303 : f32 to vector<8x32xf32>
    %892 = arith.subf %890, %891 : vector<8x32xf32>
    %893 = arith.mulf %887, %892 : vector<8x32xf32>
    %894 = arith.addf %886, %893 : vector<8x32xf32>
    %895 = vector.extract_strided_slice %884 {offsets = [0, 96], sizes = [8, 32], strides = [1, 1]} : vector<8x128xf32> to vector<8x32xf32>
    %896 = math.tanh %894 : vector<8x32xf32>
    %897 = arith.mulf %895, %896 : vector<8x32xf32>
    %c7_i32_304 = arith.constant 7 : i32
    %898 = arith.subi %c7_i32_304, %c7_i32_297 : i32
    %c8_i32_305 = arith.constant 8 : i32
    %899 = arith.muli %898, %c8_i32_305 : i32
    %900 = tpu.assume_multiple %899, 8 : i32
    %901 = arith.index_cast %900 : i32 to index
    %c0_306 = arith.constant 0 : index
    %902 = vector.load %arg13[%901, %c0_306] : memref<64x128xf32, #tpu.memory_space<vmem>>, vector<8x128xf32>
    %cst_307 = arith.constant dense<0.000000e+00> : vector<8x128xf32>
    %903 = tpu.matmul %865, %473, %cst_307 {dimension_numbers = #tpu.dot_dimension_numbers<[1], [0], [0], [1], [0, 0, 1, 1], [], []>} : vector<8x32xf32>, vector<32x128xf32>, vector<8x128xf32> -> vector<8x128xf32>
    %904 = arith.addf %902, %903 : vector<8x128xf32>
    %905 = arith.negf %904 : vector<8x128xf32>
    %906 = math.exp %905 : vector<8x128xf32>
    %cst_308 = arith.constant 1.000000e+00 : f32
    %907 = vector.broadcast %cst_308 : f32 to vector<8x128xf32>
    %908 = arith.addf %907, %906 : vector<8x128xf32>
    %909 = arith.divf %907, %908 : vector<8x128xf32>
    %910 = vector.extract_strided_slice %909 {offsets = [0, 32], sizes = [8, 32], strides = [1, 1]} : vector<8x128xf32> to vector<8x32xf32>
    %911 = arith.mulf %910, %862 : vector<8x32xf32>
    %912 = vector.extract_strided_slice %909 {offsets = [0, 0], sizes = [8, 32], strides = [1, 1]} : vector<8x128xf32> to vector<8x32xf32>
    %913 = vector.extract_strided_slice %909 {offsets = [0, 64], sizes = [8, 32], strides = [1, 1]} : vector<8x128xf32> to vector<8x32xf32>
    %cst_309 = arith.constant 2.000000e+00 : f32
    %914 = vector.broadcast %cst_309 : f32 to vector<8x32xf32>
    %915 = arith.mulf %914, %913 : vector<8x32xf32>
    %cst_310 = arith.constant 1.000000e+00 : f32
    %916 = vector.broadcast %cst_310 : f32 to vector<8x32xf32>
    %917 = arith.subf %915, %916 : vector<8x32xf32>
    %918 = arith.mulf %912, %917 : vector<8x32xf32>
    %919 = arith.addf %911, %918 : vector<8x32xf32>
    %920 = vector.extract_strided_slice %909 {offsets = [0, 96], sizes = [8, 32], strides = [1, 1]} : vector<8x128xf32> to vector<8x32xf32>
    %921 = math.tanh %919 : vector<8x32xf32>
    %922 = arith.mulf %920, %921 : vector<8x32xf32>
    %cst_311 = arith.constant 0.000000e+00 : f32
    %923 = vector.broadcast %cst_311 : f32 to vector<8x32xf32>
    %924 = arith.maximumf %897, %923 : vector<8x32xf32>
    %cst_312 = arith.constant 0.000000e+00 : f32
    %925 = vector.broadcast %cst_312 : f32 to vector<8x32xf32>
    %926 = arith.maximumf %922, %925 : vector<8x32xf32>
    %927 = arith.index_cast %875 : i32 to index
    %c0_313 = arith.constant 0 : index
    %928 = vector.load %arg15[%927, %c0_313] : memref<64x64xf32, #tpu.memory_space<vmem>>, vector<8x32xf32>
    tpu.vector_store %arg15[%927, %c0_313], %924 {strides = array<i32>} : memref<64x64xf32, #tpu.memory_space<vmem>>, vector<8x32xf32>,
    %929 = arith.index_cast %900 : i32 to index
    %c32_314 = arith.constant 32 : index
    %930 = vector.load %arg15[%929, %c32_314] : memref<64x64xf32, #tpu.memory_space<vmem>>, vector<8x32xf32>
    tpu.vector_store %arg15[%929, %c32_314], %926 {strides = array<i32>} : memref<64x64xf32, #tpu.memory_space<vmem>>, vector<8x32xf32>,
    %c8_i32_315 = arith.constant 8 : i32
    %c0_316 = arith.constant 0 : index
    %c0_317 = arith.constant 0 : index
    %931 = vector.load %arg15[%c0_316, %c0_317] : memref<64x64xf32, #tpu.memory_space<vmem>>, vector<48x64xf32>
    %c0_318 = arith.constant 0 : index
    %c0_319 = arith.constant 0 : index
    %c0_320 = arith.constant 0 : index
    %932 = vector.load %arg7[%c0_318, %c0_319, %c0_320] : memref<3x64x64xf32, #tpu.memory_space<vmem>>, vector<1x64x64xf32>
    %933 = vector.shape_cast %932 : vector<1x64x64xf32> to vector<64x64xf32>
    %cst_321 = arith.constant dense<0.000000e+00> : vector<48x64xf32>
    %934 = tpu.matmul %931, %933, %cst_321 {dimension_numbers = #tpu.dot_dimension_numbers<[1], [0], [0], [1], [0, 0, 1, 1], [], []>} : vector<48x64xf32>, vector<64x64xf32>, vector<48x64xf32> -> vector<48x64xf32>
    %c8 = arith.constant 8 : index
    %c0_322 = arith.constant 0 : index
    %935 = vector.load %arg15[%c8, %c0_322] : memref<64x64xf32, #tpu.memory_space<vmem>>, vector<48x64xf32>
    %c1_323 = arith.constant 1 : index
    %c0_324 = arith.constant 0 : index
    %c0_325 = arith.constant 0 : index
    %936 = vector.load %arg7[%c1_323, %c0_324, %c0_325] : memref<3x64x64xf32, #tpu.memory_space<vmem>>, vector<1x64x64xf32>
    %937 = vector.shape_cast %936 : vector<1x64x64xf32> to vector<64x64xf32>
    %cst_326 = arith.constant dense<0.000000e+00> : vector<48x64xf32>
    %938 = tpu.matmul %935, %937, %cst_326 {dimension_numbers = #tpu.dot_dimension_numbers<[1], [0], [0], [1], [0, 0, 1, 1], [], []>} : vector<48x64xf32>, vector<64x64xf32>, vector<48x64xf32> -> vector<48x64xf32>
    %939 = arith.addf %934, %938 : vector<48x64xf32>
    %c16 = arith.constant 16 : index
    %c0_327 = arith.constant 0 : index
    %940 = vector.load %arg15[%c16, %c0_327] : memref<64x64xf32, #tpu.memory_space<vmem>>, vector<48x64xf32>
    %c2_328 = arith.constant 2 : index
    %c0_329 = arith.constant 0 : index
    %c0_330 = arith.constant 0 : index
    %941 = vector.load %arg7[%c2_328, %c0_329, %c0_330] : memref<3x64x64xf32, #tpu.memory_space<vmem>>, vector<1x64x64xf32>
    %942 = vector.shape_cast %941 : vector<1x64x64xf32> to vector<64x64xf32>
    %cst_331 = arith.constant dense<0.000000e+00> : vector<48x64xf32>
    %943 = tpu.matmul %940, %942, %cst_331 {dimension_numbers = #tpu.dot_dimension_numbers<[1], [0], [0], [1], [0, 0, 1, 1], [], []>} : vector<48x64xf32>, vector<64x64xf32>, vector<48x64xf32> -> vector<48x64xf32>
    %944 = arith.addf %939, %943 : vector<48x64xf32>
    %c0_332 = arith.constant 0 : index
    %c0_333 = arith.constant 0 : index
    %945 = vector.load %arg8[%c0_332, %c0_333] : memref<1x64xf32, #tpu.memory_space<vmem>>, vector<1x64xf32>
    %946 = vector.broadcast %945 : vector<1x64xf32> to vector<48x64xf32>
    %947 = arith.addf %944, %946 : vector<48x64xf32>
    %948 = vector.extract_strided_slice %947 {offsets = [0, 0], sizes = [8, 64], strides = [1, 1]} : vector<48x64xf32> to vector<8x64xf32>
    %949 = vector.extract_strided_slice %947 {offsets = [0, 0], sizes = [8, 64], strides = [1, 1]} : vector<48x64xf32> to vector<8x64xf32>
    %950 = vector.extract_strided_slice %947 {offsets = [8, 0], sizes = [8, 64], strides = [1, 1]} : vector<48x64xf32> to vector<8x64xf32>
    %951 = arith.addf %948, %950 : vector<8x64xf32>
    %952 = arith.maximumf %949, %950 : vector<8x64xf32>
    %953 = vector.extract_strided_slice %947 {offsets = [16, 0], sizes = [8, 64], strides = [1, 1]} : vector<48x64xf32> to vector<8x64xf32>
    %954 = arith.addf %951, %953 : vector<8x64xf32>
    %955 = arith.maximumf %952, %953 : vector<8x64xf32>
    %956 = vector.extract_strided_slice %947 {offsets = [24, 0], sizes = [8, 64], strides = [1, 1]} : vector<48x64xf32> to vector<8x64xf32>
    %957 = arith.addf %954, %956 : vector<8x64xf32>
    %958 = arith.maximumf %955, %956 : vector<8x64xf32>
    %959 = vector.extract_strided_slice %947 {offsets = [32, 0], sizes = [8, 64], strides = [1, 1]} : vector<48x64xf32> to vector<8x64xf32>
    %960 = arith.addf %957, %959 : vector<8x64xf32>
    %961 = arith.maximumf %958, %959 : vector<8x64xf32>
    %962 = vector.extract_strided_slice %947 {offsets = [40, 0], sizes = [8, 64], strides = [1, 1]} : vector<48x64xf32> to vector<8x64xf32>
    %963 = arith.addf %960, %962 : vector<8x64xf32>
    %964 = arith.maximumf %961, %962 : vector<8x64xf32>
    %cst_334 = arith.constant 0.166666672 : f32
    %965 = vector.broadcast %cst_334 : f32 to vector<8x64xf32>
    %966 = arith.mulf %963, %965 : vector<8x64xf32>
    %967 = tpu.concatenate %966, %964 in 1 : vector<8x64xf32>, vector<8x64xf32> -> vector<8x128xf32>
    %c0_335 = arith.constant 0 : index
    %c0_336 = arith.constant 0 : index
    %968 = vector.load %arg9[%c0_335, %c0_336] : memref<128x128xf32, #tpu.memory_space<vmem>>, vector<128x128xf32>
    %cst_337 = arith.constant dense<0.000000e+00> : vector<8x128xf32>
    %969 = tpu.matmul %967, %968, %cst_337 {dimension_numbers = #tpu.dot_dimension_numbers<[1], [0], [0], [1], [0, 0, 1, 1], [], []>} : vector<8x128xf32>, vector<128x128xf32>, vector<8x128xf32> -> vector<8x128xf32>
    %c0_338 = arith.constant 0 : index
    %c0_339 = arith.constant 0 : index
    %970 = vector.load %arg10[%c0_338, %c0_339] : memref<1x128xf32, #tpu.memory_space<vmem>>, vector<1x128xf32>
    %971 = vector.broadcast %970 : vector<1x128xf32> to vector<8x128xf32>
    %972 = arith.addf %969, %971 : vector<8x128xf32>
    %cst_340 = arith.constant dense<0xFF800000> : vector<8xf32>
    %973 = vector.multi_reduction <maximumf>, %972, %cst_340 [1] : vector<8x128xf32> to vector<8xf32>
    %974 = vector.shape_cast %973 : vector<8xf32> to vector<8x1xf32>
    %975 = vector.broadcast %974 : vector<8x1xf32> to vector<8x128xf32>
    %976 = arith.subf %972, %975 : vector<8x128xf32>
    %977 = math.exp %976 : vector<8x128xf32>
    %cst_341 = arith.constant dense<0.000000e+00> : vector<8xf32>
    %978 = vector.multi_reduction <add>, %977, %cst_341 [1] : vector<8x128xf32> to vector<8xf32>
    %979 = vector.shape_cast %978 : vector<8xf32> to vector<8x1xf32>
    %980 = math.log %979 : vector<8x1xf32>
    %981 = arith.addf %974, %980 : vector<8x1xf32>
    %982 = vector.broadcast %981 : vector<8x1xf32> to vector<8x128xf32>
    %983 = arith.subf %972, %982 : vector<8x128xf32>
    %c0_342 = arith.constant 0 : index
    %c0_343 = arith.constant 0 : index
    %984 = vector.load %arg11[%c0_342, %c0_343] : memref<8x128xf32, #tpu.memory_space<vmem>>, vector<8x128xf32>
    tpu.vector_store %arg11[%c0_342, %c0_343], %983 {strides = array<i32>} : memref<8x128xf32, #tpu.memory_space<vmem>>, vector<8x128xf32>,
    return
  }
  func.func @transform_0(%arg0: i32) -> (i32, i32) {
    %c0_i32 = arith.constant 0 : i32
    %c0_i32_0 = arith.constant 0 : i32
    return %arg0, %c0_i32 : i32, i32
  }
  func.func @transform_1(%arg0: i32) -> (i32, i32) {
    %c0_i32 = arith.constant 0 : i32
    %c0_i32_0 = arith.constant 0 : i32
    %c0_i32_1 = arith.constant 0 : i32
    return %c0_i32, %c0_i32_0 : i32, i32
  }
  func.func @transform_2(%arg0: i32) -> (i32, i32, i32) {
    %c0_i32 = arith.constant 0 : i32
    %c0_i32_0 = arith.constant 0 : i32
    %c0_i32_1 = arith.constant 0 : i32
    %c0_i32_2 = arith.constant 0 : i32
    return %c0_i32, %c0_i32_0, %c0_i32_1 : i32, i32, i32
  }
  func.func @transform_3(%arg0: i32) -> (i32, i32, i32) {
    %c0_i32 = arith.constant 0 : i32
    %c0_i32_0 = arith.constant 0 : i32
    %c0_i32_1 = arith.constant 0 : i32
    %c0_i32_2 = arith.constant 0 : i32
    return %c0_i32, %c0_i32_0, %c0_i32_1 : i32, i32, i32
  }
  func.func @transform_4(%arg0: i32) -> (i32, i32, i32) {
    %c0_i32 = arith.constant 0 : i32
    %c0_i32_0 = arith.constant 0 : i32
    %c0_i32_1 = arith.constant 0 : i32
    %c0_i32_2 = arith.constant 0 : i32
    return %c0_i32, %c0_i32_0, %c0_i32_1 : i32, i32, i32
  }
  func.func @transform_5(%arg0: i32) -> (i32, i32, i32) {
    %c0_i32 = arith.constant 0 : i32
    %c0_i32_0 = arith.constant 0 : i32
    %c0_i32_1 = arith.constant 0 : i32
    %c0_i32_2 = arith.constant 0 : i32
    return %c0_i32, %c0_i32_0, %c0_i32_1 : i32, i32, i32
  }
  func.func @transform_6(%arg0: i32) -> (i32, i32, i32) {
    %c0_i32 = arith.constant 0 : i32
    %c0_i32_0 = arith.constant 0 : i32
    %c0_i32_1 = arith.constant 0 : i32
    %c0_i32_2 = arith.constant 0 : i32
    return %c0_i32, %c0_i32_0, %c0_i32_1 : i32, i32, i32
  }
  func.func @transform_7(%arg0: i32) -> (i32, i32) {
    %c0_i32 = arith.constant 0 : i32
    %c0_i32_0 = arith.constant 0 : i32
    %c0_i32_1 = arith.constant 0 : i32
    return %c0_i32, %c0_i32_0 : i32, i32
  }
  func.func @transform_8(%arg0: i32) -> (i32, i32) {
    %c0_i32 = arith.constant 0 : i32
    %c0_i32_0 = arith.constant 0 : i32
    %c0_i32_1 = arith.constant 0 : i32
    return %c0_i32, %c0_i32_0 : i32, i32
  }
  func.func @transform_9(%arg0: i32) -> (i32, i32) {
    %c0_i32 = arith.constant 0 : i32
    %c0_i32_0 = arith.constant 0 : i32
    %c0_i32_1 = arith.constant 0 : i32
    return %c0_i32, %c0_i32_0 : i32, i32
  }
  func.func @transform_10(%arg0: i32) -> (i32, i32) {
    %c0_i32 = arith.constant 0 : i32
    %c0_i32_0 = arith.constant 0 : i32
    return %arg0, %c0_i32 : i32, i32
  }
}

</mosaic_0001>

<llo_original>
// kernel: tpu_custom_call.1
$region0: #{tpu_custom_call.1}
  #allocation0 [shape = 'u32[]', space=smem, size = 0x4, offset = 0x4, fixed_abs, tag = 'smem constant byte address 0x4 - core index']
  #allocation1 [shape = 'u32[144,128]{1,0:T(1,128)}', space=vmem, size = 0x12000, scoped, tag = 'internal scratch']
  #allocation2 [shape = 'f32[64,128]{1,0:T(8,128)}', space=vmem, size = 0x8000, scoped, tag = 'scratch operand']
  #allocation3 [shape = 'f32[64,128]{1,0:T(8,128)}', space=vmem, size = 0x8000, scoped, tag = 'scratch operand']
  #allocation4 [shape = 'f32[64,64]{1,0:T(8,128)}', space=vmem, size = 0x8000, scoped, tag = 'scratch operand']
  #allocation5 [shape = 'f32[64,64]{1,0:T(8,128)}', space=vmem, size = 0x8000, scoped, tag = 'scratch operand']
  %s0 = inlined_call_operand.vmem [shape: s32[64,1], index: 0, kind: input, shape index: {}]
  %s1 = inlined_call_operand.vmem [shape: f32[128,16], index: 1, kind: input, shape index: {}]
  %s2 = inlined_call_operand.vmem [shape: f32[2,16,128], index: 2, kind: input, shape index: {}]
  %s3 = inlined_call_operand.hbm [shape: f32[2,64,128], index: 3, kind: input, shape index: {}]
  %s4 = inlined_call_operand.hbm [shape: f32[4,32,128], index: 4, kind: input, shape index: {}]
  %s5 = inlined_call_operand.vmem [shape: f32[4,1,128], index: 5, kind: input, shape index: {}]
  %s6 = inlined_call_operand.vmem [shape: f32[3,64,64], index: 6, kind: input, shape index: {}]
  %s7 = inlined_call_operand.vmem [shape: f32[1,64], index: 7, kind: input, shape index: {}]
  %s8 = inlined_call_operand.hbm [shape: f32[128,128], index: 8, kind: input, shape index: {}]
  %s9 = inlined_call_operand.vmem [shape: f32[1,128], index: 9, kind: input, shape index: {}]
  %s10 = inlined_call_operand.hbm [shape: f32[8,128], index: 10, kind: output, shape index: {}]
  %s11 = sld [smem:[#allocation0]]
  $region62: #{tpu_custom_call.1} parent=0
    _
  %s13 = ssub.s32 1, %s11
  %s14 = scalar_select 0, %s13, %s11
  $region1: #{tpu_custom_call.1} parent=0
    #allocation6 [shape = 'u8[65536]{0}', space=vmem, size = 0x10000, scoped, tag = 'input window, operand 3, single buffered']
    #allocation7 [shape = 's32[1]{0}', space=sflag, size = 0x4, scoped, tag = 'scoped memory for tpu_custom_call.1']
    #allocation8 [shape = 's32[1]{0}', space=sflag, size = 0x4, scoped, tag = 'scoped memory for tpu_custom_call.1']
    #allocation9 [shape = 'u8[65536]{0}', space=vmem, size = 0x10000, scoped, tag = 'input window, operand 4, single buffered']
    #allocation10 [shape = 's32[1]{0}', space=sflag, size = 0x4, scoped, tag = 'scoped memory for tpu_custom_call.1']
    #allocation11 [shape = 'u8[65536]{0}', space=vmem, size = 0x10000, scoped, tag = 'input window, operand 8, single buffered']
    #allocation12 [shape = 'u8[4096]{0}', space=vmem, size = 0x1000, scoped, tag = 'output window, operand 0, single buffered']
    %15 = vsyncpa [#allocation7], 0
    %16 = vsyncpa [#allocation10], 0
    %17 = vsyncpa [#allocation8], 0
    // Predicated region
    $region2: #{tpu_custom_call.1} parent=1 // pred_check
      _
    $region3: #{tpu_custom_call.1} parent=1 // pred_check_branch
      %19 = sbr.rel (0) target = $region5
    $region4: #{tpu_custom_call.1} parent=1 // pred_region
      _
    $region5: #{tpu_custom_call.1} parent=1 // pred_fallthru
      _
    // Predicated region
    $region6: #{tpu_custom_call.1} parent=1 // pred_check
      _
    $region7: #{tpu_custom_call.1} parent=1 // pred_check_branch
      %21 = sbr.rel (0) target = $region9
    $region8: #{tpu_custom_call.1} parent=1 // pred_region
      _
    $region9: #{tpu_custom_call.1} parent=1 // pred_fallthru
      _
    // Predicated region
    $region10: #{tpu_custom_call.1} parent=1 // pred_check
      _
    $region11: #{tpu_custom_call.1} parent=1 // pred_check_branch
      %23 = sbr.rel (0) target = $region13
    $region12: #{tpu_custom_call.1} parent=1 // pred_region
      _
    $region13: #{tpu_custom_call.1} parent=1 // pred_fallthru
      _
    // Predicated region
    $region14: #{tpu_custom_call.1} parent=1 // pred_check
      _
    $region15: #{tpu_custom_call.1} parent=1 // pred_check_branch
      %25 = sbr.rel (0) target = $region17
    $region16: #{tpu_custom_call.1} parent=1 // pred_region
      %s27 = ssub.s32 2048, 2048
      %28 = vsyncadd [#allocation7], %s27
      %s29 = sshll.u32 [#allocation6], 4
      %s30 = int_to_ptr.vmem [resolvable:$true] %s29
      %35 = dma.hbm_to_vmem [thread:$0]  %s3, 2048, %s30, [#allocation7], 128, 128, 8
    $region17: #{tpu_custom_call.1} parent=1 // pred_fallthru
      _
    // Predicated region
    $region18: #{tpu_custom_call.1} parent=1 // pred_check
      _
    $region19: #{tpu_custom_call.1} parent=1 // pred_check_branch
      %37 = sbr.rel (0) target = $region21
    $region20: #{tpu_custom_call.1} parent=1 // pred_region
      %s39 = ssub.s32 2048, 2048
      %40 = vsyncadd [#allocation10], %s39
      %s41 = sshll.u32 [#allocation9], 4
      %s42 = int_to_ptr.vmem [resolvable:$true] %s41
      %47 = dma.hbm_to_vmem [thread:$0]  %s4, 2048, %s42, [#allocation10], 128, 128, 8
    $region21: #{tpu_custom_call.1} parent=1 // pred_fallthru
      _
    // Predicated region
    $region22: #{tpu_custom_call.1} parent=1 // pred_check
      _
    $region23: #{tpu_custom_call.1} parent=1 // pred_check_branch
      %49 = sbr.rel (0) target = $region25
    $region24: #{tpu_custom_call.1} parent=1 // pred_region
      _
    $region25: #{tpu_custom_call.1} parent=1 // pred_fallthru
      _
    // Predicated region
    $region26: #{tpu_custom_call.1} parent=1 // pred_check
      _
    $region27: #{tpu_custom_call.1} parent=1 // pred_check_branch
      %51 = sbr.rel (0) target = $region29
    $region28: #{tpu_custom_call.1} parent=1 // pred_region
      _
    $region29: #{tpu_custom_call.1} parent=1 // pred_fallthru
      _
    // Predicated region
    $region30: #{tpu_custom_call.1} parent=1 // pred_check
      _
    $region31: #{tpu_custom_call.1} parent=1 // pred_check_branch
      %53 = sbr.rel (0) target = $region33
    $region32: #{tpu_custom_call.1} parent=1 // pred_region
      _
    $region33: #{tpu_custom_call.1} parent=1 // pred_fallthru
      _
    // Predicated region
    $region34: #{tpu_custom_call.1} parent=1 // pred_check
      _
    $region35: #{tpu_custom_call.1} parent=1 // pred_check_branch
      %55 = sbr.rel (0) target = $region37
    $region36: #{tpu_custom_call.1} parent=1 // pred_region
      %s57 = ssub.s32 2048, 2048
      %58 = vsyncadd [#allocation10], %s57
      %s59 = sshll.u32 [#allocation11], 4
      %s60 = int_to_ptr.vmem [resolvable:$true] %s59
      %65 = dma.hbm_to_vmem [thread:$0]  %s8, 2048, %s60, [#allocation10], 128, 128, 8
    $region37: #{tpu_custom_call.1} parent=1 // pred_fallthru
      _
    // Predicated region
    $region38: #{tpu_custom_call.1} parent=1 // pred_check
      _
    $region39: #{tpu_custom_call.1} parent=1 // pred_check_branch
      %67 = sbr.rel (0) target = $region41
    $region40: #{tpu_custom_call.1} parent=1 // pred_region
      _
    $region41: #{tpu_custom_call.1} parent=1 // pred_fallthru
      _
    // Predicated region
    $region42: #{tpu_custom_call.1} parent=1 // pred_check
      _
    $region43: #{tpu_custom_call.1} parent=1 // pred_check_branch
      %69 = sbr.rel (0) target = $region45
    $region44: #{tpu_custom_call.1} parent=1 // pred_region
      %70 = dma.done [#allocation7], 2048
    $region45: #{tpu_custom_call.1} parent=1 // pred_fallthru
      _
    // Predicated region
    $region46: #{tpu_custom_call.1} parent=1 // pred_check
      _
    $region47: #{tpu_custom_call.1} parent=1 // pred_check_branch
      %72 = sbr.rel (0) target = $region49
    $region48: #{tpu_custom_call.1} parent=1 // pred_region
      %73 = dma.done [#allocation10], 2048
    $region49: #{tpu_custom_call.1} parent=1 // pred_fallthru
      _
    // Predicated region
    $region50: #{tpu_custom_call.1} parent=1 // pred_check
      _
    $region51: #{tpu_custom_call.1} parent=1 // pred_check_branch
      %75 = sbr.rel (0) target = $region53
    $region52: #{tpu_custom_call.1} parent=1 // pred_region
      %76 = dma.done [#allocation10], 2048
    $region53: #{tpu_custom_call.1} parent=1 // pred_fallthru
      _
    %v77 = vld [vmem:[%s0] sm:$0xff]
    %v78 = vld [vmem:[%s0 + $0x8] sm:$0xff]
    %v79 = vld [vmem:[%s0 + $0x10] sm:$0xff]
    %v80 = vld [vmem:[%s0 + $0x18] sm:$0xff]
    %v81 = vld [vmem:[%s0 + $0x20] sm:$0xff]
    %v82 = vld [vmem:[%s0 + $0x28] sm:$0xff]
    %v83 = vld [vmem:[%s0 + $0x30] sm:$0xff]
    %v84 = vld [vmem:[%s0 + $0x38] sm:$0xff]
    %v85 = vlaneseq
    %v86 = vand.u32 %v85, 127
    %87 = vset.pattern.permute.xlu0 0
    %88 = vperm.xlu0 %87, %v77
    %v89 = vpop.permute.xlu0 %88
    %90 = vset.pattern.permute.xlu0 0
    %91 = vperm.xlu0 %90, %v78
    %v92 = vpop.permute.xlu0 %91
    %93 = vset.pattern.permute.xlu0 0
    %94 = vperm.xlu0 %93, %v79
    %v95 = vpop.permute.xlu0 %94
    %96 = vset.pattern.permute.xlu0 0
    %97 = vperm.xlu0 %96, %v80
    %v98 = vpop.permute.xlu0 %97
    %99 = vset.pattern.permute.xlu0 0
    %100 = vperm.xlu0 %99, %v81
    %v101 = vpop.permute.xlu0 %100
    %102 = vset.pattern.permute.xlu0 0
    %103 = vperm.xlu0 %102, %v82
    %v104 = vpop.permute.xlu0 %103
    %105 = vset.pattern.permute.xlu0 0
    %106 = vperm.xlu0 %105, %v83
    %v107 = vpop.permute.xlu0 %106
    %108 = vset.pattern.permute.xlu0 0
    %109 = vperm.xlu0 %108, %v84
    %v110 = vpop.permute.xlu0 %109
    %vm111 = vcmp.eq.s32.totalorder %v86, %v89
    %vm112 = vcmp.eq.s32.totalorder %v86, %v92
    %vm113 = vcmp.eq.s32.totalorder %v86, %v95
    %vm114 = vcmp.eq.s32.totalorder %v86, %v98
    %vm115 = vcmp.eq.s32.totalorder %v86, %v101
    %vm116 = vcmp.eq.s32.totalorder %v86, %v104
    %vm117 = vcmp.eq.s32.totalorder %v86, %v107
    %vm118 = vcmp.eq.s32.totalorder %v86, %v110
    %v119 = vsel %vm111, 1, 0
    %v120 = vsel %vm112, 1, 0
    %v121 = vsel %vm113, 1, 0
    %v122 = vsel %vm114, 1, 0
    %v123 = vsel %vm115, 1, 0
    %v124 = vsel %vm116, 1, 0
    %v125 = vsel %vm117, 1, 0
    %v126 = vsel %vm118, 1, 0
    %v127 = vcvt.s32.f32 %v119
    %v128 = vcvt.s32.f32 %v120
    %v129 = vcvt.s32.f32 %v121
    %v130 = vcvt.s32.f32 %v122
    %v131 = vcvt.s32.f32 %v123
    %v132 = vcvt.s32.f32 %v124
    %v133 = vcvt.s32.f32 %v125
    %v134 = vcvt.s32.f32 %v126
    %v135 = vld [vmem:[%s1] sm:$0xff]
    %v136 = vld [vmem:[%s1 + $0x8] sm:$0xff]
    %v137 = vld [vmem:[%s1 + $0x10] sm:$0xff]
    %v138 = vld [vmem:[%s1 + $0x18] sm:$0xff]
    %v139 = vld [vmem:[%s1 + $0x20] sm:$0xff]
    %v140 = vld [vmem:[%s1 + $0x28] sm:$0xff]
    %v141 = vld [vmem:[%s1 + $0x30] sm:$0xff]
    %v142 = vld [vmem:[%s1 + $0x38] sm:$0xff]
    %v143 = vld [vmem:[%s1 + $0x40] sm:$0xff]
    %v144 = vld [vmem:[%s1 + $0x48] sm:$0xff]
    %v145 = vld [vmem:[%s1 + $0x50] sm:$0xff]
    %v146 = vld [vmem:[%s1 + $0x58] sm:$0xff]
    %v147 = vld [vmem:[%s1 + $0x60] sm:$0xff]
    %v148 = vld [vmem:[%s1 + $0x68] sm:$0xff]
    %v149 = vld [vmem:[%s1 + $0x70] sm:$0xff]
    %v150 = vld [vmem:[%s1 + $0x78] sm:$0xff]
    %151 = vmatprep.subr.mxu0 0.0
    %152 = vmatpush1.msra.mxu0 %v135
    %153 = vmatprep.subr.mxu0 0.0
    %154 = vmatpush1.msra.mxu0 %v136
    %155 = vmatprep.subr.mxu0 0.0
    %156 = vmatpush1.msra.mxu0 %v137
    %157 = vmatprep.subr.mxu0 0.0
    %158 = vmatpush1.msra.mxu0 %v138
    %159 = vmatprep.subr.mxu0 0.0
    %160 = vmatpush1.msra.mxu0 %v139
    %161 = vmatprep.subr.mxu0 0.0
    %162 = vmatpush1.msra.mxu0 %v140
    %163 = vmatprep.subr.mxu0 0.0
    %164 = vmatpush1.msra.mxu0 %v141
    %165 = vmatprep.subr.mxu0 0.0
    %166 = vmatpush1.msra.mxu0 %v142
    %167 = vmatprep.subr.mxu0 0.0
    %168 = vmatpush1.msra.mxu0 %v143
    %169 = vmatprep.subr.mxu0 0.0
    %170 = vmatpush1.msra.mxu0 %v144
    %171 = vmatprep.subr.mxu0 0.0
    %172 = vmatpush1.msra.mxu0 %v145
    %173 = vmatprep.subr.mxu0 0.0
    %174 = vmatpush1.msra.mxu0 %v146
    %175 = vmatprep.subr.mxu0 0.0
    %176 = vmatpush1.msra.mxu0 %v147
    %177 = vmatprep.subr.mxu0 0.0
    %178 = vmatpush1.msra.mxu0 %v148
    %179 = vmatprep.subr.mxu0 0.0
    %180 = vmatpush1.msra.mxu0 %v149
    %181 = vmatprep.subr.mxu0 0.0
    %182 = vmatpush1.msra.mxu0 %v150
    %183 = vmatprep.subr.mxu0 0.0
    %184 = vmatpush1.msra.mxu0 0.0
    %185 = vmatprep.subr.mxu0 0.0
    %186 = vmatpush1.msra.mxu0 0.0
    %187 = vmatprep.subr.mxu0 0.0
    %188 = vmatpush1.msra.mxu0 0.0
    %189 = vmatprep.subr.mxu0 0.0
    %190 = vmatpush1.msra.mxu0 0.0
    %191 = vmatprep.subr.mxu0 0.0
    %192 = vmatpush1.msra.mxu0 0.0
    %193 = vmatprep.subr.mxu0 0.0
    %194 = vmatpush1.msra.mxu0 0.0
    %195 = vmatprep.subr.mxu0 0.0
    %196 = vmatpush1.msra.mxu0 0.0
    %197 = vmatprep.subr.mxu0 0.0
    %198 = vmatpush1.msra.mxu0 0.0
    %199 = vmatprep.subr.mxu0 0.0
    %200 = vmatpush1.msra.mxu0 0.0
    %201 = vmatprep.subr.mxu0 0.0
    %202 = vmatpush1.msra.mxu0 0.0
    %203 = vmatprep.subr.mxu0 0.0
    %204 = vmatpush1.msra.mxu0 0.0
    %205 = vmatprep.subr.mxu0 0.0
    %206 = vmatpush1.msra.mxu0 0.0
    %207 = vmatprep.subr.mxu0 0.0
    %208 = vmatpush1.msra.mxu0 0.0
    %209 = vmatprep.subr.mxu0 0.0
    %210 = vmatpush1.msra.mxu0 0.0
    %211 = vmatprep.subr.mxu0 0.0
    %212 = vmatpush1.msra.mxu0 0.0
    %213 = vmatprep.subr.mxu0 0.0
    %214 = vmatpush1.msra.mxu0 0.0
    %215 = vmatprep.mubr.f32.mxu0 0.0
    %216 = vmatmul.mubr.f32.gmra.mrb[0].mxu0 %v127
    %v217 = vpop.f32.mrb[0].mxu0
    %v218 = vadd.f32 0.0, %v217
    %v219 = vpop.f32.mrb[0].mxu0
    %220 = vmatprep.mubr.f32.mxu0 0.0
    %221 = vmatmul.mubr.f32.gmra.mrb[0].mxu0 %v128
    %v222 = vpop.f32.mrb[0].mxu0
    %v223 = vadd.f32 0.0, %v222
    %v224 = vpop.f32.mrb[0].mxu0
    %225 = vmatprep.mubr.f32.mxu0 0.0
    %226 = vmatmul.mubr.f32.gmra.mrb[0].mxu0 %v129
    %v227 = vpop.f32.mrb[0].mxu0
    %v228 = vadd.f32 0.0, %v227
    %v229 = vpop.f32.mrb[0].mxu0
    %230 = vmatprep.mubr.f32.mxu0 0.0
    %231 = vmatmul.mubr.f32.gmra.mrb[0].mxu0 %v130
    %v232 = vpop.f32.mrb[0].mxu0
    %v233 = vadd.f32 0.0, %v232
    %v234 = vpop.f32.mrb[0].mxu0
    %235 = vmatprep.mubr.f32.mxu0 0.0
    %236 = vmatmul.mubr.f32.gmra.mrb[0].mxu0 %v131
    %v237 = vpop.f32.mrb[0].mxu0
    %v238 = vadd.f32 0.0, %v237
    %v239 = vpop.f32.mrb[0].mxu0
    %240 = vmatprep.mubr.f32.mxu0 0.0
    %241 = vmatmul.mubr.f32.gmra.mrb[0].mxu0 %v132
    %v242 = vpop.f32.mrb[0].mxu0
    %v243 = vadd.f32 0.0, %v242
    %v244 = vpop.f32.mrb[0].mxu0
    %245 = vmatprep.mubr.f32.mxu0 0.0
    %246 = vmatmul.mubr.f32.gmra.mrb[0].mxu0 %v133
    %v247 = vpop.f32.mrb[0].mxu0
    %v248 = vadd.f32 0.0, %v247
    %v249 = vpop.f32.mrb[0].mxu0
    %250 = vmatprep.mubr.f32.mxu0 0.0
    %251 = vmatmul.mubr.f32.gmra.mrb[0].mxu0 %v134
    %v252 = vpop.f32.mrb[0].mxu0
    %v253 = vadd.f32 0.0, %v252
    %v254 = vpop.f32.mrb[0].mxu0
    %255 = vdwg.mxu0
    %v256 = vld [vmem:[%s2] sm:$0xff]
    %v257 = vld [vmem:[%s2 + $0x8] sm:$0xff]
    %v258 = vld [vmem:[%s5] sm:$0x1]
    %v260 = vlaneseq
    %v261 = vshrl.u32 %v260, 7
    %v262 = vsub.s32 0, %v261
    %v263 = vrot.slane %v258, %v262
    %vm265 = vcmask 130048
    %v267 = vsel %vm265, %v218, 0
    %v270 = vsel %vm265, %v223, 0
    %v273 = vsel %vm265, %v228, 0
    %v276 = vsel %vm265, %v233, 0
    %v279 = vsel %vm265, %v238, 0
    %v282 = vsel %vm265, %v243, 0
    %v285 = vsel %vm265, %v248, 0
    %v288 = vsel %vm265, %v253, 0
    %290 = vmatprep.subr.mxu0 0.0
    %291 = vmatpush1.msra.mxu0 %v256
    %292 = vmatprep.subr.mxu0 0.0
    %293 = vmatpush1.msra.mxu0 %v257
    %294 = vmatprep.subr.mxu0 0.0
    %295 = vmatpush1.msra.mxu0 0.0
    %296 = vmatprep.subr.mxu0 0.0
    %297 = vmatpush1.msra.mxu0 0.0
    %298 = vmatprep.subr.mxu0 0.0
    %299 = vmatpush1.msra.mxu0 0.0
    %300 = vmatprep.subr.mxu0 0.0
    %301 = vmatpush1.msra.mxu0 0.0
    %302 = vmatprep.subr.mxu0 0.0
    %303 = vmatpush1.msra.mxu0 0.0
    %304 = vmatprep.subr.mxu0 0.0
    %305 = vmatpush1.msra.mxu0 0.0
    %306 = vmatprep.subr.mxu0 0.0
    %307 = vmatpush1.msra.mxu0 0.0
    %308 = vmatprep.subr.mxu0 0.0
    %309 = vmatpush1.msra.mxu0 0.0
    %310 = vmatprep.subr.mxu0 0.0
    %311 = vmatpush1.msra.mxu0 0.0
    %312 = vmatprep.subr.mxu0 0.0
    %313 = vmatpush1.msra.mxu0 0.0
    %314 = vmatprep.subr.mxu0 0.0
    %315 = vmatpush1.msra.mxu0 0.0
    %316 = vmatprep.subr.mxu0 0.0
    %317 = vmatpush1.msra.mxu0 0.0
    %318 = vmatprep.subr.mxu0 0.0
    %319 = vmatpush1.msra.mxu0 0.0
    %320 = vmatprep.subr.mxu0 0.0
    %321 = vmatpush1.msra.mxu0 0.0
    %322 = vmatprep.subr.mxu0 0.0
    %323 = vmatpush1.msra.mxu0 0.0
    %324 = vmatprep.subr.mxu0 0.0
    %325 = vmatpush1.msra.mxu0 0.0
    %326 = vmatprep.subr.mxu0 0.0
    %327 = vmatpush1.msra.mxu0 0.0
    %328 = vmatprep.subr.mxu0 0.0
    %329 = vmatpush1.msra.mxu0 0.0
    %330 = vmatprep.subr.mxu0 0.0
    %331 = vmatpush1.msra.mxu0 0.0
    %332 = vmatprep.subr.mxu0 0.0
    %333 = vmatpush1.msra.mxu0 0.0
    %334 = vmatprep.subr.mxu0 0.0
    %335 = vmatpush1.msra.mxu0 0.0
    %336 = vmatprep.subr.mxu0 0.0
    %337 = vmatpush1.msra.mxu0 0.0
    %338 = vmatprep.subr.mxu0 0.0
    %339 = vmatpush1.msra.mxu0 0.0
    %340 = vmatprep.subr.mxu0 0.0
    %341 = vmatpush1.msra.mxu0 0.0
    %342 = vmatprep.subr.mxu0 0.0
    %343 = vmatpush1.msra.mxu0 0.0
    %344 = vmatprep.subr.mxu0 0.0
    %345 = vmatpush1.msra.mxu0 0.0
    %346 = vmatprep.subr.mxu0 0.0
    %347 = vmatpush1.msra.mxu0 0.0
    %348 = vmatprep.subr.mxu0 0.0
    %349 = vmatpush1.msra.mxu0 0.0
    %350 = vmatprep.subr.mxu0 0.0
    %351 = vmatpush1.msra.mxu0 0.0
    %352 = vmatprep.subr.mxu0 0.0
    %353 = vmatpush1.msra.mxu0 0.0
    %354 = vmatprep.mubr.f32.mxu0 0.0
    %355 = vmatmul.mubr.f32.gmra.mrb[0].mxu0 %v267
    %v356 = vpop.f32.mrb[0].mxu0
    %v357 = vadd.f32 %v263, %v356
    %v358 = vpop.f32.mrb[0].mxu0
    %359 = vmatprep.mubr.f32.mxu0 0.0
    %360 = vmatmul.mubr.f32.gmra.mrb[0].mxu0 %v270
    %v361 = vpop.f32.mrb[0].mxu0
    %v362 = vadd.f32 %v263, %v361
    %v363 = vpop.f32.mrb[0].mxu0
    %364 = vmatprep.mubr.f32.mxu0 0.0
    %365 = vmatmul.mubr.f32.gmra.mrb[0].mxu0 %v273
    %v366 = vpop.f32.mrb[0].mxu0
    %v367 = vadd.f32 %v263, %v366
    %v368 = vpop.f32.mrb[0].mxu0
    %369 = vmatprep.mubr.f32.mxu0 0.0
    %370 = vmatmul.mubr.f32.gmra.mrb[0].mxu0 %v276
    %v371 = vpop.f32.mrb[0].mxu0
    %v372 = vadd.f32 %v263, %v371
    %v373 = vpop.f32.mrb[0].mxu0
    %374 = vmatprep.mubr.f32.mxu0 0.0
    %375 = vmatmul.mubr.f32.gmra.mrb[0].mxu0 %v279
    %v376 = vpop.f32.mrb[0].mxu0
    %v377 = vadd.f32 %v263, %v376
    %v378 = vpop.f32.mrb[0].mxu0
    %379 = vmatprep.mubr.f32.mxu0 0.0
    %380 = vmatmul.mubr.f32.gmra.mrb[0].mxu0 %v282
    %v381 = vpop.f32.mrb[0].mxu0
    %v382 = vadd.f32 %v263, %v381
    %v383 = vpop.f32.mrb[0].mxu0
    %384 = vmatprep.mubr.f32.mxu0 0.0
    %385 = vmatmul.mubr.f32.gmra.mrb[0].mxu0 %v285
    %v386 = vpop.f32.mrb[0].mxu0
    %v387 = vadd.f32 %v263, %v386
    %v388 = vpop.f32.mrb[0].mxu0
    %389 = vmatprep.mubr.f32.mxu0 0.0
    %390 = vmatmul.mubr.f32.gmra.mrb[0].mxu0 %v288
    %v391 = vpop.f32.mrb[0].mxu0
    %v392 = vadd.f32 %v263, %v391
    %v393 = vpop.f32.mrb[0].mxu0
    %394 = vdwg.mxu0
    %395 = vst [vmem:[#allocation2] sm:$0xff] %v357
    %396 = vst [vmem:[#allocation2 + $0x8] sm:$0xff] %v362
    %397 = vst [vmem:[#allocation2 + $0x10] sm:$0xff] %v367
    %398 = vst [vmem:[#allocation2 + $0x18] sm:$0xff] %v372
    %399 = vst [vmem:[#allocation2 + $0x20] sm:$0xff] %v377
    %400 = vst [vmem:[#allocation2 + $0x28] sm:$0xff] %v382
    %401 = vst [vmem:[#allocation2 + $0x30] sm:$0xff] %v387
    %402 = vst [vmem:[#allocation2 + $0x38] sm:$0xff] %v392
    %s403 = scalar_lea.vmem %s2, 16
    %v404 = vld [vmem:[%s403] sm:$0xff]
    %v405 = vld [vmem:[%s403 + $0x8] sm:$0xff]
    %s406 = scalar_lea.vmem %s5, 1
    %v407 = vld [vmem:[%s406] sm:$0x1]
    %v409 = vlaneseq
    %v410 = vshrl.u32 %v409, 7
    %v411 = vsub.s32 0, %v410
    %v412 = vrot.slane %v407, %v411
    %414 = vmatprep.subr.mxu0 0.0
    %415 = vmatpush1.msra.mxu0 %v404
    %416 = vmatprep.subr.mxu0 0.0
    %417 = vmatpush1.msra.mxu0 %v405
    %418 = vmatprep.subr.mxu0 0.0
    %419 = vmatpush1.msra.mxu0 0.0
    %420 = vmatprep.subr.mxu0 0.0
    %421 = vmatpush1.msra.mxu0 0.0
    %422 = vmatprep.subr.mxu0 0.0
    %423 = vmatpush1.msra.mxu0 0.0
    %424 = vmatprep.subr.mxu0 0.0
    %425 = vmatpush1.msra.mxu0 0.0
    %426 = vmatprep.subr.mxu0 0.0
    %427 = vmatpush1.msra.mxu0 0.0
    %428 = vmatprep.subr.mxu0 0.0
    %429 = vmatpush1.msra.mxu0 0.0
    %430 = vmatprep.subr.mxu0 0.0
    %431 = vmatpush1.msra.mxu0 0.0
    %432 = vmatprep.subr.mxu0 0.0
    %433 = vmatpush1.msra.mxu0 0.0
    %434 = vmatprep.subr.mxu0 0.0
    %435 = vmatpush1.msra.mxu0 0.0
    %436 = vmatprep.subr.mxu0 0.0
    %437 = vmatpush1.msra.mxu0 0.0
    %438 = vmatprep.subr.mxu0 0.0
    %439 = vmatpush1.msra.mxu0 0.0
    %440 = vmatprep.subr.mxu0 0.0
    %441 = vmatpush1.msra.mxu0 0.0
    %442 = vmatprep.subr.mxu0 0.0
    %443 = vmatpush1.msra.mxu0 0.0
    %444 = vmatprep.subr.mxu0 0.0
    %445 = vmatpush1.msra.mxu0 0.0
    %446 = vmatprep.subr.mxu0 0.0
    %447 = vmatpush1.msra.mxu0 0.0
    %448 = vmatprep.subr.mxu0 0.0
    %449 = vmatpush1.msra.mxu0 0.0
    %450 = vmatprep.subr.mxu0 0.0
    %451 = vmatpush1.msra.mxu0 0.0
    %452 = vmatprep.subr.mxu0 0.0
    %453 = vmatpush1.msra.mxu0 0.0
    %454 = vmatprep.subr.mxu0 0.0
    %455 = vmatpush1.msra.mxu0 0.0
    %456 = vmatprep.subr.mxu0 0.0
    %457 = vmatpush1.msra.mxu0 0.0
    %458 = vmatprep.subr.mxu0 0.0
    %459 = vmatpush1.msra.mxu0 0.0
    %460 = vmatprep.subr.mxu0 0.0
    %461 = vmatpush1.msra.mxu0 0.0
    %462 = vmatprep.subr.mxu0 0.0
    %463 = vmatpush1.msra.mxu0 0.0
    %464 = vmatprep.subr.mxu0 0.0
    %465 = vmatpush1.msra.mxu0 0.0
    %466 = vmatprep.subr.mxu0 0.0
    %467 = vmatpush1.msra.mxu0 0.0
    %468 = vmatprep.subr.mxu0 0.0
    %469 = vmatpush1.msra.mxu0 0.0
    %470 = vmatprep.subr.mxu0 0.0
    %471 = vmatpush1.msra.mxu0 0.0
    %472 = vmatprep.subr.mxu0 0.0
    %473 = vmatpush1.msra.mxu0 0.0
    %474 = vmatprep.subr.mxu0 0.0
    %475 = vmatpush1.msra.mxu0 0.0
    %476 = vmatprep.subr.mxu0 0.0
    %477 = vmatpush1.msra.mxu0 0.0
    %478 = vmatprep.mubr.f32.mxu0 0.0
    %479 = vmatmul.mubr.f32.gmra.mrb[0].mxu0 %v267
    %v480 = vpop.f32.mrb[0].mxu0
    %v481 = vadd.f32 %v412, %v480
    %v482 = vpop.f32.mrb[0].mxu0
    %483 = vmatprep.mubr.f32.mxu0 0.0
    %484 = vmatmul.mubr.f32.gmra.mrb[0].mxu0 %v270
    %v485 = vpop.f32.mrb[0].mxu0
    %v486 = vadd.f32 %v412, %v485
    %v487 = vpop.f32.mrb[0].mxu0
    %488 = vmatprep.mubr.f32.mxu0 0.0
    %489 = vmatmul.mubr.f32.gmra.mrb[0].mxu0 %v273
    %v490 = vpop.f32.mrb[0].mxu0
    %v491 = vadd.f32 %v412, %v490
    %v492 = vpop.f32.mrb[0].mxu0
    %493 = vmatprep.mubr.f32.mxu0 0.0
    %494 = vmatmul.mubr.f32.gmra.mrb[0].mxu0 %v276
    %v495 = vpop.f32.mrb[0].mxu0
    %v496 = vadd.f32 %v412, %v495
    %v497 = vpop.f32.mrb[0].mxu0
    %498 = vmatprep.mubr.f32.mxu0 0.0
    %499 = vmatmul.mubr.f32.gmra.mrb[0].mxu0 %v279
    %v500 = vpop.f32.mrb[0].mxu0
    %v501 = vadd.f32 %v412, %v500
    %v502 = vpop.f32.mrb[0].mxu0
    %503 = vmatprep.mubr.f32.mxu0 0.0
    %504 = vmatmul.mubr.f32.gmra.mrb[0].mxu0 %v282
    %v505 = vpop.f32.mrb[0].mxu0
    %v506 = vadd.f32 %v412, %v505
    %v507 = vpop.f32.mrb[0].mxu0
    %508 = vmatprep.mubr.f32.mxu0 0.0
    %509 = vmatmul.mubr.f32.gmra.mrb[0].mxu0 %v285
    %v510 = vpop.f32.mrb[0].mxu0
    %v511 = vadd.f32 %v412, %v510
    %v512 = vpop.f32.mrb[0].mxu0
    %513 = vmatprep.mubr.f32.mxu0 0.0
    %514 = vmatmul.mubr.f32.gmra.mrb[0].mxu0 %v288
    %v515 = vpop.f32.mrb[0].mxu0
    %v516 = vadd.f32 %v412, %v515
    %v517 = vpop.f32.mrb[0].mxu0
    %518 = vdwg.mxu0
    %519 = vst [vmem:[#allocation3] sm:$0xff] %v481
    %520 = vst [vmem:[#allocation3 + $0x8] sm:$0xff] %v486
    %521 = vst [vmem:[#allocation3 + $0x10] sm:$0xff] %v491
    %522 = vst [vmem:[#allocation3 + $0x18] sm:$0xff] %v496
    %523 = vst [vmem:[#allocation3 + $0x20] sm:$0xff] %v501
    %524 = vst [vmem:[#allocation3 + $0x28] sm:$0xff] %v506
    %525 = vst [vmem:[#allocation3 + $0x30] sm:$0xff] %v511
    %526 = vst [vmem:[#allocation3 + $0x38] sm:$0xff] %v516
    %v527 = vld [vmem:[#allocation9] sm:$0xff]
    %v528 = vld [vmem:[#allocation9 + $0x8] sm:$0xff]
    %v529 = vld [vmem:[#allocation9 + $0x10] sm:$0xff]
    %v530 = vld [vmem:[#allocation9 + $0x18] sm:$0xff]
    %s531 = scalar_lea.vmem [#allocation9], 32
    %v532 = vld [vmem:[%s531] sm:$0xff]
    %v533 = vld [vmem:[%s531 + $0x8] sm:$0xff]
    %v534 = vld [vmem:[%s531 + $0x10] sm:$0xff]
    %v535 = vld [vmem:[%s531 + $0x18] sm:$0xff]
    %v536 = vld [vmem:[#allocation2] sm:$0xff]
    %vm537 = vcmask 261120
    %v539 = vsel %vm537, 0.0, 0
    %541 = vmatprep.subr.mxu0 0.0
    %542 = vmatpush1.msra.mxu0 %v527
    %543 = vmatprep.subr.mxu0 0.0
    %544 = vmatpush1.msra.mxu0 %v528
    %545 = vmatprep.subr.mxu0 0.0
    %546 = vmatpush1.msra.mxu0 %v529
    %547 = vmatprep.subr.mxu0 0.0
    %548 = vmatpush1.msra.mxu0 %v530
    %549 = vmatprep.subr.mxu0 0.0
    %550 = vmatpush1.msra.mxu0 0.0
    %551 = vmatprep.subr.mxu0 0.0
    %552 = vmatpush1.msra.mxu0 0.0
    %553 = vmatprep.subr.mxu0 0.0
    %554 = vmatpush1.msra.mxu0 0.0
    %555 = vmatprep.subr.mxu0 0.0
    %556 = vmatpush1.msra.mxu0 0.0
    %557 = vmatprep.subr.mxu0 0.0
    %558 = vmatpush1.msra.mxu0 0.0
    %559 = vmatprep.subr.mxu0 0.0
    %560 = vmatpush1.msra.mxu0 0.0
    %561 = vmatprep.subr.mxu0 0.0
    %562 = vmatpush1.msra.mxu0 0.0
    %563 = vmatprep.subr.mxu0 0.0
    %564 = vmatpush1.msra.mxu0 0.0
    %565 = vmatprep.subr.mxu0 0.0
    %566 = vmatpush1.msra.mxu0 0.0
    %567 = vmatprep.subr.mxu0 0.0
    %568 = vmatpush1.msra.mxu0 0.0
    %569 = vmatprep.subr.mxu0 0.0
    %570 = vmatpush1.msra.mxu0 0.0
    %571 = vmatprep.subr.mxu0 0.0
    %572 = vmatpush1.msra.mxu0 0.0
    %573 = vmatprep.subr.mxu0 0.0
    %574 = vmatpush1.msra.mxu0 0.0
    %575 = vmatprep.subr.mxu0 0.0
    %576 = vmatpush1.msra.mxu0 0.0
    %577 = vmatprep.subr.mxu0 0.0
    %578 = vmatpush1.msra.mxu0 0.0
    %579 = vmatprep.subr.mxu0 0.0
    %580 = vmatpush1.msra.mxu0 0.0
    %581 = vmatprep.subr.mxu0 0.0
    %582 = vmatpush1.msra.mxu0 0.0
    %583 = vmatprep.subr.mxu0 0.0
    %584 = vmatpush1.msra.mxu0 0.0
    %585 = vmatprep.subr.mxu0 0.0
    %586 = vmatpush1.msra.mxu0 0.0
    %587 = vmatprep.subr.mxu0 0.0
    %588 = vmatpush1.msra.mxu0 0.0
    %589 = vmatprep.subr.mxu0 0.0
    %590 = vmatpush1.msra.mxu0 0.0
    %591 = vmatprep.subr.mxu0 0.0
    %592 = vmatpush1.msra.mxu0 0.0
    %593 = vmatprep.subr.mxu0 0.0
    %594 = vmatpush1.msra.mxu0 0.0
    %595 = vmatprep.subr.mxu0 0.0
    %596 = vmatpush1.msra.mxu0 0.0
    %597 = vmatprep.subr.mxu0 0.0
    %598 = vmatpush1.msra.mxu0 0.0
    %599 = vmatprep.subr.mxu0 0.0
    %600 = vmatpush1.msra.mxu0 0.0
    %601 = vmatprep.subr.mxu0 0.0
    %602 = vmatpush1.msra.mxu0 0.0
    %603 = vmatprep.subr.mxu0 0.0
    %604 = vmatpush1.msra.mxu0 0.0
    %605 = vmatprep.mubr.f32.mxu0 0.0
    %606 = vmatmul.mubr.f32.gmra.mrb[0].mxu0 %v539
    %v607 = vpop.f32.mrb[0].mxu0
    %v608 = vadd.f32 0.0, %v607
    %v609 = vpop.f32.mrb[0].mxu0
    %610 = vdwg.mxu0
    %v611 = vadd.f32 %v536, %v608
    %v612 = vxor.u32 %v611, 2147483648
    %v613 = vmul.f32 %v612, 1.442695
    %v614 = vpow.pop %v613
    %v615 = vadd.f32 %v614, 1.0
    %v616 = vrcp.pop %v615
    %v617 = vmul.f32 1.0, %v616
    %v618 = vmul.f32 %v617, 0.0
    %v619 = vmul.f32 %v617, 2.0
    %v620 = vsub.f32 %v619, 1.0
    %622 = vrot.lane.b32.xlu0 %v620, 64
    %v623 = vpop.permute.xlu0 %622
    %v625 = vmul.f32 %v617, %v623
    %627 = vrot.lane.b32.xlu0 %v625, 32
    %v628 = vpop.permute.xlu0 %627
    %v630 = vadd.f32 %v618, %v628
    %v631 = vtanh.pop %v630
    %633 = vrot.lane.b32.xlu0 %v631, 64
    %v634 = vpop.permute.xlu0 %633
    %v636 = vmul.f32 %v617, %v634
    %s637 = scalar_lea.vmem [#allocation3], 56
    %v638 = vld [vmem:[%s637] sm:$0xff]
    %639 = vmatprep.subr.mxu0 0.0
    %640 = vmatpush1.msra.mxu0 %v532
    %641 = vmatprep.subr.mxu0 0.0
    %642 = vmatpush1.msra.mxu0 %v533
    %643 = vmatprep.subr.mxu0 0.0
    %644 = vmatpush1.msra.mxu0 %v534
    %645 = vmatprep.subr.mxu0 0.0
    %646 = vmatpush1.msra.mxu0 %v535
    %647 = vmatprep.subr.mxu0 0.0
    %648 = vmatpush1.msra.mxu0 0.0
    %649 = vmatprep.subr.mxu0 0.0
    %650 = vmatpush1.msra.mxu0 0.0
    %651 = vmatprep.subr.mxu0 0.0
    %652 = vmatpush1.msra.mxu0 0.0
    %653 = vmatprep.subr.mxu0 0.0
    %654 = vmatpush1.msra.mxu0 0.0
    %655 = vmatprep.subr.mxu0 0.0
    %656 = vmatpush1.msra.mxu0 0.0
    %657 = vmatprep.subr.mxu0 0.0
    %658 = vmatpush1.msra.mxu0 0.0
    %659 = vmatprep.subr.mxu0 0.0
    %660 = vmatpush1.msra.mxu0 0.0
    %661 = vmatprep.subr.mxu0 0.0
    %662 = vmatpush1.msra.mxu0 0.0
    %663 = vmatprep.subr.mxu0 0.0
    %664 = vmatpush1.msra.mxu0 0.0
    %665 = vmatprep.subr.mxu0 0.0
    %666 = vmatpush1.msra.mxu0 0.0
    %667 = vmatprep.subr.mxu0 0.0
    %668 = vmatpush1.msra.mxu0 0.0
    %669 = vmatprep.subr.mxu0 0.0
    %670 = vmatpush1.msra.mxu0 0.0
    %671 = vmatprep.subr.mxu0 0.0
    %672 = vmatpush1.msra.mxu0 0.0
    %673 = vmatprep.subr.mxu0 0.0
    %674 = vmatpush1.msra.mxu0 0.0
    %675 = vmatprep.subr.mxu0 0.0
    %676 = vmatpush1.msra.mxu0 0.0
    %677 = vmatprep.subr.mxu0 0.0
    %678 = vmatpush1.msra.mxu0 0.0
    %679 = vmatprep.subr.mxu0 0.0
    %680 = vmatpush1.msra.mxu0 0.0
    %681 = vmatprep.subr.mxu0 0.0
    %682 = vmatpush1.msra.mxu0 0.0
    %683 = vmatprep.subr.mxu0 0.0
    %684 = vmatpush1.msra.mxu0 0.0
    %685 = vmatprep.subr.mxu0 0.0
    %686 = vmatpush1.msra.mxu0 0.0
    %687 = vmatprep.subr.mxu0 0.0
    %688 = vmatpush1.msra.mxu0 0.0
    %689 = vmatprep.subr.mxu0 0.0
    %690 = vmatpush1.msra.mxu0 0.0
    %691 = vmatprep.subr.mxu0 0.0
    %692 = vmatpush1.msra.mxu0 0.0
    %693 = vmatprep.subr.mxu0 0.0
    %694 = vmatpush1.msra.mxu0 0.0
    %695 = vmatprep.subr.mxu0 0.0
    %696 = vmatpush1.msra.mxu0 0.0
    %697 = vmatprep.subr.mxu0 0.0
    %698 = vmatpush1.msra.mxu0 0.0
    %699 = vmatprep.subr.mxu0 0.0
    %700 = vmatpush1.msra.mxu0 0.0
    %701 = vmatprep.subr.mxu0 0.0
    %702 = vmatpush1.msra.mxu0 0.0
    %703 = vmatprep.mubr.f32.mxu0 0.0
    %704 = vmatmul.mubr.f32.gmra.mrb[0].mxu0 %v539
    %v705 = vpop.f32.mrb[0].mxu0
    %v706 = vadd.f32 0.0, %v705
    %v707 = vpop.f32.mrb[0].mxu0
    %708 = vdwg.mxu0
    %v709 = vadd.f32 %v638, %v706
    %v710 = vxor.u32 %v709, 2147483648
    %v711 = vmul.f32 %v710, 1.442695
    %v712 = vpow.pop %v711
    %v713 = vadd.f32 %v712, 1.0
    %v714 = vrcp.pop %v713
    %v715 = vmul.f32 1.0, %v714
    %v716 = vmul.f32 %v715, 0.0
    %v717 = vmul.f32 %v715, 2.0
    %v718 = vsub.f32 %v717, 1.0
    %720 = vrot.lane.b32.xlu0 %v718, 64
    %v721 = vpop.permute.xlu0 %720
    %v723 = vmul.f32 %v715, %v721
    %725 = vrot.lane.b32.xlu0 %v723, 32
    %v726 = vpop.permute.xlu0 %725
    %v728 = vadd.f32 %v716, %v726
    %v729 = vtanh.pop %v728
    %731 = vrot.lane.b32.xlu0 %v729, 64
    %v732 = vpop.permute.xlu0 %731
    %v734 = vmul.f32 %v715, %v732
    %736 = vrot.lane.b32.xlu0 %v636, 32
    %v737 = vpop.permute.xlu0 %736
    %739 = vst.msk [vmem:[#allocation4] sm:$0xff] %vm537, %v737
    %741 = vrot.lane.b32.xlu0 %v734, 64
    %v742 = vpop.permute.xlu0 %741
    %s744 = scalar_lea.vmem [#allocation4], 56
    %vm745 = vcmask 523520
    %746 = vst.msk [vmem:[%s744] sm:$0xff] %vm745, %v742
    %s747 = scalar_lea.vmem [#allocation2], 8
    %v748 = vld [vmem:[%s747] sm:$0xff]
    %v749 = vsel %vm537, %v737, 0
    %751 = vmatprep.subr.mxu0 0.0
    %752 = vmatpush1.msra.mxu0 %v527
    %753 = vmatprep.subr.mxu0 0.0
    %754 = vmatpush1.msra.mxu0 %v528
    %755 = vmatprep.subr.mxu0 0.0
    %756 = vmatpush1.msra.mxu0 %v529
    %757 = vmatprep.subr.mxu0 0.0
    %758 = vmatpush1.msra.mxu0 %v530
    %759 = vmatprep.subr.mxu0 0.0
    %760 = vmatpush1.msra.mxu0 0.0
    %761 = vmatprep.subr.mxu0 0.0
    %762 = vmatpush1.msra.mxu0 0.0
    %763 = vmatprep.subr.mxu0 0.0
    %764 = vmatpush1.msra.mxu0 0.0
    %765 = vmatprep.subr.mxu0 0.0
    %766 = vmatpush1.msra.mxu0 0.0
    %767 = vmatprep.subr.mxu0 0.0
    %768 = vmatpush1.msra.mxu0 0.0
    %769 = vmatprep.subr.mxu0 0.0
    %770 = vmatpush1.msra.mxu0 0.0
    %771 = vmatprep.subr.mxu0 0.0
    %772 = vmatpush1.msra.mxu0 0.0
    %773 = vmatprep.subr.mxu0 0.0
    %774 = vmatpush1.msra.mxu0 0.0
    %775 = vmatprep.subr.mxu0 0.0
    %776 = vmatpush1.msra.mxu0 0.0
    %777 = vmatprep.subr.mxu0 0.0
    %778 = vmatpush1.msra.mxu0 0.0
    %779 = vmatprep.subr.mxu0 0.0
    %780 = vmatpush1.msra.mxu0 0.0
    %781 = vmatprep.subr.mxu0 0.0
    %782 = vmatpush1.msra.mxu0 0.0
    %783 = vmatprep.subr.mxu0 0.0
    %784 = vmatpush1.msra.mxu0 0.0
    %785 = vmatprep.subr.mxu0 0.0
    %786 = vmatpush1.msra.mxu0 0.0
    %787 = vmatprep.subr.mxu0 0.0
    %788 = vmatpush1.msra.mxu0 0.0
    %789 = vmatprep.subr.mxu0 0.0
    %790 = vmatpush1.msra.mxu0 0.0
    %791 = vmatprep.subr.mxu0 0.0
    %792 = vmatpush1.msra.mxu0 0.0
    %793 = vmatprep.subr.mxu0 0.0
    %794 = vmatpush1.msra.mxu0 0.0
    %795 = vmatprep.subr.mxu0 0.0
    %796 = vmatpush1.msra.mxu0 0.0
    %797 = vmatprep.subr.mxu0 0.0
    %798 = vmatpush1.msra.mxu0 0.0
    %799 = vmatprep.subr.mxu0 0.0
    %800 = vmatpush1.msra.mxu0 0.0
    %801 = vmatprep.subr.mxu0 0.0
    %802 = vmatpush1.msra.mxu0 0.0
    %803 = vmatprep.subr.mxu0 0.0
    %804 = vmatpush1.msra.mxu0 0.0
    %805 = vmatprep.subr.mxu0 0.0
    %806 = vmatpush1.msra.mxu0 0.0
    %807 = vmatprep.subr.mxu0 0.0
    %808 = vmatpush1.msra.mxu0 0.0
    %809 = vmatprep.subr.mxu0 0.0
    %810 = vmatpush1.msra.mxu0 0.0
    %811 = vmatprep.subr.mxu0 0.0
    %812 = vmatpush1.msra.mxu0 0.0
    %813 = vmatprep.subr.mxu0 0.0
    %814 = vmatpush1.msra.mxu0 0.0
    %815 = vmatprep.mubr.f32.mxu0 0.0
    %816 = vmatmul.mubr.f32.gmra.mrb[0].mxu0 %v749
    %v817 = vpop.f32.mrb[0].mxu0
    %v818 = vadd.f32 0.0, %v817
    %v819 = vpop.f32.mrb[0].mxu0
    %820 = vdwg.mxu0
    %v821 = vadd.f32 %v748, %v818
    %v822 = vxor.u32 %v821, 2147483648
    %v823 = vmul.f32 %v822, 1.442695
    %v824 = vpow.pop %v823
    %v825 = vadd.f32 %v824, 1.0
    %v826 = vrcp.pop %v825
    %v827 = vmul.f32 1.0, %v826
    %v828 = vmul.f32 %v827, %v630
    %v829 = vmul.f32 %v827, 2.0
    %v830 = vsub.f32 %v829, 1.0
    %832 = vrot.lane.b32.xlu0 %v830, 64
    %v833 = vpop.permute.xlu0 %832
    %v835 = vmul.f32 %v827, %v833
    %837 = vrot.lane.b32.xlu0 %v835, 32
    %v838 = vpop.permute.xlu0 %837
    %v840 = vadd.f32 %v828, %v838
    %v841 = vtanh.pop %v840
    %843 = vrot.lane.b32.xlu0 %v841, 64
    %v844 = vpop.permute.xlu0 %843
    %v846 = vmul.f32 %v827, %v844
    %s847 = scalar_lea.vmem [#allocation3], 48
    %v848 = vld [vmem:[%s847] sm:$0xff]
    %849 = vrot.lane.b32.xlu0 %v734, 32
    %v850 = vpop.permute.xlu0 %849
    %v851 = vsel %vm537, %v850, 0
    %853 = vmatprep.subr.mxu0 0.0
    %854 = vmatpush1.msra.mxu0 %v532
    %855 = vmatprep.subr.mxu0 0.0
    %856 = vmatpush1.msra.mxu0 %v533
    %857 = vmatprep.subr.mxu0 0.0
    %858 = vmatpush1.msra.mxu0 %v534
    %859 = vmatprep.subr.mxu0 0.0
    %860 = vmatpush1.msra.mxu0 %v535
    %861 = vmatprep.subr.mxu0 0.0
    %862 = vmatpush1.msra.mxu0 0.0
    %863 = vmatprep.subr.mxu0 0.0
    %864 = vmatpush1.msra.mxu0 0.0
    %865 = vmatprep.subr.mxu0 0.0
    %866 = vmatpush1.msra.mxu0 0.0
    %867 = vmatprep.subr.mxu0 0.0
    %868 = vmatpush1.msra.mxu0 0.0
    %869 = vmatprep.subr.mxu0 0.0
    %870 = vmatpush1.msra.mxu0 0.0
    %871 = vmatprep.subr.mxu0 0.0
    %872 = vmatpush1.msra.mxu0 0.0
    %873 = vmatprep.subr.mxu0 0.0
    %874 = vmatpush1.msra.mxu0 0.0
    %875 = vmatprep.subr.mxu0 0.0
    %876 = vmatpush1.msra.mxu0 0.0
    %877 = vmatprep.subr.mxu0 0.0
    %878 = vmatpush1.msra.mxu0 0.0
    %879 = vmatprep.subr.mxu0 0.0
    %880 = vmatpush1.msra.mxu0 0.0
    %881 = vmatprep.subr.mxu0 0.0
    %882 = vmatpush1.msra.mxu0 0.0
    %883 = vmatprep.subr.mxu0 0.0
    %884 = vmatpush1.msra.mxu0 0.0
    %885 = vmatprep.subr.mxu0 0.0
    %886 = vmatpush1.msra.mxu0 0.0
    %887 = vmatprep.subr.mxu0 0.0
    %888 = vmatpush1.msra.mxu0 0.0
    %889 = vmatprep.subr.mxu0 0.0
    %890 = vmatpush1.msra.mxu0 0.0
    %891 = vmatprep.subr.mxu0 0.0
    %892 = vmatpush1.msra.mxu0 0.0
    %893 = vmatprep.subr.mxu0 0.0
    %894 = vmatpush1.msra.mxu0 0.0
    %895 = vmatprep.subr.mxu0 0.0
    %896 = vmatpush1.msra.mxu0 0.0
    %897 = vmatprep.subr.mxu0 0.0
    %898 = vmatpush1.msra.mxu0 0.0
    %899 = vmatprep.subr.mxu0 0.0
    %900 = vmatpush1.msra.mxu0 0.0
    %901 = vmatprep.subr.mxu0 0.0
    %902 = vmatpush1.msra.mxu0 0.0
    %903 = vmatprep.subr.mxu0 0.0
    %904 = vmatpush1.msra.mxu0 0.0
    %905 = vmatprep.subr.mxu0 0.0
    %906 = vmatpush1.msra.mxu0 0.0
    %907 = vmatprep.subr.mxu0 0.0
    %908 = vmatpush1.msra.mxu0 0.0
    %909 = vmatprep.subr.mxu0 0.0
    %910 = vmatpush1.msra.mxu0 0.0
    %911 = vmatprep.subr.mxu0 0.0
    %912 = vmatpush1.msra.mxu0 0.0
    %913 = vmatprep.subr.mxu0 0.0
    %914 = vmatpush1.msra.mxu0 0.0
    %915 = vmatprep.subr.mxu0 0.0
    %916 = vmatpush1.msra.mxu0 0.0
    %917 = vmatprep.mubr.f32.mxu0 0.0
    %918 = vmatmul.mubr.f32.gmra.mrb[0].mxu0 %v851
    %v919 = vpop.f32.mrb[0].mxu0
    %v920 = vadd.f32 0.0, %v919
    %v921 = vpop.f32.mrb[0].mxu0
    %922 = vdwg.mxu0
    %v923 = vadd.f32 %v848, %v920
    %v924 = vxor.u32 %v923, 2147483648
    %v925 = vmul.f32 %v924, 1.442695
    %v926 = vpow.pop %v925
    %v927 = vadd.f32 %v926, 1.0
    %v928 = vrcp.pop %v927
    %v929 = vmul.f32 1.0, %v928
    %v930 = vmul.f32 %v929, %v728
    %v931 = vmul.f32 %v929, 2.0
    %v932 = vsub.f32 %v931, 1.0
    %934 = vrot.lane.b32.xlu0 %v932, 64
    %v935 = vpop.permute.xlu0 %934
    %v937 = vmul.f32 %v929, %v935
    %939 = vrot.lane.b32.xlu0 %v937, 32
    %v940 = vpop.permute.xlu0 %939
    %v942 = vadd.f32 %v930, %v940
    %v943 = vtanh.pop %v942
    %945 = vrot.lane.b32.xlu0 %v943, 64
    %v946 = vpop.permute.xlu0 %945
    %v948 = vmul.f32 %v929, %v946
    %950 = vrot.lane.b32.xlu0 %v846, 32
    %v951 = vpop.permute.xlu0 %950
    %s953 = scalar_lea.vmem [#allocation4], 8
    %954 = vst.msk [vmem:[%s953] sm:$0xff] %vm537, %v951
    %956 = vrot.lane.b32.xlu0 %v948, 64
    %v957 = vpop.permute.xlu0 %956
    %s959 = scalar_lea.vmem [#allocation4], 48
    %960 = vst.msk [vmem:[%s959] sm:$0xff] %vm745, %v957
    %s961 = scalar_lea.vmem [#allocation2], 16
    %v962 = vld [vmem:[%s961] sm:$0xff]
    %v963 = vsel %vm537, %v951, 0
    %965 = vmatprep.subr.mxu0 0.0
    %966 = vmatpush1.msra.mxu0 %v527
    %967 = vmatprep.subr.mxu0 0.0
    %968 = vmatpush1.msra.mxu0 %v528
    %969 = vmatprep.subr.mxu0 0.0
    %970 = vmatpush1.msra.mxu0 %v529
    %971 = vmatprep.subr.mxu0 0.0
    %972 = vmatpush1.msra.mxu0 %v530
    %973 = vmatprep.subr.mxu0 0.0
    %974 = vmatpush1.msra.mxu0 0.0
    %975 = vmatprep.subr.mxu0 0.0
    %976 = vmatpush1.msra.mxu0 0.0
    %977 = vmatprep.subr.mxu0 0.0
    %978 = vmatpush1.msra.mxu0 0.0
    %979 = vmatprep.subr.mxu0 0.0
    %980 = vmatpush1.msra.mxu0 0.0
    %981 = vmatprep.subr.mxu0 0.0
    %982 = vmatpush1.msra.mxu0 0.0
    %983 = vmatprep.subr.mxu0 0.0
    %984 = vmatpush1.msra.mxu0 0.0
    %985 = vmatprep.subr.mxu0 0.0
    %986 = vmatpush1.msra.mxu0 0.0
    %987 = vmatprep.subr.mxu0 0.0
    %988 = vmatpush1.msra.mxu0 0.0
    %989 = vmatprep.subr.mxu0 0.0
    %990 = vmatpush1.msra.mxu0 0.0
    %991 = vmatprep.subr.mxu0 0.0
    %992 = vmatpush1.msra.mxu0 0.0
    %993 = vmatprep.subr.mxu0 0.0
    %994 = vmatpush1.msra.mxu0 0.0
    %995 = vmatprep.subr.mxu0 0.0
    %996 = vmatpush1.msra.mxu0 0.0
    %997 = vmatprep.subr.mxu0 0.0
    %998 = vmatpush1.msra.mxu0 0.0
    %999 = vmatprep.subr.mxu0 0.0
    %1000 = vmatpush1.msra.mxu0 0.0
    %1001 = vmatprep.subr.mxu0 0.0
    %1002 = vmatpush1.msra.mxu0 0.0
    %1003 = vmatprep.subr.mxu0 0.0
    %1004 = vmatpush1.msra.mxu0 0.0
    %1005 = vmatprep.subr.mxu0 0.0
    %1006 = vmatpush1.msra.mxu0 0.0
    %1007 = vmatprep.subr.mxu0 0.0
    %1008 = vmatpush1.msra.mxu0 0.0
    %1009 = vmatprep.subr.mxu0 0.0
    %1010 = vmatpush1.msra.mxu0 0.0
    %1011 = vmatprep.subr.mxu0 0.0
    %1012 = vmatpush1.msra.mxu0 0.0
    %1013 = vmatprep.subr.mxu0 0.0
    %1014 = vmatpush1.msra.mxu0 0.0
    %1015 = vmatprep.subr.mxu0 0.0
    %1016 = vmatpush1.msra.mxu0 0.0
    %1017 = vmatprep.subr.mxu0 0.0
    %1018 = vmatpush1.msra.mxu0 0.0
    %1019 = vmatprep.subr.mxu0 0.0
    %1020 = vmatpush1.msra.mxu0 0.0
    %1021 = vmatprep.subr.mxu0 0.0
    %1022 = vmatpush1.msra.mxu0 0.0
    %1023 = vmatprep.subr.mxu0 0.0
    %1024 = vmatpush1.msra.mxu0 0.0
    %1025 = vmatprep.subr.mxu0 0.0
    %1026 = vmatpush1.msra.mxu0 0.0
    %1027 = vmatprep.subr.mxu0 0.0
    %1028 = vmatpush1.msra.mxu0 0.0
    %1029 = vmatprep.mubr.f32.mxu0 0.0
    %1030 = vmatmul.mubr.f32.gmra.mrb[0].mxu0 %v963
    %v1031 = vpop.f32.mrb[0].mxu0
    %v1032 = vadd.f32 0.0, %v1031
    %v1033 = vpop.f32.mrb[0].mxu0
    %1034 = vdwg.mxu0
    %v1035 = vadd.f32 %v962, %v1032
    %v1036 = vxor.u32 %v1035, 2147483648
    %v1037 = vmul.f32 %v1036, 1.442695
    %v1038 = vpow.pop %v1037
    %v1039 = vadd.f32 %v1038, 1.0
    %v1040 = vrcp.pop %v1039
    %v1041 = vmul.f32 1.0, %v1040
    %v1042 = vmul.f32 %v1041, %v840
    %v1043 = vmul.f32 %v1041, 2.0
    %v1044 = vsub.f32 %v1043, 1.0
    %1046 = vrot.lane.b32.xlu0 %v1044, 64
    %v1047 = vpop.permute.xlu0 %1046
    %v1049 = vmul.f32 %v1041, %v1047
    %1051 = vrot.lane.b32.xlu0 %v1049, 32
    %v1052 = vpop.permute.xlu0 %1051
    %v1054 = vadd.f32 %v1042, %v1052
    %v1055 = vtanh.pop %v1054
    %1057 = vrot.lane.b32.xlu0 %v1055, 64
    %v1058 = vpop.permute.xlu0 %1057
    %v1060 = vmul.f32 %v1041, %v1058
    %s1061 = scalar_lea.vmem [#allocation3], 40
    %v1062 = vld [vmem:[%s1061] sm:$0xff]
    %1063 = vrot.lane.b32.xlu0 %v948, 32
    %v1064 = vpop.permute.xlu0 %1063
    %v1065 = vsel %vm537, %v1064, 0
    %1067 = vmatprep.subr.mxu0 0.0
    %1068 = vmatpush1.msra.mxu0 %v532
    %1069 = vmatprep.subr.mxu0 0.0
    %1070 = vmatpush1.msra.mxu0 %v533
    %1071 = vmatprep.subr.mxu0 0.0
    %1072 = vmatpush1.msra.mxu0 %v534
    %1073 = vmatprep.subr.mxu0 0.0
    %1074 = vmatpush1.msra.mxu0 %v535
    %1075 = vmatprep.subr.mxu0 0.0
    %1076 = vmatpush1.msra.mxu0 0.0
    %1077 = vmatprep.subr.mxu0 0.0
    %1078 = vmatpush1.msra.mxu0 0.0
    %1079 = vmatprep.subr.mxu0 0.0
    %1080 = vmatpush1.msra.mxu0 0.0
    %1081 = vmatprep.subr.mxu0 0.0
    %1082 = vmatpush1.msra.mxu0 0.0
    %1083 = vmatprep.subr.mxu0 0.0
    %1084 = vmatpush1.msra.mxu0 0.0
    %1085 = vmatprep.subr.mxu0 0.0
    %1086 = vmatpush1.msra.mxu0 0.0
    %1087 = vmatprep.subr.mxu0 0.0
    %1088 = vmatpush1.msra.mxu0 0.0
    %1089 = vmatprep.subr.mxu0 0.0
    %1090 = vmatpush1.msra.mxu0 0.0
    %1091 = vmatprep.subr.mxu0 0.0
    %1092 = vmatpush1.msra.mxu0 0.0
    %1093 = vmatprep.subr.mxu0 0.0
    %1094 = vmatpush1.msra.mxu0 0.0
    %1095 = vmatprep.subr.mxu0 0.0
    %1096 = vmatpush1.msra.mxu0 0.0
    %1097 = vmatprep.subr.mxu0 0.0
    %1098 = vmatpush1.msra.mxu0 0.0
    %1099 = vmatprep.subr.mxu0 0.0
    %1100 = vmatpush1.msra.mxu0 0.0
    %1101 = vmatprep.subr.mxu0 0.0
    %1102 = vmatpush1.msra.mxu0 0.0
    %1103 = vmatprep.subr.mxu0 0.0
    %1104 = vmatpush1.msra.mxu0 0.0
    %1105 = vmatprep.subr.mxu0 0.0
    %1106 = vmatpush1.msra.mxu0 0.0
    %1107 = vmatprep.subr.mxu0 0.0
    %1108 = vmatpush1.msra.mxu0 0.0
    %1109 = vmatprep.subr.mxu0 0.0
    %1110 = vmatpush1.msra.mxu0 0.0
    %1111 = vmatprep.subr.mxu0 0.0
    %1112 = vmatpush1.msra.mxu0 0.0
    %1113 = vmatprep.subr.mxu0 0.0
    %1114 = vmatpush1.msra.mxu0 0.0
    %1115 = vmatprep.subr.mxu0 0.0
    %1116 = vmatpush1.msra.mxu0 0.0
    %1117 = vmatprep.subr.mxu0 0.0
    %1118 = vmatpush1.msra.mxu0 0.0
    %1119 = vmatprep.subr.mxu0 0.0
    %1120 = vmatpush1.msra.mxu0 0.0
    %1121 = vmatprep.subr.mxu0 0.0
    %1122 = vmatpush1.msra.mxu0 0.0
    %1123 = vmatprep.subr.mxu0 0.0
    %1124 = vmatpush1.msra.mxu0 0.0
    %1125 = vmatprep.subr.mxu0 0.0
    %1126 = vmatpush1.msra.mxu0 0.0
    %1127 = vmatprep.subr.mxu0 0.0
    %1128 = vmatpush1.msra.mxu0 0.0
    %1129 = vmatprep.subr.mxu0 0.0
    %1130 = vmatpush1.msra.mxu0 0.0
    %1131 = vmatprep.mubr.f32.mxu0 0.0
    %1132 = vmatmul.mubr.f32.gmra.mrb[0].mxu0 %v1065
    %v1133 = vpop.f32.mrb[0].mxu0
    %v1134 = vadd.f32 0.0, %v1133
    %v1135 = vpop.f32.mrb[0].mxu0
    %1136 = vdwg.mxu0
    %v1137 = vadd.f32 %v1062, %v1134
    %v1138 = vxor.u32 %v1137, 2147483648
    %v1139 = vmul.f32 %v1138, 1.442695
    %v1140 = vpow.pop %v1139
    %v1141 = vadd.f32 %v1140, 1.0
    %v1142 = vrcp.pop %v1141
    %v1143 = vmul.f32 1.0, %v1142
    %v1144 = vmul.f32 %v1143, %v942
    %v1145 = vmul.f32 %v1143, 2.0
    %v1146 = vsub.f32 %v1145, 1.0
    %1148 = vrot.lane.b32.xlu0 %v1146, 64
    %v1149 = vpop.permute.xlu0 %1148
    %v1151 = vmul.f32 %v1143, %v1149
    %1153 = vrot.lane.b32.xlu0 %v1151, 32
    %v1154 = vpop.permute.xlu0 %1153
    %v1156 = vadd.f32 %v1144, %v1154
    %v1157 = vtanh.pop %v1156
    %1159 = vrot.lane.b32.xlu0 %v1157, 64
    %v1160 = vpop.permute.xlu0 %1159
    %v1162 = vmul.f32 %v1143, %v1160
    %1164 = vrot.lane.b32.xlu0 %v1060, 32
    %v1165 = vpop.permute.xlu0 %1164
    %s1167 = scalar_lea.vmem [#allocation4], 16
    %1168 = vst.msk [vmem:[%s1167] sm:$0xff] %vm537, %v1165
    %1170 = vrot.lane.b32.xlu0 %v1162, 64
    %v1171 = vpop.permute.xlu0 %1170
    %s1173 = scalar_lea.vmem [#allocation4], 40
    %1174 = vst.msk [vmem:[%s1173] sm:$0xff] %vm745, %v1171
    %s1175 = scalar_lea.vmem [#allocation2], 24
    %v1176 = vld [vmem:[%s1175] sm:$0xff]
    %v1177 = vsel %vm537, %v1165, 0
    %1179 = vmatprep.subr.mxu0 0.0
    %1180 = vmatpush1.msra.mxu0 %v527
    %1181 = vmatprep.subr.mxu0 0.0
    %1182 = vmatpush1.msra.mxu0 %v528
    %1183 = vmatprep.subr.mxu0 0.0
    %1184 = vmatpush1.msra.mxu0 %v529
    %1185 = vmatprep.subr.mxu0 0.0
    %1186 = vmatpush1.msra.mxu0 %v530
    %1187 = vmatprep.subr.mxu0 0.0
    %1188 = vmatpush1.msra.mxu0 0.0
    %1189 = vmatprep.subr.mxu0 0.0
    %1190 = vmatpush1.msra.mxu0 0.0
    %1191 = vmatprep.subr.mxu0 0.0
    %1192 = vmatpush1.msra.mxu0 0.0
    %1193 = vmatprep.subr.mxu0 0.0
    %1194 = vmatpush1.msra.mxu0 0.0
    %1195 = vmatprep.subr.mxu0 0.0
    %1196 = vmatpush1.msra.mxu0 0.0
    %1197 = vmatprep.subr.mxu0 0.0
    %1198 = vmatpush1.msra.mxu0 0.0
    %1199 = vmatprep.subr.mxu0 0.0
    %1200 = vmatpush1.msra.mxu0 0.0
    %1201 = vmatprep.subr.mxu0 0.0
    %1202 = vmatpush1.msra.mxu0 0.0
    %1203 = vmatprep.subr.mxu0 0.0
    %1204 = vmatpush1.msra.mxu0 0.0
    %1205 = vmatprep.subr.mxu0 0.0
    %1206 = vmatpush1.msra.mxu0 0.0
    %1207 = vmatprep.subr.mxu0 0.0
    %1208 = vmatpush1.msra.mxu0 0.0
    %1209 = vmatprep.subr.mxu0 0.0
    %1210 = vmatpush1.msra.mxu0 0.0
    %1211 = vmatprep.subr.mxu0 0.0
    %1212 = vmatpush1.msra.mxu0 0.0
    %1213 = vmatprep.subr.mxu0 0.0
    %1214 = vmatpush1.msra.mxu0 0.0
    %1215 = vmatprep.subr.mxu0 0.0
    %1216 = vmatpush1.msra.mxu0 0.0
    %1217 = vmatprep.subr.mxu0 0.0
    %1218 = vmatpush1.msra.mxu0 0.0
    %1219 = vmatprep.subr.mxu0 0.0
    %1220 = vmatpush1.msra.mxu0 0.0
    %1221 = vmatprep.subr.mxu0 0.0
    %1222 = vmatpush1.msra.mxu0 0.0
    %1223 = vmatprep.subr.mxu0 0.0
    %1224 = vmatpush1.msra.mxu0 0.0
    %1225 = vmatprep.subr.mxu0 0.0
    %1226 = vmatpush1.msra.mxu0 0.0
    %1227 = vmatprep.subr.mxu0 0.0
    %1228 = vmatpush1.msra.mxu0 0.0
    %1229 = vmatprep.subr.mxu0 0.0
    %1230 = vmatpush1.msra.mxu0 0.0
    %1231 = vmatprep.subr.mxu0 0.0
    %1232 = vmatpush1.msra.mxu0 0.0
    %1233 = vmatprep.subr.mxu0 0.0
    %1234 = vmatpush1.msra.mxu0 0.0
    %1235 = vmatprep.subr.mxu0 0.0
    %1236 = vmatpush1.msra.mxu0 0.0
    %1237 = vmatprep.subr.mxu0 0.0
    %1238 = vmatpush1.msra.mxu0 0.0
    %1239 = vmatprep.subr.mxu0 0.0
    %1240 = vmatpush1.msra.mxu0 0.0
    %1241 = vmatprep.subr.mxu0 0.0
    %1242 = vmatpush1.msra.mxu0 0.0
    %1243 = vmatprep.mubr.f32.mxu0 0.0
    %1244 = vmatmul.mubr.f32.gmra.mrb[0].mxu0 %v1177
    %v1245 = vpop.f32.mrb[0].mxu0
    %v1246 = vadd.f32 0.0, %v1245
    %v1247 = vpop.f32.mrb[0].mxu0
    %1248 = vdwg.mxu0
    %v1249 = vadd.f32 %v1176, %v1246
    %v1250 = vxor.u32 %v1249, 2147483648
    %v1251 = vmul.f32 %v1250, 1.442695
    %v1252 = vpow.pop %v1251
    %v1253 = vadd.f32 %v1252, 1.0
    %v1254 = vrcp.pop %v1253
    %v1255 = vmul.f32 1.0, %v1254
    %v1256 = vmul.f32 %v1255, %v1054
    %v1257 = vmul.f32 %v1255, 2.0
    %v1258 = vsub.f32 %v1257, 1.0
    %1260 = vrot.lane.b32.xlu0 %v1258, 64
    %v1261 = vpop.permute.xlu0 %1260
    %v1263 = vmul.f32 %v1255, %v1261
    %1265 = vrot.lane.b32.xlu0 %v1263, 32
    %v1266 = vpop.permute.xlu0 %1265
    %v1268 = vadd.f32 %v1256, %v1266
    %v1269 = vtanh.pop %v1268
    %1271 = vrot.lane.b32.xlu0 %v1269, 64
    %v1272 = vpop.permute.xlu0 %1271
    %v1274 = vmul.f32 %v1255, %v1272
    %s1275 = scalar_lea.vmem [#allocation3], 32
    %v1276 = vld [vmem:[%s1275] sm:$0xff]
    %1277 = vrot.lane.b32.xlu0 %v1162, 32
    %v1278 = vpop.permute.xlu0 %1277
    %v1279 = vsel %vm537, %v1278, 0
    %1281 = vmatprep.subr.mxu0 0.0
    %1282 = vmatpush1.msra.mxu0 %v532
    %1283 = vmatprep.subr.mxu0 0.0
    %1284 = vmatpush1.msra.mxu0 %v533
    %1285 = vmatprep.subr.mxu0 0.0
    %1286 = vmatpush1.msra.mxu0 %v534
    %1287 = vmatprep.subr.mxu0 0.0
    %1288 = vmatpush1.msra.mxu0 %v535
    %1289 = vmatprep.subr.mxu0 0.0
    %1290 = vmatpush1.msra.mxu0 0.0
    %1291 = vmatprep.subr.mxu0 0.0
    %1292 = vmatpush1.msra.mxu0 0.0
    %1293 = vmatprep.subr.mxu0 0.0
    %1294 = vmatpush1.msra.mxu0 0.0
    %1295 = vmatprep.subr.mxu0 0.0
    %1296 = vmatpush1.msra.mxu0 0.0
    %1297 = vmatprep.subr.mxu0 0.0
    %1298 = vmatpush1.msra.mxu0 0.0
    %1299 = vmatprep.subr.mxu0 0.0
    %1300 = vmatpush1.msra.mxu0 0.0
    %1301 = vmatprep.subr.mxu0 0.0
    %1302 = vmatpush1.msra.mxu0 0.0
    %1303 = vmatprep.subr.mxu0 0.0
    %1304 = vmatpush1.msra.mxu0 0.0
    %1305 = vmatprep.subr.mxu0 0.0
    %1306 = vmatpush1.msra.mxu0 0.0
    %1307 = vmatprep.subr.mxu0 0.0
    %1308 = vmatpush1.msra.mxu0 0.0
    %1309 = vmatprep.subr.mxu0 0.0
    %1310 = vmatpush1.msra.mxu0 0.0
    %1311 = vmatprep.subr.mxu0 0.0
    %1312 = vmatpush1.msra.mxu0 0.0
    %1313 = vmatprep.subr.mxu0 0.0
    %1314 = vmatpush1.msra.mxu0 0.0
    %1315 = vmatprep.subr.mxu0 0.0
    %1316 = vmatpush1.msra.mxu0 0.0
    %1317 = vmatprep.subr.mxu0 0.0
    %1318 = vmatpush1.msra.mxu0 0.0
    %1319 = vmatprep.subr.mxu0 0.0
    %1320 = vmatpush1.msra.mxu0 0.0
    %1321 = vmatprep.subr.mxu0 0.0
    %1322 = vmatpush1.msra.mxu0 0.0
    %1323 = vmatprep.subr.mxu0 0.0
    %1324 = vmatpush1.msra.mxu0 0.0
    %1325 = vmatprep.subr.mxu0 0.0
    %1326 = vmatpush1.msra.mxu0 0.0
    %1327 = vmatprep.subr.mxu0 0.0
    %1328 = vmatpush1.msra.mxu0 0.0
    %1329 = vmatprep.subr.mxu0 0.0
    %1330 = vmatpush1.msra.mxu0 0.0
    %1331 = vmatprep.subr.mxu0 0.0
    %1332 = vmatpush1.msra.mxu0 0.0
    %1333 = vmatprep.subr.mxu0 0.0
    %1334 = vmatpush1.msra.mxu0 0.0
    %1335 = vmatprep.subr.mxu0 0.0
    %1336 = vmatpush1.msra.mxu0 0.0
    %1337 = vmatprep.subr.mxu0 0.0
    %1338 = vmatpush1.msra.mxu0 0.0
    %1339 = vmatprep.subr.mxu0 0.0
    %1340 = vmatpush1.msra.mxu0 0.0
    %1341 = vmatprep.subr.mxu0 0.0
    %1342 = vmatpush1.msra.mxu0 0.0
    %1343 = vmatprep.subr.mxu0 0.0
    %1344 = vmatpush1.msra.mxu0 0.0
    %1345 = vmatprep.mubr.f32.mxu0 0.0
    %1346 = vmatmul.mubr.f32.gmra.mrb[0].mxu0 %v1279
    %v1347 = vpop.f32.mrb[0].mxu0
    %v1348 = vadd.f32 0.0, %v1347
    %v1349 = vpop.f32.mrb[0].mxu0
    %1350 = vdwg.mxu0
    %v1351 = vadd.f32 %v1276, %v1348
    %v1352 = vxor.u32 %v1351, 2147483648
    %v1353 = vmul.f32 %v1352, 1.442695
    %v1354 = vpow.pop %v1353
    %v1355 = vadd.f32 %v1354, 1.0
    %v1356 = vrcp.pop %v1355
    %v1357 = vmul.f32 1.0, %v1356
    %v1358 = vmul.f32 %v1357, %v1156
    %v1359 = vmul.f32 %v1357, 2.0
    %v1360 = vsub.f32 %v1359, 1.0
    %1362 = vrot.lane.b32.xlu0 %v1360, 64
    %v1363 = vpop.permute.xlu0 %1362
    %v1365 = vmul.f32 %v1357, %v1363
    %1367 = vrot.lane.b32.xlu0 %v1365, 32
    %v1368 = vpop.permute.xlu0 %1367
    %v1370 = vadd.f32 %v1358, %v1368
    %v1371 = vtanh.pop %v1370
    %1373 = vrot.lane.b32.xlu0 %v1371, 64
    %v1374 = vpop.permute.xlu0 %1373
    %v1376 = vmul.f32 %v1357, %v1374
    %1378 = vrot.lane.b32.xlu0 %v1274, 32
    %v1379 = vpop.permute.xlu0 %1378
    %s1381 = scalar_lea.vmem [#allocation4], 24
    %1382 = vst.msk [vmem:[%s1381] sm:$0xff] %vm537, %v1379
    %1384 = vrot.lane.b32.xlu0 %v1376, 64
    %v1385 = vpop.permute.xlu0 %1384
    %s1387 = scalar_lea.vmem [#allocation4], 32
    %1388 = vst.msk [vmem:[%s1387] sm:$0xff] %vm745, %v1385
    %s1389 = scalar_lea.vmem [#allocation2], 32
    %v1390 = vld [vmem:[%s1389] sm:$0xff]
    %v1391 = vsel %vm537, %v1379, 0
    %1393 = vmatprep.subr.mxu0 0.0
    %1394 = vmatpush1.msra.mxu0 %v527
    %1395 = vmatprep.subr.mxu0 0.0
    %1396 = vmatpush1.msra.mxu0 %v528
    %1397 = vmatprep.subr.mxu0 0.0
    %1398 = vmatpush1.msra.mxu0 %v529
    %1399 = vmatprep.subr.mxu0 0.0
    %1400 = vmatpush1.msra.mxu0 %v530
    %1401 = vmatprep.subr.mxu0 0.0
    %1402 = vmatpush1.msra.mxu0 0.0
    %1403 = vmatprep.subr.mxu0 0.0
    %1404 = vmatpush1.msra.mxu0 0.0
    %1405 = vmatprep.subr.mxu0 0.0
    %1406 = vmatpush1.msra.mxu0 0.0
    %1407 = vmatprep.subr.mxu0 0.0
    %1408 = vmatpush1.msra.mxu0 0.0
    %1409 = vmatprep.subr.mxu0 0.0
    %1410 = vmatpush1.msra.mxu0 0.0
    %1411 = vmatprep.subr.mxu0 0.0
    %1412 = vmatpush1.msra.mxu0 0.0
    %1413 = vmatprep.subr.mxu0 0.0
    %1414 = vmatpush1.msra.mxu0 0.0
    %1415 = vmatprep.subr.mxu0 0.0
    %1416 = vmatpush1.msra.mxu0 0.0
    %1417 = vmatprep.subr.mxu0 0.0
    %1418 = vmatpush1.msra.mxu0 0.0
    %1419 = vmatprep.subr.mxu0 0.0
    %1420 = vmatpush1.msra.mxu0 0.0
    %1421 = vmatprep.subr.mxu0 0.0
    %1422 = vmatpush1.msra.mxu0 0.0
    %1423 = vmatprep.subr.mxu0 0.0
    %1424 = vmatpush1.msra.mxu0 0.0
    %1425 = vmatprep.subr.mxu0 0.0
    %1426 = vmatpush1.msra.mxu0 0.0
    %1427 = vmatprep.subr.mxu0 0.0
    %1428 = vmatpush1.msra.mxu0 0.0
    %1429 = vmatprep.subr.mxu0 0.0
    %1430 = vmatpush1.msra.mxu0 0.0
    %1431 = vmatprep.subr.mxu0 0.0
    %1432 = vmatpush1.msra.mxu0 0.0
    %1433 = vmatprep.subr.mxu0 0.0
    %1434 = vmatpush1.msra.mxu0 0.0
    %1435 = vmatprep.subr.mxu0 0.0
    %1436 = vmatpush1.msra.mxu0 0.0
    %1437 = vmatprep.subr.mxu0 0.0
    %1438 = vmatpush1.msra.mxu0 0.0
    %1439 = vmatprep.subr.mxu0 0.0
    %1440 = vmatpush1.msra.mxu0 0.0
    %1441 = vmatprep.subr.mxu0 0.0
    %1442 = vmatpush1.msra.mxu0 0.0
    %1443 = vmatprep.subr.mxu0 0.0
    %1444 = vmatpush1.msra.mxu0 0.0
    %1445 = vmatprep.subr.mxu0 0.0
    %1446 = vmatpush1.msra.mxu0 0.0
    %1447 = vmatprep.subr.mxu0 0.0
    %1448 = vmatpush1.msra.mxu0 0.0
    %1449 = vmatprep.subr.mxu0 0.0
    %1450 = vmatpush1.msra.mxu0 0.0
    %1451 = vmatprep.subr.mxu0 0.0
    %1452 = vmatpush1.msra.mxu0 0.0
    %1453 = vmatprep.subr.mxu0 0.0
    %1454 = vmatpush1.msra.mxu0 0.0
    %1455 = vmatprep.subr.mxu0 0.0
    %1456 = vmatpush1.msra.mxu0 0.0
    %1457 = vmatprep.mubr.f32.mxu0 0.0
    %1458 = vmatmul.mubr.f32.gmra.mrb[0].mxu0 %v1391
    %v1459 = vpop.f32.mrb[0].mxu0
    %v1460 = vadd.f32 0.0, %v1459
    %v1461 = vpop.f32.mrb[0].mxu0
    %1462 = vdwg.mxu0
    %v1463 = vadd.f32 %v1390, %v1460
    %v1464 = vxor.u32 %v1463, 2147483648
    %v1465 = vmul.f32 %v1464, 1.442695
    %v1466 = vpow.pop %v1465
    %v1467 = vadd.f32 %v1466, 1.0
    %v1468 = vrcp.pop %v1467
    %v1469 = vmul.f32 1.0, %v1468
    %v1470 = vmul.f32 %v1469, %v1268
    %v1471 = vmul.f32 %v1469, 2.0
    %v1472 = vsub.f32 %v1471, 1.0
    %1474 = vrot.lane.b32.xlu0 %v1472, 64
    %v1475 = vpop.permute.xlu0 %1474
    %v1477 = vmul.f32 %v1469, %v1475
    %1479 = vrot.lane.b32.xlu0 %v1477, 32
    %v1480 = vpop.permute.xlu0 %1479
    %v1482 = vadd.f32 %v1470, %v1480
    %v1483 = vtanh.pop %v1482
    %1485 = vrot.lane.b32.xlu0 %v1483, 64
    %v1486 = vpop.permute.xlu0 %1485
    %v1488 = vmul.f32 %v1469, %v1486
    %s1489 = scalar_lea.vmem [#allocation3], 24
    %v1490 = vld [vmem:[%s1489] sm:$0xff]
    %1491 = vrot.lane.b32.xlu0 %v1376, 32
    %v1492 = vpop.permute.xlu0 %1491
    %v1493 = vsel %vm537, %v1492, 0
    %1495 = vmatprep.subr.mxu0 0.0
    %1496 = vmatpush1.msra.mxu0 %v532
    %1497 = vmatprep.subr.mxu0 0.0
    %1498 = vmatpush1.msra.mxu0 %v533
    %1499 = vmatprep.subr.mxu0 0.0
    %1500 = vmatpush1.msra.mxu0 %v534
    %1501 = vmatprep.subr.mxu0 0.0
    %1502 = vmatpush1.msra.mxu0 %v535
    %1503 = vmatprep.subr.mxu0 0.0
    %1504 = vmatpush1.msra.mxu0 0.0
    %1505 = vmatprep.subr.mxu0 0.0
    %1506 = vmatpush1.msra.mxu0 0.0
    %1507 = vmatprep.subr.mxu0 0.0
    %1508 = vmatpush1.msra.mxu0 0.0
    %1509 = vmatprep.subr.mxu0 0.0
    %1510 = vmatpush1.msra.mxu0 0.0
    %1511 = vmatprep.subr.mxu0 0.0
    %1512 = vmatpush1.msra.mxu0 0.0
    %1513 = vmatprep.subr.mxu0 0.0
    %1514 = vmatpush1.msra.mxu0 0.0
    %1515 = vmatprep.subr.mxu0 0.0
    %1516 = vmatpush1.msra.mxu0 0.0
    %1517 = vmatprep.subr.mxu0 0.0
    %1518 = vmatpush1.msra.mxu0 0.0
    %1519 = vmatprep.subr.mxu0 0.0
    %1520 = vmatpush1.msra.mxu0 0.0
    %1521 = vmatprep.subr.mxu0 0.0
    %1522 = vmatpush1.msra.mxu0 0.0
    %1523 = vmatprep.subr.mxu0 0.0
    %1524 = vmatpush1.msra.mxu0 0.0
    %1525 = vmatprep.subr.mxu0 0.0
    %1526 = vmatpush1.msra.mxu0 0.0
    %1527 = vmatprep.subr.mxu0 0.0
    %1528 = vmatpush1.msra.mxu0 0.0
    %1529 = vmatprep.subr.mxu0 0.0
    %1530 = vmatpush1.msra.mxu0 0.0
    %1531 = vmatprep.subr.mxu0 0.0
    %1532 = vmatpush1.msra.mxu0 0.0
    %1533 = vmatprep.subr.mxu0 0.0
    %1534 = vmatpush1.msra.mxu0 0.0
    %1535 = vmatprep.subr.mxu0 0.0
    %1536 = vmatpush1.msra.mxu0 0.0
    %1537 = vmatprep.subr.mxu0 0.0
    %1538 = vmatpush1.msra.mxu0 0.0
    %1539 = vmatprep.subr.mxu0 0.0
    %1540 = vmatpush1.msra.mxu0 0.0
    %1541 = vmatprep.subr.mxu0 0.0
    %1542 = vmatpush1.msra.mxu0 0.0
    %1543 = vmatprep.subr.mxu0 0.0
    %1544 = vmatpush1.msra.mxu0 0.0
    %1545 = vmatprep.subr.mxu0 0.0
    %1546 = vmatpush1.msra.mxu0 0.0
    %1547 = vmatprep.subr.mxu0 0.0
    %1548 = vmatpush1.msra.mxu0 0.0
    %1549 = vmatprep.subr.mxu0 0.0
    %1550 = vmatpush1.msra.mxu0 0.0
    %1551 = vmatprep.subr.mxu0 0.0
    %1552 = vmatpush1.msra.mxu0 0.0
    %1553 = vmatprep.subr.mxu0 0.0
    %1554 = vmatpush1.msra.mxu0 0.0
    %1555 = vmatprep.subr.mxu0 0.0
    %1556 = vmatpush1.msra.mxu0 0.0
    %1557 = vmatprep.subr.mxu0 0.0
    %1558 = vmatpush1.msra.mxu0 0.0
    %1559 = vmatprep.mubr.f32.mxu0 0.0
    %1560 = vmatmul.mubr.f32.gmra.mrb[0].mxu0 %v1493
    %v1561 = vpop.f32.mrb[0].mxu0
    %v1562 = vadd.f32 0.0, %v1561
    %v1563 = vpop.f32.mrb[0].mxu0
    %1564 = vdwg.mxu0
    %v1565 = vadd.f32 %v1490, %v1562
    %v1566 = vxor.u32 %v1565, 2147483648
    %v1567 = vmul.f32 %v1566, 1.442695
    %v1568 = vpow.pop %v1567
    %v1569 = vadd.f32 %v1568, 1.0
    %v1570 = vrcp.pop %v1569
    %v1571 = vmul.f32 1.0, %v1570
    %v1572 = vmul.f32 %v1571, %v1370
    %v1573 = vmul.f32 %v1571, 2.0
    %v1574 = vsub.f32 %v1573, 1.0
    %1576 = vrot.lane.b32.xlu0 %v1574, 64
    %v1577 = vpop.permute.xlu0 %1576
    %v1579 = vmul.f32 %v1571, %v1577
    %1581 = vrot.lane.b32.xlu0 %v1579, 32
    %v1582 = vpop.permute.xlu0 %1581
    %v1584 = vadd.f32 %v1572, %v1582
    %v1585 = vtanh.pop %v1584
    %1587 = vrot.lane.b32.xlu0 %v1585, 64
    %v1588 = vpop.permute.xlu0 %1587
    %v1590 = vmul.f32 %v1571, %v1588
    %1592 = vrot.lane.b32.xlu0 %v1488, 32
    %v1593 = vpop.permute.xlu0 %1592
    %1595 = vst.msk [vmem:[%s1387] sm:$0xff] %vm537, %v1593
    %1597 = vrot.lane.b32.xlu0 %v1590, 64
    %v1598 = vpop.permute.xlu0 %1597
    %1600 = vst.msk [vmem:[%s1381] sm:$0xff] %vm745, %v1598
    %s1601 = scalar_lea.vmem [#allocation2], 40
    %v1602 = vld [vmem:[%s1601] sm:$0xff]
    %v1603 = vsel %vm537, %v1593, 0
    %1605 = vmatprep.subr.mxu0 0.0
    %1606 = vmatpush1.msra.mxu0 %v527
    %1607 = vmatprep.subr.mxu0 0.0
    %1608 = vmatpush1.msra.mxu0 %v528
    %1609 = vmatprep.subr.mxu0 0.0
    %1610 = vmatpush1.msra.mxu0 %v529
    %1611 = vmatprep.subr.mxu0 0.0
    %1612 = vmatpush1.msra.mxu0 %v530
    %1613 = vmatprep.subr.mxu0 0.0
    %1614 = vmatpush1.msra.mxu0 0.0
    %1615 = vmatprep.subr.mxu0 0.0
    %1616 = vmatpush1.msra.mxu0 0.0
    %1617 = vmatprep.subr.mxu0 0.0
    %1618 = vmatpush1.msra.mxu0 0.0
    %1619 = vmatprep.subr.mxu0 0.0
    %1620 = vmatpush1.msra.mxu0 0.0
    %1621 = vmatprep.subr.mxu0 0.0
    %1622 = vmatpush1.msra.mxu0 0.0
    %1623 = vmatprep.subr.mxu0 0.0
    %1624 = vmatpush1.msra.mxu0 0.0
    %1625 = vmatprep.subr.mxu0 0.0
    %1626 = vmatpush1.msra.mxu0 0.0
    %1627 = vmatprep.subr.mxu0 0.0
    %1628 = vmatpush1.msra.mxu0 0.0
    %1629 = vmatprep.subr.mxu0 0.0
    %1630 = vmatpush1.msra.mxu0 0.0
    %1631 = vmatprep.subr.mxu0 0.0
    %1632 = vmatpush1.msra.mxu0 0.0
    %1633 = vmatprep.subr.mxu0 0.0
    %1634 = vmatpush1.msra.mxu0 0.0
    %1635 = vmatprep.subr.mxu0 0.0
    %1636 = vmatpush1.msra.mxu0 0.0
    %1637 = vmatprep.subr.mxu0 0.0
    %1638 = vmatpush1.msra.mxu0 0.0
    %1639 = vmatprep.subr.mxu0 0.0
    %1640 = vmatpush1.msra.mxu0 0.0
    %1641 = vmatprep.subr.mxu0 0.0
    %1642 = vmatpush1.msra.mxu0 0.0
    %1643 = vmatprep.subr.mxu0 0.0
    %1644 = vmatpush1.msra.mxu0 0.0
    %1645 = vmatprep.subr.mxu0 0.0
    %1646 = vmatpush1.msra.mxu0 0.0
    %1647 = vmatprep.subr.mxu0 0.0
    %1648 = vmatpush1.msra.mxu0 0.0
    %1649 = vmatprep.subr.mxu0 0.0
    %1650 = vmatpush1.msra.mxu0 0.0
    %1651 = vmatprep.subr.mxu0 0.0
    %1652 = vmatpush1.msra.mxu0 0.0
    %1653 = vmatprep.subr.mxu0 0.0
    %1654 = vmatpush1.msra.mxu0 0.0
    %1655 = vmatprep.subr.mxu0 0.0
    %1656 = vmatpush1.msra.mxu0 0.0
    %1657 = vmatprep.subr.mxu0 0.0
    %1658 = vmatpush1.msra.mxu0 0.0
    %1659 = vmatprep.subr.mxu0 0.0
    %1660 = vmatpush1.msra.mxu0 0.0
    %1661 = vmatprep.subr.mxu0 0.0
    %1662 = vmatpush1.msra.mxu0 0.0
    %1663 = vmatprep.subr.mxu0 0.0
    %1664 = vmatpush1.msra.mxu0 0.0
    %1665 = vmatprep.subr.mxu0 0.0
    %1666 = vmatpush1.msra.mxu0 0.0
    %1667 = vmatprep.subr.mxu0 0.0
    %1668 = vmatpush1.msra.mxu0 0.0
    %1669 = vmatprep.mubr.f32.mxu0 0.0
    %1670 = vmatmul.mubr.f32.gmra.mrb[0].mxu0 %v1603
    %v1671 = vpop.f32.mrb[0].mxu0
    %v1672 = vadd.f32 0.0, %v1671
    %v1673 = vpop.f32.mrb[0].mxu0
    %1674 = vdwg.mxu0
    %v1675 = vadd.f32 %v1602, %v1672
    %v1676 = vxor.u32 %v1675, 2147483648
    %v1677 = vmul.f32 %v1676, 1.442695
    %v1678 = vpow.pop %v1677
    %v1679 = vadd.f32 %v1678, 1.0
    %v1680 = vrcp.pop %v1679
    %v1681 = vmul.f32 1.0, %v1680
    %v1682 = vmul.f32 %v1681, %v1482
    %v1683 = vmul.f32 %v1681, 2.0
    %v1684 = vsub.f32 %v1683, 1.0
    %1686 = vrot.lane.b32.xlu0 %v1684, 64
    %v1687 = vpop.permute.xlu0 %1686
    %v1689 = vmul.f32 %v1681, %v1687
    %1691 = vrot.lane.b32.xlu0 %v1689, 32
    %v1692 = vpop.permute.xlu0 %1691
    %v1694 = vadd.f32 %v1682, %v1692
    %v1695 = vtanh.pop %v1694
    %1697 = vrot.lane.b32.xlu0 %v1695, 64
    %v1698 = vpop.permute.xlu0 %1697
    %v1700 = vmul.f32 %v1681, %v1698
    %s1701 = scalar_lea.vmem [#allocation3], 16
    %v1702 = vld [vmem:[%s1701] sm:$0xff]
    %1703 = vrot.lane.b32.xlu0 %v1590, 32
    %v1704 = vpop.permute.xlu0 %1703
    %v1705 = vsel %vm537, %v1704, 0
    %1707 = vmatprep.subr.mxu0 0.0
    %1708 = vmatpush1.msra.mxu0 %v532
    %1709 = vmatprep.subr.mxu0 0.0
    %1710 = vmatpush1.msra.mxu0 %v533
    %1711 = vmatprep.subr.mxu0 0.0
    %1712 = vmatpush1.msra.mxu0 %v534
    %1713 = vmatprep.subr.mxu0 0.0
    %1714 = vmatpush1.msra.mxu0 %v535
    %1715 = vmatprep.subr.mxu0 0.0
    %1716 = vmatpush1.msra.mxu0 0.0
    %1717 = vmatprep.subr.mxu0 0.0
    %1718 = vmatpush1.msra.mxu0 0.0
    %1719 = vmatprep.subr.mxu0 0.0
    %1720 = vmatpush1.msra.mxu0 0.0
    %1721 = vmatprep.subr.mxu0 0.0
    %1722 = vmatpush1.msra.mxu0 0.0
    %1723 = vmatprep.subr.mxu0 0.0
    %1724 = vmatpush1.msra.mxu0 0.0
    %1725 = vmatprep.subr.mxu0 0.0
    %1726 = vmatpush1.msra.mxu0 0.0
    %1727 = vmatprep.subr.mxu0 0.0
    %1728 = vmatpush1.msra.mxu0 0.0
    %1729 = vmatprep.subr.mxu0 0.0
    %1730 = vmatpush1.msra.mxu0 0.0
    %1731 = vmatprep.subr.mxu0 0.0
    %1732 = vmatpush1.msra.mxu0 0.0
    %1733 = vmatprep.subr.mxu0 0.0
    %1734 = vmatpush1.msra.mxu0 0.0
    %1735 = vmatprep.subr.mxu0 0.0
    %1736 = vmatpush1.msra.mxu0 0.0
    %1737 = vmatprep.subr.mxu0 0.0
    %1738 = vmatpush1.msra.mxu0 0.0
    %1739 = vmatprep.subr.mxu0 0.0
    %1740 = vmatpush1.msra.mxu0 0.0
    %1741 = vmatprep.subr.mxu0 0.0
    %1742 = vmatpush1.msra.mxu0 0.0
    %1743 = vmatprep.subr.mxu0 0.0
    %1744 = vmatpush1.msra.mxu0 0.0
    %1745 = vmatprep.subr.mxu0 0.0
    %1746 = vmatpush1.msra.mxu0 0.0
    %1747 = vmatprep.subr.mxu0 0.0
    %1748 = vmatpush1.msra.mxu0 0.0
    %1749 = vmatprep.subr.mxu0 0.0
    %1750 = vmatpush1.msra.mxu0 0.0
    %1751 = vmatprep.subr.mxu0 0.0
    %1752 = vmatpush1.msra.mxu0 0.0
    %1753 = vmatprep.subr.mxu0 0.0
    %1754 = vmatpush1.msra.mxu0 0.0
    %1755 = vmatprep.subr.mxu0 0.0
    %1756 = vmatpush1.msra.mxu0 0.0
    %1757 = vmatprep.subr.mxu0 0.0
    %1758 = vmatpush1.msra.mxu0 0.0
    %1759 = vmatprep.subr.mxu0 0.0
    %1760 = vmatpush1.msra.mxu0 0.0
    %1761 = vmatprep.subr.mxu0 0.0
    %1762 = vmatpush1.msra.mxu0 0.0
    %1763 = vmatprep.subr.mxu0 0.0
    %1764 = vmatpush1.msra.mxu0 0.0
    %1765 = vmatprep.subr.mxu0 0.0
    %1766 = vmatpush1.msra.mxu0 0.0
    %1767 = vmatprep.subr.mxu0 0.0
    %1768 = vmatpush1.msra.mxu0 0.0
    %1769 = vmatprep.subr.mxu0 0.0
    %1770 = vmatpush1.msra.mxu0 0.0
    %1771 = vmatprep.mubr.f32.mxu0 0.0
    %1772 = vmatmul.mubr.f32.gmra.mrb[0].mxu0 %v1705
    %v1773 = vpop.f32.mrb[0].mxu0
    %v1774 = vadd.f32 0.0, %v1773
    %v1775 = vpop.f32.mrb[0].mxu0
    %1776 = vdwg.mxu0
    %v1777 = vadd.f32 %v1702, %v1774
    %v1778 = vxor.u32 %v1777, 2147483648
    %v1779 = vmul.f32 %v1778, 1.442695
    %v1780 = vpow.pop %v1779
    %v1781 = vadd.f32 %v1780, 1.0
    %v1782 = vrcp.pop %v1781
    %v1783 = vmul.f32 1.0, %v1782
    %v1784 = vmul.f32 %v1783, %v1584
    %v1785 = vmul.f32 %v1783, 2.0
    %v1786 = vsub.f32 %v1785, 1.0
    %1788 = vrot.lane.b32.xlu0 %v1786, 64
    %v1789 = vpop.permute.xlu0 %1788
    %v1791 = vmul.f32 %v1783, %v1789
    %1793 = vrot.lane.b32.xlu0 %v1791, 32
    %v1794 = vpop.permute.xlu0 %1793
    %v1796 = vadd.f32 %v1784, %v1794
    %v1797 = vtanh.pop %v1796
    %1799 = vrot.lane.b32.xlu0 %v1797, 64
    %v1800 = vpop.permute.xlu0 %1799
    %v1802 = vmul.f32 %v1783, %v1800
    %1804 = vrot.lane.b32.xlu0 %v1700, 32
    %v1805 = vpop.permute.xlu0 %1804
    %1807 = vst.msk [vmem:[%s1173] sm:$0xff] %vm537, %v1805
    %1809 = vrot.lane.b32.xlu0 %v1802, 64
    %v1810 = vpop.permute.xlu0 %1809
    %1812 = vst.msk [vmem:[%s1167] sm:$0xff] %vm745, %v1810
    %s1813 = scalar_lea.vmem [#allocation2], 48
    %v1814 = vld [vmem:[%s1813] sm:$0xff]
    %v1815 = vsel %vm537, %v1805, 0
    %1817 = vmatprep.subr.mxu0 0.0
    %1818 = vmatpush1.msra.mxu0 %v527
    %1819 = vmatprep.subr.mxu0 0.0
    %1820 = vmatpush1.msra.mxu0 %v528
    %1821 = vmatprep.subr.mxu0 0.0
    %1822 = vmatpush1.msra.mxu0 %v529
    %1823 = vmatprep.subr.mxu0 0.0
    %1824 = vmatpush1.msra.mxu0 %v530
    %1825 = vmatprep.subr.mxu0 0.0
    %1826 = vmatpush1.msra.mxu0 0.0
    %1827 = vmatprep.subr.mxu0 0.0
    %1828 = vmatpush1.msra.mxu0 0.0
    %1829 = vmatprep.subr.mxu0 0.0
    %1830 = vmatpush1.msra.mxu0 0.0
    %1831 = vmatprep.subr.mxu0 0.0
    %1832 = vmatpush1.msra.mxu0 0.0
    %1833 = vmatprep.subr.mxu0 0.0
    %1834 = vmatpush1.msra.mxu0 0.0
    %1835 = vmatprep.subr.mxu0 0.0
    %1836 = vmatpush1.msra.mxu0 0.0
    %1837 = vmatprep.subr.mxu0 0.0
    %1838 = vmatpush1.msra.mxu0 0.0
    %1839 = vmatprep.subr.mxu0 0.0
    %1840 = vmatpush1.msra.mxu0 0.0
    %1841 = vmatprep.subr.mxu0 0.0
    %1842 = vmatpush1.msra.mxu0 0.0
    %1843 = vmatprep.subr.mxu0 0.0
    %1844 = vmatpush1.msra.mxu0 0.0
    %1845 = vmatprep.subr.mxu0 0.0
    %1846 = vmatpush1.msra.mxu0 0.0
    %1847 = vmatprep.subr.mxu0 0.0
    %1848 = vmatpush1.msra.mxu0 0.0
    %1849 = vmatprep.subr.mxu0 0.0
    %1850 = vmatpush1.msra.mxu0 0.0
    %1851 = vmatprep.subr.mxu0 0.0
    %1852 = vmatpush1.msra.mxu0 0.0
    %1853 = vmatprep.subr.mxu0 0.0
    %1854 = vmatpush1.msra.mxu0 0.0
    %1855 = vmatprep.subr.mxu0 0.0
    %1856 = vmatpush1.msra.mxu0 0.0
    %1857 = vmatprep.subr.mxu0 0.0
    %1858 = vmatpush1.msra.mxu0 0.0
    %1859 = vmatprep.subr.mxu0 0.0
    %1860 = vmatpush1.msra.mxu0 0.0
    %1861 = vmatprep.subr.mxu0 0.0
    %1862 = vmatpush1.msra.mxu0 0.0
    %1863 = vmatprep.subr.mxu0 0.0
    %1864 = vmatpush1.msra.mxu0 0.0
    %1865 = vmatprep.subr.mxu0 0.0
    %1866 = vmatpush1.msra.mxu0 0.0
    %1867 = vmatprep.subr.mxu0 0.0
    %1868 = vmatpush1.msra.mxu0 0.0
    %1869 = vmatprep.subr.mxu0 0.0
    %1870 = vmatpush1.msra.mxu0 0.0
    %1871 = vmatprep.subr.mxu0 0.0
    %1872 = vmatpush1.msra.mxu0 0.0
    %1873 = vmatprep.subr.mxu0 0.0
    %1874 = vmatpush1.msra.mxu0 0.0
    %1875 = vmatprep.subr.mxu0 0.0
    %1876 = vmatpush1.msra.mxu0 0.0
    %1877 = vmatprep.subr.mxu0 0.0
    %1878 = vmatpush1.msra.mxu0 0.0
    %1879 = vmatprep.subr.mxu0 0.0
    %1880 = vmatpush1.msra.mxu0 0.0
    %1881 = vmatprep.mubr.f32.mxu0 0.0
    %1882 = vmatmul.mubr.f32.gmra.mrb[0].mxu0 %v1815
    %v1883 = vpop.f32.mrb[0].mxu0
    %v1884 = vadd.f32 0.0, %v1883
    %v1885 = vpop.f32.mrb[0].mxu0
    %1886 = vdwg.mxu0
    %v1887 = vadd.f32 %v1814, %v1884
    %v1888 = vxor.u32 %v1887, 2147483648
    %v1889 = vmul.f32 %v1888, 1.442695
    %v1890 = vpow.pop %v1889
    %v1891 = vadd.f32 %v1890, 1.0
    %v1892 = vrcp.pop %v1891
    %v1893 = vmul.f32 1.0, %v1892
    %v1894 = vmul.f32 %v1893, %v1694
    %v1895 = vmul.f32 %v1893, 2.0
    %v1896 = vsub.f32 %v1895, 1.0
    %1898 = vrot.lane.b32.xlu0 %v1896, 64
    %v1899 = vpop.permute.xlu0 %1898
    %v1901 = vmul.f32 %v1893, %v1899
    %1903 = vrot.lane.b32.xlu0 %v1901, 32
    %v1904 = vpop.permute.xlu0 %1903
    %v1906 = vadd.f32 %v1894, %v1904
    %v1907 = vtanh.pop %v1906
    %1909 = vrot.lane.b32.xlu0 %v1907, 64
    %v1910 = vpop.permute.xlu0 %1909
    %v1912 = vmul.f32 %v1893, %v1910
    %s1913 = scalar_lea.vmem [#allocation3], 8
    %v1914 = vld [vmem:[%s1913] sm:$0xff]
    %1915 = vrot.lane.b32.xlu0 %v1802, 32
    %v1916 = vpop.permute.xlu0 %1915
    %v1917 = vsel %vm537, %v1916, 0
    %1919 = vmatprep.subr.mxu0 0.0
    %1920 = vmatpush1.msra.mxu0 %v532
    %1921 = vmatprep.subr.mxu0 0.0
    %1922 = vmatpush1.msra.mxu0 %v533
    %1923 = vmatprep.subr.mxu0 0.0
    %1924 = vmatpush1.msra.mxu0 %v534
    %1925 = vmatprep.subr.mxu0 0.0
    %1926 = vmatpush1.msra.mxu0 %v535
    %1927 = vmatprep.subr.mxu0 0.0
    %1928 = vmatpush1.msra.mxu0 0.0
    %1929 = vmatprep.subr.mxu0 0.0
    %1930 = vmatpush1.msra.mxu0 0.0
    %1931 = vmatprep.subr.mxu0 0.0
    %1932 = vmatpush1.msra.mxu0 0.0
    %1933 = vmatprep.subr.mxu0 0.0
    %1934 = vmatpush1.msra.mxu0 0.0
    %1935 = vmatprep.subr.mxu0 0.0
    %1936 = vmatpush1.msra.mxu0 0.0
    %1937 = vmatprep.subr.mxu0 0.0
    %1938 = vmatpush1.msra.mxu0 0.0
    %1939 = vmatprep.subr.mxu0 0.0
    %1940 = vmatpush1.msra.mxu0 0.0
    %1941 = vmatprep.subr.mxu0 0.0
    %1942 = vmatpush1.msra.mxu0 0.0
    %1943 = vmatprep.subr.mxu0 0.0
    %1944 = vmatpush1.msra.mxu0 0.0
    %1945 = vmatprep.subr.mxu0 0.0
    %1946 = vmatpush1.msra.mxu0 0.0
    %1947 = vmatprep.subr.mxu0 0.0
    %1948 = vmatpush1.msra.mxu0 0.0
    %1949 = vmatprep.subr.mxu0 0.0
    %1950 = vmatpush1.msra.mxu0 0.0
    %1951 = vmatprep.subr.mxu0 0.0
    %1952 = vmatpush1.msra.mxu0 0.0
    %1953 = vmatprep.subr.mxu0 0.0
    %1954 = vmatpush1.msra.mxu0 0.0
    %1955 = vmatprep.subr.mxu0 0.0
    %1956 = vmatpush1.msra.mxu0 0.0
    %1957 = vmatprep.subr.mxu0 0.0
    %1958 = vmatpush1.msra.mxu0 0.0
    %1959 = vmatprep.subr.mxu0 0.0
    %1960 = vmatpush1.msra.mxu0 0.0
    %1961 = vmatprep.subr.mxu0 0.0
    %1962 = vmatpush1.msra.mxu0 0.0
    %1963 = vmatprep.subr.mxu0 0.0
    %1964 = vmatpush1.msra.mxu0 0.0
    %1965 = vmatprep.subr.mxu0 0.0
    %1966 = vmatpush1.msra.mxu0 0.0
    %1967 = vmatprep.subr.mxu0 0.0
    %1968 = vmatpush1.msra.mxu0 0.0
    %1969 = vmatprep.subr.mxu0 0.0
    %1970 = vmatpush1.msra.mxu0 0.0
    %1971 = vmatprep.subr.mxu0 0.0
    %1972 = vmatpush1.msra.mxu0 0.0
    %1973 = vmatprep.subr.mxu0 0.0
    %1974 = vmatpush1.msra.mxu0 0.0
    %1975 = vmatprep.subr.mxu0 0.0
    %1976 = vmatpush1.msra.mxu0 0.0
    %1977 = vmatprep.subr.mxu0 0.0
    %1978 = vmatpush1.msra.mxu0 0.0
    %1979 = vmatprep.subr.mxu0 0.0
    %1980 = vmatpush1.msra.mxu0 0.0
    %1981 = vmatprep.subr.mxu0 0.0
    %1982 = vmatpush1.msra.mxu0 0.0
    %1983 = vmatprep.mubr.f32.mxu0 0.0
    %1984 = vmatmul.mubr.f32.gmra.mrb[0].mxu0 %v1917
    %v1985 = vpop.f32.mrb[0].mxu0
    %v1986 = vadd.f32 0.0, %v1985
    %v1987 = vpop.f32.mrb[0].mxu0
    %1988 = vdwg.mxu0
    %v1989 = vadd.f32 %v1914, %v1986
    %v1990 = vxor.u32 %v1989, 2147483648
    %v1991 = vmul.f32 %v1990, 1.442695
    %v1992 = vpow.pop %v1991
    %v1993 = vadd.f32 %v1992, 1.0
    %v1994 = vrcp.pop %v1993
    %v1995 = vmul.f32 1.0, %v1994
    %v1996 = vmul.f32 %v1995, %v1796
    %v1997 = vmul.f32 %v1995, 2.0
    %v1998 = vsub.f32 %v1997, 1.0
    %2000 = vrot.lane.b32.xlu0 %v1998, 64
    %v2001 = vpop.permute.xlu0 %2000
    %v2003 = vmul.f32 %v1995, %v2001
    %2005 = vrot.lane.b32.xlu0 %v2003, 32
    %v2006 = vpop.permute.xlu0 %2005
    %v2008 = vadd.f32 %v1996, %v2006
    %v2009 = vtanh.pop %v2008
    %2011 = vrot.lane.b32.xlu0 %v2009, 64
    %v2012 = vpop.permute.xlu0 %2011
    %v2014 = vmul.f32 %v1995, %v2012
    %2016 = vrot.lane.b32.xlu0 %v1912, 32
    %v2017 = vpop.permute.xlu0 %2016
    %2019 = vst.msk [vmem:[%s959] sm:$0xff] %vm537, %v2017
    %2021 = vrot.lane.b32.xlu0 %v2014, 64
    %v2022 = vpop.permute.xlu0 %2021
    %2024 = vst.msk [vmem:[%s953] sm:$0xff] %vm745, %v2022
    %s2025 = scalar_lea.vmem [#allocation2], 56
    %v2026 = vld [vmem:[%s2025] sm:$0xff]
    %v2027 = vsel %vm537, %v2017, 0
    %2029 = vmatprep.subr.mxu0 0.0
    %2030 = vmatpush1.msra.mxu0 %v527
    %2031 = vmatprep.subr.mxu0 0.0
    %2032 = vmatpush1.msra.mxu0 %v528
    %2033 = vmatprep.subr.mxu0 0.0
    %2034 = vmatpush1.msra.mxu0 %v529
    %2035 = vmatprep.subr.mxu0 0.0
    %2036 = vmatpush1.msra.mxu0 %v530
    %2037 = vmatprep.subr.mxu0 0.0
    %2038 = vmatpush1.msra.mxu0 0.0
    %2039 = vmatprep.subr.mxu0 0.0
    %2040 = vmatpush1.msra.mxu0 0.0
    %2041 = vmatprep.subr.mxu0 0.0
    %2042 = vmatpush1.msra.mxu0 0.0
    %2043 = vmatprep.subr.mxu0 0.0
    %2044 = vmatpush1.msra.mxu0 0.0
    %2045 = vmatprep.subr.mxu0 0.0
    %2046 = vmatpush1.msra.mxu0 0.0
    %2047 = vmatprep.subr.mxu0 0.0
    %2048 = vmatpush1.msra.mxu0 0.0
    %2049 = vmatprep.subr.mxu0 0.0
    %2050 = vmatpush1.msra.mxu0 0.0
    %2051 = vmatprep.subr.mxu0 0.0
    %2052 = vmatpush1.msra.mxu0 0.0
    %2053 = vmatprep.subr.mxu0 0.0
    %2054 = vmatpush1.msra.mxu0 0.0
    %2055 = vmatprep.subr.mxu0 0.0
    %2056 = vmatpush1.msra.mxu0 0.0
    %2057 = vmatprep.subr.mxu0 0.0
    %2058 = vmatpush1.msra.mxu0 0.0
    %2059 = vmatprep.subr.mxu0 0.0
    %2060 = vmatpush1.msra.mxu0 0.0
    %2061 = vmatprep.subr.mxu0 0.0
    %2062 = vmatpush1.msra.mxu0 0.0
    %2063 = vmatprep.subr.mxu0 0.0
    %2064 = vmatpush1.msra.mxu0 0.0
    %2065 = vmatprep.subr.mxu0 0.0
    %2066 = vmatpush1.msra.mxu0 0.0
    %2067 = vmatprep.subr.mxu0 0.0
    %2068 = vmatpush1.msra.mxu0 0.0
    %2069 = vmatprep.subr.mxu0 0.0
    %2070 = vmatpush1.msra.mxu0 0.0
    %2071 = vmatprep.subr.mxu0 0.0
    %2072 = vmatpush1.msra.mxu0 0.0
    %2073 = vmatprep.subr.mxu0 0.0
    %2074 = vmatpush1.msra.mxu0 0.0
    %2075 = vmatprep.subr.mxu0 0.0
    %2076 = vmatpush1.msra.mxu0 0.0
    %2077 = vmatprep.subr.mxu0 0.0
    %2078 = vmatpush1.msra.mxu0 0.0
    %2079 = vmatprep.subr.mxu0 0.0
    %2080 = vmatpush1.msra.mxu0 0.0
    %2081 = vmatprep.subr.mxu0 0.0
    %2082 = vmatpush1.msra.mxu0 0.0
    %2083 = vmatprep.subr.mxu0 0.0
    %2084 = vmatpush1.msra.mxu0 0.0
    %2085 = vmatprep.subr.mxu0 0.0
    %2086 = vmatpush1.msra.mxu0 0.0
    %2087 = vmatprep.subr.mxu0 0.0
    %2088 = vmatpush1.msra.mxu0 0.0
    %2089 = vmatprep.subr.mxu0 0.0
    %2090 = vmatpush1.msra.mxu0 0.0
    %2091 = vmatprep.subr.mxu0 0.0
    %2092 = vmatpush1.msra.mxu0 0.0
    %2093 = vmatprep.mubr.f32.mxu0 0.0
    %2094 = vmatmul.mubr.f32.gmra.mrb[0].mxu0 %v2027
    %v2095 = vpop.f32.mrb[0].mxu0
    %v2096 = vadd.f32 0.0, %v2095
    %v2097 = vpop.f32.mrb[0].mxu0
    %2098 = vdwg.mxu0
    %v2099 = vadd.f32 %v2026, %v2096
    %v2100 = vxor.u32 %v2099, 2147483648
    %v2101 = vmul.f32 %v2100, 1.442695
    %v2102 = vpow.pop %v2101
    %v2103 = vadd.f32 %v2102, 1.0
    %v2104 = vrcp.pop %v2103
    %v2105 = vmul.f32 1.0, %v2104
    %v2106 = vmul.f32 %v2105, %v1906
    %v2107 = vmul.f32 %v2105, 2.0
    %v2108 = vsub.f32 %v2107, 1.0
    %2110 = vrot.lane.b32.xlu0 %v2108, 64
    %v2111 = vpop.permute.xlu0 %2110
    %v2113 = vmul.f32 %v2105, %v2111
    %2115 = vrot.lane.b32.xlu0 %v2113, 32
    %v2116 = vpop.permute.xlu0 %2115
    %v2118 = vadd.f32 %v2106, %v2116
    %v2119 = vtanh.pop %v2118
    %2121 = vrot.lane.b32.xlu0 %v2119, 64
    %v2122 = vpop.permute.xlu0 %2121
    %v2124 = vmul.f32 %v2105, %v2122
    %v2125 = vld [vmem:[#allocation3] sm:$0xff]
    %2126 = vrot.lane.b32.xlu0 %v2014, 32
    %v2127 = vpop.permute.xlu0 %2126
    %v2128 = vsel %vm537, %v2127, 0
    %2130 = vmatprep.subr.mxu0 0.0
    %2131 = vmatpush1.msra.mxu0 %v532
    %2132 = vmatprep.subr.mxu0 0.0
    %2133 = vmatpush1.msra.mxu0 %v533
    %2134 = vmatprep.subr.mxu0 0.0
    %2135 = vmatpush1.msra.mxu0 %v534
    %2136 = vmatprep.subr.mxu0 0.0
    %2137 = vmatpush1.msra.mxu0 %v535
    %2138 = vmatprep.subr.mxu0 0.0
    %2139 = vmatpush1.msra.mxu0 0.0
    %2140 = vmatprep.subr.mxu0 0.0
    %2141 = vmatpush1.msra.mxu0 0.0
    %2142 = vmatprep.subr.mxu0 0.0
    %2143 = vmatpush1.msra.mxu0 0.0
    %2144 = vmatprep.subr.mxu0 0.0
    %2145 = vmatpush1.msra.mxu0 0.0
    %2146 = vmatprep.subr.mxu0 0.0
    %2147 = vmatpush1.msra.mxu0 0.0
    %2148 = vmatprep.subr.mxu0 0.0
    %2149 = vmatpush1.msra.mxu0 0.0
    %2150 = vmatprep.subr.mxu0 0.0
    %2151 = vmatpush1.msra.mxu0 0.0
    %2152 = vmatprep.subr.mxu0 0.0
    %2153 = vmatpush1.msra.mxu0 0.0
    %2154 = vmatprep.subr.mxu0 0.0
    %2155 = vmatpush1.msra.mxu0 0.0
    %2156 = vmatprep.subr.mxu0 0.0
    %2157 = vmatpush1.msra.mxu0 0.0
    %2158 = vmatprep.subr.mxu0 0.0
    %2159 = vmatpush1.msra.mxu0 0.0
    %2160 = vmatprep.subr.mxu0 0.0
    %2161 = vmatpush1.msra.mxu0 0.0
    %2162 = vmatprep.subr.mxu0 0.0
    %2163 = vmatpush1.msra.mxu0 0.0
    %2164 = vmatprep.subr.mxu0 0.0
    %2165 = vmatpush1.msra.mxu0 0.0
    %2166 = vmatprep.subr.mxu0 0.0
    %2167 = vmatpush1.msra.mxu0 0.0
    %2168 = vmatprep.subr.mxu0 0.0
    %2169 = vmatpush1.msra.mxu0 0.0
    %2170 = vmatprep.subr.mxu0 0.0
    %2171 = vmatpush1.msra.mxu0 0.0
    %2172 = vmatprep.subr.mxu0 0.0
    %2173 = vmatpush1.msra.mxu0 0.0
    %2174 = vmatprep.subr.mxu0 0.0
    %2175 = vmatpush1.msra.mxu0 0.0
    %2176 = vmatprep.subr.mxu0 0.0
    %2177 = vmatpush1.msra.mxu0 0.0
    %2178 = vmatprep.subr.mxu0 0.0
    %2179 = vmatpush1.msra.mxu0 0.0
    %2180 = vmatprep.subr.mxu0 0.0
    %2181 = vmatpush1.msra.mxu0 0.0
    %2182 = vmatprep.subr.mxu0 0.0
    %2183 = vmatpush1.msra.mxu0 0.0
    %2184 = vmatprep.subr.mxu0 0.0
    %2185 = vmatpush1.msra.mxu0 0.0
    %2186 = vmatprep.subr.mxu0 0.0
    %2187 = vmatpush1.msra.mxu0 0.0
    %2188 = vmatprep.subr.mxu0 0.0
    %2189 = vmatpush1.msra.mxu0 0.0
    %2190 = vmatprep.subr.mxu0 0.0
    %2191 = vmatpush1.msra.mxu0 0.0
    %2192 = vmatprep.subr.mxu0 0.0
    %2193 = vmatpush1.msra.mxu0 0.0
    %2194 = vmatprep.mubr.f32.mxu0 0.0
    %2195 = vmatmul.mubr.f32.gmra.mrb[0].mxu0 %v2128
    %v2196 = vpop.f32.mrb[0].mxu0
    %v2197 = vadd.f32 0.0, %v2196
    %v2198 = vpop.f32.mrb[0].mxu0
    %2199 = vdwg.mxu0
    %v2200 = vadd.f32 %v2125, %v2197
    %v2201 = vxor.u32 %v2200, 2147483648
    %v2202 = vmul.f32 %v2201, 1.442695
    %v2203 = vpow.pop %v2202
    %v2204 = vadd.f32 %v2203, 1.0
    %v2205 = vrcp.pop %v2204
    %v2206 = vmul.f32 1.0, %v2205
    %v2207 = vmul.f32 %v2206, %v2008
    %v2208 = vmul.f32 %v2206, 2.0
    %v2209 = vsub.f32 %v2208, 1.0
    %2211 = vrot.lane.b32.xlu0 %v2209, 64
    %v2212 = vpop.permute.xlu0 %2211
    %v2214 = vmul.f32 %v2206, %v2212
    %2216 = vrot.lane.b32.xlu0 %v2214, 32
    %v2217 = vpop.permute.xlu0 %2216
    %v2219 = vadd.f32 %v2207, %v2217
    %v2220 = vtanh.pop %v2219
    %2222 = vrot.lane.b32.xlu0 %v2220, 64
    %v2223 = vpop.permute.xlu0 %2222
    %v2225 = vmul.f32 %v2206, %v2223
    %2227 = vrot.lane.b32.xlu0 %v2124, 32
    %v2228 = vpop.permute.xlu0 %2227
    %2230 = vst.msk [vmem:[%s744] sm:$0xff] %vm537, %v2228
    %2232 = vrot.lane.b32.xlu0 %v2225, 64
    %v2233 = vpop.permute.xlu0 %2232
    %2235 = vst.msk [vmem:[#allocation4] sm:$0xff] %vm745, %v2233
    %v2236 = vld [vmem:[#allocation4] sm:$0xff]
    %v2237 = vld [vmem:[#allocation4 + $0x8] sm:$0xff]
    %v2238 = vld [vmem:[#allocation4 + $0x10] sm:$0xff]
    %v2239 = vld [vmem:[#allocation4 + $0x18] sm:$0xff]
    %v2240 = vld [vmem:[#allocation4 + $0x20] sm:$0xff]
    %v2241 = vld [vmem:[#allocation4 + $0x28] sm:$0xff]
    %v2242 = vld [vmem:[#allocation4 + $0x30] sm:$0xff]
    %v2243 = vld [vmem:[#allocation4 + $0x38] sm:$0xff]
    %v2244 = vld [vmem:[#allocation6] sm:$0xff]
    %v2245 = vld [vmem:[#allocation6 + $0x8] sm:$0xff]
    %v2246 = vld [vmem:[#allocation6 + $0x10] sm:$0xff]
    %v2247 = vld [vmem:[#allocation6 + $0x18] sm:$0xff]
    %v2248 = vld [vmem:[#allocation6 + $0x20] sm:$0xff]
    %v2249 = vld [vmem:[#allocation6 + $0x28] sm:$0xff]
    %v2250 = vld [vmem:[#allocation6 + $0x30] sm:$0xff]
    %v2251 = vld [vmem:[#allocation6 + $0x38] sm:$0xff]
    %s2252 = scalar_lea.vmem %s5, 2
    %v2253 = vld [vmem:[%s2252] sm:$0x1]
    %v2255 = vlaneseq
    %v2256 = vshrl.u32 %v2255, 7
    %v2257 = vsub.s32 0, %v2256
    %v2258 = vrot.slane %v2253, %v2257
    %vm2260 = vcmask 523264
    %v2262 = vsel %vm2260, %v2236, 0
    %v2265 = vsel %vm2260, %v2237, 0
    %v2268 = vsel %vm2260, %v2238, 0
    %v2271 = vsel %vm2260, %v2239, 0
    %v2274 = vsel %vm2260, %v2240, 0
    %v2277 = vsel %vm2260, %v2241, 0
    %v2280 = vsel %vm2260, %v2242, 0
    %v2283 = vsel %vm2260, %v2243, 0
    %2285 = vmatprep.subr.mxu0 0.0
    %2286 = vmatpush1.msra.mxu0 %v2244
    %2287 = vmatprep.subr.mxu0 0.0
    %2288 = vmatpush1.msra.mxu0 %v2245
    %2289 = vmatprep.subr.mxu0 0.0
    %2290 = vmatpush1.msra.mxu0 %v2246
    %2291 = vmatprep.subr.mxu0 0.0
    %2292 = vmatpush1.msra.mxu0 %v2247
    %2293 = vmatprep.subr.mxu0 0.0
    %2294 = vmatpush1.msra.mxu0 %v2248
    %2295 = vmatprep.subr.mxu0 0.0
    %2296 = vmatpush1.msra.mxu0 %v2249
    %2297 = vmatprep.subr.mxu0 0.0
    %2298 = vmatpush1.msra.mxu0 %v2250
    %2299 = vmatprep.subr.mxu0 0.0
    %2300 = vmatpush1.msra.mxu0 %v2251
    %2301 = vmatprep.subr.mxu0 0.0
    %2302 = vmatpush1.msra.mxu0 0.0
    %2303 = vmatprep.subr.mxu0 0.0
    %2304 = vmatpush1.msra.mxu0 0.0
    %2305 = vmatprep.subr.mxu0 0.0
    %2306 = vmatpush1.msra.mxu0 0.0
    %2307 = vmatprep.subr.mxu0 0.0
    %2308 = vmatpush1.msra.mxu0 0.0
    %2309 = vmatprep.subr.mxu0 0.0
    %2310 = vmatpush1.msra.mxu0 0.0
    %2311 = vmatprep.subr.mxu0 0.0
    %2312 = vmatpush1.msra.mxu0 0.0
    %2313 = vmatprep.subr.mxu0 0.0
    %2314 = vmatpush1.msra.mxu0 0.0
    %2315 = vmatprep.subr.mxu0 0.0
    %2316 = vmatpush1.msra.mxu0 0.0
    %2317 = vmatprep.subr.mxu0 0.0
    %2318 = vmatpush1.msra.mxu0 0.0
    %2319 = vmatprep.subr.mxu0 0.0
    %2320 = vmatpush1.msra.mxu0 0.0
    %2321 = vmatprep.subr.mxu0 0.0
    %2322 = vmatpush1.msra.mxu0 0.0
    %2323 = vmatprep.subr.mxu0 0.0
    %2324 = vmatpush1.msra.mxu0 0.0
    %2325 = vmatprep.subr.mxu0 0.0
    %2326 = vmatpush1.msra.mxu0 0.0
    %2327 = vmatprep.subr.mxu0 0.0
    %2328 = vmatpush1.msra.mxu0 0.0
    %2329 = vmatprep.subr.mxu0 0.0
    %2330 = vmatpush1.msra.mxu0 0.0
    %2331 = vmatprep.subr.mxu0 0.0
    %2332 = vmatpush1.msra.mxu0 0.0
    %2333 = vmatprep.subr.mxu0 0.0
    %2334 = vmatpush1.msra.mxu0 0.0
    %2335 = vmatprep.subr.mxu0 0.0
    %2336 = vmatpush1.msra.mxu0 0.0
    %2337 = vmatprep.subr.mxu0 0.0
    %2338 = vmatpush1.msra.mxu0 0.0
    %2339 = vmatprep.subr.mxu0 0.0
    %2340 = vmatpush1.msra.mxu0 0.0
    %2341 = vmatprep.subr.mxu0 0.0
    %2342 = vmatpush1.msra.mxu0 0.0
    %2343 = vmatprep.subr.mxu0 0.0
    %2344 = vmatpush1.msra.mxu0 0.0
    %2345 = vmatprep.subr.mxu0 0.0
    %2346 = vmatpush1.msra.mxu0 0.0
    %2347 = vmatprep.subr.mxu0 0.0
    %2348 = vmatpush1.msra.mxu0 0.0
    %2349 = vmatprep.mubr.f32.mxu0 0.0
    %2350 = vmatmul.mubr.f32.gmra.mrb[0].mxu0 %v2262
    %v2351 = vpop.f32.mrb[0].mxu0
    %v2352 = vadd.f32 %v2258, %v2351
    %v2353 = vpop.f32.mrb[0].mxu0
    %2354 = vmatprep.mubr.f32.mxu0 0.0
    %2355 = vmatmul.mubr.f32.gmra.mrb[0].mxu0 %v2265
    %v2356 = vpop.f32.mrb[0].mxu0
    %v2357 = vadd.f32 %v2258, %v2356
    %v2358 = vpop.f32.mrb[0].mxu0
    %2359 = vmatprep.mubr.f32.mxu0 0.0
    %2360 = vmatmul.mubr.f32.gmra.mrb[0].mxu0 %v2268
    %v2361 = vpop.f32.mrb[0].mxu0
    %v2362 = vadd.f32 %v2258, %v2361
    %v2363 = vpop.f32.mrb[0].mxu0
    %2364 = vmatprep.mubr.f32.mxu0 0.0
    %2365 = vmatmul.mubr.f32.gmra.mrb[0].mxu0 %v2271
    %v2366 = vpop.f32.mrb[0].mxu0
    %v2367 = vadd.f32 %v2258, %v2366
    %v2368 = vpop.f32.mrb[0].mxu0
    %2369 = vmatprep.mubr.f32.mxu0 0.0
    %2370 = vmatmul.mubr.f32.gmra.mrb[0].mxu0 %v2274
    %v2371 = vpop.f32.mrb[0].mxu0
    %v2372 = vadd.f32 %v2258, %v2371
    %v2373 = vpop.f32.mrb[0].mxu0
    %2374 = vmatprep.mubr.f32.mxu0 0.0
    %2375 = vmatmul.mubr.f32.gmra.mrb[0].mxu0 %v2277
    %v2376 = vpop.f32.mrb[0].mxu0
    %v2377 = vadd.f32 %v2258, %v2376
    %v2378 = vpop.f32.mrb[0].mxu0
    %2379 = vmatprep.mubr.f32.mxu0 0.0
    %2380 = vmatmul.mubr.f32.gmra.mrb[0].mxu0 %v2280
    %v2381 = vpop.f32.mrb[0].mxu0
    %v2382 = vadd.f32 %v2258, %v2381
    %v2383 = vpop.f32.mrb[0].mxu0
    %2384 = vmatprep.mubr.f32.mxu0 0.0
    %2385 = vmatmul.mubr.f32.gmra.mrb[0].mxu0 %v2283
    %v2386 = vpop.f32.mrb[0].mxu0
    %v2387 = vadd.f32 %v2258, %v2386
    %v2388 = vpop.f32.mrb[0].mxu0
    %2389 = vdwg.mxu0
    %2390 = vst [vmem:[#allocation2] sm:$0xff] %v2352
    %2391 = vst [vmem:[#allocation2 + $0x8] sm:$0xff] %v2357
    %2392 = vst [vmem:[#allocation2 + $0x10] sm:$0xff] %v2362
    %2393 = vst [vmem:[#allocation2 + $0x18] sm:$0xff] %v2367
    %2394 = vst [vmem:[#allocation2 + $0x20] sm:$0xff] %v2372
    %2395 = vst [vmem:[#allocation2 + $0x28] sm:$0xff] %v2377
    %2396 = vst [vmem:[#allocation2 + $0x30] sm:$0xff] %v2382
    %2397 = vst [vmem:[#allocation2 + $0x38] sm:$0xff] %v2387
    %s2398 = scalar_lea.vmem [#allocation6], 64
    %v2399 = vld [vmem:[%s2398] sm:$0xff]
    %v2400 = vld [vmem:[%s2398 + $0x8] sm:$0xff]
    %v2401 = vld [vmem:[%s2398 + $0x10] sm:$0xff]
    %v2402 = vld [vmem:[%s2398 + $0x18] sm:$0xff]
    %v2403 = vld [vmem:[%s2398 + $0x20] sm:$0xff]
    %v2404 = vld [vmem:[%s2398 + $0x28] sm:$0xff]
    %v2405 = vld [vmem:[%s2398 + $0x30] sm:$0xff]
    %v2406 = vld [vmem:[%s2398 + $0x38] sm:$0xff]
    %s2407 = scalar_lea.vmem %s5, 3
    %v2408 = vld [vmem:[%s2407] sm:$0x1]
    %v2410 = vlaneseq
    %v2411 = vshrl.u32 %v2410, 7
    %v2412 = vsub.s32 0, %v2411
    %v2413 = vrot.slane %v2408, %v2412
    %2415 = vmatprep.subr.mxu0 0.0
    %2416 = vmatpush1.msra.mxu0 %v2399
    %2417 = vmatprep.subr.mxu0 0.0
    %2418 = vmatpush1.msra.mxu0 %v2400
    %2419 = vmatprep.subr.mxu0 0.0
    %2420 = vmatpush1.msra.mxu0 %v2401
    %2421 = vmatprep.subr.mxu0 0.0
    %2422 = vmatpush1.msra.mxu0 %v2402
    %2423 = vmatprep.subr.mxu0 0.0
    %2424 = vmatpush1.msra.mxu0 %v2403
    %2425 = vmatprep.subr.mxu0 0.0
    %2426 = vmatpush1.msra.mxu0 %v2404
    %2427 = vmatprep.subr.mxu0 0.0
    %2428 = vmatpush1.msra.mxu0 %v2405
    %2429 = vmatprep.subr.mxu0 0.0
    %2430 = vmatpush1.msra.mxu0 %v2406
    %2431 = vmatprep.subr.mxu0 0.0
    %2432 = vmatpush1.msra.mxu0 0.0
    %2433 = vmatprep.subr.mxu0 0.0
    %2434 = vmatpush1.msra.mxu0 0.0
    %2435 = vmatprep.subr.mxu0 0.0
    %2436 = vmatpush1.msra.mxu0 0.0
    %2437 = vmatprep.subr.mxu0 0.0
    %2438 = vmatpush1.msra.mxu0 0.0
    %2439 = vmatprep.subr.mxu0 0.0
    %2440 = vmatpush1.msra.mxu0 0.0
    %2441 = vmatprep.subr.mxu0 0.0
    %2442 = vmatpush1.msra.mxu0 0.0
    %2443 = vmatprep.subr.mxu0 0.0
    %2444 = vmatpush1.msra.mxu0 0.0
    %2445 = vmatprep.subr.mxu0 0.0
    %2446 = vmatpush1.msra.mxu0 0.0
    %2447 = vmatprep.subr.mxu0 0.0
    %2448 = vmatpush1.msra.mxu0 0.0
    %2449 = vmatprep.subr.mxu0 0.0
    %2450 = vmatpush1.msra.mxu0 0.0
    %2451 = vmatprep.subr.mxu0 0.0
    %2452 = vmatpush1.msra.mxu0 0.0
    %2453 = vmatprep.subr.mxu0 0.0
    %2454 = vmatpush1.msra.mxu0 0.0
    %2455 = vmatprep.subr.mxu0 0.0
    %2456 = vmatpush1.msra.mxu0 0.0
    %2457 = vmatprep.subr.mxu0 0.0
    %2458 = vmatpush1.msra.mxu0 0.0
    %2459 = vmatprep.subr.mxu0 0.0
    %2460 = vmatpush1.msra.mxu0 0.0
    %2461 = vmatprep.subr.mxu0 0.0
    %2462 = vmatpush1.msra.mxu0 0.0
    %2463 = vmatprep.subr.mxu0 0.0
    %2464 = vmatpush1.msra.mxu0 0.0
    %2465 = vmatprep.subr.mxu0 0.0
    %2466 = vmatpush1.msra.mxu0 0.0
    %2467 = vmatprep.subr.mxu0 0.0
    %2468 = vmatpush1.msra.mxu0 0.0
    %2469 = vmatprep.subr.mxu0 0.0
    %2470 = vmatpush1.msra.mxu0 0.0
    %2471 = vmatprep.subr.mxu0 0.0
    %2472 = vmatpush1.msra.mxu0 0.0
    %2473 = vmatprep.subr.mxu0 0.0
    %2474 = vmatpush1.msra.mxu0 0.0
    %2475 = vmatprep.subr.mxu0 0.0
    %2476 = vmatpush1.msra.mxu0 0.0
    %2477 = vmatprep.subr.mxu0 0.0
    %2478 = vmatpush1.msra.mxu0 0.0
    %2479 = vmatprep.mubr.f32.mxu0 0.0
    %2480 = vmatmul.mubr.f32.gmra.mrb[0].mxu0 %v2262
    %v2481 = vpop.f32.mrb[0].mxu0
    %v2482 = vadd.f32 %v2413, %v2481
    %v2483 = vpop.f32.mrb[0].mxu0
    %2484 = vmatprep.mubr.f32.mxu0 0.0
    %2485 = vmatmul.mubr.f32.gmra.mrb[0].mxu0 %v2265
    %v2486 = vpop.f32.mrb[0].mxu0
    %v2487 = vadd.f32 %v2413, %v2486
    %v2488 = vpop.f32.mrb[0].mxu0
    %2489 = vmatprep.mubr.f32.mxu0 0.0
    %2490 = vmatmul.mubr.f32.gmra.mrb[0].mxu0 %v2268
    %v2491 = vpop.f32.mrb[0].mxu0
    %v2492 = vadd.f32 %v2413, %v2491
    %v2493 = vpop.f32.mrb[0].mxu0
    %2494 = vmatprep.mubr.f32.mxu0 0.0
    %2495 = vmatmul.mubr.f32.gmra.mrb[0].mxu0 %v2271
    %v2496 = vpop.f32.mrb[0].mxu0
    %v2497 = vadd.f32 %v2413, %v2496
    %v2498 = vpop.f32.mrb[0].mxu0
    %2499 = vmatprep.mubr.f32.mxu0 0.0
    %2500 = vmatmul.mubr.f32.gmra.mrb[0].mxu0 %v2274
    %v2501 = vpop.f32.mrb[0].mxu0
    %v2502 = vadd.f32 %v2413, %v2501
    %v2503 = vpop.f32.mrb[0].mxu0
    %2504 = vmatprep.mubr.f32.mxu0 0.0
    %2505 = vmatmul.mubr.f32.gmra.mrb[0].mxu0 %v2277
    %v2506 = vpop.f32.mrb[0].mxu0
    %v2507 = vadd.f32 %v2413, %v2506
    %v2508 = vpop.f32.mrb[0].mxu0
    %2509 = vmatprep.mubr.f32.mxu0 0.0
    %2510 = vmatmul.mubr.f32.gmra.mrb[0].mxu0 %v2280
    %v2511 = vpop.f32.mrb[0].mxu0
    %v2512 = vadd.f32 %v2413, %v2511
    %v2513 = vpop.f32.mrb[0].mxu0
    %2514 = vmatprep.mubr.f32.mxu0 0.0
    %2515 = vmatmul.mubr.f32.gmra.mrb[0].mxu0 %v2283
    %v2516 = vpop.f32.mrb[0].mxu0
    %v2517 = vadd.f32 %v2413, %v2516
    %v2518 = vpop.f32.mrb[0].mxu0
    %2519 = vdwg.mxu0
    %2520 = vst [vmem:[#allocation3] sm:$0xff] %v2482
    %2521 = vst [vmem:[#allocation3 + $0x8] sm:$0xff] %v2487
    %2522 = vst [vmem:[#allocation3 + $0x10] sm:$0xff] %v2492
    %2523 = vst [vmem:[#allocation3 + $0x18] sm:$0xff] %v2497
    %2524 = vst [vmem:[#allocation3 + $0x20] sm:$0xff] %v2502
    %2525 = vst [vmem:[#allocation3 + $0x28] sm:$0xff] %v2507
    %2526 = vst [vmem:[#allocation3 + $0x30] sm:$0xff] %v2512
    %2527 = vst [vmem:[#allocation3 + $0x38] sm:$0xff] %v2517
    %s2528 = scalar_lea.vmem [#allocation9], 64
    %v2529 = vld [vmem:[%s2528] sm:$0xff]
    %v2530 = vld [vmem:[%s2528 + $0x8] sm:$0xff]
    %v2531 = vld [vmem:[%s2528 + $0x10] sm:$0xff]
    %v2532 = vld [vmem:[%s2528 + $0x18] sm:$0xff]
    %s2533 = scalar_lea.vmem [#allocation9], 96
    %v2534 = vld [vmem:[%s2533] sm:$0xff]
    %v2535 = vld [vmem:[%s2533 + $0x8] sm:$0xff]
    %v2536 = vld [vmem:[%s2533 + $0x10] sm:$0xff]
    %v2537 = vld [vmem:[%s2533 + $0x18] sm:$0xff]
    %v2538 = vld [vmem:[#allocation2] sm:$0xff]
    %2539 = vmatprep.subr.mxu0 0.0
    %2540 = vmatpush1.msra.mxu0 %v2529
    %2541 = vmatprep.subr.mxu0 0.0
    %2542 = vmatpush1.msra.mxu0 %v2530
    %2543 = vmatprep.subr.mxu0 0.0
    %2544 = vmatpush1.msra.mxu0 %v2531
    %2545 = vmatprep.subr.mxu0 0.0
    %2546 = vmatpush1.msra.mxu0 %v2532
    %2547 = vmatprep.subr.mxu0 0.0
    %2548 = vmatpush1.msra.mxu0 0.0
    %2549 = vmatprep.subr.mxu0 0.0
    %2550 = vmatpush1.msra.mxu0 0.0
    %2551 = vmatprep.subr.mxu0 0.0
    %2552 = vmatpush1.msra.mxu0 0.0
    %2553 = vmatprep.subr.mxu0 0.0
    %2554 = vmatpush1.msra.mxu0 0.0
    %2555 = vmatprep.subr.mxu0 0.0
    %2556 = vmatpush1.msra.mxu0 0.0
    %2557 = vmatprep.subr.mxu0 0.0
    %2558 = vmatpush1.msra.mxu0 0.0
    %2559 = vmatprep.subr.mxu0 0.0
    %2560 = vmatpush1.msra.mxu0 0.0
    %2561 = vmatprep.subr.mxu0 0.0
    %2562 = vmatpush1.msra.mxu0 0.0
    %2563 = vmatprep.subr.mxu0 0.0
    %2564 = vmatpush1.msra.mxu0 0.0
    %2565 = vmatprep.subr.mxu0 0.0
    %2566 = vmatpush1.msra.mxu0 0.0
    %2567 = vmatprep.subr.mxu0 0.0
    %2568 = vmatpush1.msra.mxu0 0.0
    %2569 = vmatprep.subr.mxu0 0.0
    %2570 = vmatpush1.msra.mxu0 0.0
    %2571 = vmatprep.subr.mxu0 0.0
    %2572 = vmatpush1.msra.mxu0 0.0
    %2573 = vmatprep.subr.mxu0 0.0
    %2574 = vmatpush1.msra.mxu0 0.0
    %2575 = vmatprep.subr.mxu0 0.0
    %2576 = vmatpush1.msra.mxu0 0.0
    %2577 = vmatprep.subr.mxu0 0.0
    %2578 = vmatpush1.msra.mxu0 0.0
    %2579 = vmatprep.subr.mxu0 0.0
    %2580 = vmatpush1.msra.mxu0 0.0
    %2581 = vmatprep.subr.mxu0 0.0
    %2582 = vmatpush1.msra.mxu0 0.0
    %2583 = vmatprep.subr.mxu0 0.0
    %2584 = vmatpush1.msra.mxu0 0.0
    %2585 = vmatprep.subr.mxu0 0.0
    %2586 = vmatpush1.msra.mxu0 0.0
    %2587 = vmatprep.subr.mxu0 0.0
    %2588 = vmatpush1.msra.mxu0 0.0
    %2589 = vmatprep.subr.mxu0 0.0
    %2590 = vmatpush1.msra.mxu0 0.0
    %2591 = vmatprep.subr.mxu0 0.0
    %2592 = vmatpush1.msra.mxu0 0.0
    %2593 = vmatprep.subr.mxu0 0.0
    %2594 = vmatpush1.msra.mxu0 0.0
    %2595 = vmatprep.subr.mxu0 0.0
    %2596 = vmatpush1.msra.mxu0 0.0
    %2597 = vmatprep.subr.mxu0 0.0
    %2598 = vmatpush1.msra.mxu0 0.0
    %2599 = vmatprep.subr.mxu0 0.0
    %2600 = vmatpush1.msra.mxu0 0.0
    %2601 = vmatprep.subr.mxu0 0.0
    %2602 = vmatpush1.msra.mxu0 0.0
    %2603 = vmatprep.mubr.f32.mxu0 0.0
    %2604 = vmatmul.mubr.f32.gmra.mrb[0].mxu0 %v539
    %v2605 = vpop.f32.mrb[0].mxu0
    %v2606 = vadd.f32 0.0, %v2605
    %v2607 = vpop.f32.mrb[0].mxu0
    %2608 = vdwg.mxu0
    %v2609 = vadd.f32 %v2538, %v2606
    %v2610 = vxor.u32 %v2609, 2147483648
    %v2611 = vmul.f32 %v2610, 1.442695
    %v2612 = vpow.pop %v2611
    %v2613 = vadd.f32 %v2612, 1.0
    %v2614 = vrcp.pop %v2613
    %v2615 = vmul.f32 1.0, %v2614
    %v2616 = vmul.f32 %v2615, 0.0
    %v2617 = vmul.f32 %v2615, 2.0
    %v2618 = vsub.f32 %v2617, 1.0
    %2620 = vrot.lane.b32.xlu0 %v2618, 64
    %v2621 = vpop.permute.xlu0 %2620
    %v2623 = vmul.f32 %v2615, %v2621
    %2625 = vrot.lane.b32.xlu0 %v2623, 32
    %v2626 = vpop.permute.xlu0 %2625
    %v2628 = vadd.f32 %v2616, %v2626
    %v2629 = vtanh.pop %v2628
    %2631 = vrot.lane.b32.xlu0 %v2629, 64
    %v2632 = vpop.permute.xlu0 %2631
    %v2634 = vmul.f32 %v2615, %v2632
    %v2635 = vld [vmem:[%s637] sm:$0xff]
    %2636 = vmatprep.subr.mxu0 0.0
    %2637 = vmatpush1.msra.mxu0 %v2534
    %2638 = vmatprep.subr.mxu0 0.0
    %2639 = vmatpush1.msra.mxu0 %v2535
    %2640 = vmatprep.subr.mxu0 0.0
    %2641 = vmatpush1.msra.mxu0 %v2536
    %2642 = vmatprep.subr.mxu0 0.0
    %2643 = vmatpush1.msra.mxu0 %v2537
    %2644 = vmatprep.subr.mxu0 0.0
    %2645 = vmatpush1.msra.mxu0 0.0
    %2646 = vmatprep.subr.mxu0 0.0
    %2647 = vmatpush1.msra.mxu0 0.0
    %2648 = vmatprep.subr.mxu0 0.0
    %2649 = vmatpush1.msra.mxu0 0.0
    %2650 = vmatprep.subr.mxu0 0.0
    %2651 = vmatpush1.msra.mxu0 0.0
    %2652 = vmatprep.subr.mxu0 0.0
    %2653 = vmatpush1.msra.mxu0 0.0
    %2654 = vmatprep.subr.mxu0 0.0
    %2655 = vmatpush1.msra.mxu0 0.0
    %2656 = vmatprep.subr.mxu0 0.0
    %2657 = vmatpush1.msra.mxu0 0.0
    %2658 = vmatprep.subr.mxu0 0.0
    %2659 = vmatpush1.msra.mxu0 0.0
    %2660 = vmatprep.subr.mxu0 0.0
    %2661 = vmatpush1.msra.mxu0 0.0
    %2662 = vmatprep.subr.mxu0 0.0
    %2663 = vmatpush1.msra.mxu0 0.0
    %2664 = vmatprep.subr.mxu0 0.0
    %2665 = vmatpush1.msra.mxu0 0.0
    %2666 = vmatprep.subr.mxu0 0.0
    %2667 = vmatpush1.msra.mxu0 0.0
    %2668 = vmatprep.subr.mxu0 0.0
    %2669 = vmatpush1.msra.mxu0 0.0
    %2670 = vmatprep.subr.mxu0 0.0
    %2671 = vmatpush1.msra.mxu0 0.0
    %2672 = vmatprep.subr.mxu0 0.0
    %2673 = vmatpush1.msra.mxu0 0.0
    %2674 = vmatprep.subr.mxu0 0.0
    %2675 = vmatpush1.msra.mxu0 0.0
    %2676 = vmatprep.subr.mxu0 0.0
    %2677 = vmatpush1.msra.mxu0 0.0
    %2678 = vmatprep.subr.mxu0 0.0
    %2679 = vmatpush1.msra.mxu0 0.0
    %2680 = vmatprep.subr.mxu0 0.0
    %2681 = vmatpush1.msra.mxu0 0.0
    %2682 = vmatprep.subr.mxu0 0.0
    %2683 = vmatpush1.msra.mxu0 0.0
    %2684 = vmatprep.subr.mxu0 0.0
    %2685 = vmatpush1.msra.mxu0 0.0
    %2686 = vmatprep.subr.mxu0 0.0
    %2687 = vmatpush1.msra.mxu0 0.0
    %2688 = vmatprep.subr.mxu0 0.0
    %2689 = vmatpush1.msra.mxu0 0.0
    %2690 = vmatprep.subr.mxu0 0.0
    %2691 = vmatpush1.msra.mxu0 0.0
    %2692 = vmatprep.subr.mxu0 0.0
    %2693 = vmatpush1.msra.mxu0 0.0
    %2694 = vmatprep.subr.mxu0 0.0
    %2695 = vmatpush1.msra.mxu0 0.0
    %2696 = vmatprep.subr.mxu0 0.0
    %2697 = vmatpush1.msra.mxu0 0.0
    %2698 = vmatprep.subr.mxu0 0.0
    %2699 = vmatpush1.msra.mxu0 0.0
    %2700 = vmatprep.mubr.f32.mxu0 0.0
    %2701 = vmatmul.mubr.f32.gmra.mrb[0].mxu0 %v539
    %v2702 = vpop.f32.mrb[0].mxu0
    %v2703 = vadd.f32 0.0, %v2702
    %v2704 = vpop.f32.mrb[0].mxu0
    %2705 = vdwg.mxu0
    %v2706 = vadd.f32 %v2635, %v2703
    %v2707 = vxor.u32 %v2706, 2147483648
    %v2708 = vmul.f32 %v2707, 1.442695
    %v2709 = vpow.pop %v2708
    %v2710 = vadd.f32 %v2709, 1.0
    %v2711 = vrcp.pop %v2710
    %v2712 = vmul.f32 1.0, %v2711
    %v2713 = vmul.f32 %v2712, 0.0
    %v2714 = vmul.f32 %v2712, 2.0
    %v2715 = vsub.f32 %v2714, 1.0
    %2717 = vrot.lane.b32.xlu0 %v2715, 64
    %v2718 = vpop.permute.xlu0 %2717
    %v2720 = vmul.f32 %v2712, %v2718
    %2722 = vrot.lane.b32.xlu0 %v2720, 32
    %v2723 = vpop.permute.xlu0 %2722
    %v2725 = vadd.f32 %v2713, %v2723
    %v2726 = vtanh.pop %v2725
    %2728 = vrot.lane.b32.xlu0 %v2726, 64
    %v2729 = vpop.permute.xlu0 %2728
    %v2731 = vmul.f32 %v2712, %v2729
    %v2732 = vmax.f32 %v2634, 0.0
    %v2733 = vmax.f32 %v2731, 0.0
    %2735 = vrot.lane.b32.xlu0 %v2732, 32
    %v2736 = vpop.permute.xlu0 %2735
    %2738 = vst.msk [vmem:[#allocation5] sm:$0xff] %vm537, %v2736
    %2740 = vrot.lane.b32.xlu0 %v2733, 64
    %v2741 = vpop.permute.xlu0 %2740
    %s2743 = scalar_lea.vmem [#allocation5], 56
    %2744 = vst.msk [vmem:[%s2743] sm:$0xff] %vm745, %v2741
    %v2745 = vld [vmem:[%s747] sm:$0xff]
    %2747 = vrot.lane.b32.xlu0 %v2634, 32
    %v2748 = vpop.permute.xlu0 %2747
    %v2749 = vsel %vm537, %v2748, 0
    %2751 = vmatprep.subr.mxu0 0.0
    %2752 = vmatpush1.msra.mxu0 %v2529
    %2753 = vmatprep.subr.mxu0 0.0
    %2754 = vmatpush1.msra.mxu0 %v2530
    %2755 = vmatprep.subr.mxu0 0.0
    %2756 = vmatpush1.msra.mxu0 %v2531
    %2757 = vmatprep.subr.mxu0 0.0
    %2758 = vmatpush1.msra.mxu0 %v2532
    %2759 = vmatprep.subr.mxu0 0.0
    %2760 = vmatpush1.msra.mxu0 0.0
    %2761 = vmatprep.subr.mxu0 0.0
    %2762 = vmatpush1.msra.mxu0 0.0
    %2763 = vmatprep.subr.mxu0 0.0
    %2764 = vmatpush1.msra.mxu0 0.0
    %2765 = vmatprep.subr.mxu0 0.0
    %2766 = vmatpush1.msra.mxu0 0.0
    %2767 = vmatprep.subr.mxu0 0.0
    %2768 = vmatpush1.msra.mxu0 0.0
    %2769 = vmatprep.subr.mxu0 0.0
    %2770 = vmatpush1.msra.mxu0 0.0
    %2771 = vmatprep.subr.mxu0 0.0
    %2772 = vmatpush1.msra.mxu0 0.0
    %2773 = vmatprep.subr.mxu0 0.0
    %2774 = vmatpush1.msra.mxu0 0.0
    %2775 = vmatprep.subr.mxu0 0.0
    %2776 = vmatpush1.msra.mxu0 0.0
    %2777 = vmatprep.subr.mxu0 0.0
    %2778 = vmatpush1.msra.mxu0 0.0
    %2779 = vmatprep.subr.mxu0 0.0
    %2780 = vmatpush1.msra.mxu0 0.0
    %2781 = vmatprep.subr.mxu0 0.0
    %2782 = vmatpush1.msra.mxu0 0.0
    %2783 = vmatprep.subr.mxu0 0.0
    %2784 = vmatpush1.msra.mxu0 0.0
    %2785 = vmatprep.subr.mxu0 0.0
    %2786 = vmatpush1.msra.mxu0 0.0
    %2787 = vmatprep.subr.mxu0 0.0
    %2788 = vmatpush1.msra.mxu0 0.0
    %2789 = vmatprep.subr.mxu0 0.0
    %2790 = vmatpush1.msra.mxu0 0.0
    %2791 = vmatprep.subr.mxu0 0.0
    %2792 = vmatpush1.msra.mxu0 0.0
    %2793 = vmatprep.subr.mxu0 0.0
    %2794 = vmatpush1.msra.mxu0 0.0
    %2795 = vmatprep.subr.mxu0 0.0
    %2796 = vmatpush1.msra.mxu0 0.0
    %2797 = vmatprep.subr.mxu0 0.0
    %2798 = vmatpush1.msra.mxu0 0.0
    %2799 = vmatprep.subr.mxu0 0.0
    %2800 = vmatpush1.msra.mxu0 0.0
    %2801 = vmatprep.subr.mxu0 0.0
    %2802 = vmatpush1.msra.mxu0 0.0
    %2803 = vmatprep.subr.mxu0 0.0
    %2804 = vmatpush1.msra.mxu0 0.0
    %2805 = vmatprep.subr.mxu0 0.0
    %2806 = vmatpush1.msra.mxu0 0.0
    %2807 = vmatprep.subr.mxu0 0.0
    %2808 = vmatpush1.msra.mxu0 0.0
    %2809 = vmatprep.subr.mxu0 0.0
    %2810 = vmatpush1.msra.mxu0 0.0
    %2811 = vmatprep.subr.mxu0 0.0
    %2812 = vmatpush1.msra.mxu0 0.0
    %2813 = vmatprep.subr.mxu0 0.0
    %2814 = vmatpush1.msra.mxu0 0.0
    %2815 = vmatprep.mubr.f32.mxu0 0.0
    %2816 = vmatmul.mubr.f32.gmra.mrb[0].mxu0 %v2749
    %v2817 = vpop.f32.mrb[0].mxu0
    %v2818 = vadd.f32 0.0, %v2817
    %v2819 = vpop.f32.mrb[0].mxu0
    %2820 = vdwg.mxu0
    %v2821 = vadd.f32 %v2745, %v2818
    %v2822 = vxor.u32 %v2821, 2147483648
    %v2823 = vmul.f32 %v2822, 1.442695
    %v2824 = vpow.pop %v2823
    %v2825 = vadd.f32 %v2824, 1.0
    %v2826 = vrcp.pop %v2825
    %v2827 = vmul.f32 1.0, %v2826
    %v2828 = vmul.f32 %v2827, %v2628
    %v2829 = vmul.f32 %v2827, 2.0
    %v2830 = vsub.f32 %v2829, 1.0
    %2832 = vrot.lane.b32.xlu0 %v2830, 64
    %v2833 = vpop.permute.xlu0 %2832
    %v2835 = vmul.f32 %v2827, %v2833
    %2837 = vrot.lane.b32.xlu0 %v2835, 32
    %v2838 = vpop.permute.xlu0 %2837
    %v2840 = vadd.f32 %v2828, %v2838
    %v2841 = vtanh.pop %v2840
    %2843 = vrot.lane.b32.xlu0 %v2841, 64
    %v2844 = vpop.permute.xlu0 %2843
    %v2846 = vmul.f32 %v2827, %v2844
    %v2847 = vld [vmem:[%s847] sm:$0xff]
    %2849 = vrot.lane.b32.xlu0 %v2731, 32
    %v2850 = vpop.permute.xlu0 %2849
    %v2851 = vsel %vm537, %v2850, 0
    %2853 = vmatprep.subr.mxu0 0.0
    %2854 = vmatpush1.msra.mxu0 %v2534
    %2855 = vmatprep.subr.mxu0 0.0
    %2856 = vmatpush1.msra.mxu0 %v2535
    %2857 = vmatprep.subr.mxu0 0.0
    %2858 = vmatpush1.msra.mxu0 %v2536
    %2859 = vmatprep.subr.mxu0 0.0
    %2860 = vmatpush1.msra.mxu0 %v2537
    %2861 = vmatprep.subr.mxu0 0.0
    %2862 = vmatpush1.msra.mxu0 0.0
    %2863 = vmatprep.subr.mxu0 0.0
    %2864 = vmatpush1.msra.mxu0 0.0
    %2865 = vmatprep.subr.mxu0 0.0
    %2866 = vmatpush1.msra.mxu0 0.0
    %2867 = vmatprep.subr.mxu0 0.0
    %2868 = vmatpush1.msra.mxu0 0.0
    %2869 = vmatprep.subr.mxu0 0.0
    %2870 = vmatpush1.msra.mxu0 0.0
    %2871 = vmatprep.subr.mxu0 0.0
    %2872 = vmatpush1.msra.mxu0 0.0
    %2873 = vmatprep.subr.mxu0 0.0
    %2874 = vmatpush1.msra.mxu0 0.0
    %2875 = vmatprep.subr.mxu0 0.0
    %2876 = vmatpush1.msra.mxu0 0.0
    %2877 = vmatprep.subr.mxu0 0.0
    %2878 = vmatpush1.msra.mxu0 0.0
    %2879 = vmatprep.subr.mxu0 0.0
    %2880 = vmatpush1.msra.mxu0 0.0
    %2881 = vmatprep.subr.mxu0 0.0
    %2882 = vmatpush1.msra.mxu0 0.0
    %2883 = vmatprep.subr.mxu0 0.0
    %2884 = vmatpush1.msra.mxu0 0.0
    %2885 = vmatprep.subr.mxu0 0.0
    %2886 = vmatpush1.msra.mxu0 0.0
    %2887 = vmatprep.subr.mxu0 0.0
    %2888 = vmatpush1.msra.mxu0 0.0
    %2889 = vmatprep.subr.mxu0 0.0
    %2890 = vmatpush1.msra.mxu0 0.0
    %2891 = vmatprep.subr.mxu0 0.0
    %2892 = vmatpush1.msra.mxu0 0.0
    %2893 = vmatprep.subr.mxu0 0.0
    %2894 = vmatpush1.msra.mxu0 0.0
    %2895 = vmatprep.subr.mxu0 0.0
    %2896 = vmatpush1.msra.mxu0 0.0
    %2897 = vmatprep.subr.mxu0 0.0
    %2898 = vmatpush1.msra.mxu0 0.0
    %2899 = vmatprep.subr.mxu0 0.0
    %2900 = vmatpush1.msra.mxu0 0.0
    %2901 = vmatprep.subr.mxu0 0.0
    %2902 = vmatpush1.msra.mxu0 0.0
    %2903 = vmatprep.subr.mxu0 0.0
    %2904 = vmatpush1.msra.mxu0 0.0
    %2905 = vmatprep.subr.mxu0 0.0
    %2906 = vmatpush1.msra.mxu0 0.0
    %2907 = vmatprep.subr.mxu0 0.0
    %2908 = vmatpush1.msra.mxu0 0.0
    %2909 = vmatprep.subr.mxu0 0.0
    %2910 = vmatpush1.msra.mxu0 0.0
    %2911 = vmatprep.subr.mxu0 0.0
    %2912 = vmatpush1.msra.mxu0 0.0
    %2913 = vmatprep.subr.mxu0 0.0
    %2914 = vmatpush1.msra.mxu0 0.0
    %2915 = vmatprep.subr.mxu0 0.0
    %2916 = vmatpush1.msra.mxu0 0.0
    %2917 = vmatprep.mubr.f32.mxu0 0.0
    %2918 = vmatmul.mubr.f32.gmra.mrb[0].mxu0 %v2851
    %v2919 = vpop.f32.mrb[0].mxu0
    %v2920 = vadd.f32 0.0, %v2919
    %v2921 = vpop.f32.mrb[0].mxu0
    %2922 = vdwg.mxu0
    %v2923 = vadd.f32 %v2847, %v2920
    %v2924 = vxor.u32 %v2923, 2147483648
    %v2925 = vmul.f32 %v2924, 1.442695
    %v2926 = vpow.pop %v2925
    %v2927 = vadd.f32 %v2926, 1.0
    %v2928 = vrcp.pop %v2927
    %v2929 = vmul.f32 1.0, %v2928
    %v2930 = vmul.f32 %v2929, %v2725
    %v2931 = vmul.f32 %v2929, 2.0
    %v2932 = vsub.f32 %v2931, 1.0
    %2934 = vrot.lane.b32.xlu0 %v2932, 64
    %v2935 = vpop.permute.xlu0 %2934
    %v2937 = vmul.f32 %v2929, %v2935
    %2939 = vrot.lane.b32.xlu0 %v2937, 32
    %v2940 = vpop.permute.xlu0 %2939
    %v2942 = vadd.f32 %v2930, %v2940
    %v2943 = vtanh.pop %v2942
    %2945 = vrot.lane.b32.xlu0 %v2943, 64
    %v2946 = vpop.permute.xlu0 %2945
    %v2948 = vmul.f32 %v2929, %v2946
    %v2949 = vmax.f32 %v2846, 0.0
    %v2950 = vmax.f32 %v2948, 0.0
    %2952 = vrot.lane.b32.xlu0 %v2949, 32
    %v2953 = vpop.permute.xlu0 %2952
    %s2955 = scalar_lea.vmem [#allocation5], 8
    %2956 = vst.msk [vmem:[%s2955] sm:$0xff] %vm537, %v2953
    %2958 = vrot.lane.b32.xlu0 %v2950, 64
    %v2959 = vpop.permute.xlu0 %2958
    %s2961 = scalar_lea.vmem [#allocation5], 48
    %2962 = vst.msk [vmem:[%s2961] sm:$0xff] %vm745, %v2959
    %v2963 = vld [vmem:[%s961] sm:$0xff]
    %2965 = vrot.lane.b32.xlu0 %v2846, 32
    %v2966 = vpop.permute.xlu0 %2965
    %v2967 = vsel %vm537, %v2966, 0
    %2969 = vmatprep.subr.mxu0 0.0
    %2970 = vmatpush1.msra.mxu0 %v2529
    %2971 = vmatprep.subr.mxu0 0.0
    %2972 = vmatpush1.msra.mxu0 %v2530
    %2973 = vmatprep.subr.mxu0 0.0
    %2974 = vmatpush1.msra.mxu0 %v2531
    %2975 = vmatprep.subr.mxu0 0.0
    %2976 = vmatpush1.msra.mxu0 %v2532
    %2977 = vmatprep.subr.mxu0 0.0
    %2978 = vmatpush1.msra.mxu0 0.0
    %2979 = vmatprep.subr.mxu0 0.0
    %2980 = vmatpush1.msra.mxu0 0.0
    %2981 = vmatprep.subr.mxu0 0.0
    %2982 = vmatpush1.msra.mxu0 0.0
    %2983 = vmatprep.subr.mxu0 0.0
    %2984 = vmatpush1.msra.mxu0 0.0
    %2985 = vmatprep.subr.mxu0 0.0
    %2986 = vmatpush1.msra.mxu0 0.0
    %2987 = vmatprep.subr.mxu0 0.0
    %2988 = vmatpush1.msra.mxu0 0.0
    %2989 = vmatprep.subr.mxu0 0.0
    %2990 = vmatpush1.msra.mxu0 0.0
    %2991 = vmatprep.subr.mxu0 0.0
    %2992 = vmatpush1.msra.mxu0 0.0
    %2993 = vmatprep.subr.mxu0 0.0
    %2994 = vmatpush1.msra.mxu0 0.0
    %2995 = vmatprep.subr.mxu0 0.0
    %2996 = vmatpush1.msra.mxu0 0.0
    %2997 = vmatprep.subr.mxu0 0.0
    %2998 = vmatpush1.msra.mxu0 0.0
    %2999 = vmatprep.subr.mxu0 0.0
    %3000 = vmatpush1.msra.mxu0 0.0
    %3001 = vmatprep.subr.mxu0 0.0
    %3002 = vmatpush1.msra.mxu0 0.0
    %3003 = vmatprep.subr.mxu0 0.0
    %3004 = vmatpush1.msra.mxu0 0.0
    %3005 = vmatprep.subr.mxu0 0.0
    %3006 = vmatpush1.msra.mxu0 0.0
    %3007 = vmatprep.subr.mxu0 0.0
    %3008 = vmatpush1.msra.mxu0 0.0
    %3009 = vmatprep.subr.mxu0 0.0
    %3010 = vmatpush1.msra.mxu0 0.0
    %3011 = vmatprep.subr.mxu0 0.0
    %3012 = vmatpush1.msra.mxu0 0.0
    %3013 = vmatprep.subr.mxu0 0.0
    %3014 = vmatpush1.msra.mxu0 0.0
    %3015 = vmatprep.subr.mxu0 0.0
    %3016 = vmatpush1.msra.mxu0 0.0
    %3017 = vmatprep.subr.mxu0 0.0
    %3018 = vmatpush1.msra.mxu0 0.0
    %3019 = vmatprep.subr.mxu0 0.0
    %3020 = vmatpush1.msra.mxu0 0.0
    %3021 = vmatprep.subr.mxu0 0.0
    %3022 = vmatpush1.msra.mxu0 0.0
    %3023 = vmatprep.subr.mxu0 0.0
    %3024 = vmatpush1.msra.mxu0 0.0
    %3025 = vmatprep.subr.mxu0 0.0
    %3026 = vmatpush1.msra.mxu0 0.0
    %3027 = vmatprep.subr.mxu0 0.0
    %3028 = vmatpush1.msra.mxu0 0.0
    %3029 = vmatprep.subr.mxu0 0.0
    %3030 = vmatpush1.msra.mxu0 0.0
    %3031 = vmatprep.subr.mxu0 0.0
    %3032 = vmatpush1.msra.mxu0 0.0
    %3033 = vmatprep.mubr.f32.mxu0 0.0
    %3034 = vmatmul.mubr.f32.gmra.mrb[0].mxu0 %v2967
    %v3035 = vpop.f32.mrb[0].mxu0
    %v3036 = vadd.f32 0.0, %v3035
    %v3037 = vpop.f32.mrb[0].mxu0
    %3038 = vdwg.mxu0
    %v3039 = vadd.f32 %v2963, %v3036
    %v3040 = vxor.u32 %v3039, 2147483648
    %v3041 = vmul.f32 %v3040, 1.442695
    %v3042 = vpow.pop %v3041
    %v3043 = vadd.f32 %v3042, 1.0
    %v3044 = vrcp.pop %v3043
    %v3045 = vmul.f32 1.0, %v3044
    %v3046 = vmul.f32 %v3045, %v2840
    %v3047 = vmul.f32 %v3045, 2.0
    %v3048 = vsub.f32 %v3047, 1.0
    %3050 = vrot.lane.b32.xlu0 %v3048, 64
    %v3051 = vpop.permute.xlu0 %3050
    %v3053 = vmul.f32 %v3045, %v3051
    %3055 = vrot.lane.b32.xlu0 %v3053, 32
    %v3056 = vpop.permute.xlu0 %3055
    %v3058 = vadd.f32 %v3046, %v3056
    %v3059 = vtanh.pop %v3058
    %3061 = vrot.lane.b32.xlu0 %v3059, 64
    %v3062 = vpop.permute.xlu0 %3061
    %v3064 = vmul.f32 %v3045, %v3062
    %v3065 = vld [vmem:[%s1061] sm:$0xff]
    %3067 = vrot.lane.b32.xlu0 %v2948, 32
    %v3068 = vpop.permute.xlu0 %3067
    %v3069 = vsel %vm537, %v3068, 0
    %3071 = vmatprep.subr.mxu0 0.0
    %3072 = vmatpush1.msra.mxu0 %v2534
    %3073 = vmatprep.subr.mxu0 0.0
    %3074 = vmatpush1.msra.mxu0 %v2535
    %3075 = vmatprep.subr.mxu0 0.0
    %3076 = vmatpush1.msra.mxu0 %v2536
    %3077 = vmatprep.subr.mxu0 0.0
    %3078 = vmatpush1.msra.mxu0 %v2537
    %3079 = vmatprep.subr.mxu0 0.0
    %3080 = vmatpush1.msra.mxu0 0.0
    %3081 = vmatprep.subr.mxu0 0.0
    %3082 = vmatpush1.msra.mxu0 0.0
    %3083 = vmatprep.subr.mxu0 0.0
    %3084 = vmatpush1.msra.mxu0 0.0
    %3085 = vmatprep.subr.mxu0 0.0
    %3086 = vmatpush1.msra.mxu0 0.0
    %3087 = vmatprep.subr.mxu0 0.0
    %3088 = vmatpush1.msra.mxu0 0.0
    %3089 = vmatprep.subr.mxu0 0.0
    %3090 = vmatpush1.msra.mxu0 0.0
    %3091 = vmatprep.subr.mxu0 0.0
    %3092 = vmatpush1.msra.mxu0 0.0
    %3093 = vmatprep.subr.mxu0 0.0
    %3094 = vmatpush1.msra.mxu0 0.0
    %3095 = vmatprep.subr.mxu0 0.0
    %3096 = vmatpush1.msra.mxu0 0.0
    %3097 = vmatprep.subr.mxu0 0.0
    %3098 = vmatpush1.msra.mxu0 0.0
    %3099 = vmatprep.subr.mxu0 0.0
    %3100 = vmatpush1.msra.mxu0 0.0
    %3101 = vmatprep.subr.mxu0 0.0
    %3102 = vmatpush1.msra.mxu0 0.0
    %3103 = vmatprep.subr.mxu0 0.0
    %3104 = vmatpush1.msra.mxu0 0.0
    %3105 = vmatprep.subr.mxu0 0.0
    %3106 = vmatpush1.msra.mxu0 0.0
    %3107 = vmatprep.subr.mxu0 0.0
    %3108 = vmatpush1.msra.mxu0 0.0
    %3109 = vmatprep.subr.mxu0 0.0
    %3110 = vmatpush1.msra.mxu0 0.0
    %3111 = vmatprep.subr.mxu0 0.0
    %3112 = vmatpush1.msra.mxu0 0.0
    %3113 = vmatprep.subr.mxu0 0.0
    %3114 = vmatpush1.msra.mxu0 0.0
    %3115 = vmatprep.subr.mxu0 0.0
    %3116 = vmatpush1.msra.mxu0 0.0
    %3117 = vmatprep.subr.mxu0 0.0
    %3118 = vmatpush1.msra.mxu0 0.0
    %3119 = vmatprep.subr.mxu0 0.0
    %3120 = vmatpush1.msra.mxu0 0.0
    %3121 = vmatprep.subr.mxu0 0.0
    %3122 = vmatpush1.msra.mxu0 0.0
    %3123 = vmatprep.subr.mxu0 0.0
    %3124 = vmatpush1.msra.mxu0 0.0
    %3125 = vmatprep.subr.mxu0 0.0
    %3126 = vmatpush1.msra.mxu0 0.0
    %3127 = vmatprep.subr.mxu0 0.0
    %3128 = vmatpush1.msra.mxu0 0.0
    %3129 = vmatprep.subr.mxu0 0.0
    %3130 = vmatpush1.msra.mxu0 0.0
    %3131 = vmatprep.subr.mxu0 0.0
    %3132 = vmatpush1.msra.mxu0 0.0
    %3133 = vmatprep.subr.mxu0 0.0
    %3134 = vmatpush1.msra.mxu0 0.0
    %3135 = vmatprep.mubr.f32.mxu0 0.0
    %3136 = vmatmul.mubr.f32.gmra.mrb[0].mxu0 %v3069
    %v3137 = vpop.f32.mrb[0].mxu0
    %v3138 = vadd.f32 0.0, %v3137
    %v3139 = vpop.f32.mrb[0].mxu0
    %3140 = vdwg.mxu0
    %v3141 = vadd.f32 %v3065, %v3138
    %v3142 = vxor.u32 %v3141, 2147483648
    %v3143 = vmul.f32 %v3142, 1.442695
    %v3144 = vpow.pop %v3143
    %v3145 = vadd.f32 %v3144, 1.0
    %v3146 = vrcp.pop %v3145
    %v3147 = vmul.f32 1.0, %v3146
    %v3148 = vmul.f32 %v3147, %v2942
    %v3149 = vmul.f32 %v3147, 2.0
    %v3150 = vsub.f32 %v3149, 1.0
    %3152 = vrot.lane.b32.xlu0 %v3150, 64
    %v3153 = vpop.permute.xlu0 %3152
    %v3155 = vmul.f32 %v3147, %v3153
    %3157 = vrot.lane.b32.xlu0 %v3155, 32
    %v3158 = vpop.permute.xlu0 %3157
    %v3160 = vadd.f32 %v3148, %v3158
    %v3161 = vtanh.pop %v3160
    %3163 = vrot.lane.b32.xlu0 %v3161, 64
    %v3164 = vpop.permute.xlu0 %3163
    %v3166 = vmul.f32 %v3147, %v3164
    %v3167 = vmax.f32 %v3064, 0.0
    %v3168 = vmax.f32 %v3166, 0.0
    %3170 = vrot.lane.b32.xlu0 %v3167, 32
    %v3171 = vpop.permute.xlu0 %3170
    %s3173 = scalar_lea.vmem [#allocation5], 16
    %3174 = vst.msk [vmem:[%s3173] sm:$0xff] %vm537, %v3171
    %3176 = vrot.lane.b32.xlu0 %v3168, 64
    %v3177 = vpop.permute.xlu0 %3176
    %s3179 = scalar_lea.vmem [#allocation5], 40
    %3180 = vst.msk [vmem:[%s3179] sm:$0xff] %vm745, %v3177
    %v3181 = vld [vmem:[%s1175] sm:$0xff]
    %3183 = vrot.lane.b32.xlu0 %v3064, 32
    %v3184 = vpop.permute.xlu0 %3183
    %v3185 = vsel %vm537, %v3184, 0
    %3187 = vmatprep.subr.mxu0 0.0
    %3188 = vmatpush1.msra.mxu0 %v2529
    %3189 = vmatprep.subr.mxu0 0.0
    %3190 = vmatpush1.msra.mxu0 %v2530
    %3191 = vmatprep.subr.mxu0 0.0
    %3192 = vmatpush1.msra.mxu0 %v2531
    %3193 = vmatprep.subr.mxu0 0.0
    %3194 = vmatpush1.msra.mxu0 %v2532
    %3195 = vmatprep.subr.mxu0 0.0
    %3196 = vmatpush1.msra.mxu0 0.0
    %3197 = vmatprep.subr.mxu0 0.0
    %3198 = vmatpush1.msra.mxu0 0.0
    %3199 = vmatprep.subr.mxu0 0.0
    %3200 = vmatpush1.msra.mxu0 0.0
    %3201 = vmatprep.subr.mxu0 0.0
    %3202 = vmatpush1.msra.mxu0 0.0
    %3203 = vmatprep.subr.mxu0 0.0
    %3204 = vmatpush1.msra.mxu0 0.0
    %3205 = vmatprep.subr.mxu0 0.0
    %3206 = vmatpush1.msra.mxu0 0.0
    %3207 = vmatprep.subr.mxu0 0.0
    %3208 = vmatpush1.msra.mxu0 0.0
    %3209 = vmatprep.subr.mxu0 0.0
    %3210 = vmatpush1.msra.mxu0 0.0
    %3211 = vmatprep.subr.mxu0 0.0
    %3212 = vmatpush1.msra.mxu0 0.0
    %3213 = vmatprep.subr.mxu0 0.0
    %3214 = vmatpush1.msra.mxu0 0.0
    %3215 = vmatprep.subr.mxu0 0.0
    %3216 = vmatpush1.msra.mxu0 0.0
    %3217 = vmatprep.subr.mxu0 0.0
    %3218 = vmatpush1.msra.mxu0 0.0
    %3219 = vmatprep.subr.mxu0 0.0
    %3220 = vmatpush1.msra.mxu0 0.0
    %3221 = vmatprep.subr.mxu0 0.0
    %3222 = vmatpush1.msra.mxu0 0.0
    %3223 = vmatprep.subr.mxu0 0.0
    %3224 = vmatpush1.msra.mxu0 0.0
    %3225 = vmatprep.subr.mxu0 0.0
    %3226 = vmatpush1.msra.mxu0 0.0
    %3227 = vmatprep.subr.mxu0 0.0
    %3228 = vmatpush1.msra.mxu0 0.0
    %3229 = vmatprep.subr.mxu0 0.0
    %3230 = vmatpush1.msra.mxu0 0.0
    %3231 = vmatprep.subr.mxu0 0.0
    %3232 = vmatpush1.msra.mxu0 0.0
    %3233 = vmatprep.subr.mxu0 0.0
    %3234 = vmatpush1.msra.mxu0 0.0
    %3235 = vmatprep.subr.mxu0 0.0
    %3236 = vmatpush1.msra.mxu0 0.0
    %3237 = vmatprep.subr.mxu0 0.0
    %3238 = vmatpush1.msra.mxu0 0.0
    %3239 = vmatprep.subr.mxu0 0.0
    %3240 = vmatpush1.msra.mxu0 0.0
    %3241 = vmatprep.subr.mxu0 0.0
    %3242 = vmatpush1.msra.mxu0 0.0
    %3243 = vmatprep.subr.mxu0 0.0
    %3244 = vmatpush1.msra.mxu0 0.0
    %3245 = vmatprep.subr.mxu0 0.0
    %3246 = vmatpush1.msra.mxu0 0.0
    %3247 = vmatprep.subr.mxu0 0.0
    %3248 = vmatpush1.msra.mxu0 0.0
    %3249 = vmatprep.subr.mxu0 0.0
    %3250 = vmatpush1.msra.mxu0 0.0
    %3251 = vmatprep.mubr.f32.mxu0 0.0
    %3252 = vmatmul.mubr.f32.gmra.mrb[0].mxu0 %v3185
    %v3253 = vpop.f32.mrb[0].mxu0
    %v3254 = vadd.f32 0.0, %v3253
    %v3255 = vpop.f32.mrb[0].mxu0
    %3256 = vdwg.mxu0
    %v3257 = vadd.f32 %v3181, %v3254
    %v3258 = vxor.u32 %v3257, 2147483648
    %v3259 = vmul.f32 %v3258, 1.442695
    %v3260 = vpow.pop %v3259
    %v3261 = vadd.f32 %v3260, 1.0
    %v3262 = vrcp.pop %v3261
    %v3263 = vmul.f32 1.0, %v3262
    %v3264 = vmul.f32 %v3263, %v3058
    %v3265 = vmul.f32 %v3263, 2.0
    %v3266 = vsub.f32 %v3265, 1.0
    %3268 = vrot.lane.b32.xlu0 %v3266, 64
    %v3269 = vpop.permute.xlu0 %3268
    %v3271 = vmul.f32 %v3263, %v3269
    %3273 = vrot.lane.b32.xlu0 %v3271, 32
    %v3274 = vpop.permute.xlu0 %3273
    %v3276 = vadd.f32 %v3264, %v3274
    %v3277 = vtanh.pop %v3276
    %3279 = vrot.lane.b32.xlu0 %v3277, 64
    %v3280 = vpop.permute.xlu0 %3279
    %v3282 = vmul.f32 %v3263, %v3280
    %v3283 = vld [vmem:[%s1275] sm:$0xff]
    %3285 = vrot.lane.b32.xlu0 %v3166, 32
    %v3286 = vpop.permute.xlu0 %3285
    %v3287 = vsel %vm537, %v3286, 0
    %3289 = vmatprep.subr.mxu0 0.0
    %3290 = vmatpush1.msra.mxu0 %v2534
    %3291 = vmatprep.subr.mxu0 0.0
    %3292 = vmatpush1.msra.mxu0 %v2535
    %3293 = vmatprep.subr.mxu0 0.0
    %3294 = vmatpush1.msra.mxu0 %v2536
    %3295 = vmatprep.subr.mxu0 0.0
    %3296 = vmatpush1.msra.mxu0 %v2537
    %3297 = vmatprep.subr.mxu0 0.0
    %3298 = vmatpush1.msra.mxu0 0.0
    %3299 = vmatprep.subr.mxu0 0.0
    %3300 = vmatpush1.msra.mxu0 0.0
    %3301 = vmatprep.subr.mxu0 0.0
    %3302 = vmatpush1.msra.mxu0 0.0
    %3303 = vmatprep.subr.mxu0 0.0
    %3304 = vmatpush1.msra.mxu0 0.0
    %3305 = vmatprep.subr.mxu0 0.0
    %3306 = vmatpush1.msra.mxu0 0.0
    %3307 = vmatprep.subr.mxu0 0.0
    %3308 = vmatpush1.msra.mxu0 0.0
    %3309 = vmatprep.subr.mxu0 0.0
    %3310 = vmatpush1.msra.mxu0 0.0
    %3311 = vmatprep.subr.mxu0 0.0
    %3312 = vmatpush1.msra.mxu0 0.0
    %3313 = vmatprep.subr.mxu0 0.0
    %3314 = vmatpush1.msra.mxu0 0.0
    %3315 = vmatprep.subr.mxu0 0.0
    %3316 = vmatpush1.msra.mxu0 0.0
    %3317 = vmatprep.subr.mxu0 0.0
    %3318 = vmatpush1.msra.mxu0 0.0
    %3319 = vmatprep.subr.mxu0 0.0
    %3320 = vmatpush1.msra.mxu0 0.0
    %3321 = vmatprep.subr.mxu0 0.0
    %3322 = vmatpush1.msra.mxu0 0.0
    %3323 = vmatprep.subr.mxu0 0.0
    %3324 = vmatpush1.msra.mxu0 0.0
    %3325 = vmatprep.subr.mxu0 0.0
    %3326 = vmatpush1.msra.mxu0 0.0
    %3327 = vmatprep.subr.mxu0 0.0
    %3328 = vmatpush1.msra.mxu0 0.0
    %3329 = vmatprep.subr.mxu0 0.0
    %3330 = vmatpush1.msra.mxu0 0.0
    %3331 = vmatprep.subr.mxu0 0.0
    %3332 = vmatpush1.msra.mxu0 0.0
    %3333 = vmatprep.subr.mxu0 0.0
    %3334 = vmatpush1.msra.mxu0 0.0
    %3335 = vmatprep.subr.mxu0 0.0
    %3336 = vmatpush1.msra.mxu0 0.0
    %3337 = vmatprep.subr.mxu0 0.0
    %3338 = vmatpush1.msra.mxu0 0.0
    %3339 = vmatprep.subr.mxu0 0.0
    %3340 = vmatpush1.msra.mxu0 0.0
    %3341 = vmatprep.subr.mxu0 0.0
    %3342 = vmatpush1.msra.mxu0 0.0
    %3343 = vmatprep.subr.mxu0 0.0
    %3344 = vmatpush1.msra.mxu0 0.0
    %3345 = vmatprep.subr.mxu0 0.0
    %3346 = vmatpush1.msra.mxu0 0.0
    %3347 = vmatprep.subr.mxu0 0.0
    %3348 = vmatpush1.msra.mxu0 0.0
    %3349 = vmatprep.subr.mxu0 0.0
    %3350 = vmatpush1.msra.mxu0 0.0
    %3351 = vmatprep.subr.mxu0 0.0
    %3352 = vmatpush1.msra.mxu0 0.0
    %3353 = vmatprep.mubr.f32.mxu0 0.0
    %3354 = vmatmul.mubr.f32.gmra.mrb[0].mxu0 %v3287
    %v3355 = vpop.f32.mrb[0].mxu0
    %v3356 = vadd.f32 0.0, %v3355
    %v3357 = vpop.f32.mrb[0].mxu0
    %3358 = vdwg.mxu0
    %v3359 = vadd.f32 %v3283, %v3356
    %v3360 = vxor.u32 %v3359, 2147483648
    %v3361 = vmul.f32 %v3360, 1.442695
    %v3362 = vpow.pop %v3361
    %v3363 = vadd.f32 %v3362, 1.0
    %v3364 = vrcp.pop %v3363
    %v3365 = vmul.f32 1.0, %v3364
    %v3366 = vmul.f32 %v3365, %v3160
    %v3367 = vmul.f32 %v3365, 2.0
    %v3368 = vsub.f32 %v3367, 1.0
    %3370 = vrot.lane.b32.xlu0 %v3368, 64
    %v3371 = vpop.permute.xlu0 %3370
    %v3373 = vmul.f32 %v3365, %v3371
    %3375 = vrot.lane.b32.xlu0 %v3373, 32
    %v3376 = vpop.permute.xlu0 %3375
    %v3378 = vadd.f32 %v3366, %v3376
    %v3379 = vtanh.pop %v3378
    %3381 = vrot.lane.b32.xlu0 %v3379, 64
    %v3382 = vpop.permute.xlu0 %3381
    %v3384 = vmul.f32 %v3365, %v3382
    %v3385 = vmax.f32 %v3282, 0.0
    %v3386 = vmax.f32 %v3384, 0.0
    %3388 = vrot.lane.b32.xlu0 %v3385, 32
    %v3389 = vpop.permute.xlu0 %3388
    %s3391 = scalar_lea.vmem [#allocation5], 24
    %3392 = vst.msk [vmem:[%s3391] sm:$0xff] %vm537, %v3389
    %3394 = vrot.lane.b32.xlu0 %v3386, 64
    %v3395 = vpop.permute.xlu0 %3394
    %s3397 = scalar_lea.vmem [#allocation5], 32
    %3398 = vst.msk [vmem:[%s3397] sm:$0xff] %vm745, %v3395
    %v3399 = vld [vmem:[%s1389] sm:$0xff]
    %3401 = vrot.lane.b32.xlu0 %v3282, 32
    %v3402 = vpop.permute.xlu0 %3401
    %v3403 = vsel %vm537, %v3402, 0
    %3405 = vmatprep.subr.mxu0 0.0
    %3406 = vmatpush1.msra.mxu0 %v2529
    %3407 = vmatprep.subr.mxu0 0.0
    %3408 = vmatpush1.msra.mxu0 %v2530
    %3409 = vmatprep.subr.mxu0 0.0
    %3410 = vmatpush1.msra.mxu0 %v2531
    %3411 = vmatprep.subr.mxu0 0.0
    %3412 = vmatpush1.msra.mxu0 %v2532
    %3413 = vmatprep.subr.mxu0 0.0
    %3414 = vmatpush1.msra.mxu0 0.0
    %3415 = vmatprep.subr.mxu0 0.0
    %3416 = vmatpush1.msra.mxu0 0.0
    %3417 = vmatprep.subr.mxu0 0.0
    %3418 = vmatpush1.msra.mxu0 0.0
    %3419 = vmatprep.subr.mxu0 0.0
    %3420 = vmatpush1.msra.mxu0 0.0
    %3421 = vmatprep.subr.mxu0 0.0
    %3422 = vmatpush1.msra.mxu0 0.0
    %3423 = vmatprep.subr.mxu0 0.0
    %3424 = vmatpush1.msra.mxu0 0.0
    %3425 = vmatprep.subr.mxu0 0.0
    %3426 = vmatpush1.msra.mxu0 0.0
    %3427 = vmatprep.subr.mxu0 0.0
    %3428 = vmatpush1.msra.mxu0 0.0
    %3429 = vmatprep.subr.mxu0 0.0
    %3430 = vmatpush1.msra.mxu0 0.0
    %3431 = vmatprep.subr.mxu0 0.0
    %3432 = vmatpush1.msra.mxu0 0.0
    %3433 = vmatprep.subr.mxu0 0.0
    %3434 = vmatpush1.msra.mxu0 0.0
    %3435 = vmatprep.subr.mxu0 0.0
    %3436 = vmatpush1.msra.mxu0 0.0
    %3437 = vmatprep.subr.mxu0 0.0
    %3438 = vmatpush1.msra.mxu0 0.0
    %3439 = vmatprep.subr.mxu0 0.0
    %3440 = vmatpush1.msra.mxu0 0.0
    %3441 = vmatprep.subr.mxu0 0.0
    %3442 = vmatpush1.msra.mxu0 0.0
    %3443 = vmatprep.subr.mxu0 0.0
    %3444 = vmatpush1.msra.mxu0 0.0
    %3445 = vmatprep.subr.mxu0 0.0
    %3446 = vmatpush1.msra.mxu0 0.0
    %3447 = vmatprep.subr.mxu0 0.0
    %3448 = vmatpush1.msra.mxu0 0.0
    %3449 = vmatprep.subr.mxu0 0.0
    %3450 = vmatpush1.msra.mxu0 0.0
    %3451 = vmatprep.subr.mxu0 0.0
    %3452 = vmatpush1.msra.mxu0 0.0
    %3453 = vmatprep.subr.mxu0 0.0
    %3454 = vmatpush1.msra.mxu0 0.0
    %3455 = vmatprep.subr.mxu0 0.0
    %3456 = vmatpush1.msra.mxu0 0.0
    %3457 = vmatprep.subr.mxu0 0.0
    %3458 = vmatpush1.msra.mxu0 0.0
    %3459 = vmatprep.subr.mxu0 0.0
    %3460 = vmatpush1.msra.mxu0 0.0
    %3461 = vmatprep.subr.mxu0 0.0
    %3462 = vmatpush1.msra.mxu0 0.0
    %3463 = vmatprep.subr.mxu0 0.0
    %3464 = vmatpush1.msra.mxu0 0.0
    %3465 = vmatprep.subr.mxu0 0.0
    %3466 = vmatpush1.msra.mxu0 0.0
    %3467 = vmatprep.subr.mxu0 0.0
    %3468 = vmatpush1.msra.mxu0 0.0
    %3469 = vmatprep.mubr.f32.mxu0 0.0
    %3470 = vmatmul.mubr.f32.gmra.mrb[0].mxu0 %v3403
    %v3471 = vpop.f32.mrb[0].mxu0
    %v3472 = vadd.f32 0.0, %v3471
    %v3473 = vpop.f32.mrb[0].mxu0
    %3474 = vdwg.mxu0
    %v3475 = vadd.f32 %v3399, %v3472
    %v3476 = vxor.u32 %v3475, 2147483648
    %v3477 = vmul.f32 %v3476, 1.442695
    %v3478 = vpow.pop %v3477
    %v3479 = vadd.f32 %v3478, 1.0
    %v3480 = vrcp.pop %v3479
    %v3481 = vmul.f32 1.0, %v3480
    %v3482 = vmul.f32 %v3481, %v3276
    %v3483 = vmul.f32 %v3481, 2.0
    %v3484 = vsub.f32 %v3483, 1.0
    %3486 = vrot.lane.b32.xlu0 %v3484, 64
    %v3487 = vpop.permute.xlu0 %3486
    %v3489 = vmul.f32 %v3481, %v3487
    %3491 = vrot.lane.b32.xlu0 %v3489, 32
    %v3492 = vpop.permute.xlu0 %3491
    %v3494 = vadd.f32 %v3482, %v3492
    %v3495 = vtanh.pop %v3494
    %3497 = vrot.lane.b32.xlu0 %v3495, 64
    %v3498 = vpop.permute.xlu0 %3497
    %v3500 = vmul.f32 %v3481, %v3498
    %v3501 = vld [vmem:[%s1489] sm:$0xff]
    %3503 = vrot.lane.b32.xlu0 %v3384, 32
    %v3504 = vpop.permute.xlu0 %3503
    %v3505 = vsel %vm537, %v3504, 0
    %3507 = vmatprep.subr.mxu0 0.0
    %3508 = vmatpush1.msra.mxu0 %v2534
    %3509 = vmatprep.subr.mxu0 0.0
    %3510 = vmatpush1.msra.mxu0 %v2535
    %3511 = vmatprep.subr.mxu0 0.0
    %3512 = vmatpush1.msra.mxu0 %v2536
    %3513 = vmatprep.subr.mxu0 0.0
    %3514 = vmatpush1.msra.mxu0 %v2537
    %3515 = vmatprep.subr.mxu0 0.0
    %3516 = vmatpush1.msra.mxu0 0.0
    %3517 = vmatprep.subr.mxu0 0.0
    %3518 = vmatpush1.msra.mxu0 0.0
    %3519 = vmatprep.subr.mxu0 0.0
    %3520 = vmatpush1.msra.mxu0 0.0
    %3521 = vmatprep.subr.mxu0 0.0
    %3522 = vmatpush1.msra.mxu0 0.0
    %3523 = vmatprep.subr.mxu0 0.0
    %3524 = vmatpush1.msra.mxu0 0.0
    %3525 = vmatprep.subr.mxu0 0.0
    %3526 = vmatpush1.msra.mxu0 0.0
    %3527 = vmatprep.subr.mxu0 0.0
    %3528 = vmatpush1.msra.mxu0 0.0
    %3529 = vmatprep.subr.mxu0 0.0
    %3530 = vmatpush1.msra.mxu0 0.0
    %3531 = vmatprep.subr.mxu0 0.0
    %3532 = vmatpush1.msra.mxu0 0.0
    %3533 = vmatprep.subr.mxu0 0.0
    %3534 = vmatpush1.msra.mxu0 0.0
    %3535 = vmatprep.subr.mxu0 0.0
    %3536 = vmatpush1.msra.mxu0 0.0
    %3537 = vmatprep.subr.mxu0 0.0
    %3538 = vmatpush1.msra.mxu0 0.0
    %3539 = vmatprep.subr.mxu0 0.0
    %3540 = vmatpush1.msra.mxu0 0.0
    %3541 = vmatprep.subr.mxu0 0.0
    %3542 = vmatpush1.msra.mxu0 0.0
    %3543 = vmatprep.subr.mxu0 0.0
    %3544 = vmatpush1.msra.mxu0 0.0
    %3545 = vmatprep.subr.mxu0 0.0
    %3546 = vmatpush1.msra.mxu0 0.0
    %3547 = vmatprep.subr.mxu0 0.0
    %3548 = vmatpush1.msra.mxu0 0.0
    %3549 = vmatprep.subr.mxu0 0.0
    %3550 = vmatpush1.msra.mxu0 0.0
    %3551 = vmatprep.subr.mxu0 0.0
    %3552 = vmatpush1.msra.mxu0 0.0
    %3553 = vmatprep.subr.mxu0 0.0
    %3554 = vmatpush1.msra.mxu0 0.0
    %3555 = vmatprep.subr.mxu0 0.0
    %3556 = vmatpush1.msra.mxu0 0.0
    %3557 = vmatprep.subr.mxu0 0.0
    %3558 = vmatpush1.msra.mxu0 0.0
    %3559 = vmatprep.subr.mxu0 0.0
    %3560 = vmatpush1.msra.mxu0 0.0
    %3561 = vmatprep.subr.mxu0 0.0
    %3562 = vmatpush1.msra.mxu0 0.0
    %3563 = vmatprep.subr.mxu0 0.0
    %3564 = vmatpush1.msra.mxu0 0.0
    %3565 = vmatprep.subr.mxu0 0.0
    %3566 = vmatpush1.msra.mxu0 0.0
    %3567 = vmatprep.subr.mxu0 0.0
    %3568 = vmatpush1.msra.mxu0 0.0
    %3569 = vmatprep.subr.mxu0 0.0
    %3570 = vmatpush1.msra.mxu0 0.0
    %3571 = vmatprep.mubr.f32.mxu0 0.0
    %3572 = vmatmul.mubr.f32.gmra.mrb[0].mxu0 %v3505
    %v3573 = vpop.f32.mrb[0].mxu0
    %v3574 = vadd.f32 0.0, %v3573
    %v3575 = vpop.f32.mrb[0].mxu0
    %3576 = vdwg.mxu0
    %v3577 = vadd.f32 %v3501, %v3574
    %v3578 = vxor.u32 %v3577, 2147483648
    %v3579 = vmul.f32 %v3578, 1.442695
    %v3580 = vpow.pop %v3579
    %v3581 = vadd.f32 %v3580, 1.0
    %v3582 = vrcp.pop %v3581
    %v3583 = vmul.f32 1.0, %v3582
    %v3584 = vmul.f32 %v3583, %v3378
    %v3585 = vmul.f32 %v3583, 2.0
    %v3586 = vsub.f32 %v3585, 1.0
    %3588 = vrot.lane.b32.xlu0 %v3586, 64
    %v3589 = vpop.permute.xlu0 %3588
    %v3591 = vmul.f32 %v3583, %v3589
    %3593 = vrot.lane.b32.xlu0 %v3591, 32
    %v3594 = vpop.permute.xlu0 %3593
    %v3596 = vadd.f32 %v3584, %v3594
    %v3597 = vtanh.pop %v3596
    %3599 = vrot.lane.b32.xlu0 %v3597, 64
    %v3600 = vpop.permute.xlu0 %3599
    %v3602 = vmul.f32 %v3583, %v3600
    %v3603 = vmax.f32 %v3500, 0.0
    %v3604 = vmax.f32 %v3602, 0.0
    %3606 = vrot.lane.b32.xlu0 %v3603, 32
    %v3607 = vpop.permute.xlu0 %3606
    %3609 = vst.msk [vmem:[%s3397] sm:$0xff] %vm537, %v3607
    %3611 = vrot.lane.b32.xlu0 %v3604, 64
    %v3612 = vpop.permute.xlu0 %3611
    %3614 = vst.msk [vmem:[%s3391] sm:$0xff] %vm745, %v3612
    %v3615 = vld [vmem:[%s1601] sm:$0xff]
    %3617 = vrot.lane.b32.xlu0 %v3500, 32
    %v3618 = vpop.permute.xlu0 %3617
    %v3619 = vsel %vm537, %v3618, 0
    %3621 = vmatprep.subr.mxu0 0.0
    %3622 = vmatpush1.msra.mxu0 %v2529
    %3623 = vmatprep.subr.mxu0 0.0
    %3624 = vmatpush1.msra.mxu0 %v2530
    %3625 = vmatprep.subr.mxu0 0.0
    %3626 = vmatpush1.msra.mxu0 %v2531
    %3627 = vmatprep.subr.mxu0 0.0
    %3628 = vmatpush1.msra.mxu0 %v2532
    %3629 = vmatprep.subr.mxu0 0.0
    %3630 = vmatpush1.msra.mxu0 0.0
    %3631 = vmatprep.subr.mxu0 0.0
    %3632 = vmatpush1.msra.mxu0 0.0
    %3633 = vmatprep.subr.mxu0 0.0
    %3634 = vmatpush1.msra.mxu0 0.0
    %3635 = vmatprep.subr.mxu0 0.0
    %3636 = vmatpush1.msra.mxu0 0.0
    %3637 = vmatprep.subr.mxu0 0.0
    %3638 = vmatpush1.msra.mxu0 0.0
    %3639 = vmatprep.subr.mxu0 0.0
    %3640 = vmatpush1.msra.mxu0 0.0
    %3641 = vmatprep.subr.mxu0 0.0
    %3642 = vmatpush1.msra.mxu0 0.0
    %3643 = vmatprep.subr.mxu0 0.0
    %3644 = vmatpush1.msra.mxu0 0.0
    %3645 = vmatprep.subr.mxu0 0.0
    %3646 = vmatpush1.msra.mxu0 0.0
    %3647 = vmatprep.subr.mxu0 0.0
    %3648 = vmatpush1.msra.mxu0 0.0
    %3649 = vmatprep.subr.mxu0 0.0
    %3650 = vmatpush1.msra.mxu0 0.0
    %3651 = vmatprep.subr.mxu0 0.0
    %3652 = vmatpush1.msra.mxu0 0.0
    %3653 = vmatprep.subr.mxu0 0.0
    %3654 = vmatpush1.msra.mxu0 0.0
    %3655 = vmatprep.subr.mxu0 0.0
    %3656 = vmatpush1.msra.mxu0 0.0
    %3657 = vmatprep.subr.mxu0 0.0
    %3658 = vmatpush1.msra.mxu0 0.0
    %3659 = vmatprep.subr.mxu0 0.0
    %3660 = vmatpush1.msra.mxu0 0.0
    %3661 = vmatprep.subr.mxu0 0.0
    %3662 = vmatpush1.msra.mxu0 0.0
    %3663 = vmatprep.subr.mxu0 0.0
    %3664 = vmatpush1.msra.mxu0 0.0
    %3665 = vmatprep.subr.mxu0 0.0
    %3666 = vmatpush1.msra.mxu0 0.0
    %3667 = vmatprep.subr.mxu0 0.0
    %3668 = vmatpush1.msra.mxu0 0.0
    %3669 = vmatprep.subr.mxu0 0.0
    %3670 = vmatpush1.msra.mxu0 0.0
    %3671 = vmatprep.subr.mxu0 0.0
    %3672 = vmatpush1.msra.mxu0 0.0
    %3673 = vmatprep.subr.mxu0 0.0
    %3674 = vmatpush1.msra.mxu0 0.0
    %3675 = vmatprep.subr.mxu0 0.0
    %3676 = vmatpush1.msra.mxu0 0.0
    %3677 = vmatprep.subr.mxu0 0.0
    %3678 = vmatpush1.msra.mxu0 0.0
    %3679 = vmatprep.subr.mxu0 0.0
    %3680 = vmatpush1.msra.mxu0 0.0
    %3681 = vmatprep.subr.mxu0 0.0
    %3682 = vmatpush1.msra.mxu0 0.0
    %3683 = vmatprep.subr.mxu0 0.0
    %3684 = vmatpush1.msra.mxu0 0.0
    %3685 = vmatprep.mubr.f32.mxu0 0.0
    %3686 = vmatmul.mubr.f32.gmra.mrb[0].mxu0 %v3619
    %v3687 = vpop.f32.mrb[0].mxu0
    %v3688 = vadd.f32 0.0, %v3687
    %v3689 = vpop.f32.mrb[0].mxu0
    %3690 = vdwg.mxu0
    %v3691 = vadd.f32 %v3615, %v3688
    %v3692 = vxor.u32 %v3691, 2147483648
    %v3693 = vmul.f32 %v3692, 1.442695
    %v3694 = vpow.pop %v3693
    %v3695 = vadd.f32 %v3694, 1.0
    %v3696 = vrcp.pop %v3695
    %v3697 = vmul.f32 1.0, %v3696
    %v3698 = vmul.f32 %v3697, %v3494
    %v3699 = vmul.f32 %v3697, 2.0
    %v3700 = vsub.f32 %v3699, 1.0
    %3702 = vrot.lane.b32.xlu0 %v3700, 64
    %v3703 = vpop.permute.xlu0 %3702
    %v3705 = vmul.f32 %v3697, %v3703
    %3707 = vrot.lane.b32.xlu0 %v3705, 32
    %v3708 = vpop.permute.xlu0 %3707
    %v3710 = vadd.f32 %v3698, %v3708
    %v3711 = vtanh.pop %v3710
    %3713 = vrot.lane.b32.xlu0 %v3711, 64
    %v3714 = vpop.permute.xlu0 %3713
    %v3716 = vmul.f32 %v3697, %v3714
    %v3717 = vld [vmem:[%s1701] sm:$0xff]
    %3719 = vrot.lane.b32.xlu0 %v3602, 32
    %v3720 = vpop.permute.xlu0 %3719
    %v3721 = vsel %vm537, %v3720, 0
    %3723 = vmatprep.subr.mxu0 0.0
    %3724 = vmatpush1.msra.mxu0 %v2534
    %3725 = vmatprep.subr.mxu0 0.0
    %3726 = vmatpush1.msra.mxu0 %v2535
    %3727 = vmatprep.subr.mxu0 0.0
    %3728 = vmatpush1.msra.mxu0 %v2536
    %3729 = vmatprep.subr.mxu0 0.0
    %3730 = vmatpush1.msra.mxu0 %v2537
    %3731 = vmatprep.subr.mxu0 0.0
    %3732 = vmatpush1.msra.mxu0 0.0
    %3733 = vmatprep.subr.mxu0 0.0
    %3734 = vmatpush1.msra.mxu0 0.0
    %3735 = vmatprep.subr.mxu0 0.0
    %3736 = vmatpush1.msra.mxu0 0.0
    %3737 = vmatprep.subr.mxu0 0.0
    %3738 = vmatpush1.msra.mxu0 0.0
    %3739 = vmatprep.subr.mxu0 0.0
    %3740 = vmatpush1.msra.mxu0 0.0
    %3741 = vmatprep.subr.mxu0 0.0
    %3742 = vmatpush1.msra.mxu0 0.0
    %3743 = vmatprep.subr.mxu0 0.0
    %3744 = vmatpush1.msra.mxu0 0.0
    %3745 = vmatprep.subr.mxu0 0.0
    %3746 = vmatpush1.msra.mxu0 0.0
    %3747 = vmatprep.subr.mxu0 0.0
    %3748 = vmatpush1.msra.mxu0 0.0
    %3749 = vmatprep.subr.mxu0 0.0
    %3750 = vmatpush1.msra.mxu0 0.0
    %3751 = vmatprep.subr.mxu0 0.0
    %3752 = vmatpush1.msra.mxu0 0.0
    %3753 = vmatprep.subr.mxu0 0.0
    %3754 = vmatpush1.msra.mxu0 0.0
    %3755 = vmatprep.subr.mxu0 0.0
    %3756 = vmatpush1.msra.mxu0 0.0
    %3757 = vmatprep.subr.mxu0 0.0
    %3758 = vmatpush1.msra.mxu0 0.0
    %3759 = vmatprep.subr.mxu0 0.0
    %3760 = vmatpush1.msra.mxu0 0.0
    %3761 = vmatprep.subr.mxu0 0.0
    %3762 = vmatpush1.msra.mxu0 0.0
    %3763 = vmatprep.subr.mxu0 0.0
    %3764 = vmatpush1.msra.mxu0 0.0
    %3765 = vmatprep.subr.mxu0 0.0
    %3766 = vmatpush1.msra.mxu0 0.0
    %3767 = vmatprep.subr.mxu0 0.0
    %3768 = vmatpush1.msra.mxu0 0.0
    %3769 = vmatprep.subr.mxu0 0.0
    %3770 = vmatpush1.msra.mxu0 0.0
    %3771 = vmatprep.subr.mxu0 0.0
    %3772 = vmatpush1.msra.mxu0 0.0
    %3773 = vmatprep.subr.mxu0 0.0
    %3774 = vmatpush1.msra.mxu0 0.0
    %3775 = vmatprep.subr.mxu0 0.0
    %3776 = vmatpush1.msra.mxu0 0.0
    %3777 = vmatprep.subr.mxu0 0.0
    %3778 = vmatpush1.msra.mxu0 0.0
    %3779 = vmatprep.subr.mxu0 0.0
    %3780 = vmatpush1.msra.mxu0 0.0
    %3781 = vmatprep.subr.mxu0 0.0
    %3782 = vmatpush1.msra.mxu0 0.0
    %3783 = vmatprep.subr.mxu0 0.0
    %3784 = vmatpush1.msra.mxu0 0.0
    %3785 = vmatprep.subr.mxu0 0.0
    %3786 = vmatpush1.msra.mxu0 0.0
    %3787 = vmatprep.mubr.f32.mxu0 0.0
    %3788 = vmatmul.mubr.f32.gmra.mrb[0].mxu0 %v3721
    %v3789 = vpop.f32.mrb[0].mxu0
    %v3790 = vadd.f32 0.0, %v3789
    %v3791 = vpop.f32.mrb[0].mxu0
    %3792 = vdwg.mxu0
    %v3793 = vadd.f32 %v3717, %v3790
    %v3794 = vxor.u32 %v3793, 2147483648
    %v3795 = vmul.f32 %v3794, 1.442695
    %v3796 = vpow.pop %v3795
    %v3797 = vadd.f32 %v3796, 1.0
    %v3798 = vrcp.pop %v3797
    %v3799 = vmul.f32 1.0, %v3798
    %v3800 = vmul.f32 %v3799, %v3596
    %v3801 = vmul.f32 %v3799, 2.0
    %v3802 = vsub.f32 %v3801, 1.0
    %3804 = vrot.lane.b32.xlu0 %v3802, 64
    %v3805 = vpop.permute.xlu0 %3804
    %v3807 = vmul.f32 %v3799, %v3805
    %3809 = vrot.lane.b32.xlu0 %v3807, 32
    %v3810 = vpop.permute.xlu0 %3809
    %v3812 = vadd.f32 %v3800, %v3810
    %v3813 = vtanh.pop %v3812
    %3815 = vrot.lane.b32.xlu0 %v3813, 64
    %v3816 = vpop.permute.xlu0 %3815
    %v3818 = vmul.f32 %v3799, %v3816
    %v3819 = vmax.f32 %v3716, 0.0
    %v3820 = vmax.f32 %v3818, 0.0
    %3822 = vrot.lane.b32.xlu0 %v3819, 32
    %v3823 = vpop.permute.xlu0 %3822
    %3825 = vst.msk [vmem:[%s3179] sm:$0xff] %vm537, %v3823
    %3827 = vrot.lane.b32.xlu0 %v3820, 64
    %v3828 = vpop.permute.xlu0 %3827
    %3830 = vst.msk [vmem:[%s3173] sm:$0xff] %vm745, %v3828
    %v3831 = vld [vmem:[%s1813] sm:$0xff]
    %3833 = vrot.lane.b32.xlu0 %v3716, 32
    %v3834 = vpop.permute.xlu0 %3833
    %v3835 = vsel %vm537, %v3834, 0
    %3837 = vmatprep.subr.mxu0 0.0
    %3838 = vmatpush1.msra.mxu0 %v2529
    %3839 = vmatprep.subr.mxu0 0.0
    %3840 = vmatpush1.msra.mxu0 %v2530
    %3841 = vmatprep.subr.mxu0 0.0
    %3842 = vmatpush1.msra.mxu0 %v2531
    %3843 = vmatprep.subr.mxu0 0.0
    %3844 = vmatpush1.msra.mxu0 %v2532
    %3845 = vmatprep.subr.mxu0 0.0
    %3846 = vmatpush1.msra.mxu0 0.0
    %3847 = vmatprep.subr.mxu0 0.0
    %3848 = vmatpush1.msra.mxu0 0.0
    %3849 = vmatprep.subr.mxu0 0.0
    %3850 = vmatpush1.msra.mxu0 0.0
    %3851 = vmatprep.subr.mxu0 0.0
    %3852 = vmatpush1.msra.mxu0 0.0
    %3853 = vmatprep.subr.mxu0 0.0
    %3854 = vmatpush1.msra.mxu0 0.0
    %3855 = vmatprep.subr.mxu0 0.0
    %3856 = vmatpush1.msra.mxu0 0.0
    %3857 = vmatprep.subr.mxu0 0.0
    %3858 = vmatpush1.msra.mxu0 0.0
    %3859 = vmatprep.subr.mxu0 0.0
    %3860 = vmatpush1.msra.mxu0 0.0
    %3861 = vmatprep.subr.mxu0 0.0
    %3862 = vmatpush1.msra.mxu0 0.0
    %3863 = vmatprep.subr.mxu0 0.0
    %3864 = vmatpush1.msra.mxu0 0.0
    %3865 = vmatprep.subr.mxu0 0.0
    %3866 = vmatpush1.msra.mxu0 0.0
    %3867 = vmatprep.subr.mxu0 0.0
    %3868 = vmatpush1.msra.mxu0 0.0
    %3869 = vmatprep.subr.mxu0 0.0
    %3870 = vmatpush1.msra.mxu0 0.0
    %3871 = vmatprep.subr.mxu0 0.0
    %3872 = vmatpush1.msra.mxu0 0.0
    %3873 = vmatprep.subr.mxu0 0.0
    %3874 = vmatpush1.msra.mxu0 0.0
    %3875 = vmatprep.subr.mxu0 0.0
    %3876 = vmatpush1.msra.mxu0 0.0
    %3877 = vmatprep.subr.mxu0 0.0
    %3878 = vmatpush1.msra.mxu0 0.0
    %3879 = vmatprep.subr.mxu0 0.0
    %3880 = vmatpush1.msra.mxu0 0.0
    %3881 = vmatprep.subr.mxu0 0.0
    %3882 = vmatpush1.msra.mxu0 0.0
    %3883 = vmatprep.subr.mxu0 0.0
    %3884 = vmatpush1.msra.mxu0 0.0
    %3885 = vmatprep.subr.mxu0 0.0
    %3886 = vmatpush1.msra.mxu0 0.0
    %3887 = vmatprep.subr.mxu0 0.0
    %3888 = vmatpush1.msra.mxu0 0.0
    %3889 = vmatprep.subr.mxu0 0.0
    %3890 = vmatpush1.msra.mxu0 0.0
    %3891 = vmatprep.subr.mxu0 0.0
    %3892 = vmatpush1.msra.mxu0 0.0
    %3893 = vmatprep.subr.mxu0 0.0
    %3894 = vmatpush1.msra.mxu0 0.0
    %3895 = vmatprep.subr.mxu0 0.0
    %3896 = vmatpush1.msra.mxu0 0.0
    %3897 = vmatprep.subr.mxu0 0.0
    %3898 = vmatpush1.msra.mxu0 0.0
    %3899 = vmatprep.subr.mxu0 0.0
    %3900 = vmatpush1.msra.mxu0 0.0
    %3901 = vmatprep.mubr.f32.mxu0 0.0
    %3902 = vmatmul.mubr.f32.gmra.mrb[0].mxu0 %v3835
    %v3903 = vpop.f32.mrb[0].mxu0
    %v3904 = vadd.f32 0.0, %v3903
    %v3905 = vpop.f32.mrb[0].mxu0
    %3906 = vdwg.mxu0
    %v3907 = vadd.f32 %v3831, %v3904
    %v3908 = vxor.u32 %v3907, 2147483648
    %v3909 = vmul.f32 %v3908, 1.442695
    %v3910 = vpow.pop %v3909
    %v3911 = vadd.f32 %v3910, 1.0
    %v3912 = vrcp.pop %v3911
    %v3913 = vmul.f32 1.0, %v3912
    %v3914 = vmul.f32 %v3913, %v3710
    %v3915 = vmul.f32 %v3913, 2.0
    %v3916 = vsub.f32 %v3915, 1.0
    %3918 = vrot.lane.b32.xlu0 %v3916, 64
    %v3919 = vpop.permute.xlu0 %3918
    %v3921 = vmul.f32 %v3913, %v3919
    %3923 = vrot.lane.b32.xlu0 %v3921, 32
    %v3924 = vpop.permute.xlu0 %3923
    %v3926 = vadd.f32 %v3914, %v3924
    %v3927 = vtanh.pop %v3926
    %3929 = vrot.lane.b32.xlu0 %v3927, 64
    %v3930 = vpop.permute.xlu0 %3929
    %v3932 = vmul.f32 %v3913, %v3930
    %v3933 = vld [vmem:[%s1913] sm:$0xff]
    %3935 = vrot.lane.b32.xlu0 %v3818, 32
    %v3936 = vpop.permute.xlu0 %3935
    %v3937 = vsel %vm537, %v3936, 0
    %3939 = vmatprep.subr.mxu0 0.0
    %3940 = vmatpush1.msra.mxu0 %v2534
    %3941 = vmatprep.subr.mxu0 0.0
    %3942 = vmatpush1.msra.mxu0 %v2535
    %3943 = vmatprep.subr.mxu0 0.0
    %3944 = vmatpush1.msra.mxu0 %v2536
    %3945 = vmatprep.subr.mxu0 0.0
    %3946 = vmatpush1.msra.mxu0 %v2537
    %3947 = vmatprep.subr.mxu0 0.0
    %3948 = vmatpush1.msra.mxu0 0.0
    %3949 = vmatprep.subr.mxu0 0.0
    %3950 = vmatpush1.msra.mxu0 0.0
    %3951 = vmatprep.subr.mxu0 0.0
    %3952 = vmatpush1.msra.mxu0 0.0
    %3953 = vmatprep.subr.mxu0 0.0
    %3954 = vmatpush1.msra.mxu0 0.0
    %3955 = vmatprep.subr.mxu0 0.0
    %3956 = vmatpush1.msra.mxu0 0.0
    %3957 = vmatprep.subr.mxu0 0.0
    %3958 = vmatpush1.msra.mxu0 0.0
    %3959 = vmatprep.subr.mxu0 0.0
    %3960 = vmatpush1.msra.mxu0 0.0
    %3961 = vmatprep.subr.mxu0 0.0
    %3962 = vmatpush1.msra.mxu0 0.0
    %3963 = vmatprep.subr.mxu0 0.0
    %3964 = vmatpush1.msra.mxu0 0.0
    %3965 = vmatprep.subr.mxu0 0.0
    %3966 = vmatpush1.msra.mxu0 0.0
    %3967 = vmatprep.subr.mxu0 0.0
    %3968 = vmatpush1.msra.mxu0 0.0
    %3969 = vmatprep.subr.mxu0 0.0
    %3970 = vmatpush1.msra.mxu0 0.0
    %3971 = vmatprep.subr.mxu0 0.0
    %3972 = vmatpush1.msra.mxu0 0.0
    %3973 = vmatprep.subr.mxu0 0.0
    %3974 = vmatpush1.msra.mxu0 0.0
    %3975 = vmatprep.subr.mxu0 0.0
    %3976 = vmatpush1.msra.mxu0 0.0
    %3977 = vmatprep.subr.mxu0 0.0
    %3978 = vmatpush1.msra.mxu0 0.0
    %3979 = vmatprep.subr.mxu0 0.0
    %3980 = vmatpush1.msra.mxu0 0.0
    %3981 = vmatprep.subr.mxu0 0.0
    %3982 = vmatpush1.msra.mxu0 0.0
    %3983 = vmatprep.subr.mxu0 0.0
    %3984 = vmatpush1.msra.mxu0 0.0
    %3985 = vmatprep.subr.mxu0 0.0
    %3986 = vmatpush1.msra.mxu0 0.0
    %3987 = vmatprep.subr.mxu0 0.0
    %3988 = vmatpush1.msra.mxu0 0.0
    %3989 = vmatprep.subr.mxu0 0.0
    %3990 = vmatpush1.msra.mxu0 0.0
    %3991 = vmatprep.subr.mxu0 0.0
    %3992 = vmatpush1.msra.mxu0 0.0
    %3993 = vmatprep.subr.mxu0 0.0
    %3994 = vmatpush1.msra.mxu0 0.0
    %3995 = vmatprep.subr.mxu0 0.0
    %3996 = vmatpush1.msra.mxu0 0.0
    %3997 = vmatprep.subr.mxu0 0.0
    %3998 = vmatpush1.msra.mxu0 0.0
    %3999 = vmatprep.subr.mxu0 0.0
    %4000 = vmatpush1.msra.mxu0 0.0
    %4001 = vmatprep.subr.mxu0 0.0
    %4002 = vmatpush1.msra.mxu0 0.0
    %4003 = vmatprep.mubr.f32.mxu0 0.0
    %4004 = vmatmul.mubr.f32.gmra.mrb[0].mxu0 %v3937
    %v4005 = vpop.f32.mrb[0].mxu0
    %v4006 = vadd.f32 0.0, %v4005
    %v4007 = vpop.f32.mrb[0].mxu0
    %4008 = vdwg.mxu0
    %v4009 = vadd.f32 %v3933, %v4006
    %v4010 = vxor.u32 %v4009, 2147483648
    %v4011 = vmul.f32 %v4010, 1.442695
    %v4012 = vpow.pop %v4011
    %v4013 = vadd.f32 %v4012, 1.0
    %v4014 = vrcp.pop %v4013
    %v4015 = vmul.f32 1.0, %v4014
    %v4016 = vmul.f32 %v4015, %v3812
    %v4017 = vmul.f32 %v4015, 2.0
    %v4018 = vsub.f32 %v4017, 1.0
    %4020 = vrot.lane.b32.xlu0 %v4018, 64
    %v4021 = vpop.permute.xlu0 %4020
    %v4023 = vmul.f32 %v4015, %v4021
    %4025 = vrot.lane.b32.xlu0 %v4023, 32
    %v4026 = vpop.permute.xlu0 %4025
    %v4028 = vadd.f32 %v4016, %v4026
    %v4029 = vtanh.pop %v4028
    %4031 = vrot.lane.b32.xlu0 %v4029, 64
    %v4032 = vpop.permute.xlu0 %4031
    %v4034 = vmul.f32 %v4015, %v4032
    %v4035 = vmax.f32 %v3932, 0.0
    %v4036 = vmax.f32 %v4034, 0.0
    %4038 = vrot.lane.b32.xlu0 %v4035, 32
    %v4039 = vpop.permute.xlu0 %4038
    %4041 = vst.msk [vmem:[%s2961] sm:$0xff] %vm537, %v4039
    %4043 = vrot.lane.b32.xlu0 %v4036, 64
    %v4044 = vpop.permute.xlu0 %4043
    %4046 = vst.msk [vmem:[%s2955] sm:$0xff] %vm745, %v4044
    %v4047 = vld [vmem:[%s2025] sm:$0xff]
    %4049 = vrot.lane.b32.xlu0 %v3932, 32
    %v4050 = vpop.permute.xlu0 %4049
    %v4051 = vsel %vm537, %v4050, 0
    %4053 = vmatprep.subr.mxu0 0.0
    %4054 = vmatpush1.msra.mxu0 %v2529
    %4055 = vmatprep.subr.mxu0 0.0
    %4056 = vmatpush1.msra.mxu0 %v2530
    %4057 = vmatprep.subr.mxu0 0.0
    %4058 = vmatpush1.msra.mxu0 %v2531
    %4059 = vmatprep.subr.mxu0 0.0
    %4060 = vmatpush1.msra.mxu0 %v2532
    %4061 = vmatprep.subr.mxu0 0.0
    %4062 = vmatpush1.msra.mxu0 0.0
    %4063 = vmatprep.subr.mxu0 0.0
    %4064 = vmatpush1.msra.mxu0 0.0
    %4065 = vmatprep.subr.mxu0 0.0
    %4066 = vmatpush1.msra.mxu0 0.0
    %4067 = vmatprep.subr.mxu0 0.0
    %4068 = vmatpush1.msra.mxu0 0.0
    %4069 = vmatprep.subr.mxu0 0.0
    %4070 = vmatpush1.msra.mxu0 0.0
    %4071 = vmatprep.subr.mxu0 0.0
    %4072 = vmatpush1.msra.mxu0 0.0
    %4073 = vmatprep.subr.mxu0 0.0
    %4074 = vmatpush1.msra.mxu0 0.0
    %4075 = vmatprep.subr.mxu0 0.0
    %4076 = vmatpush1.msra.mxu0 0.0
    %4077 = vmatprep.subr.mxu0 0.0
    %4078 = vmatpush1.msra.mxu0 0.0
    %4079 = vmatprep.subr.mxu0 0.0
    %4080 = vmatpush1.msra.mxu0 0.0
    %4081 = vmatprep.subr.mxu0 0.0
    %4082 = vmatpush1.msra.mxu0 0.0
    %4083 = vmatprep.subr.mxu0 0.0
    %4084 = vmatpush1.msra.mxu0 0.0
    %4085 = vmatprep.subr.mxu0 0.0
    %4086 = vmatpush1.msra.mxu0 0.0
    %4087 = vmatprep.subr.mxu0 0.0
    %4088 = vmatpush1.msra.mxu0 0.0
    %4089 = vmatprep.subr.mxu0 0.0
    %4090 = vmatpush1.msra.mxu0 0.0
    %4091 = vmatprep.subr.mxu0 0.0
    %4092 = vmatpush1.msra.mxu0 0.0
    %4093 = vmatprep.subr.mxu0 0.0
    %4094 = vmatpush1.msra.mxu0 0.0
    %4095 = vmatprep.subr.mxu0 0.0
    %4096 = vmatpush1.msra.mxu0 0.0
    %4097 = vmatprep.subr.mxu0 0.0
    %4098 = vmatpush1.msra.mxu0 0.0
    %4099 = vmatprep.subr.mxu0 0.0
    %4100 = vmatpush1.msra.mxu0 0.0
    %4101 = vmatprep.subr.mxu0 0.0
    %4102 = vmatpush1.msra.mxu0 0.0
    %4103 = vmatprep.subr.mxu0 0.0
    %4104 = vmatpush1.msra.mxu0 0.0
    %4105 = vmatprep.subr.mxu0 0.0
    %4106 = vmatpush1.msra.mxu0 0.0
    %4107 = vmatprep.subr.mxu0 0.0
    %4108 = vmatpush1.msra.mxu0 0.0
    %4109 = vmatprep.subr.mxu0 0.0
    %4110 = vmatpush1.msra.mxu0 0.0
    %4111 = vmatprep.subr.mxu0 0.0
    %4112 = vmatpush1.msra.mxu0 0.0
    %4113 = vmatprep.subr.mxu0 0.0
    %4114 = vmatpush1.msra.mxu0 0.0
    %4115 = vmatprep.subr.mxu0 0.0
    %4116 = vmatpush1.msra.mxu0 0.0
    %4117 = vmatprep.mubr.f32.mxu0 0.0
    %4118 = vmatmul.mubr.f32.gmra.mrb[0].mxu0 %v4051
    %v4119 = vpop.f32.mrb[0].mxu0
    %v4120 = vadd.f32 0.0, %v4119
    %v4121 = vpop.f32.mrb[0].mxu0
    %4122 = vdwg.mxu0
    %v4123 = vadd.f32 %v4047, %v4120
    %v4124 = vxor.u32 %v4123, 2147483648
    %v4125 = vmul.f32 %v4124, 1.442695
    %v4126 = vpow.pop %v4125
    %v4127 = vadd.f32 %v4126, 1.0
    %v4128 = vrcp.pop %v4127
    %v4129 = vmul.f32 1.0, %v4128
    %v4130 = vmul.f32 %v4129, %v3926
    %v4131 = vmul.f32 %v4129, 2.0
    %v4132 = vsub.f32 %v4131, 1.0
    %4134 = vrot.lane.b32.xlu0 %v4132, 64
    %v4135 = vpop.permute.xlu0 %4134
    %v4137 = vmul.f32 %v4129, %v4135
    %4139 = vrot.lane.b32.xlu0 %v4137, 32
    %v4140 = vpop.permute.xlu0 %4139
    %v4142 = vadd.f32 %v4130, %v4140
    %v4143 = vtanh.pop %v4142
    %4145 = vrot.lane.b32.xlu0 %v4143, 64
    %v4146 = vpop.permute.xlu0 %4145
    %v4148 = vmul.f32 %v4129, %v4146
    %v4149 = vld [vmem:[#allocation3] sm:$0xff]
    %4151 = vrot.lane.b32.xlu0 %v4034, 32
    %v4152 = vpop.permute.xlu0 %4151
    %v4153 = vsel %vm537, %v4152, 0
    %4155 = vmatprep.subr.mxu0 0.0
    %4156 = vmatpush1.msra.mxu0 %v2534
    %4157 = vmatprep.subr.mxu0 0.0
    %4158 = vmatpush1.msra.mxu0 %v2535
    %4159 = vmatprep.subr.mxu0 0.0
    %4160 = vmatpush1.msra.mxu0 %v2536
    %4161 = vmatprep.subr.mxu0 0.0
    %4162 = vmatpush1.msra.mxu0 %v2537
    %4163 = vmatprep.subr.mxu0 0.0
    %4164 = vmatpush1.msra.mxu0 0.0
    %4165 = vmatprep.subr.mxu0 0.0
    %4166 = vmatpush1.msra.mxu0 0.0
    %4167 = vmatprep.subr.mxu0 0.0
    %4168 = vmatpush1.msra.mxu0 0.0
    %4169 = vmatprep.subr.mxu0 0.0
    %4170 = vmatpush1.msra.mxu0 0.0
    %4171 = vmatprep.subr.mxu0 0.0
    %4172 = vmatpush1.msra.mxu0 0.0
    %4173 = vmatprep.subr.mxu0 0.0
    %4174 = vmatpush1.msra.mxu0 0.0
    %4175 = vmatprep.subr.mxu0 0.0
    %4176 = vmatpush1.msra.mxu0 0.0
    %4177 = vmatprep.subr.mxu0 0.0
    %4178 = vmatpush1.msra.mxu0 0.0
    %4179 = vmatprep.subr.mxu0 0.0
    %4180 = vmatpush1.msra.mxu0 0.0
    %4181 = vmatprep.subr.mxu0 0.0
    %4182 = vmatpush1.msra.mxu0 0.0
    %4183 = vmatprep.subr.mxu0 0.0
    %4184 = vmatpush1.msra.mxu0 0.0
    %4185 = vmatprep.subr.mxu0 0.0
    %4186 = vmatpush1.msra.mxu0 0.0
    %4187 = vmatprep.subr.mxu0 0.0
    %4188 = vmatpush1.msra.mxu0 0.0
    %4189 = vmatprep.subr.mxu0 0.0
    %4190 = vmatpush1.msra.mxu0 0.0
    %4191 = vmatprep.subr.mxu0 0.0
    %4192 = vmatpush1.msra.mxu0 0.0
    %4193 = vmatprep.subr.mxu0 0.0
    %4194 = vmatpush1.msra.mxu0 0.0
    %4195 = vmatprep.subr.mxu0 0.0
    %4196 = vmatpush1.msra.mxu0 0.0
    %4197 = vmatprep.subr.mxu0 0.0
    %4198 = vmatpush1.msra.mxu0 0.0
    %4199 = vmatprep.subr.mxu0 0.0
    %4200 = vmatpush1.msra.mxu0 0.0
    %4201 = vmatprep.subr.mxu0 0.0
    %4202 = vmatpush1.msra.mxu0 0.0
    %4203 = vmatprep.subr.mxu0 0.0
    %4204 = vmatpush1.msra.mxu0 0.0
    %4205 = vmatprep.subr.mxu0 0.0
    %4206 = vmatpush1.msra.mxu0 0.0
    %4207 = vmatprep.subr.mxu0 0.0
    %4208 = vmatpush1.msra.mxu0 0.0
    %4209 = vmatprep.subr.mxu0 0.0
    %4210 = vmatpush1.msra.mxu0 0.0
    %4211 = vmatprep.subr.mxu0 0.0
    %4212 = vmatpush1.msra.mxu0 0.0
    %4213 = vmatprep.subr.mxu0 0.0
    %4214 = vmatpush1.msra.mxu0 0.0
    %4215 = vmatprep.subr.mxu0 0.0
    %4216 = vmatpush1.msra.mxu0 0.0
    %4217 = vmatprep.subr.mxu0 0.0
    %4218 = vmatpush1.msra.mxu0 0.0
    %4219 = vmatprep.mubr.f32.mxu0 0.0
    %4220 = vmatmul.mubr.f32.gmra.mrb[0].mxu0 %v4153
    %v4221 = vpop.f32.mrb[0].mxu0
    %v4222 = vadd.f32 0.0, %v4221
    %v4223 = vpop.f32.mrb[0].mxu0
    %4224 = vdwg.mxu0
    %v4225 = vadd.f32 %v4149, %v4222
    %v4226 = vxor.u32 %v4225, 2147483648
    %v4227 = vmul.f32 %v4226, 1.442695
    %v4228 = vpow.pop %v4227
    %v4229 = vadd.f32 %v4228, 1.0
    %v4230 = vrcp.pop %v4229
    %v4231 = vmul.f32 1.0, %v4230
    %v4232 = vmul.f32 %v4231, %v4028
    %v4233 = vmul.f32 %v4231, 2.0
    %v4234 = vsub.f32 %v4233, 1.0
    %4236 = vrot.lane.b32.xlu0 %v4234, 64
    %v4237 = vpop.permute.xlu0 %4236
    %v4239 = vmul.f32 %v4231, %v4237
    %4241 = vrot.lane.b32.xlu0 %v4239, 32
    %v4242 = vpop.permute.xlu0 %4241
    %v4244 = vadd.f32 %v4232, %v4242
    %v4245 = vtanh.pop %v4244
    %4247 = vrot.lane.b32.xlu0 %v4245, 64
    %v4248 = vpop.permute.xlu0 %4247
    %v4250 = vmul.f32 %v4231, %v4248
    %v4251 = vmax.f32 %v4148, 0.0
    %v4252 = vmax.f32 %v4250, 0.0
    %4254 = vrot.lane.b32.xlu0 %v4251, 32
    %v4255 = vpop.permute.xlu0 %4254
    %4257 = vst.msk [vmem:[%s2743] sm:$0xff] %vm537, %v4255
    %4259 = vrot.lane.b32.xlu0 %v4252, 64
    %v4260 = vpop.permute.xlu0 %4259
    %4262 = vst.msk [vmem:[#allocation5] sm:$0xff] %vm745, %v4260
    %v4263 = vld [vmem:[#allocation5] sm:$0xff]
    %v4264 = vld [vmem:[#allocation5 + $0x8] sm:$0xff]
    %v4265 = vld [vmem:[#allocation5 + $0x10] sm:$0xff]
    %v4266 = vld [vmem:[#allocation5 + $0x18] sm:$0xff]
    %v4267 = vld [vmem:[#allocation5 + $0x20] sm:$0xff]
    %v4268 = vld [vmem:[#allocation5 + $0x28] sm:$0xff]
    %v4269 = vld [vmem:[%s6] sm:$0xff]
    %v4270 = vld [vmem:[%s6 + $0x8] sm:$0xff]
    %v4271 = vld [vmem:[%s6 + $0x10] sm:$0xff]
    %v4272 = vld [vmem:[%s6 + $0x18] sm:$0xff]
    %v4273 = vld [vmem:[%s6 + $0x20] sm:$0xff]
    %v4274 = vld [vmem:[%s6 + $0x28] sm:$0xff]
    %v4275 = vld [vmem:[%s6 + $0x30] sm:$0xff]
    %v4276 = vld [vmem:[%s6 + $0x38] sm:$0xff]
    %v4277 = vld [vmem:[#allocation5 + $0x30] sm:$0xff]
    %s4278 = scalar_lea.vmem %s6, 64
    %v4279 = vld [vmem:[%s4278] sm:$0xff]
    %v4280 = vld [vmem:[%s4278 + $0x8] sm:$0xff]
    %v4281 = vld [vmem:[%s4278 + $0x10] sm:$0xff]
    %v4282 = vld [vmem:[%s4278 + $0x18] sm:$0xff]
    %v4283 = vld [vmem:[%s4278 + $0x20] sm:$0xff]
    %v4284 = vld [vmem:[%s4278 + $0x28] sm:$0xff]
    %v4285 = vld [vmem:[%s4278 + $0x30] sm:$0xff]
    %v4286 = vld [vmem:[%s4278 + $0x38] sm:$0xff]
    %v4288 = vsel %vm2260, %v4264, 0
    %v4291 = vsel %vm2260, %v4265, 0
    %v4294 = vsel %vm2260, %v4266, 0
    %v4297 = vsel %vm2260, %v4267, 0
    %v4300 = vsel %vm2260, %v4268, 0
    %v4303 = vsel %vm2260, %v4277, 0
    %4305 = vmatprep.subr.mxu0 0.0
    %4306 = vmatpush1.msra.mxu0 %v4279
    %4307 = vmatprep.subr.mxu0 0.0
    %4308 = vmatpush1.msra.mxu0 %v4280
    %4309 = vmatprep.subr.mxu0 0.0
    %4310 = vmatpush1.msra.mxu0 %v4281
    %4311 = vmatprep.subr.mxu0 0.0
    %4312 = vmatpush1.msra.mxu0 %v4282
    %4313 = vmatprep.subr.mxu0 0.0
    %4314 = vmatpush1.msra.mxu0 %v4283
    %4315 = vmatprep.subr.mxu0 0.0
    %4316 = vmatpush1.msra.mxu0 %v4284
    %4317 = vmatprep.subr.mxu0 0.0
    %4318 = vmatpush1.msra.mxu0 %v4285
    %4319 = vmatprep.subr.mxu0 0.0
    %4320 = vmatpush1.msra.mxu0 %v4286
    %4321 = vmatprep.subr.mxu0 0.0
    %4322 = vmatpush1.msra.mxu0 0.0
    %4323 = vmatprep.subr.mxu0 0.0
    %4324 = vmatpush1.msra.mxu0 0.0
    %4325 = vmatprep.subr.mxu0 0.0
    %4326 = vmatpush1.msra.mxu0 0.0
    %4327 = vmatprep.subr.mxu0 0.0
    %4328 = vmatpush1.msra.mxu0 0.0
    %4329 = vmatprep.subr.mxu0 0.0
    %4330 = vmatpush1.msra.mxu0 0.0
    %4331 = vmatprep.subr.mxu0 0.0
    %4332 = vmatpush1.msra.mxu0 0.0
    %4333 = vmatprep.subr.mxu0 0.0
    %4334 = vmatpush1.msra.mxu0 0.0
    %4335 = vmatprep.subr.mxu0 0.0
    %4336 = vmatpush1.msra.mxu0 0.0
    %4337 = vmatprep.subr.mxu0 0.0
    %4338 = vmatpush1.msra.mxu0 0.0
    %4339 = vmatprep.subr.mxu0 0.0
    %4340 = vmatpush1.msra.mxu0 0.0
    %4341 = vmatprep.subr.mxu0 0.0
    %4342 = vmatpush1.msra.mxu0 0.0
    %4343 = vmatprep.subr.mxu0 0.0
    %4344 = vmatpush1.msra.mxu0 0.0
    %4345 = vmatprep.subr.mxu0 0.0
    %4346 = vmatpush1.msra.mxu0 0.0
    %4347 = vmatprep.subr.mxu0 0.0
    %4348 = vmatpush1.msra.mxu0 0.0
    %4349 = vmatprep.subr.mxu0 0.0
    %4350 = vmatpush1.msra.mxu0 0.0
    %4351 = vmatprep.subr.mxu0 0.0
    %4352 = vmatpush1.msra.mxu0 0.0
    %4353 = vmatprep.subr.mxu0 0.0
    %4354 = vmatpush1.msra.mxu0 0.0
    %4355 = vmatprep.subr.mxu0 0.0
    %4356 = vmatpush1.msra.mxu0 0.0
    %4357 = vmatprep.subr.mxu0 0.0
    %4358 = vmatpush1.msra.mxu0 0.0
    %4359 = vmatprep.subr.mxu0 0.0
    %4360 = vmatpush1.msra.mxu0 0.0
    %4361 = vmatprep.subr.mxu0 0.0
    %4362 = vmatpush1.msra.mxu0 0.0
    %4363 = vmatprep.subr.mxu0 0.0
    %4364 = vmatpush1.msra.mxu0 0.0
    %4365 = vmatprep.subr.mxu0 0.0
    %4366 = vmatpush1.msra.mxu0 0.0
    %4367 = vmatprep.subr.mxu0 0.0
    %4368 = vmatpush1.msra.mxu0 0.0
    %4369 = vmatprep.mubr.f32.mxu0 0.0
    %4370 = vmatmul.mubr.f32.gmra.mrb[0].mxu0 %v4288
    %v4371 = vpop.f32.mrb[0].mxu0
    %v4372 = vadd.f32 0.0, %v4371
    %v4373 = vpop.f32.mrb[0].mxu0
    %4374 = vmatprep.mubr.f32.mxu0 0.0
    %4375 = vmatmul.mubr.f32.gmra.mrb[0].mxu0 %v4291
    %v4376 = vpop.f32.mrb[0].mxu0
    %v4377 = vadd.f32 0.0, %v4376
    %v4378 = vpop.f32.mrb[0].mxu0
    %4379 = vmatprep.mubr.f32.mxu0 0.0
    %4380 = vmatmul.mubr.f32.gmra.mrb[0].mxu0 %v4294
    %v4381 = vpop.f32.mrb[0].mxu0
    %v4382 = vadd.f32 0.0, %v4381
    %v4383 = vpop.f32.mrb[0].mxu0
    %4384 = vmatprep.mubr.f32.mxu0 0.0
    %4385 = vmatmul.mubr.f32.gmra.mrb[0].mxu0 %v4297
    %v4386 = vpop.f32.mrb[0].mxu0
    %v4387 = vadd.f32 0.0, %v4386
    %v4388 = vpop.f32.mrb[0].mxu0
    %4389 = vmatprep.mubr.f32.mxu0 0.0
    %4390 = vmatmul.mubr.f32.gmra.mrb[0].mxu0 %v4300
    %v4391 = vpop.f32.mrb[0].mxu0
    %v4392 = vadd.f32 0.0, %v4391
    %v4393 = vpop.f32.mrb[0].mxu0
    %4394 = vmatprep.mubr.f32.mxu0 0.0
    %4395 = vmatmul.mubr.f32.gmra.mrb[0].mxu0 %v4303
    %v4396 = vpop.f32.mrb[0].mxu0
    %v4397 = vadd.f32 0.0, %v4396
    %v4398 = vpop.f32.mrb[0].mxu0
    %4399 = vdwg.mxu0
    %v4401 = vsel %vm2260, %v4263, 0
    %4403 = vmatprep.subr.mxu0 0.0
    %4404 = vmatpush1.msra.mxu0 %v4269
    %4405 = vmatprep.subr.mxu0 0.0
    %4406 = vmatpush1.msra.mxu0 %v4270
    %4407 = vmatprep.subr.mxu0 0.0
    %4408 = vmatpush1.msra.mxu0 %v4271
    %4409 = vmatprep.subr.mxu0 0.0
    %4410 = vmatpush1.msra.mxu0 %v4272
    %4411 = vmatprep.subr.mxu0 0.0
    %4412 = vmatpush1.msra.mxu0 %v4273
    %4413 = vmatprep.subr.mxu0 0.0
    %4414 = vmatpush1.msra.mxu0 %v4274
    %4415 = vmatprep.subr.mxu0 0.0
    %4416 = vmatpush1.msra.mxu0 %v4275
    %4417 = vmatprep.subr.mxu0 0.0
    %4418 = vmatpush1.msra.mxu0 %v4276
    %4419 = vmatprep.subr.mxu0 0.0
    %4420 = vmatpush1.msra.mxu0 0.0
    %4421 = vmatprep.subr.mxu0 0.0
    %4422 = vmatpush1.msra.mxu0 0.0
    %4423 = vmatprep.subr.mxu0 0.0
    %4424 = vmatpush1.msra.mxu0 0.0
    %4425 = vmatprep.subr.mxu0 0.0
    %4426 = vmatpush1.msra.mxu0 0.0
    %4427 = vmatprep.subr.mxu0 0.0
    %4428 = vmatpush1.msra.mxu0 0.0
    %4429 = vmatprep.subr.mxu0 0.0
    %4430 = vmatpush1.msra.mxu0 0.0
    %4431 = vmatprep.subr.mxu0 0.0
    %4432 = vmatpush1.msra.mxu0 0.0
    %4433 = vmatprep.subr.mxu0 0.0
    %4434 = vmatpush1.msra.mxu0 0.0
    %4435 = vmatprep.subr.mxu0 0.0
    %4436 = vmatpush1.msra.mxu0 0.0
    %4437 = vmatprep.subr.mxu0 0.0
    %4438 = vmatpush1.msra.mxu0 0.0
    %4439 = vmatprep.subr.mxu0 0.0
    %4440 = vmatpush1.msra.mxu0 0.0
    %4441 = vmatprep.subr.mxu0 0.0
    %4442 = vmatpush1.msra.mxu0 0.0
    %4443 = vmatprep.subr.mxu0 0.0
    %4444 = vmatpush1.msra.mxu0 0.0
    %4445 = vmatprep.subr.mxu0 0.0
    %4446 = vmatpush1.msra.mxu0 0.0
    %4447 = vmatprep.subr.mxu0 0.0
    %4448 = vmatpush1.msra.mxu0 0.0
    %4449 = vmatprep.subr.mxu0 0.0
    %4450 = vmatpush1.msra.mxu0 0.0
    %4451 = vmatprep.subr.mxu0 0.0
    %4452 = vmatpush1.msra.mxu0 0.0
    %4453 = vmatprep.subr.mxu0 0.0
    %4454 = vmatpush1.msra.mxu0 0.0
    %4455 = vmatprep.subr.mxu0 0.0
    %4456 = vmatpush1.msra.mxu0 0.0
    %4457 = vmatprep.subr.mxu0 0.0
    %4458 = vmatpush1.msra.mxu0 0.0
    %4459 = vmatprep.subr.mxu0 0.0
    %4460 = vmatpush1.msra.mxu0 0.0
    %4461 = vmatprep.subr.mxu0 0.0
    %4462 = vmatpush1.msra.mxu0 0.0
    %4463 = vmatprep.subr.mxu0 0.0
    %4464 = vmatpush1.msra.mxu0 0.0
    %4465 = vmatprep.subr.mxu0 0.0
    %4466 = vmatpush1.msra.mxu0 0.0
    %4467 = vmatprep.mubr.f32.mxu0 0.0
    %4468 = vmatmul.mubr.f32.gmra.mrb[0].mxu0 %v4401
    %v4469 = vpop.f32.mrb[0].mxu0
    %v4470 = vadd.f32 %v4372, %v4469
    %v4471 = vpop.f32.mrb[0].mxu0
    %4472 = vmatprep.mubr.f32.mxu0 0.0
    %4473 = vmatmul.mubr.f32.gmra.mrb[0].mxu0 %v4288
    %v4474 = vpop.f32.mrb[0].mxu0
    %v4475 = vadd.f32 %v4377, %v4474
    %v4476 = vpop.f32.mrb[0].mxu0
    %4477 = vmatprep.mubr.f32.mxu0 0.0
    %4478 = vmatmul.mubr.f32.gmra.mrb[0].mxu0 %v4291
    %v4479 = vpop.f32.mrb[0].mxu0
    %v4480 = vadd.f32 %v4382, %v4479
    %v4481 = vpop.f32.mrb[0].mxu0
    %4482 = vmatprep.mubr.f32.mxu0 0.0
    %4483 = vmatmul.mubr.f32.gmra.mrb[0].mxu0 %v4294
    %v4484 = vpop.f32.mrb[0].mxu0
    %v4485 = vadd.f32 %v4387, %v4484
    %v4486 = vpop.f32.mrb[0].mxu0
    %4487 = vmatprep.mubr.f32.mxu0 0.0
    %4488 = vmatmul.mubr.f32.gmra.mrb[0].mxu0 %v4297
    %v4489 = vpop.f32.mrb[0].mxu0
    %v4490 = vadd.f32 %v4392, %v4489
    %v4491 = vpop.f32.mrb[0].mxu0
    %4492 = vmatprep.mubr.f32.mxu0 0.0
    %4493 = vmatmul.mubr.f32.gmra.mrb[0].mxu0 %v4300
    %v4494 = vpop.f32.mrb[0].mxu0
    %v4495 = vadd.f32 %v4397, %v4494
    %v4496 = vpop.f32.mrb[0].mxu0
    %4497 = vdwg.mxu0
    %v4498 = vld [vmem:[#allocation5 + $0x10] sm:$0xff]
    %v4499 = vld [vmem:[#allocation5 + $0x18] sm:$0xff]
    %v4500 = vld [vmem:[#allocation5 + $0x20] sm:$0xff]
    %v4501 = vld [vmem:[#allocation5 + $0x28] sm:$0xff]
    %v4502 = vld [vmem:[#allocation5 + $0x30] sm:$0xff]
    %v4503 = vld [vmem:[#allocation5 + $0x38] sm:$0xff]
    %s4504 = scalar_lea.vmem %s6, 128
    %v4505 = vld [vmem:[%s4504] sm:$0xff]
    %v4506 = vld [vmem:[%s4504 + $0x8] sm:$0xff]
    %v4507 = vld [vmem:[%s4504 + $0x10] sm:$0xff]
    %v4508 = vld [vmem:[%s4504 + $0x18] sm:$0xff]
    %v4509 = vld [vmem:[%s4504 + $0x20] sm:$0xff]
    %v4510 = vld [vmem:[%s4504 + $0x28] sm:$0xff]
    %v4511 = vld [vmem:[%s4504 + $0x30] sm:$0xff]
    %v4512 = vld [vmem:[%s4504 + $0x38] sm:$0xff]
    %v4514 = vsel %vm2260, %v4498, 0
    %v4517 = vsel %vm2260, %v4499, 0
    %v4520 = vsel %vm2260, %v4500, 0
    %v4523 = vsel %vm2260, %v4501, 0
    %v4526 = vsel %vm2260, %v4502, 0
    %v4529 = vsel %vm2260, %v4503, 0
    %4531 = vmatprep.subr.mxu0 0.0
    %4532 = vmatpush1.msra.mxu0 %v4505
    %4533 = vmatprep.subr.mxu0 0.0
    %4534 = vmatpush1.msra.mxu0 %v4506
    %4535 = vmatprep.subr.mxu0 0.0
    %4536 = vmatpush1.msra.mxu0 %v4507
    %4537 = vmatprep.subr.mxu0 0.0
    %4538 = vmatpush1.msra.mxu0 %v4508
    %4539 = vmatprep.subr.mxu0 0.0
    %4540 = vmatpush1.msra.mxu0 %v4509
    %4541 = vmatprep.subr.mxu0 0.0
    %4542 = vmatpush1.msra.mxu0 %v4510
    %4543 = vmatprep.subr.mxu0 0.0
    %4544 = vmatpush1.msra.mxu0 %v4511
    %4545 = vmatprep.subr.mxu0 0.0
    %4546 = vmatpush1.msra.mxu0 %v4512
    %4547 = vmatprep.subr.mxu0 0.0
    %4548 = vmatpush1.msra.mxu0 0.0
    %4549 = vmatprep.subr.mxu0 0.0
    %4550 = vmatpush1.msra.mxu0 0.0
    %4551 = vmatprep.subr.mxu0 0.0
    %4552 = vmatpush1.msra.mxu0 0.0
    %4553 = vmatprep.subr.mxu0 0.0
    %4554 = vmatpush1.msra.mxu0 0.0
    %4555 = vmatprep.subr.mxu0 0.0
    %4556 = vmatpush1.msra.mxu0 0.0
    %4557 = vmatprep.subr.mxu0 0.0
    %4558 = vmatpush1.msra.mxu0 0.0
    %4559 = vmatprep.subr.mxu0 0.0
    %4560 = vmatpush1.msra.mxu0 0.0
    %4561 = vmatprep.subr.mxu0 0.0
    %4562 = vmatpush1.msra.mxu0 0.0
    %4563 = vmatprep.subr.mxu0 0.0
    %4564 = vmatpush1.msra.mxu0 0.0
    %4565 = vmatprep.subr.mxu0 0.0
    %4566 = vmatpush1.msra.mxu0 0.0
    %4567 = vmatprep.subr.mxu0 0.0
    %4568 = vmatpush1.msra.mxu0 0.0
    %4569 = vmatprep.subr.mxu0 0.0
    %4570 = vmatpush1.msra.mxu0 0.0
    %4571 = vmatprep.subr.mxu0 0.0
    %4572 = vmatpush1.msra.mxu0 0.0
    %4573 = vmatprep.subr.mxu0 0.0
    %4574 = vmatpush1.msra.mxu0 0.0
    %4575 = vmatprep.subr.mxu0 0.0
    %4576 = vmatpush1.msra.mxu0 0.0
    %4577 = vmatprep.subr.mxu0 0.0
    %4578 = vmatpush1.msra.mxu0 0.0
    %4579 = vmatprep.subr.mxu0 0.0
    %4580 = vmatpush1.msra.mxu0 0.0
    %4581 = vmatprep.subr.mxu0 0.0
    %4582 = vmatpush1.msra.mxu0 0.0
    %4583 = vmatprep.subr.mxu0 0.0
    %4584 = vmatpush1.msra.mxu0 0.0
    %4585 = vmatprep.subr.mxu0 0.0
    %4586 = vmatpush1.msra.mxu0 0.0
    %4587 = vmatprep.subr.mxu0 0.0
    %4588 = vmatpush1.msra.mxu0 0.0
    %4589 = vmatprep.subr.mxu0 0.0
    %4590 = vmatpush1.msra.mxu0 0.0
    %4591 = vmatprep.subr.mxu0 0.0
    %4592 = vmatpush1.msra.mxu0 0.0
    %4593 = vmatprep.subr.mxu0 0.0
    %4594 = vmatpush1.msra.mxu0 0.0
    %4595 = vmatprep.mubr.f32.mxu0 0.0
    %4596 = vmatmul.mubr.f32.gmra.mrb[0].mxu0 %v4514
    %v4597 = vpop.f32.mrb[0].mxu0
    %v4598 = vadd.f32 0.0, %v4597
    %v4599 = vpop.f32.mrb[0].mxu0
    %4600 = vmatprep.mubr.f32.mxu0 0.0
    %4601 = vmatmul.mubr.f32.gmra.mrb[0].mxu0 %v4517
    %v4602 = vpop.f32.mrb[0].mxu0
    %v4603 = vadd.f32 0.0, %v4602
    %v4604 = vpop.f32.mrb[0].mxu0
    %4605 = vmatprep.mubr.f32.mxu0 0.0
    %4606 = vmatmul.mubr.f32.gmra.mrb[0].mxu0 %v4520
    %v4607 = vpop.f32.mrb[0].mxu0
    %v4608 = vadd.f32 0.0, %v4607
    %v4609 = vpop.f32.mrb[0].mxu0
    %4610 = vmatprep.mubr.f32.mxu0 0.0
    %4611 = vmatmul.mubr.f32.gmra.mrb[0].mxu0 %v4523
    %v4612 = vpop.f32.mrb[0].mxu0
    %v4613 = vadd.f32 0.0, %v4612
    %v4614 = vpop.f32.mrb[0].mxu0
    %4615 = vmatprep.mubr.f32.mxu0 0.0
    %4616 = vmatmul.mubr.f32.gmra.mrb[0].mxu0 %v4526
    %v4617 = vpop.f32.mrb[0].mxu0
    %v4618 = vadd.f32 0.0, %v4617
    %v4619 = vpop.f32.mrb[0].mxu0
    %4620 = vmatprep.mubr.f32.mxu0 0.0
    %4621 = vmatmul.mubr.f32.gmra.mrb[0].mxu0 %v4529
    %v4622 = vpop.f32.mrb[0].mxu0
    %v4623 = vadd.f32 0.0, %v4622
    %v4624 = vpop.f32.mrb[0].mxu0
    %4625 = vdwg.mxu0
    %v4626 = vadd.f32 %v4470, %v4598
    %v4627 = vadd.f32 %v4475, %v4603
    %v4628 = vadd.f32 %v4480, %v4608
    %v4629 = vadd.f32 %v4485, %v4613
    %v4630 = vadd.f32 %v4490, %v4618
    %v4631 = vadd.f32 %v4495, %v4623
    %v4632 = vld [vmem:[%s7] sm:$0x1]
    %v4634 = vlaneseq
    %v4635 = vshrl.u32 %v4634, 7
    %v4636 = vsub.s32 0, %v4635
    %v4637 = vrot.slane %v4632, %v4636
    %v4639 = vadd.f32 %v4626, %v4637
    %v4640 = vadd.f32 %v4627, %v4637
    %v4641 = vadd.f32 %v4628, %v4637
    %v4642 = vadd.f32 %v4629, %v4637
    %v4643 = vadd.f32 %v4630, %v4637
    %v4644 = vadd.f32 %v4631, %v4637
    %v4645 = vadd.f32 %v4639, %v4640
    %v4646 = vmax.f32 %v4639, %v4640
    %v4647 = vadd.f32 %v4645, %v4641
    %v4648 = vmax.f32 %v4646, %v4641
    %v4649 = vadd.f32 %v4647, %v4642
    %v4650 = vmax.f32 %v4648, %v4642
    %v4651 = vadd.f32 %v4649, %v4643
    %v4652 = vmax.f32 %v4650, %v4643
    %v4653 = vadd.f32 %v4651, %v4644
    %v4654 = vmax.f32 %v4652, %v4644
    %v4655 = vmul.f32 %v4653, 0.16666667
    %4657 = vrot.lane.b32.xlu0 %v4654, 64
    %v4658 = vpop.permute.xlu0 %4657
    %v4660 = vsel %vm2260, %v4655, %v4658
    %v4661 = vld [vmem:[#allocation11] sm:$0xff]
    %v4662 = vld [vmem:[#allocation11 + $0x8] sm:$0xff]
    %v4663 = vld [vmem:[#allocation11 + $0x10] sm:$0xff]
    %v4664 = vld [vmem:[#allocation11 + $0x18] sm:$0xff]
    %v4665 = vld [vmem:[#allocation11 + $0x20] sm:$0xff]
    %v4666 = vld [vmem:[#allocation11 + $0x28] sm:$0xff]
    %v4667 = vld [vmem:[#allocation11 + $0x30] sm:$0xff]
    %v4668 = vld [vmem:[#allocation11 + $0x38] sm:$0xff]
    %v4669 = vld [vmem:[#allocation11 + $0x40] sm:$0xff]
    %v4670 = vld [vmem:[#allocation11 + $0x48] sm:$0xff]
    %v4671 = vld [vmem:[#allocation11 + $0x50] sm:$0xff]
    %v4672 = vld [vmem:[#allocation11 + $0x58] sm:$0xff]
    %v4673 = vld [vmem:[#allocation11 + $0x60] sm:$0xff]
    %v4674 = vld [vmem:[#allocation11 + $0x68] sm:$0xff]
    %v4675 = vld [vmem:[#allocation11 + $0x70] sm:$0xff]
    %v4676 = vld [vmem:[#allocation11 + $0x78] sm:$0xff]
    %v4677 = vld [vmem:[%s9] sm:$0x1]
    %v4679 = vlaneseq
    %v4680 = vshrl.u32 %v4679, 7
    %v4681 = vsub.s32 0, %v4680
    %v4682 = vrot.slane %v4677, %v4681
    %4684 = vmatprep.subr.mxu0 0.0
    %4685 = vmatpush1.msra.mxu0 %v4661
    %4686 = vmatprep.subr.mxu0 0.0
    %4687 = vmatpush1.msra.mxu0 %v4662
    %4688 = vmatprep.subr.mxu0 0.0
    %4689 = vmatpush1.msra.mxu0 %v4663
    %4690 = vmatprep.subr.mxu0 0.0
    %4691 = vmatpush1.msra.mxu0 %v4664
    %4692 = vmatprep.subr.mxu0 0.0
    %4693 = vmatpush1.msra.mxu0 %v4665
    %4694 = vmatprep.subr.mxu0 0.0
    %4695 = vmatpush1.msra.mxu0 %v4666
    %4696 = vmatprep.subr.mxu0 0.0
    %4697 = vmatpush1.msra.mxu0 %v4667
    %4698 = vmatprep.subr.mxu0 0.0
    %4699 = vmatpush1.msra.mxu0 %v4668
    %4700 = vmatprep.subr.mxu0 0.0
    %4701 = vmatpush1.msra.mxu0 %v4669
    %4702 = vmatprep.subr.mxu0 0.0
    %4703 = vmatpush1.msra.mxu0 %v4670
    %4704 = vmatprep.subr.mxu0 0.0
    %4705 = vmatpush1.msra.mxu0 %v4671
    %4706 = vmatprep.subr.mxu0 0.0
    %4707 = vmatpush1.msra.mxu0 %v4672
    %4708 = vmatprep.subr.mxu0 0.0
    %4709 = vmatpush1.msra.mxu0 %v4673
    %4710 = vmatprep.subr.mxu0 0.0
    %4711 = vmatpush1.msra.mxu0 %v4674
    %4712 = vmatprep.subr.mxu0 0.0
    %4713 = vmatpush1.msra.mxu0 %v4675
    %4714 = vmatprep.subr.mxu0 0.0
    %4715 = vmatpush1.msra.mxu0 %v4676
    %4716 = vmatprep.subr.mxu0 0.0
    %4717 = vmatpush1.msra.mxu0 0.0
    %4718 = vmatprep.subr.mxu0 0.0
    %4719 = vmatpush1.msra.mxu0 0.0
    %4720 = vmatprep.subr.mxu0 0.0
    %4721 = vmatpush1.msra.mxu0 0.0
    %4722 = vmatprep.subr.mxu0 0.0
    %4723 = vmatpush1.msra.mxu0 0.0
    %4724 = vmatprep.subr.mxu0 0.0
    %4725 = vmatpush1.msra.mxu0 0.0
    %4726 = vmatprep.subr.mxu0 0.0
    %4727 = vmatpush1.msra.mxu0 0.0
    %4728 = vmatprep.subr.mxu0 0.0
    %4729 = vmatpush1.msra.mxu0 0.0
    %4730 = vmatprep.subr.mxu0 0.0
    %4731 = vmatpush1.msra.mxu0 0.0
    %4732 = vmatprep.subr.mxu0 0.0
    %4733 = vmatpush1.msra.mxu0 0.0
    %4734 = vmatprep.subr.mxu0 0.0
    %4735 = vmatpush1.msra.mxu0 0.0
    %4736 = vmatprep.subr.mxu0 0.0
    %4737 = vmatpush1.msra.mxu0 0.0
    %4738 = vmatprep.subr.mxu0 0.0
    %4739 = vmatpush1.msra.mxu0 0.0
    %4740 = vmatprep.subr.mxu0 0.0
    %4741 = vmatpush1.msra.mxu0 0.0
    %4742 = vmatprep.subr.mxu0 0.0
    %4743 = vmatpush1.msra.mxu0 0.0
    %4744 = vmatprep.subr.mxu0 0.0
    %4745 = vmatpush1.msra.mxu0 0.0
    %4746 = vmatprep.subr.mxu0 0.0
    %4747 = vmatpush1.msra.mxu0 0.0
    %4748 = vmatprep.mubr.f32.mxu0 0.0
    %4749 = vmatmul.mubr.f32.gmra.mrb[0].mxu0 %v4660
    %v4750 = vpop.f32.mrb[0].mxu0
    %v4751 = vadd.f32 %v4682, %v4750
    %v4752 = vpop.f32.mrb[0].mxu0
    %4753 = vdwg.mxu0
    %4754 = vmax.xlane.f32.xlu0 %v4751
    %v4755 = vpop.xlane.xlu0 %4754
    %v4756 = vsub.f32 %v4751, %v4755
    %v4757 = vmul.f32 %v4756, 1.442695
    %v4758 = vpow.pop %v4757
    %4759 = vadd.xlane.f32.xlu0 %v4758
    %v4760 = vpop.xlane.xlu0 %4759
    %v4761 = vlog2.pop %v4760
    %v4762 = vmul.f32 %v4761, 0.6931472
    %v4763 = vadd.f32 %v4755, %v4762
    %v4764 = vsub.f32 %v4751, %v4763
    %4765 = vst [vmem:[#allocation12] sm:$0xff] %v4764
    // Predicated region
    $region54: #{tpu_custom_call.1} parent=1 // pred_check
      _
    $region55: #{tpu_custom_call.1} parent=1 // pred_check_branch
      %4767 = sbr.rel (0) target = $region57
    $region56: #{tpu_custom_call.1} parent=1 // pred_region
      %s4769 = ssub.s32 128, 128
      %4770 = vsyncadd [#allocation8], %s4769
      %s4772 = sshll.u32 [#allocation12], 4
      %s4773 = int_to_ptr.vmem [resolvable:$true] %s4772
      %4775 = dma.vmem_to_hbm [thread:$0]  %s4773, 128, %s10, [#allocation8]
    $region57: #{tpu_custom_call.1} parent=1 // pred_fallthru
      _
    // Predicated region
    $region58: #{tpu_custom_call.1} parent=1 // pred_check
      _
    $region59: #{tpu_custom_call.1} parent=1 // pred_check_branch
      %4777 = sbr.rel (0) target = $region61
    $region60: #{tpu_custom_call.1} parent=1 // pred_region
      %4778 = dma.done [#allocation8], 128
    $region61: #{tpu_custom_call.1} parent=1 // pred_fallthru
      _
    %4779 = vsyncpa [#allocation7], 1
    %4780 = vsyncpa [#allocation10], 1
    %4781 = vsyncpa [#allocation8], 1

</llo_original>
